<compile_context>
chip_gen: v5e
topology: v5e:2x2
jax: 0.10.0
libtpu: 0.0.40
codegen_flags: <defaults>
</compile_context>

<pallas_src>
import jax
import jax.numpy as jnp
from jax import lax
from jax.experimental import pallas as pl
from jax.experimental.pallas import tpu as pltpu

EPS = 1e-5
NEG_SLOPE = 0.01
HIDDEN = 64
Y_LEN = 3
VMEM_LIMIT = 32 * 1024 * 1024   # safe on v5e/v6e (128 MiB) and v7x (64 MiB)


# ---------------------------------------------------------------------------
# helpers traced inside kernels
# ---------------------------------------------------------------------------
def _act(y, p):
    """conv bias -> LeakyReLU -> folded BatchNorm.  p: (3, C) = bias/scale/shift."""
    y = y + p[0:1, :]
    y = jnp.where(y >= 0.0, y, NEG_SLOPE * y)
    return y * p[1:2, :] + p[2:3, :]


def _tconv_valid(a, w_taps, p):
    """'valid' conv over time of a 2-D (T, Cin) slab with (k, Cin, Cout) taps."""
    k = w_taps.shape[0]
    to = a.shape[0] - k + 1
    acc = jnp.dot(a[0:to], w_taps[0], preferred_element_type=jnp.float32)
    for dt in range(1, k):
        acc = acc + jnp.dot(a[dt:dt + to], w_taps[dt],
                            preferred_element_type=jnp.float32)
    return _act(acc, p)


# ---------------------------------------------------------------------------
# Pallas kernels
# ---------------------------------------------------------------------------
def _conv1_stack_kernel(x_ref, w1a_ref, p1a_ref, w1b_ref, p1b_ref,
                        w1c_ref, p1c_ref, o_ref):
    bb = x_ref.shape[0]
    w1a = w1a_ref[...]
    p1a = p1a_ref[...]
    w1b = w1b_ref[...]
    p1b = p1b_ref[...]
    w1c = w1c_ref[...]
    p1c = p1c_ref[...]
    for r in range(bb):              # static unroll: independent rows -> ILP
        x = x_ref[r]                                           # (T, 2)
        # conv1a (1,2)/stride(1,2): K=2 degenerate matmul -> VPU broadcast FMA
        y = x[:, 0:1] * w1a[0:1, :] + x[:, 1:2] * w1a[1:2, :]
        y = _act(y, p1a)                                       # (T, 32)
        y = _tconv_valid(y, w1b, p1b)                          # (T-3, 32)
        y = _tconv_valid(y, w1c, p1c)                          # (T-6, 32)
        o_ref[r] = y


def _conv3_stack_kernel(x_ref, w3a_ref, p3a_ref, w3b_ref, p3b_ref,
                        w3c_ref, p3c_ref, o_ref):
    bb = x_ref.shape[0]
    w3a = w3a_ref[...]
    p3a = p3a_ref[...]
    w3b = w3b_ref[...]
    p3b = p3b_ref[...]
    w3c = w3c_ref[...]
    p3c = p3c_ref[...]
    for r in range(bb):
        # conv3a (1,10): collapses the 10 width columns -> (T1,320)@(320,32)
        y = _act(jnp.dot(x_ref[r], w3a, preferred_element_type=jnp.float32), p3a)
        y = _tconv_valid(y, w3b, p3b)                          # (T1-3, 32)
        y = _tconv_valid(y, w3c, p3c)                          # (T1-6, 32)
        o_ref[r] = y


def _inception_proj_kernel(h_ref, w12_ref, p12_ref, w1b_ref, p1b_ref,
                           w2b_ref, p2b_ref, w3_ref, p3_ref, wih_ref, b_ref,
                           o_ref, a1p_ref, a2p_ref, hp_ref):
    bb, t2, _ = h_ref.shape
    w12 = w12_ref[...]
    p12 = p12_ref[...]
    w1b = w1b_ref[...]
    p1b = p1b_ref[...]
    w2b = w2b_ref[...]
    p2b = p2b_ref[...]
    w3 = w3_ref[...]
    p3 = p3_ref[...]
    wih = wih_ref[...]
    blstm = b_ref[...]
    for r in range(bb):
        h = h_ref[r]                                           # (T2, 32)
        # inp1/inp2 1x1 branches fused into one 128-lane matmul
        a12 = _act(jnp.dot(h, w12, preferred_element_type=jnp.float32), p12)
        # zero-padded intermediates for the 'same' (3,1)/(5,1) convs (VMEM scratch)
        a1p_ref[r] = jnp.zeros((t2 + 2, 64), jnp.float32)
        a1p_ref[r, 1:t2 + 1, :] = a12[:, 0:64]
        a2p_ref[r] = jnp.zeros((t2 + 4, 64), jnp.float32)
        a2p_ref[r, 2:t2 + 2, :] = a12[:, 64:128]
        acc1 = jnp.dot(a1p_ref[r, 0:t2, :], w1b[0],
                       preferred_element_type=jnp.float32)
        for dt in range(1, 3):
            acc1 = acc1 + jnp.dot(a1p_ref[r, dt:dt + t2, :], w1b[dt],
                                  preferred_element_type=jnp.float32)
        x1 = _act(acc1, p1b)
        acc2 = jnp.dot(a2p_ref[r, 0:t2, :], w2b[0],
                       preferred_element_type=jnp.float32)
        for dt in range(1, 5):
            acc2 = acc2 + jnp.dot(a2p_ref[r, dt:dt + t2, :], w2b[dt],
                                  preferred_element_type=jnp.float32)
        x2 = _act(acc2, p2b)
        # inp3: MaxPool2d((3,1), stride 1, pad (1,0)) (implicit -inf pad) + 1x1
        hp_ref[r] = jnp.full((t2 + 2, 32), -jnp.inf, jnp.float32)
        hp_ref[r, 1:t2 + 1, :] = h
        pooled = jnp.maximum(jnp.maximum(hp_ref[r, 0:t2, :],
                                         hp_ref[r, 1:t2 + 1, :]),
                             hp_ref[r, 2:t2 + 2, :])
        x3 = _act(jnp.dot(pooled, w3, preferred_element_type=jnp.float32), p3)
        # hoisted LSTM input projection: concat(x1,x2,x3) @ W_ih + (b_ih+b_hh)
        gx = (jnp.dot(x1, wih[0:64], preferred_element_type=jnp.float32)
              + jnp.dot(x2, wih[64:128], preferred_element_type=jnp.float32)
              + jnp.dot(x3, wih[128:192], preferred_element_type=jnp.float32)
              + blstm)
        o_ref[r] = gx                                          # (T2, 256) lane-dense


def _lstm_fc_kernel(gx_ref, whh_ref, wfc_ref, bfc_ref, o_ref):
    # gx_ref: (T, B, 4H) precomputed x-projection + bias; gate cols = [i, f, o, g]
    t, b, _ = gx_ref.shape
    hd = HIDDEN
    whh = whh_ref[...]

    def step(i, carry):
        h, c = carry
        gates = gx_ref[i] + jnp.dot(h, whh, preferred_element_type=jnp.float32)
        sig = jax.nn.sigmoid(gates[:, 0:3 * hd])   # one wide sigmoid for i/f/o
        i_g = sig[:, 0:hd]
        f_g = sig[:, hd:2 * hd]
        o_g = sig[:, 2 * hd:3 * hd]
        g_g = jnp.tanh(gates[:, 3 * hd:4 * hd])
        c_new = f_g * c + i_g * g_g
        h_new = o_g * jnp.tanh(c_new)
        return (h_new, c_new)

    h0 = jnp.zeros((b, hd), jnp.float32)           # torch h0/c0 = zeros
    c0 = jnp.zeros((b, hd), jnp.float32)
    h_last, _ = lax.fori_loop(0, t, step, (h0, c0), unroll=True)
    o_ref[...] = (jnp.dot(h_last, wfc_ref[...], preferred_element_type=jnp.float32)
                  + bfc_ref[...])


# ---------------------------------------------------------------------------
# BlockSpec helpers and pallas_call wrappers
# ---------------------------------------------------------------------------
def _row_spec(bb, *dims):
    nd = len(dims)
    return pl.BlockSpec((bb,) + tuple(dims), lambda i, _nd=nd: (i,) + (0,) * _nd)


def _const_spec(a):
    nd = a.ndim
    return pl.BlockSpec(a.shape, lambda i, _nd=nd: (0,) * _nd)


def _cparams(parallel):
    sem = ("parallel",) if parallel else ("arbitrary",)
    return pltpu.CompilerParams(dimension_semantics=sem,
                                vmem_limit_bytes=VMEM_LIMIT)


def conv1_stack(x_pairs, prm, *, bb=8):
    nb, t, _ = x_pairs.shape
    bb = min(bb, nb)
    nbp = pl.cdiv(nb, bb) * bb
    if nbp != nb:
        x_pairs = jnp.pad(x_pairs, ((0, nbp - nb), (0, 0), (0, 0)))
    to = t - 6
    out = pl.pallas_call(
        _conv1_stack_kernel,
        grid=(nbp // bb,),
        in_specs=[_row_spec(bb, t, 2)] + [_const_spec(a) for a in prm],
        out_specs=_row_spec(bb, to, 32),
        out_shape=jax.ShapeDtypeStruct((nbp, to, 32), jnp.float32),
        compiler_params=_cparams(True),
    )(x_pairs, *prm)
    return out[:nb]


def conv3_stack(h, prm, *, bb=8):
    b, t1, c = h.shape
    bb = min(bb, b)
    bp = pl.cdiv(b, bb) * bb
    if bp != b:
        h = jnp.pad(h, ((0, bp - b), (0, 0), (0, 0)))
    to = t1 - 6
    out = pl.pallas_call(
        _conv3_stack_kernel,
        grid=(bp // bb,),
        in_specs=[_row_spec(bb, t1, c)] + [_const_spec(a) for a in prm],
        out_specs=_row_spec(bb, to, 32),
        out_shape=jax.ShapeDtypeStruct((bp, to, 32), jnp.float32),
        compiler_params=_cparams(True),
    )(h, *prm)
    return out[:b]


def inception_proj(h, prm, *, bb=8):
    b, t2, c = h.shape
    bb = min(bb, b)
    bp = pl.cdiv(b, bb) * bb
    if bp != b:
        h = jnp.pad(h, ((0, bp - b), (0, 0), (0, 0)))
    out = pl.pallas_call(
        _inception_proj_kernel,
        grid=(bp // bb,),
        in_specs=[_row_spec(bb, t2, c)] + [_const_spec(a) for a in prm],
        out_specs=_row_spec(bb, t2, 4 * HIDDEN),
        out_shape=jax.ShapeDtypeStruct((bp, t2, 4 * HIDDEN), jnp.float32),
        scratch_shapes=[pltpu.VMEM((bb, t2 + 2, 64), jnp.float32),
                        pltpu.VMEM((bb, t2 + 4, 64), jnp.float32),
                        pltpu.VMEM((bb, t2 + 2, 32), jnp.float32)],
        compiler_params=_cparams(True),
    )(h, *prm)
    return out[:b]


def lstm_fc(gx, prm):
    whh, wfc, bfc = prm
    t, b, _ = gx.shape
    y_len = wfc.shape[1]
    return pl.pallas_call(
        _lstm_fc_kernel,
        grid=(1,),
        in_specs=[_const_spec(gx), _const_spec(whh),
                  _const_spec(wfc), _const_spec(bfc)],
        out_specs=pl.BlockSpec((b, y_len), lambda i: (0, 0)),
        out_shape=jax.ShapeDtypeStruct((b, y_len), jnp.float32),
        compiler_params=_cparams(False),
    )(gx, whh, wfc, bfc)


# ---------------------------------------------------------------------------
# Full forward pass (glue is reshape/transpose only; compute is in kernels)
# ---------------------------------------------------------------------------
def deeplob_depth_forward(x, params):
    # x: (B, 1, T, W) NCHW; W must be 20 so conv3's (1,10) collapses width to 1.
    b, _, t, w = x.shape
    assert w == 20, "m_deeplob_depth requires input width 20"
    x = x.astype(jnp.float32)
    wp = w // 2

    # conv1: (1,2)/stride(1,2) pairs adjacent width columns; the (4,1) convs act
    # over time independently per width column -> rows = B*W/2.
    xw = x.reshape(b, t, wp, 2)
    xw = jnp.transpose(xw, (0, 2, 1, 3)).reshape(b * wp, t, 2)
    h = conv1_stack(xw, params['conv1'])                 # (B*wp, T-6, 32)

    # conv3a consumes all 10 width columns: flatten features in (cin, w) order
    # to match the PyTorch weight flattening (cin, kh, kw).
    t1 = t - 6
    h = h.reshape(b, wp, t1, 32)
    h = jnp.transpose(h, (0, 2, 3, 1)).reshape(b, t1, 32 * wp)   # (B, T1, 320)
    h = conv3_stack(h, params['conv3'])                  # (B, T2, 32), T2 = T-12

    # inception + hoisted LSTM input projection -> gate pre-activations
    gx = inception_proj(h, params['incep'])              # (B, T2, 256)

    # drop_layer1 / drop_layer2: identity (inference)
    gx = jnp.transpose(gx, (1, 0, 2))                    # (T2, B, 256)
    return lstm_fc(gx, params['lstm'])                   # (B, y_len)


# ---------------------------------------------------------------------------
# Deterministic synthetic parameters (PyTorch layouts, pre-packed for kernels)
# ---------------------------------------------------------------------------
def make_params(key, y_len=Y_LEN):
    keys = iter(jax.random.split(key, 128))

    def nrm(shape, s=0.1):
        return jax.random.normal(next(keys), shape, jnp.float32) * s

    def bn_fold(bias, gamma, beta, mean, var):
        scale = gamma / jnp.sqrt(var + EPS)
        shift = beta - mean * scale
        return jnp.stack([bias, scale, shift])           # (3, C)

    def conv_raw(cin, cout, kh, kw):
        w = nrm((cout, cin, kh, kw))                     # PyTorch (Cout,Cin,kH,kW)
        bias = nrm((cout,))
        gamma = 1.0 + nrm((cout,))
        beta = nrm((cout,))
        mean = nrm((cout,))
        var = 0.5 + jnp.abs(nrm((cout,)))
        return w, bn_fold(bias, gamma, beta, mean, var)

    def taps(w):                                         # (Cout,Cin,k,1) -> (k,Cin,Cout)
        return jnp.transpose(w[:, :, :, 0], (2, 1, 0))

    def mat1x1(w):                                       # (Cout,Cin,1,1) -> (Cin,Cout)
        return jnp.transpose(w.reshape(w.shape[0], w.shape[1]))

    p = {}
    w, p1a = conv_raw(1, 32, 1, 2)
    w1a = jnp.transpose(w.reshape(32, 2))                # (2, 32)
    w, p1b = conv_raw(32, 32, 4, 1)
    w1b = taps(w)
    w, p1c = conv_raw(32, 32, 4, 1)
    w1c = taps(w)
    p['conv1'] = (w1a, p1a, w1b, p1b, w1c, p1c)

    w, p3a = conv_raw(32, 32, 1, 10)
    w3a = jnp.transpose(w.reshape(32, 320))              # (320, 32), order (cin, kw)
    w, p3b = conv_raw(32, 32, 4, 1)
    w3b = taps(w)
    w, p3c = conv_raw(32, 32, 4, 1)
    w3c = taps(w)
    p['conv3'] = (w3a, p3a, w3b, p3b, w3c, p3c)

    wa, pa = conv_raw(32, 64, 1, 1)
    wb, pb = conv_raw(32, 64, 1, 1)
    w12 = jnp.concatenate([mat1x1(wa), mat1x1(wb)], axis=1)     # (32, 128)
    p12 = jnp.concatenate([pa, pb], axis=1)                     # (3, 128)
    w, pi1b = conv_raw(64, 64, 3, 1)
    wi1b = taps(w)
    w, pi2b = conv_raw(64, 64, 5, 1)
    wi2b = taps(w)
    w, pi3 = conv_raw(32, 64, 1, 1)
    wi3 = mat1x1(w)

    # LSTM (PyTorch layouts), gates re-packed i,f,g,o -> i,f,o,g
    h = HIDDEN
    wih = nrm((4 * h, 3 * h))                            # (4H, 192)
    whh = nrm((4 * h, h))
    bih = nrm((4 * h,))
    bhh = nrm((4 * h,))
    perm = jnp.concatenate([jnp.arange(0, 2 * h),
                            jnp.arange(3 * h, 4 * h),
                            jnp.arange(2 * h, 3 * h)])
    wih_r = jnp.transpose(wih[perm])                     # (192, 4H) cols [i,f,o,g]
    whh_r = jnp.transpose(whh[perm])                     # (H, 4H)
    b_r = (bih + bhh)[perm].reshape(1, 4 * h)

    p['incep'] = (w12, p12, wi1b, pi1b, wi2b, pi2b, wi3, pi3, wih_r, b_r)

    wfc = nrm((y_len, h))
    bfc = nrm((y_len,))
    p['lstm'] = (whh_r, jnp.transpose(wfc), bfc.reshape(1, y_len))
    return p


if __name__ == "__main__":
    key = jax.random.PRNGKey(0)
    kx, kp = jax.random.split(key)
    B, T, W = 2, 24, 20     # W=20 is required by the architecture (width -> 1)
    x = jax.random.normal(kx, (B, 1, T, W), jnp.float32)
    params = make_params(kp)

    fwd = jax.jit(deeplob_depth_forward)
    out = fwd(x, params)
    jax.block_until_ready(out)
    assert out.shape == (B, Y_LEN) and out.dtype == jnp.float32
    assert bool(jnp.all(jnp.isfinite(out)))
    print("KERNEL_OK")
</pallas_src>

<mosaic_0001>
module attributes {stable_mosaic.version = 11 : i64} {
  func.func @_conv1_stack_kernel(%arg0: i32, %arg1: memref<8x24x2xf32, #tpu.memory_space<vmem>>, %arg2: memref<2x32xf32, #tpu.memory_space<vmem>>, %arg3: memref<3x32xf32, #tpu.memory_space<vmem>>, %arg4: memref<4x32x32xf32, #tpu.memory_space<vmem>>, %arg5: memref<3x32xf32, #tpu.memory_space<vmem>>, %arg6: memref<4x32x32xf32, #tpu.memory_space<vmem>>, %arg7: memref<3x32xf32, #tpu.memory_space<vmem>>, %arg8: memref<8x18x32xf32, #tpu.memory_space<vmem>>) attributes {dimension_semantics = [#tpu.dimension_semantics<parallel>], iteration_bounds = array<i64: 3>, scalar_prefetch = 0 : i64, scratch_operands = 0 : i64, tpu.core_type = #tpu.core_type<tc>, window_params = [{transform_indices = @transform_0, window_bounds = array<i64: 8, 24, 2>}, {pipeline_mode = #tpu.pipeline_mode<synchronous>, transform_indices = @transform_1, window_bounds = array<i64: 2, 32>}, {pipeline_mode = #tpu.pipeline_mode<synchronous>, transform_indices = @transform_2, window_bounds = array<i64: 3, 32>}, {pipeline_mode = #tpu.pipeline_mode<synchronous>, transform_indices = @transform_3, window_bounds = array<i64: 4, 32, 32>}, {pipeline_mode = #tpu.pipeline_mode<synchronous>, transform_indices = @transform_4, window_bounds = array<i64: 3, 32>}, {pipeline_mode = #tpu.pipeline_mode<synchronous>, transform_indices = @transform_5, window_bounds = array<i64: 4, 32, 32>}, {pipeline_mode = #tpu.pipeline_mode<synchronous>, transform_indices = @transform_6, window_bounds = array<i64: 3, 32>}, {transform_indices = @transform_7, window_bounds = array<i64: 8, 18, 32>}]} {
    %c0 = arith.constant 0 : index
    %c0_0 = arith.constant 0 : index
    %0 = vector.load %arg2[%c0, %c0_0] : memref<2x32xf32, #tpu.memory_space<vmem>>, vector<2x32xf32>
    %c0_1 = arith.constant 0 : index
    %c0_2 = arith.constant 0 : index
    %1 = vector.load %arg3[%c0_1, %c0_2] : memref<3x32xf32, #tpu.memory_space<vmem>>, vector<3x32xf32>
    %c0_3 = arith.constant 0 : index
    %c0_4 = arith.constant 0 : index
    %c0_5 = arith.constant 0 : index
    %2 = vector.load %arg4[%c0_3, %c0_4, %c0_5] : memref<4x32x32xf32, #tpu.memory_space<vmem>>, vector<4x32x32xf32>
    %c0_6 = arith.constant 0 : index
    %c0_7 = arith.constant 0 : index
    %3 = vector.load %arg5[%c0_6, %c0_7] : memref<3x32xf32, #tpu.memory_space<vmem>>, vector<3x32xf32>
    %c0_8 = arith.constant 0 : index
    %c0_9 = arith.constant 0 : index
    %c0_10 = arith.constant 0 : index
    %4 = vector.load %arg6[%c0_8, %c0_9, %c0_10] : memref<4x32x32xf32, #tpu.memory_space<vmem>>, vector<4x32x32xf32>
    %c0_11 = arith.constant 0 : index
    %c0_12 = arith.constant 0 : index
    %5 = vector.load %arg7[%c0_11, %c0_12] : memref<3x32xf32, #tpu.memory_space<vmem>>, vector<3x32xf32>
    %c0_13 = arith.constant 0 : index
    %c0_14 = arith.constant 0 : index
    %c0_15 = arith.constant 0 : index
    %6 = vector.load %arg1[%c0_13, %c0_14, %c0_15] : memref<8x24x2xf32, #tpu.memory_space<vmem>>, vector<1x24x2xf32>
    %7 = vector.shape_cast %6 : vector<1x24x2xf32> to vector<24x2xf32>
    %8 = vector.extract_strided_slice %7 {offsets = [0, 0], sizes = [24, 1], strides = [1, 1]} : vector<24x2xf32> to vector<24x1xf32>
    %9 = vector.extract_strided_slice %0 {offsets = [0, 0], sizes = [1, 32], strides = [1, 1]} : vector<2x32xf32> to vector<1x32xf32>
    %10 = vector.broadcast %8 : vector<24x1xf32> to vector<24x32xf32>
    %11 = vector.broadcast %9 : vector<1x32xf32> to vector<24x32xf32>
    %12 = arith.mulf %10, %11 : vector<24x32xf32>
    %13 = vector.extract_strided_slice %7 {offsets = [0, 1], sizes = [24, 1], strides = [1, 1]} : vector<24x2xf32> to vector<24x1xf32>
    %14 = vector.extract_strided_slice %0 {offsets = [1, 0], sizes = [1, 32], strides = [1, 1]} : vector<2x32xf32> to vector<1x32xf32>
    %15 = vector.broadcast %13 : vector<24x1xf32> to vector<24x32xf32>
    %16 = vector.broadcast %14 : vector<1x32xf32> to vector<24x32xf32>
    %17 = arith.mulf %15, %16 : vector<24x32xf32>
    %18 = arith.addf %12, %17 : vector<24x32xf32>
    %19 = vector.extract_strided_slice %1 {offsets = [0, 0], sizes = [1, 32], strides = [1, 1]} : vector<3x32xf32> to vector<1x32xf32>
    %20 = vector.broadcast %19 : vector<1x32xf32> to vector<24x32xf32>
    %21 = arith.addf %18, %20 : vector<24x32xf32>
    %cst = arith.constant 0.000000e+00 : f32
    %22 = vector.broadcast %cst : f32 to vector<24x32xf32>
    %23 = arith.cmpf oge, %21, %22 : vector<24x32xf32>
    %cst_16 = arith.constant 0.00999999977 : f32
    %24 = vector.broadcast %cst_16 : f32 to vector<24x32xf32>
    %25 = arith.mulf %24, %21 : vector<24x32xf32>
    %26 = arith.select %23, %21, %25 : vector<24x32xi1>, vector<24x32xf32>
    %27 = vector.extract_strided_slice %1 {offsets = [1, 0], sizes = [1, 32], strides = [1, 1]} : vector<3x32xf32> to vector<1x32xf32>
    %28 = vector.broadcast %27 : vector<1x32xf32> to vector<24x32xf32>
    %29 = arith.mulf %26, %28 : vector<24x32xf32>
    %30 = vector.extract_strided_slice %1 {offsets = [2, 0], sizes = [1, 32], strides = [1, 1]} : vector<3x32xf32> to vector<1x32xf32>
    %31 = vector.broadcast %30 : vector<1x32xf32> to vector<24x32xf32>
    %32 = arith.addf %29, %31 : vector<24x32xf32>
    %33 = vector.extract_strided_slice %32 {offsets = [0, 0], sizes = [21, 32], strides = [1, 1]} : vector<24x32xf32> to vector<21x32xf32>
    %34 = vector.extract_strided_slice %2 {offsets = [0, 0, 0], sizes = [1, 32, 32], strides = [1, 1, 1]} : vector<4x32x32xf32> to vector<1x32x32xf32>
    %35 = vector.shape_cast %34 : vector<1x32x32xf32> to vector<32x32xf32>
    %cst_17 = arith.constant dense<0.000000e+00> : vector<21x32xf32>
    %36 = tpu.matmul %33, %35, %cst_17 {dimension_numbers = #tpu.dot_dimension_numbers<[1], [0], [0], [1], [0, 0, 1, 1], [], []>} : vector<21x32xf32>, vector<32x32xf32>, vector<21x32xf32> -> vector<21x32xf32>
    %37 = vector.extract_strided_slice %32 {offsets = [1, 0], sizes = [21, 32], strides = [1, 1]} : vector<24x32xf32> to vector<21x32xf32>
    %38 = vector.extract_strided_slice %2 {offsets = [1, 0, 0], sizes = [1, 32, 32], strides = [1, 1, 1]} : vector<4x32x32xf32> to vector<1x32x32xf32>
    %39 = vector.shape_cast %38 : vector<1x32x32xf32> to vector<32x32xf32>
    %cst_18 = arith.constant dense<0.000000e+00> : vector<21x32xf32>
    %40 = tpu.matmul %37, %39, %cst_18 {dimension_numbers = #tpu.dot_dimension_numbers<[1], [0], [0], [1], [0, 0, 1, 1], [], []>} : vector<21x32xf32>, vector<32x32xf32>, vector<21x32xf32> -> vector<21x32xf32>
    %41 = arith.addf %36, %40 : vector<21x32xf32>
    %42 = vector.extract_strided_slice %32 {offsets = [2, 0], sizes = [21, 32], strides = [1, 1]} : vector<24x32xf32> to vector<21x32xf32>
    %43 = vector.extract_strided_slice %2 {offsets = [2, 0, 0], sizes = [1, 32, 32], strides = [1, 1, 1]} : vector<4x32x32xf32> to vector<1x32x32xf32>
    %44 = vector.shape_cast %43 : vector<1x32x32xf32> to vector<32x32xf32>
    %cst_19 = arith.constant dense<0.000000e+00> : vector<21x32xf32>
    %45 = tpu.matmul %42, %44, %cst_19 {dimension_numbers = #tpu.dot_dimension_numbers<[1], [0], [0], [1], [0, 0, 1, 1], [], []>} : vector<21x32xf32>, vector<32x32xf32>, vector<21x32xf32> -> vector<21x32xf32>
    %46 = arith.addf %41, %45 : vector<21x32xf32>
    %47 = vector.extract_strided_slice %32 {offsets = [3, 0], sizes = [21, 32], strides = [1, 1]} : vector<24x32xf32> to vector<21x32xf32>
    %48 = vector.extract_strided_slice %2 {offsets = [3, 0, 0], sizes = [1, 32, 32], strides = [1, 1, 1]} : vector<4x32x32xf32> to vector<1x32x32xf32>
    %49 = vector.shape_cast %48 : vector<1x32x32xf32> to vector<32x32xf32>
    %cst_20 = arith.constant dense<0.000000e+00> : vector<21x32xf32>
    %50 = tpu.matmul %47, %49, %cst_20 {dimension_numbers = #tpu.dot_dimension_numbers<[1], [0], [0], [1], [0, 0, 1, 1], [], []>} : vector<21x32xf32>, vector<32x32xf32>, vector<21x32xf32> -> vector<21x32xf32>
    %51 = arith.addf %46, %50 : vector<21x32xf32>
    %52 = vector.extract_strided_slice %3 {offsets = [0, 0], sizes = [1, 32], strides = [1, 1]} : vector<3x32xf32> to vector<1x32xf32>
    %53 = vector.broadcast %52 : vector<1x32xf32> to vector<21x32xf32>
    %54 = arith.addf %51, %53 : vector<21x32xf32>
    %cst_21 = arith.constant 0.000000e+00 : f32
    %55 = vector.broadcast %cst_21 : f32 to vector<21x32xf32>
    %56 = arith.cmpf oge, %54, %55 : vector<21x32xf32>
    %cst_22 = arith.constant 0.00999999977 : f32
    %57 = vector.broadcast %cst_22 : f32 to vector<21x32xf32>
    %58 = arith.mulf %57, %54 : vector<21x32xf32>
    %59 = arith.select %56, %54, %58 : vector<21x32xi1>, vector<21x32xf32>
    %60 = vector.extract_strided_slice %3 {offsets = [1, 0], sizes = [1, 32], strides = [1, 1]} : vector<3x32xf32> to vector<1x32xf32>
    %61 = vector.broadcast %60 : vector<1x32xf32> to vector<21x32xf32>
    %62 = arith.mulf %59, %61 : vector<21x32xf32>
    %63 = vector.extract_strided_slice %3 {offsets = [2, 0], sizes = [1, 32], strides = [1, 1]} : vector<3x32xf32> to vector<1x32xf32>
    %64 = vector.broadcast %63 : vector<1x32xf32> to vector<21x32xf32>
    %65 = arith.addf %62, %64 : vector<21x32xf32>
    %66 = vector.extract_strided_slice %65 {offsets = [0, 0], sizes = [18, 32], strides = [1, 1]} : vector<21x32xf32> to vector<18x32xf32>
    %67 = vector.extract_strided_slice %4 {offsets = [0, 0, 0], sizes = [1, 32, 32], strides = [1, 1, 1]} : vector<4x32x32xf32> to vector<1x32x32xf32>
    %68 = vector.shape_cast %67 : vector<1x32x32xf32> to vector<32x32xf32>
    %cst_23 = arith.constant dense<0.000000e+00> : vector<18x32xf32>
    %69 = tpu.matmul %66, %68, %cst_23 {dimension_numbers = #tpu.dot_dimension_numbers<[1], [0], [0], [1], [0, 0, 1, 1], [], []>} : vector<18x32xf32>, vector<32x32xf32>, vector<18x32xf32> -> vector<18x32xf32>
    %70 = vector.extract_strided_slice %65 {offsets = [1, 0], sizes = [18, 32], strides = [1, 1]} : vector<21x32xf32> to vector<18x32xf32>
    %71 = vector.extract_strided_slice %4 {offsets = [1, 0, 0], sizes = [1, 32, 32], strides = [1, 1, 1]} : vector<4x32x32xf32> to vector<1x32x32xf32>
    %72 = vector.shape_cast %71 : vector<1x32x32xf32> to vector<32x32xf32>
    %cst_24 = arith.constant dense<0.000000e+00> : vector<18x32xf32>
    %73 = tpu.matmul %70, %72, %cst_24 {dimension_numbers = #tpu.dot_dimension_numbers<[1], [0], [0], [1], [0, 0, 1, 1], [], []>} : vector<18x32xf32>, vector<32x32xf32>, vector<18x32xf32> -> vector<18x32xf32>
    %74 = arith.addf %69, %73 : vector<18x32xf32>
    %75 = vector.extract_strided_slice %65 {offsets = [2, 0], sizes = [18, 32], strides = [1, 1]} : vector<21x32xf32> to vector<18x32xf32>
    %76 = vector.extract_strided_slice %4 {offsets = [2, 0, 0], sizes = [1, 32, 32], strides = [1, 1, 1]} : vector<4x32x32xf32> to vector<1x32x32xf32>
    %77 = vector.shape_cast %76 : vector<1x32x32xf32> to vector<32x32xf32>
    %cst_25 = arith.constant dense<0.000000e+00> : vector<18x32xf32>
    %78 = tpu.matmul %75, %77, %cst_25 {dimension_numbers = #tpu.dot_dimension_numbers<[1], [0], [0], [1], [0, 0, 1, 1], [], []>} : vector<18x32xf32>, vector<32x32xf32>, vector<18x32xf32> -> vector<18x32xf32>
    %79 = arith.addf %74, %78 : vector<18x32xf32>
    %80 = vector.extract_strided_slice %65 {offsets = [3, 0], sizes = [18, 32], strides = [1, 1]} : vector<21x32xf32> to vector<18x32xf32>
    %81 = vector.extract_strided_slice %4 {offsets = [3, 0, 0], sizes = [1, 32, 32], strides = [1, 1, 1]} : vector<4x32x32xf32> to vector<1x32x32xf32>
    %82 = vector.shape_cast %81 : vector<1x32x32xf32> to vector<32x32xf32>
    %cst_26 = arith.constant dense<0.000000e+00> : vector<18x32xf32>
    %83 = tpu.matmul %80, %82, %cst_26 {dimension_numbers = #tpu.dot_dimension_numbers<[1], [0], [0], [1], [0, 0, 1, 1], [], []>} : vector<18x32xf32>, vector<32x32xf32>, vector<18x32xf32> -> vector<18x32xf32>
    %84 = arith.addf %79, %83 : vector<18x32xf32>
    %85 = vector.extract_strided_slice %5 {offsets = [0, 0], sizes = [1, 32], strides = [1, 1]} : vector<3x32xf32> to vector<1x32xf32>
    %86 = vector.broadcast %85 : vector<1x32xf32> to vector<18x32xf32>
    %87 = arith.addf %84, %86 : vector<18x32xf32>
    %cst_27 = arith.constant 0.000000e+00 : f32
    %88 = vector.broadcast %cst_27 : f32 to vector<18x32xf32>
    %89 = arith.cmpf oge, %87, %88 : vector<18x32xf32>
    %cst_28 = arith.constant 0.00999999977 : f32
    %90 = vector.broadcast %cst_28 : f32 to vector<18x32xf32>
    %91 = arith.mulf %90, %87 : vector<18x32xf32>
    %92 = arith.select %89, %87, %91 : vector<18x32xi1>, vector<18x32xf32>
    %93 = vector.extract_strided_slice %5 {offsets = [1, 0], sizes = [1, 32], strides = [1, 1]} : vector<3x32xf32> to vector<1x32xf32>
    %94 = vector.broadcast %93 : vector<1x32xf32> to vector<18x32xf32>
    %95 = arith.mulf %92, %94 : vector<18x32xf32>
    %96 = vector.extract_strided_slice %5 {offsets = [2, 0], sizes = [1, 32], strides = [1, 1]} : vector<3x32xf32> to vector<1x32xf32>
    %97 = vector.broadcast %96 : vector<1x32xf32> to vector<18x32xf32>
    %98 = arith.addf %95, %97 : vector<18x32xf32>
    %c0_29 = arith.constant 0 : index
    %c0_30 = arith.constant 0 : index
    %c0_31 = arith.constant 0 : index
    %99 = vector.load %arg8[%c0_29, %c0_30, %c0_31] : memref<8x18x32xf32, #tpu.memory_space<vmem>>, vector<1x18x32xf32>
    %100 = vector.shape_cast %99 : vector<1x18x32xf32> to vector<18x32xf32>
    %101 = vector.shape_cast %98 : vector<18x32xf32> to vector<1x18x32xf32>
    tpu.vector_store %arg8[%c0_29, %c0_30, %c0_31], %101 {strides = array<i32>} : memref<8x18x32xf32, #tpu.memory_space<vmem>>, vector<1x18x32xf32>,
    %c1 = arith.constant 1 : index
    %c0_32 = arith.constant 0 : index
    %c0_33 = arith.constant 0 : index
    %102 = vector.load %arg1[%c1, %c0_32, %c0_33] : memref<8x24x2xf32, #tpu.memory_space<vmem>>, vector<1x24x2xf32>
    %103 = vector.shape_cast %102 : vector<1x24x2xf32> to vector<24x2xf32>
    %104 = vector.extract_strided_slice %103 {offsets = [0, 0], sizes = [24, 1], strides = [1, 1]} : vector<24x2xf32> to vector<24x1xf32>
    %105 = vector.extract_strided_slice %0 {offsets = [0, 0], sizes = [1, 32], strides = [1, 1]} : vector<2x32xf32> to vector<1x32xf32>
    %106 = vector.broadcast %104 : vector<24x1xf32> to vector<24x32xf32>
    %107 = vector.broadcast %105 : vector<1x32xf32> to vector<24x32xf32>
    %108 = arith.mulf %106, %107 : vector<24x32xf32>
    %109 = vector.extract_strided_slice %103 {offsets = [0, 1], sizes = [24, 1], strides = [1, 1]} : vector<24x2xf32> to vector<24x1xf32>
    %110 = vector.extract_strided_slice %0 {offsets = [1, 0], sizes = [1, 32], strides = [1, 1]} : vector<2x32xf32> to vector<1x32xf32>
    %111 = vector.broadcast %109 : vector<24x1xf32> to vector<24x32xf32>
    %112 = vector.broadcast %110 : vector<1x32xf32> to vector<24x32xf32>
    %113 = arith.mulf %111, %112 : vector<24x32xf32>
    %114 = arith.addf %108, %113 : vector<24x32xf32>
    %115 = vector.extract_strided_slice %1 {offsets = [0, 0], sizes = [1, 32], strides = [1, 1]} : vector<3x32xf32> to vector<1x32xf32>
    %116 = vector.broadcast %115 : vector<1x32xf32> to vector<24x32xf32>
    %117 = arith.addf %114, %116 : vector<24x32xf32>
    %cst_34 = arith.constant 0.000000e+00 : f32
    %118 = vector.broadcast %cst_34 : f32 to vector<24x32xf32>
    %119 = arith.cmpf oge, %117, %118 : vector<24x32xf32>
    %cst_35 = arith.constant 0.00999999977 : f32
    %120 = vector.broadcast %cst_35 : f32 to vector<24x32xf32>
    %121 = arith.mulf %120, %117 : vector<24x32xf32>
    %122 = arith.select %119, %117, %121 : vector<24x32xi1>, vector<24x32xf32>
    %123 = vector.extract_strided_slice %1 {offsets = [1, 0], sizes = [1, 32], strides = [1, 1]} : vector<3x32xf32> to vector<1x32xf32>
    %124 = vector.broadcast %123 : vector<1x32xf32> to vector<24x32xf32>
    %125 = arith.mulf %122, %124 : vector<24x32xf32>
    %126 = vector.extract_strided_slice %1 {offsets = [2, 0], sizes = [1, 32], strides = [1, 1]} : vector<3x32xf32> to vector<1x32xf32>
    %127 = vector.broadcast %126 : vector<1x32xf32> to vector<24x32xf32>
    %128 = arith.addf %125, %127 : vector<24x32xf32>
    %129 = vector.extract_strided_slice %128 {offsets = [0, 0], sizes = [21, 32], strides = [1, 1]} : vector<24x32xf32> to vector<21x32xf32>
    %130 = vector.extract_strided_slice %2 {offsets = [0, 0, 0], sizes = [1, 32, 32], strides = [1, 1, 1]} : vector<4x32x32xf32> to vector<1x32x32xf32>
    %131 = vector.shape_cast %130 : vector<1x32x32xf32> to vector<32x32xf32>
    %cst_36 = arith.constant dense<0.000000e+00> : vector<21x32xf32>
    %132 = tpu.matmul %129, %131, %cst_36 {dimension_numbers = #tpu.dot_dimension_numbers<[1], [0], [0], [1], [0, 0, 1, 1], [], []>} : vector<21x32xf32>, vector<32x32xf32>, vector<21x32xf32> -> vector<21x32xf32>
    %133 = vector.extract_strided_slice %128 {offsets = [1, 0], sizes = [21, 32], strides = [1, 1]} : vector<24x32xf32> to vector<21x32xf32>
    %134 = vector.extract_strided_slice %2 {offsets = [1, 0, 0], sizes = [1, 32, 32], strides = [1, 1, 1]} : vector<4x32x32xf32> to vector<1x32x32xf32>
    %135 = vector.shape_cast %134 : vector<1x32x32xf32> to vector<32x32xf32>
    %cst_37 = arith.constant dense<0.000000e+00> : vector<21x32xf32>
    %136 = tpu.matmul %133, %135, %cst_37 {dimension_numbers = #tpu.dot_dimension_numbers<[1], [0], [0], [1], [0, 0, 1, 1], [], []>} : vector<21x32xf32>, vector<32x32xf32>, vector<21x32xf32> -> vector<21x32xf32>
    %137 = arith.addf %132, %136 : vector<21x32xf32>
    %138 = vector.extract_strided_slice %128 {offsets = [2, 0], sizes = [21, 32], strides = [1, 1]} : vector<24x32xf32> to vector<21x32xf32>
    %139 = vector.extract_strided_slice %2 {offsets = [2, 0, 0], sizes = [1, 32, 32], strides = [1, 1, 1]} : vector<4x32x32xf32> to vector<1x32x32xf32>
    %140 = vector.shape_cast %139 : vector<1x32x32xf32> to vector<32x32xf32>
    %cst_38 = arith.constant dense<0.000000e+00> : vector<21x32xf32>
    %141 = tpu.matmul %138, %140, %cst_38 {dimension_numbers = #tpu.dot_dimension_numbers<[1], [0], [0], [1], [0, 0, 1, 1], [], []>} : vector<21x32xf32>, vector<32x32xf32>, vector<21x32xf32> -> vector<21x32xf32>
    %142 = arith.addf %137, %141 : vector<21x32xf32>
    %143 = vector.extract_strided_slice %128 {offsets = [3, 0], sizes = [21, 32], strides = [1, 1]} : vector<24x32xf32> to vector<21x32xf32>
    %144 = vector.extract_strided_slice %2 {offsets = [3, 0, 0], sizes = [1, 32, 32], strides = [1, 1, 1]} : vector<4x32x32xf32> to vector<1x32x32xf32>
    %145 = vector.shape_cast %144 : vector<1x32x32xf32> to vector<32x32xf32>
    %cst_39 = arith.constant dense<0.000000e+00> : vector<21x32xf32>
    %146 = tpu.matmul %143, %145, %cst_39 {dimension_numbers = #tpu.dot_dimension_numbers<[1], [0], [0], [1], [0, 0, 1, 1], [], []>} : vector<21x32xf32>, vector<32x32xf32>, vector<21x32xf32> -> vector<21x32xf32>
    %147 = arith.addf %142, %146 : vector<21x32xf32>
    %148 = vector.extract_strided_slice %3 {offsets = [0, 0], sizes = [1, 32], strides = [1, 1]} : vector<3x32xf32> to vector<1x32xf32>
    %149 = vector.broadcast %148 : vector<1x32xf32> to vector<21x32xf32>
    %150 = arith.addf %147, %149 : vector<21x32xf32>
    %cst_40 = arith.constant 0.000000e+00 : f32
    %151 = vector.broadcast %cst_40 : f32 to vector<21x32xf32>
    %152 = arith.cmpf oge, %150, %151 : vector<21x32xf32>
    %cst_41 = arith.constant 0.00999999977 : f32
    %153 = vector.broadcast %cst_41 : f32 to vector<21x32xf32>
    %154 = arith.mulf %153, %150 : vector<21x32xf32>
    %155 = arith.select %152, %150, %154 : vector<21x32xi1>, vector<21x32xf32>
    %156 = vector.extract_strided_slice %3 {offsets = [1, 0], sizes = [1, 32], strides = [1, 1]} : vector<3x32xf32> to vector<1x32xf32>
    %157 = vector.broadcast %156 : vector<1x32xf32> to vector<21x32xf32>
    %158 = arith.mulf %155, %157 : vector<21x32xf32>
    %159 = vector.extract_strided_slice %3 {offsets = [2, 0], sizes = [1, 32], strides = [1, 1]} : vector<3x32xf32> to vector<1x32xf32>
    %160 = vector.broadcast %159 : vector<1x32xf32> to vector<21x32xf32>
    %161 = arith.addf %158, %160 : vector<21x32xf32>
    %162 = vector.extract_strided_slice %161 {offsets = [0, 0], sizes = [18, 32], strides = [1, 1]} : vector<21x32xf32> to vector<18x32xf32>
    %163 = vector.extract_strided_slice %4 {offsets = [0, 0, 0], sizes = [1, 32, 32], strides = [1, 1, 1]} : vector<4x32x32xf32> to vector<1x32x32xf32>
    %164 = vector.shape_cast %163 : vector<1x32x32xf32> to vector<32x32xf32>
    %cst_42 = arith.constant dense<0.000000e+00> : vector<18x32xf32>
    %165 = tpu.matmul %162, %164, %cst_42 {dimension_numbers = #tpu.dot_dimension_numbers<[1], [0], [0], [1], [0, 0, 1, 1], [], []>} : vector<18x32xf32>, vector<32x32xf32>, vector<18x32xf32> -> vector<18x32xf32>
    %166 = vector.extract_strided_slice %161 {offsets = [1, 0], sizes = [18, 32], strides = [1, 1]} : vector<21x32xf32> to vector<18x32xf32>
    %167 = vector.extract_strided_slice %4 {offsets = [1, 0, 0], sizes = [1, 32, 32], strides = [1, 1, 1]} : vector<4x32x32xf32> to vector<1x32x32xf32>
    %168 = vector.shape_cast %167 : vector<1x32x32xf32> to vector<32x32xf32>
    %cst_43 = arith.constant dense<0.000000e+00> : vector<18x32xf32>
    %169 = tpu.matmul %166, %168, %cst_43 {dimension_numbers = #tpu.dot_dimension_numbers<[1], [0], [0], [1], [0, 0, 1, 1], [], []>} : vector<18x32xf32>, vector<32x32xf32>, vector<18x32xf32> -> vector<18x32xf32>
    %170 = arith.addf %165, %169 : vector<18x32xf32>
    %171 = vector.extract_strided_slice %161 {offsets = [2, 0], sizes = [18, 32], strides = [1, 1]} : vector<21x32xf32> to vector<18x32xf32>
    %172 = vector.extract_strided_slice %4 {offsets = [2, 0, 0], sizes = [1, 32, 32], strides = [1, 1, 1]} : vector<4x32x32xf32> to vector<1x32x32xf32>
    %173 = vector.shape_cast %172 : vector<1x32x32xf32> to vector<32x32xf32>
    %cst_44 = arith.constant dense<0.000000e+00> : vector<18x32xf32>
    %174 = tpu.matmul %171, %173, %cst_44 {dimension_numbers = #tpu.dot_dimension_numbers<[1], [0], [0], [1], [0, 0, 1, 1], [], []>} : vector<18x32xf32>, vector<32x32xf32>, vector<18x32xf32> -> vector<18x32xf32>
    %175 = arith.addf %170, %174 : vector<18x32xf32>
    %176 = vector.extract_strided_slice %161 {offsets = [3, 0], sizes = [18, 32], strides = [1, 1]} : vector<21x32xf32> to vector<18x32xf32>
    %177 = vector.extract_strided_slice %4 {offsets = [3, 0, 0], sizes = [1, 32, 32], strides = [1, 1, 1]} : vector<4x32x32xf32> to vector<1x32x32xf32>
    %178 = vector.shape_cast %177 : vector<1x32x32xf32> to vector<32x32xf32>
    %cst_45 = arith.constant dense<0.000000e+00> : vector<18x32xf32>
    %179 = tpu.matmul %176, %178, %cst_45 {dimension_numbers = #tpu.dot_dimension_numbers<[1], [0], [0], [1], [0, 0, 1, 1], [], []>} : vector<18x32xf32>, vector<32x32xf32>, vector<18x32xf32> -> vector<18x32xf32>
    %180 = arith.addf %175, %179 : vector<18x32xf32>
    %181 = vector.extract_strided_slice %5 {offsets = [0, 0], sizes = [1, 32], strides = [1, 1]} : vector<3x32xf32> to vector<1x32xf32>
    %182 = vector.broadcast %181 : vector<1x32xf32> to vector<18x32xf32>
    %183 = arith.addf %180, %182 : vector<18x32xf32>
    %cst_46 = arith.constant 0.000000e+00 : f32
    %184 = vector.broadcast %cst_46 : f32 to vector<18x32xf32>
    %185 = arith.cmpf oge, %183, %184 : vector<18x32xf32>
    %cst_47 = arith.constant 0.00999999977 : f32
    %186 = vector.broadcast %cst_47 : f32 to vector<18x32xf32>
    %187 = arith.mulf %186, %183 : vector<18x32xf32>
    %188 = arith.select %185, %183, %187 : vector<18x32xi1>, vector<18x32xf32>
    %189 = vector.extract_strided_slice %5 {offsets = [1, 0], sizes = [1, 32], strides = [1, 1]} : vector<3x32xf32> to vector<1x32xf32>
    %190 = vector.broadcast %189 : vector<1x32xf32> to vector<18x32xf32>
    %191 = arith.mulf %188, %190 : vector<18x32xf32>
    %192 = vector.extract_strided_slice %5 {offsets = [2, 0], sizes = [1, 32], strides = [1, 1]} : vector<3x32xf32> to vector<1x32xf32>
    %193 = vector.broadcast %192 : vector<1x32xf32> to vector<18x32xf32>
    %194 = arith.addf %191, %193 : vector<18x32xf32>
    %c1_48 = arith.constant 1 : index
    %c0_49 = arith.constant 0 : index
    %c0_50 = arith.constant 0 : index
    %195 = vector.load %arg8[%c1_48, %c0_49, %c0_50] : memref<8x18x32xf32, #tpu.memory_space<vmem>>, vector<1x18x32xf32>
    %196 = vector.shape_cast %195 : vector<1x18x32xf32> to vector<18x32xf32>
    %197 = vector.shape_cast %194 : vector<18x32xf32> to vector<1x18x32xf32>
    tpu.vector_store %arg8[%c1_48, %c0_49, %c0_50], %197 {strides = array<i32>} : memref<8x18x32xf32, #tpu.memory_space<vmem>>, vector<1x18x32xf32>,
    %c2 = arith.constant 2 : index
    %c0_51 = arith.constant 0 : index
    %c0_52 = arith.constant 0 : index
    %198 = vector.load %arg1[%c2, %c0_51, %c0_52] : memref<8x24x2xf32, #tpu.memory_space<vmem>>, vector<1x24x2xf32>
    %199 = vector.shape_cast %198 : vector<1x24x2xf32> to vector<24x2xf32>
    %200 = vector.extract_strided_slice %199 {offsets = [0, 0], sizes = [24, 1], strides = [1, 1]} : vector<24x2xf32> to vector<24x1xf32>
    %201 = vector.extract_strided_slice %0 {offsets = [0, 0], sizes = [1, 32], strides = [1, 1]} : vector<2x32xf32> to vector<1x32xf32>
    %202 = vector.broadcast %200 : vector<24x1xf32> to vector<24x32xf32>
    %203 = vector.broadcast %201 : vector<1x32xf32> to vector<24x32xf32>
    %204 = arith.mulf %202, %203 : vector<24x32xf32>
    %205 = vector.extract_strided_slice %199 {offsets = [0, 1], sizes = [24, 1], strides = [1, 1]} : vector<24x2xf32> to vector<24x1xf32>
    %206 = vector.extract_strided_slice %0 {offsets = [1, 0], sizes = [1, 32], strides = [1, 1]} : vector<2x32xf32> to vector<1x32xf32>
    %207 = vector.broadcast %205 : vector<24x1xf32> to vector<24x32xf32>
    %208 = vector.broadcast %206 : vector<1x32xf32> to vector<24x32xf32>
    %209 = arith.mulf %207, %208 : vector<24x32xf32>
    %210 = arith.addf %204, %209 : vector<24x32xf32>
    %211 = vector.extract_strided_slice %1 {offsets = [0, 0], sizes = [1, 32], strides = [1, 1]} : vector<3x32xf32> to vector<1x32xf32>
    %212 = vector.broadcast %211 : vector<1x32xf32> to vector<24x32xf32>
    %213 = arith.addf %210, %212 : vector<24x32xf32>
    %cst_53 = arith.constant 0.000000e+00 : f32
    %214 = vector.broadcast %cst_53 : f32 to vector<24x32xf32>
    %215 = arith.cmpf oge, %213, %214 : vector<24x32xf32>
    %cst_54 = arith.constant 0.00999999977 : f32
    %216 = vector.broadcast %cst_54 : f32 to vector<24x32xf32>
    %217 = arith.mulf %216, %213 : vector<24x32xf32>
    %218 = arith.select %215, %213, %217 : vector<24x32xi1>, vector<24x32xf32>
    %219 = vector.extract_strided_slice %1 {offsets = [1, 0], sizes = [1, 32], strides = [1, 1]} : vector<3x32xf32> to vector<1x32xf32>
    %220 = vector.broadcast %219 : vector<1x32xf32> to vector<24x32xf32>
    %221 = arith.mulf %218, %220 : vector<24x32xf32>
    %222 = vector.extract_strided_slice %1 {offsets = [2, 0], sizes = [1, 32], strides = [1, 1]} : vector<3x32xf32> to vector<1x32xf32>
    %223 = vector.broadcast %222 : vector<1x32xf32> to vector<24x32xf32>
    %224 = arith.addf %221, %223 : vector<24x32xf32>
    %225 = vector.extract_strided_slice %224 {offsets = [0, 0], sizes = [21, 32], strides = [1, 1]} : vector<24x32xf32> to vector<21x32xf32>
    %226 = vector.extract_strided_slice %2 {offsets = [0, 0, 0], sizes = [1, 32, 32], strides = [1, 1, 1]} : vector<4x32x32xf32> to vector<1x32x32xf32>
    %227 = vector.shape_cast %226 : vector<1x32x32xf32> to vector<32x32xf32>
    %cst_55 = arith.constant dense<0.000000e+00> : vector<21x32xf32>
    %228 = tpu.matmul %225, %227, %cst_55 {dimension_numbers = #tpu.dot_dimension_numbers<[1], [0], [0], [1], [0, 0, 1, 1], [], []>} : vector<21x32xf32>, vector<32x32xf32>, vector<21x32xf32> -> vector<21x32xf32>
    %229 = vector.extract_strided_slice %224 {offsets = [1, 0], sizes = [21, 32], strides = [1, 1]} : vector<24x32xf32> to vector<21x32xf32>
    %230 = vector.extract_strided_slice %2 {offsets = [1, 0, 0], sizes = [1, 32, 32], strides = [1, 1, 1]} : vector<4x32x32xf32> to vector<1x32x32xf32>
    %231 = vector.shape_cast %230 : vector<1x32x32xf32> to vector<32x32xf32>
    %cst_56 = arith.constant dense<0.000000e+00> : vector<21x32xf32>
    %232 = tpu.matmul %229, %231, %cst_56 {dimension_numbers = #tpu.dot_dimension_numbers<[1], [0], [0], [1], [0, 0, 1, 1], [], []>} : vector<21x32xf32>, vector<32x32xf32>, vector<21x32xf32> -> vector<21x32xf32>
    %233 = arith.addf %228, %232 : vector<21x32xf32>
    %234 = vector.extract_strided_slice %224 {offsets = [2, 0], sizes = [21, 32], strides = [1, 1]} : vector<24x32xf32> to vector<21x32xf32>
    %235 = vector.extract_strided_slice %2 {offsets = [2, 0, 0], sizes = [1, 32, 32], strides = [1, 1, 1]} : vector<4x32x32xf32> to vector<1x32x32xf32>
    %236 = vector.shape_cast %235 : vector<1x32x32xf32> to vector<32x32xf32>
    %cst_57 = arith.constant dense<0.000000e+00> : vector<21x32xf32>
    %237 = tpu.matmul %234, %236, %cst_57 {dimension_numbers = #tpu.dot_dimension_numbers<[1], [0], [0], [1], [0, 0, 1, 1], [], []>} : vector<21x32xf32>, vector<32x32xf32>, vector<21x32xf32> -> vector<21x32xf32>
    %238 = arith.addf %233, %237 : vector<21x32xf32>
    %239 = vector.extract_strided_slice %224 {offsets = [3, 0], sizes = [21, 32], strides = [1, 1]} : vector<24x32xf32> to vector<21x32xf32>
    %240 = vector.extract_strided_slice %2 {offsets = [3, 0, 0], sizes = [1, 32, 32], strides = [1, 1, 1]} : vector<4x32x32xf32> to vector<1x32x32xf32>
    %241 = vector.shape_cast %240 : vector<1x32x32xf32> to vector<32x32xf32>
    %cst_58 = arith.constant dense<0.000000e+00> : vector<21x32xf32>
    %242 = tpu.matmul %239, %241, %cst_58 {dimension_numbers = #tpu.dot_dimension_numbers<[1], [0], [0], [1], [0, 0, 1, 1], [], []>} : vector<21x32xf32>, vector<32x32xf32>, vector<21x32xf32> -> vector<21x32xf32>
    %243 = arith.addf %238, %242 : vector<21x32xf32>
    %244 = vector.extract_strided_slice %3 {offsets = [0, 0], sizes = [1, 32], strides = [1, 1]} : vector<3x32xf32> to vector<1x32xf32>
    %245 = vector.broadcast %244 : vector<1x32xf32> to vector<21x32xf32>
    %246 = arith.addf %243, %245 : vector<21x32xf32>
    %cst_59 = arith.constant 0.000000e+00 : f32
    %247 = vector.broadcast %cst_59 : f32 to vector<21x32xf32>
    %248 = arith.cmpf oge, %246, %247 : vector<21x32xf32>
    %cst_60 = arith.constant 0.00999999977 : f32
    %249 = vector.broadcast %cst_60 : f32 to vector<21x32xf32>
    %250 = arith.mulf %249, %246 : vector<21x32xf32>
    %251 = arith.select %248, %246, %250 : vector<21x32xi1>, vector<21x32xf32>
    %252 = vector.extract_strided_slice %3 {offsets = [1, 0], sizes = [1, 32], strides = [1, 1]} : vector<3x32xf32> to vector<1x32xf32>
    %253 = vector.broadcast %252 : vector<1x32xf32> to vector<21x32xf32>
    %254 = arith.mulf %251, %253 : vector<21x32xf32>
    %255 = vector.extract_strided_slice %3 {offsets = [2, 0], sizes = [1, 32], strides = [1, 1]} : vector<3x32xf32> to vector<1x32xf32>
    %256 = vector.broadcast %255 : vector<1x32xf32> to vector<21x32xf32>
    %257 = arith.addf %254, %256 : vector<21x32xf32>
    %258 = vector.extract_strided_slice %257 {offsets = [0, 0], sizes = [18, 32], strides = [1, 1]} : vector<21x32xf32> to vector<18x32xf32>
    %259 = vector.extract_strided_slice %4 {offsets = [0, 0, 0], sizes = [1, 32, 32], strides = [1, 1, 1]} : vector<4x32x32xf32> to vector<1x32x32xf32>
    %260 = vector.shape_cast %259 : vector<1x32x32xf32> to vector<32x32xf32>
    %cst_61 = arith.constant dense<0.000000e+00> : vector<18x32xf32>
    %261 = tpu.matmul %258, %260, %cst_61 {dimension_numbers = #tpu.dot_dimension_numbers<[1], [0], [0], [1], [0, 0, 1, 1], [], []>} : vector<18x32xf32>, vector<32x32xf32>, vector<18x32xf32> -> vector<18x32xf32>
    %262 = vector.extract_strided_slice %257 {offsets = [1, 0], sizes = [18, 32], strides = [1, 1]} : vector<21x32xf32> to vector<18x32xf32>
    %263 = vector.extract_strided_slice %4 {offsets = [1, 0, 0], sizes = [1, 32, 32], strides = [1, 1, 1]} : vector<4x32x32xf32> to vector<1x32x32xf32>
    %264 = vector.shape_cast %263 : vector<1x32x32xf32> to vector<32x32xf32>
    %cst_62 = arith.constant dense<0.000000e+00> : vector<18x32xf32>
    %265 = tpu.matmul %262, %264, %cst_62 {dimension_numbers = #tpu.dot_dimension_numbers<[1], [0], [0], [1], [0, 0, 1, 1], [], []>} : vector<18x32xf32>, vector<32x32xf32>, vector<18x32xf32> -> vector<18x32xf32>
    %266 = arith.addf %261, %265 : vector<18x32xf32>
    %267 = vector.extract_strided_slice %257 {offsets = [2, 0], sizes = [18, 32], strides = [1, 1]} : vector<21x32xf32> to vector<18x32xf32>
    %268 = vector.extract_strided_slice %4 {offsets = [2, 0, 0], sizes = [1, 32, 32], strides = [1, 1, 1]} : vector<4x32x32xf32> to vector<1x32x32xf32>
    %269 = vector.shape_cast %268 : vector<1x32x32xf32> to vector<32x32xf32>
    %cst_63 = arith.constant dense<0.000000e+00> : vector<18x32xf32>
    %270 = tpu.matmul %267, %269, %cst_63 {dimension_numbers = #tpu.dot_dimension_numbers<[1], [0], [0], [1], [0, 0, 1, 1], [], []>} : vector<18x32xf32>, vector<32x32xf32>, vector<18x32xf32> -> vector<18x32xf32>
    %271 = arith.addf %266, %270 : vector<18x32xf32>
    %272 = vector.extract_strided_slice %257 {offsets = [3, 0], sizes = [18, 32], strides = [1, 1]} : vector<21x32xf32> to vector<18x32xf32>
    %273 = vector.extract_strided_slice %4 {offsets = [3, 0, 0], sizes = [1, 32, 32], strides = [1, 1, 1]} : vector<4x32x32xf32> to vector<1x32x32xf32>
    %274 = vector.shape_cast %273 : vector<1x32x32xf32> to vector<32x32xf32>
    %cst_64 = arith.constant dense<0.000000e+00> : vector<18x32xf32>
    %275 = tpu.matmul %272, %274, %cst_64 {dimension_numbers = #tpu.dot_dimension_numbers<[1], [0], [0], [1], [0, 0, 1, 1], [], []>} : vector<18x32xf32>, vector<32x32xf32>, vector<18x32xf32> -> vector<18x32xf32>
    %276 = arith.addf %271, %275 : vector<18x32xf32>
    %277 = vector.extract_strided_slice %5 {offsets = [0, 0], sizes = [1, 32], strides = [1, 1]} : vector<3x32xf32> to vector<1x32xf32>
    %278 = vector.broadcast %277 : vector<1x32xf32> to vector<18x32xf32>
    %279 = arith.addf %276, %278 : vector<18x32xf32>
    %cst_65 = arith.constant 0.000000e+00 : f32
    %280 = vector.broadcast %cst_65 : f32 to vector<18x32xf32>
    %281 = arith.cmpf oge, %279, %280 : vector<18x32xf32>
    %cst_66 = arith.constant 0.00999999977 : f32
    %282 = vector.broadcast %cst_66 : f32 to vector<18x32xf32>
    %283 = arith.mulf %282, %279 : vector<18x32xf32>
    %284 = arith.select %281, %279, %283 : vector<18x32xi1>, vector<18x32xf32>
    %285 = vector.extract_strided_slice %5 {offsets = [1, 0], sizes = [1, 32], strides = [1, 1]} : vector<3x32xf32> to vector<1x32xf32>
    %286 = vector.broadcast %285 : vector<1x32xf32> to vector<18x32xf32>
    %287 = arith.mulf %284, %286 : vector<18x32xf32>
    %288 = vector.extract_strided_slice %5 {offsets = [2, 0], sizes = [1, 32], strides = [1, 1]} : vector<3x32xf32> to vector<1x32xf32>
    %289 = vector.broadcast %288 : vector<1x32xf32> to vector<18x32xf32>
    %290 = arith.addf %287, %289 : vector<18x32xf32>
    %c2_67 = arith.constant 2 : index
    %c0_68 = arith.constant 0 : index
    %c0_69 = arith.constant 0 : index
    %291 = vector.load %arg8[%c2_67, %c0_68, %c0_69] : memref<8x18x32xf32, #tpu.memory_space<vmem>>, vector<1x18x32xf32>
    %292 = vector.shape_cast %291 : vector<1x18x32xf32> to vector<18x32xf32>
    %293 = vector.shape_cast %290 : vector<18x32xf32> to vector<1x18x32xf32>
    tpu.vector_store %arg8[%c2_67, %c0_68, %c0_69], %293 {strides = array<i32>} : memref<8x18x32xf32, #tpu.memory_space<vmem>>, vector<1x18x32xf32>,
    %c3 = arith.constant 3 : index
    %c0_70 = arith.constant 0 : index
    %c0_71 = arith.constant 0 : index
    %294 = vector.load %arg1[%c3, %c0_70, %c0_71] : memref<8x24x2xf32, #tpu.memory_space<vmem>>, vector<1x24x2xf32>
    %295 = vector.shape_cast %294 : vector<1x24x2xf32> to vector<24x2xf32>
    %296 = vector.extract_strided_slice %295 {offsets = [0, 0], sizes = [24, 1], strides = [1, 1]} : vector<24x2xf32> to vector<24x1xf32>
    %297 = vector.extract_strided_slice %0 {offsets = [0, 0], sizes = [1, 32], strides = [1, 1]} : vector<2x32xf32> to vector<1x32xf32>
    %298 = vector.broadcast %296 : vector<24x1xf32> to vector<24x32xf32>
    %299 = vector.broadcast %297 : vector<1x32xf32> to vector<24x32xf32>
    %300 = arith.mulf %298, %299 : vector<24x32xf32>
    %301 = vector.extract_strided_slice %295 {offsets = [0, 1], sizes = [24, 1], strides = [1, 1]} : vector<24x2xf32> to vector<24x1xf32>
    %302 = vector.extract_strided_slice %0 {offsets = [1, 0], sizes = [1, 32], strides = [1, 1]} : vector<2x32xf32> to vector<1x32xf32>
    %303 = vector.broadcast %301 : vector<24x1xf32> to vector<24x32xf32>
    %304 = vector.broadcast %302 : vector<1x32xf32> to vector<24x32xf32>
    %305 = arith.mulf %303, %304 : vector<24x32xf32>
    %306 = arith.addf %300, %305 : vector<24x32xf32>
    %307 = vector.extract_strided_slice %1 {offsets = [0, 0], sizes = [1, 32], strides = [1, 1]} : vector<3x32xf32> to vector<1x32xf32>
    %308 = vector.broadcast %307 : vector<1x32xf32> to vector<24x32xf32>
    %309 = arith.addf %306, %308 : vector<24x32xf32>
    %cst_72 = arith.constant 0.000000e+00 : f32
    %310 = vector.broadcast %cst_72 : f32 to vector<24x32xf32>
    %311 = arith.cmpf oge, %309, %310 : vector<24x32xf32>
    %cst_73 = arith.constant 0.00999999977 : f32
    %312 = vector.broadcast %cst_73 : f32 to vector<24x32xf32>
    %313 = arith.mulf %312, %309 : vector<24x32xf32>
    %314 = arith.select %311, %309, %313 : vector<24x32xi1>, vector<24x32xf32>
    %315 = vector.extract_strided_slice %1 {offsets = [1, 0], sizes = [1, 32], strides = [1, 1]} : vector<3x32xf32> to vector<1x32xf32>
    %316 = vector.broadcast %315 : vector<1x32xf32> to vector<24x32xf32>
    %317 = arith.mulf %314, %316 : vector<24x32xf32>
    %318 = vector.extract_strided_slice %1 {offsets = [2, 0], sizes = [1, 32], strides = [1, 1]} : vector<3x32xf32> to vector<1x32xf32>
    %319 = vector.broadcast %318 : vector<1x32xf32> to vector<24x32xf32>
    %320 = arith.addf %317, %319 : vector<24x32xf32>
    %321 = vector.extract_strided_slice %320 {offsets = [0, 0], sizes = [21, 32], strides = [1, 1]} : vector<24x32xf32> to vector<21x32xf32>
    %322 = vector.extract_strided_slice %2 {offsets = [0, 0, 0], sizes = [1, 32, 32], strides = [1, 1, 1]} : vector<4x32x32xf32> to vector<1x32x32xf32>
    %323 = vector.shape_cast %322 : vector<1x32x32xf32> to vector<32x32xf32>
    %cst_74 = arith.constant dense<0.000000e+00> : vector<21x32xf32>
    %324 = tpu.matmul %321, %323, %cst_74 {dimension_numbers = #tpu.dot_dimension_numbers<[1], [0], [0], [1], [0, 0, 1, 1], [], []>} : vector<21x32xf32>, vector<32x32xf32>, vector<21x32xf32> -> vector<21x32xf32>
    %325 = vector.extract_strided_slice %320 {offsets = [1, 0], sizes = [21, 32], strides = [1, 1]} : vector<24x32xf32> to vector<21x32xf32>
    %326 = vector.extract_strided_slice %2 {offsets = [1, 0, 0], sizes = [1, 32, 32], strides = [1, 1, 1]} : vector<4x32x32xf32> to vector<1x32x32xf32>
    %327 = vector.shape_cast %326 : vector<1x32x32xf32> to vector<32x32xf32>
    %cst_75 = arith.constant dense<0.000000e+00> : vector<21x32xf32>
    %328 = tpu.matmul %325, %327, %cst_75 {dimension_numbers = #tpu.dot_dimension_numbers<[1], [0], [0], [1], [0, 0, 1, 1], [], []>} : vector<21x32xf32>, vector<32x32xf32>, vector<21x32xf32> -> vector<21x32xf32>
    %329 = arith.addf %324, %328 : vector<21x32xf32>
    %330 = vector.extract_strided_slice %320 {offsets = [2, 0], sizes = [21, 32], strides = [1, 1]} : vector<24x32xf32> to vector<21x32xf32>
    %331 = vector.extract_strided_slice %2 {offsets = [2, 0, 0], sizes = [1, 32, 32], strides = [1, 1, 1]} : vector<4x32x32xf32> to vector<1x32x32xf32>
    %332 = vector.shape_cast %331 : vector<1x32x32xf32> to vector<32x32xf32>
    %cst_76 = arith.constant dense<0.000000e+00> : vector<21x32xf32>
    %333 = tpu.matmul %330, %332, %cst_76 {dimension_numbers = #tpu.dot_dimension_numbers<[1], [0], [0], [1], [0, 0, 1, 1], [], []>} : vector<21x32xf32>, vector<32x32xf32>, vector<21x32xf32> -> vector<21x32xf32>
    %334 = arith.addf %329, %333 : vector<21x32xf32>
    %335 = vector.extract_strided_slice %320 {offsets = [3, 0], sizes = [21, 32], strides = [1, 1]} : vector<24x32xf32> to vector<21x32xf32>
    %336 = vector.extract_strided_slice %2 {offsets = [3, 0, 0], sizes = [1, 32, 32], strides = [1, 1, 1]} : vector<4x32x32xf32> to vector<1x32x32xf32>
    %337 = vector.shape_cast %336 : vector<1x32x32xf32> to vector<32x32xf32>
    %cst_77 = arith.constant dense<0.000000e+00> : vector<21x32xf32>
    %338 = tpu.matmul %335, %337, %cst_77 {dimension_numbers = #tpu.dot_dimension_numbers<[1], [0], [0], [1], [0, 0, 1, 1], [], []>} : vector<21x32xf32>, vector<32x32xf32>, vector<21x32xf32> -> vector<21x32xf32>
    %339 = arith.addf %334, %338 : vector<21x32xf32>
    %340 = vector.extract_strided_slice %3 {offsets = [0, 0], sizes = [1, 32], strides = [1, 1]} : vector<3x32xf32> to vector<1x32xf32>
    %341 = vector.broadcast %340 : vector<1x32xf32> to vector<21x32xf32>
    %342 = arith.addf %339, %341 : vector<21x32xf32>
    %cst_78 = arith.constant 0.000000e+00 : f32
    %343 = vector.broadcast %cst_78 : f32 to vector<21x32xf32>
    %344 = arith.cmpf oge, %342, %343 : vector<21x32xf32>
    %cst_79 = arith.constant 0.00999999977 : f32
    %345 = vector.broadcast %cst_79 : f32 to vector<21x32xf32>
    %346 = arith.mulf %345, %342 : vector<21x32xf32>
    %347 = arith.select %344, %342, %346 : vector<21x32xi1>, vector<21x32xf32>
    %348 = vector.extract_strided_slice %3 {offsets = [1, 0], sizes = [1, 32], strides = [1, 1]} : vector<3x32xf32> to vector<1x32xf32>
    %349 = vector.broadcast %348 : vector<1x32xf32> to vector<21x32xf32>
    %350 = arith.mulf %347, %349 : vector<21x32xf32>
    %351 = vector.extract_strided_slice %3 {offsets = [2, 0], sizes = [1, 32], strides = [1, 1]} : vector<3x32xf32> to vector<1x32xf32>
    %352 = vector.broadcast %351 : vector<1x32xf32> to vector<21x32xf32>
    %353 = arith.addf %350, %352 : vector<21x32xf32>
    %354 = vector.extract_strided_slice %353 {offsets = [0, 0], sizes = [18, 32], strides = [1, 1]} : vector<21x32xf32> to vector<18x32xf32>
    %355 = vector.extract_strided_slice %4 {offsets = [0, 0, 0], sizes = [1, 32, 32], strides = [1, 1, 1]} : vector<4x32x32xf32> to vector<1x32x32xf32>
    %356 = vector.shape_cast %355 : vector<1x32x32xf32> to vector<32x32xf32>
    %cst_80 = arith.constant dense<0.000000e+00> : vector<18x32xf32>
    %357 = tpu.matmul %354, %356, %cst_80 {dimension_numbers = #tpu.dot_dimension_numbers<[1], [0], [0], [1], [0, 0, 1, 1], [], []>} : vector<18x32xf32>, vector<32x32xf32>, vector<18x32xf32> -> vector<18x32xf32>
    %358 = vector.extract_strided_slice %353 {offsets = [1, 0], sizes = [18, 32], strides = [1, 1]} : vector<21x32xf32> to vector<18x32xf32>
    %359 = vector.extract_strided_slice %4 {offsets = [1, 0, 0], sizes = [1, 32, 32], strides = [1, 1, 1]} : vector<4x32x32xf32> to vector<1x32x32xf32>
    %360 = vector.shape_cast %359 : vector<1x32x32xf32> to vector<32x32xf32>
    %cst_81 = arith.constant dense<0.000000e+00> : vector<18x32xf32>
    %361 = tpu.matmul %358, %360, %cst_81 {dimension_numbers = #tpu.dot_dimension_numbers<[1], [0], [0], [1], [0, 0, 1, 1], [], []>} : vector<18x32xf32>, vector<32x32xf32>, vector<18x32xf32> -> vector<18x32xf32>
    %362 = arith.addf %357, %361 : vector<18x32xf32>
    %363 = vector.extract_strided_slice %353 {offsets = [2, 0], sizes = [18, 32], strides = [1, 1]} : vector<21x32xf32> to vector<18x32xf32>
    %364 = vector.extract_strided_slice %4 {offsets = [2, 0, 0], sizes = [1, 32, 32], strides = [1, 1, 1]} : vector<4x32x32xf32> to vector<1x32x32xf32>
    %365 = vector.shape_cast %364 : vector<1x32x32xf32> to vector<32x32xf32>
    %cst_82 = arith.constant dense<0.000000e+00> : vector<18x32xf32>
    %366 = tpu.matmul %363, %365, %cst_82 {dimension_numbers = #tpu.dot_dimension_numbers<[1], [0], [0], [1], [0, 0, 1, 1], [], []>} : vector<18x32xf32>, vector<32x32xf32>, vector<18x32xf32> -> vector<18x32xf32>
    %367 = arith.addf %362, %366 : vector<18x32xf32>
    %368 = vector.extract_strided_slice %353 {offsets = [3, 0], sizes = [18, 32], strides = [1, 1]} : vector<21x32xf32> to vector<18x32xf32>
    %369 = vector.extract_strided_slice %4 {offsets = [3, 0, 0], sizes = [1, 32, 32], strides = [1, 1, 1]} : vector<4x32x32xf32> to vector<1x32x32xf32>
    %370 = vector.shape_cast %369 : vector<1x32x32xf32> to vector<32x32xf32>
    %cst_83 = arith.constant dense<0.000000e+00> : vector<18x32xf32>
    %371 = tpu.matmul %368, %370, %cst_83 {dimension_numbers = #tpu.dot_dimension_numbers<[1], [0], [0], [1], [0, 0, 1, 1], [], []>} : vector<18x32xf32>, vector<32x32xf32>, vector<18x32xf32> -> vector<18x32xf32>
    %372 = arith.addf %367, %371 : vector<18x32xf32>
    %373 = vector.extract_strided_slice %5 {offsets = [0, 0], sizes = [1, 32], strides = [1, 1]} : vector<3x32xf32> to vector<1x32xf32>
    %374 = vector.broadcast %373 : vector<1x32xf32> to vector<18x32xf32>
    %375 = arith.addf %372, %374 : vector<18x32xf32>
    %cst_84 = arith.constant 0.000000e+00 : f32
    %376 = vector.broadcast %cst_84 : f32 to vector<18x32xf32>
    %377 = arith.cmpf oge, %375, %376 : vector<18x32xf32>
    %cst_85 = arith.constant 0.00999999977 : f32
    %378 = vector.broadcast %cst_85 : f32 to vector<18x32xf32>
    %379 = arith.mulf %378, %375 : vector<18x32xf32>
    %380 = arith.select %377, %375, %379 : vector<18x32xi1>, vector<18x32xf32>
    %381 = vector.extract_strided_slice %5 {offsets = [1, 0], sizes = [1, 32], strides = [1, 1]} : vector<3x32xf32> to vector<1x32xf32>
    %382 = vector.broadcast %381 : vector<1x32xf32> to vector<18x32xf32>
    %383 = arith.mulf %380, %382 : vector<18x32xf32>
    %384 = vector.extract_strided_slice %5 {offsets = [2, 0], sizes = [1, 32], strides = [1, 1]} : vector<3x32xf32> to vector<1x32xf32>
    %385 = vector.broadcast %384 : vector<1x32xf32> to vector<18x32xf32>
    %386 = arith.addf %383, %385 : vector<18x32xf32>
    %c3_86 = arith.constant 3 : index
    %c0_87 = arith.constant 0 : index
    %c0_88 = arith.constant 0 : index
    %387 = vector.load %arg8[%c3_86, %c0_87, %c0_88] : memref<8x18x32xf32, #tpu.memory_space<vmem>>, vector<1x18x32xf32>
    %388 = vector.shape_cast %387 : vector<1x18x32xf32> to vector<18x32xf32>
    %389 = vector.shape_cast %386 : vector<18x32xf32> to vector<1x18x32xf32>
    tpu.vector_store %arg8[%c3_86, %c0_87, %c0_88], %389 {strides = array<i32>} : memref<8x18x32xf32, #tpu.memory_space<vmem>>, vector<1x18x32xf32>,
    %c4 = arith.constant 4 : index
    %c0_89 = arith.constant 0 : index
    %c0_90 = arith.constant 0 : index
    %390 = vector.load %arg1[%c4, %c0_89, %c0_90] : memref<8x24x2xf32, #tpu.memory_space<vmem>>, vector<1x24x2xf32>
    %391 = vector.shape_cast %390 : vector<1x24x2xf32> to vector<24x2xf32>
    %392 = vector.extract_strided_slice %391 {offsets = [0, 0], sizes = [24, 1], strides = [1, 1]} : vector<24x2xf32> to vector<24x1xf32>
    %393 = vector.extract_strided_slice %0 {offsets = [0, 0], sizes = [1, 32], strides = [1, 1]} : vector<2x32xf32> to vector<1x32xf32>
    %394 = vector.broadcast %392 : vector<24x1xf32> to vector<24x32xf32>
    %395 = vector.broadcast %393 : vector<1x32xf32> to vector<24x32xf32>
    %396 = arith.mulf %394, %395 : vector<24x32xf32>
    %397 = vector.extract_strided_slice %391 {offsets = [0, 1], sizes = [24, 1], strides = [1, 1]} : vector<24x2xf32> to vector<24x1xf32>
    %398 = vector.extract_strided_slice %0 {offsets = [1, 0], sizes = [1, 32], strides = [1, 1]} : vector<2x32xf32> to vector<1x32xf32>
    %399 = vector.broadcast %397 : vector<24x1xf32> to vector<24x32xf32>
    %400 = vector.broadcast %398 : vector<1x32xf32> to vector<24x32xf32>
    %401 = arith.mulf %399, %400 : vector<24x32xf32>
    %402 = arith.addf %396, %401 : vector<24x32xf32>
    %403 = vector.extract_strided_slice %1 {offsets = [0, 0], sizes = [1, 32], strides = [1, 1]} : vector<3x32xf32> to vector<1x32xf32>
    %404 = vector.broadcast %403 : vector<1x32xf32> to vector<24x32xf32>
    %405 = arith.addf %402, %404 : vector<24x32xf32>
    %cst_91 = arith.constant 0.000000e+00 : f32
    %406 = vector.broadcast %cst_91 : f32 to vector<24x32xf32>
    %407 = arith.cmpf oge, %405, %406 : vector<24x32xf32>
    %cst_92 = arith.constant 0.00999999977 : f32
    %408 = vector.broadcast %cst_92 : f32 to vector<24x32xf32>
    %409 = arith.mulf %408, %405 : vector<24x32xf32>
    %410 = arith.select %407, %405, %409 : vector<24x32xi1>, vector<24x32xf32>
    %411 = vector.extract_strided_slice %1 {offsets = [1, 0], sizes = [1, 32], strides = [1, 1]} : vector<3x32xf32> to vector<1x32xf32>
    %412 = vector.broadcast %411 : vector<1x32xf32> to vector<24x32xf32>
    %413 = arith.mulf %410, %412 : vector<24x32xf32>
    %414 = vector.extract_strided_slice %1 {offsets = [2, 0], sizes = [1, 32], strides = [1, 1]} : vector<3x32xf32> to vector<1x32xf32>
    %415 = vector.broadcast %414 : vector<1x32xf32> to vector<24x32xf32>
    %416 = arith.addf %413, %415 : vector<24x32xf32>
    %417 = vector.extract_strided_slice %416 {offsets = [0, 0], sizes = [21, 32], strides = [1, 1]} : vector<24x32xf32> to vector<21x32xf32>
    %418 = vector.extract_strided_slice %2 {offsets = [0, 0, 0], sizes = [1, 32, 32], strides = [1, 1, 1]} : vector<4x32x32xf32> to vector<1x32x32xf32>
    %419 = vector.shape_cast %418 : vector<1x32x32xf32> to vector<32x32xf32>
    %cst_93 = arith.constant dense<0.000000e+00> : vector<21x32xf32>
    %420 = tpu.matmul %417, %419, %cst_93 {dimension_numbers = #tpu.dot_dimension_numbers<[1], [0], [0], [1], [0, 0, 1, 1], [], []>} : vector<21x32xf32>, vector<32x32xf32>, vector<21x32xf32> -> vector<21x32xf32>
    %421 = vector.extract_strided_slice %416 {offsets = [1, 0], sizes = [21, 32], strides = [1, 1]} : vector<24x32xf32> to vector<21x32xf32>
    %422 = vector.extract_strided_slice %2 {offsets = [1, 0, 0], sizes = [1, 32, 32], strides = [1, 1, 1]} : vector<4x32x32xf32> to vector<1x32x32xf32>
    %423 = vector.shape_cast %422 : vector<1x32x32xf32> to vector<32x32xf32>
    %cst_94 = arith.constant dense<0.000000e+00> : vector<21x32xf32>
    %424 = tpu.matmul %421, %423, %cst_94 {dimension_numbers = #tpu.dot_dimension_numbers<[1], [0], [0], [1], [0, 0, 1, 1], [], []>} : vector<21x32xf32>, vector<32x32xf32>, vector<21x32xf32> -> vector<21x32xf32>
    %425 = arith.addf %420, %424 : vector<21x32xf32>
    %426 = vector.extract_strided_slice %416 {offsets = [2, 0], sizes = [21, 32], strides = [1, 1]} : vector<24x32xf32> to vector<21x32xf32>
    %427 = vector.extract_strided_slice %2 {offsets = [2, 0, 0], sizes = [1, 32, 32], strides = [1, 1, 1]} : vector<4x32x32xf32> to vector<1x32x32xf32>
    %428 = vector.shape_cast %427 : vector<1x32x32xf32> to vector<32x32xf32>
    %cst_95 = arith.constant dense<0.000000e+00> : vector<21x32xf32>
    %429 = tpu.matmul %426, %428, %cst_95 {dimension_numbers = #tpu.dot_dimension_numbers<[1], [0], [0], [1], [0, 0, 1, 1], [], []>} : vector<21x32xf32>, vector<32x32xf32>, vector<21x32xf32> -> vector<21x32xf32>
    %430 = arith.addf %425, %429 : vector<21x32xf32>
    %431 = vector.extract_strided_slice %416 {offsets = [3, 0], sizes = [21, 32], strides = [1, 1]} : vector<24x32xf32> to vector<21x32xf32>
    %432 = vector.extract_strided_slice %2 {offsets = [3, 0, 0], sizes = [1, 32, 32], strides = [1, 1, 1]} : vector<4x32x32xf32> to vector<1x32x32xf32>
    %433 = vector.shape_cast %432 : vector<1x32x32xf32> to vector<32x32xf32>
    %cst_96 = arith.constant dense<0.000000e+00> : vector<21x32xf32>
    %434 = tpu.matmul %431, %433, %cst_96 {dimension_numbers = #tpu.dot_dimension_numbers<[1], [0], [0], [1], [0, 0, 1, 1], [], []>} : vector<21x32xf32>, vector<32x32xf32>, vector<21x32xf32> -> vector<21x32xf32>
    %435 = arith.addf %430, %434 : vector<21x32xf32>
    %436 = vector.extract_strided_slice %3 {offsets = [0, 0], sizes = [1, 32], strides = [1, 1]} : vector<3x32xf32> to vector<1x32xf32>
    %437 = vector.broadcast %436 : vector<1x32xf32> to vector<21x32xf32>
    %438 = arith.addf %435, %437 : vector<21x32xf32>
    %cst_97 = arith.constant 0.000000e+00 : f32
    %439 = vector.broadcast %cst_97 : f32 to vector<21x32xf32>
    %440 = arith.cmpf oge, %438, %439 : vector<21x32xf32>
    %cst_98 = arith.constant 0.00999999977 : f32
    %441 = vector.broadcast %cst_98 : f32 to vector<21x32xf32>
    %442 = arith.mulf %441, %438 : vector<21x32xf32>
    %443 = arith.select %440, %438, %442 : vector<21x32xi1>, vector<21x32xf32>
    %444 = vector.extract_strided_slice %3 {offsets = [1, 0], sizes = [1, 32], strides = [1, 1]} : vector<3x32xf32> to vector<1x32xf32>
    %445 = vector.broadcast %444 : vector<1x32xf32> to vector<21x32xf32>
    %446 = arith.mulf %443, %445 : vector<21x32xf32>
    %447 = vector.extract_strided_slice %3 {offsets = [2, 0], sizes = [1, 32], strides = [1, 1]} : vector<3x32xf32> to vector<1x32xf32>
    %448 = vector.broadcast %447 : vector<1x32xf32> to vector<21x32xf32>
    %449 = arith.addf %446, %448 : vector<21x32xf32>
    %450 = vector.extract_strided_slice %449 {offsets = [0, 0], sizes = [18, 32], strides = [1, 1]} : vector<21x32xf32> to vector<18x32xf32>
    %451 = vector.extract_strided_slice %4 {offsets = [0, 0, 0], sizes = [1, 32, 32], strides = [1, 1, 1]} : vector<4x32x32xf32> to vector<1x32x32xf32>
    %452 = vector.shape_cast %451 : vector<1x32x32xf32> to vector<32x32xf32>
    %cst_99 = arith.constant dense<0.000000e+00> : vector<18x32xf32>
    %453 = tpu.matmul %450, %452, %cst_99 {dimension_numbers = #tpu.dot_dimension_numbers<[1], [0], [0], [1], [0, 0, 1, 1], [], []>} : vector<18x32xf32>, vector<32x32xf32>, vector<18x32xf32> -> vector<18x32xf32>
    %454 = vector.extract_strided_slice %449 {offsets = [1, 0], sizes = [18, 32], strides = [1, 1]} : vector<21x32xf32> to vector<18x32xf32>
    %455 = vector.extract_strided_slice %4 {offsets = [1, 0, 0], sizes = [1, 32, 32], strides = [1, 1, 1]} : vector<4x32x32xf32> to vector<1x32x32xf32>
    %456 = vector.shape_cast %455 : vector<1x32x32xf32> to vector<32x32xf32>
    %cst_100 = arith.constant dense<0.000000e+00> : vector<18x32xf32>
    %457 = tpu.matmul %454, %456, %cst_100 {dimension_numbers = #tpu.dot_dimension_numbers<[1], [0], [0], [1], [0, 0, 1, 1], [], []>} : vector<18x32xf32>, vector<32x32xf32>, vector<18x32xf32> -> vector<18x32xf32>
    %458 = arith.addf %453, %457 : vector<18x32xf32>
    %459 = vector.extract_strided_slice %449 {offsets = [2, 0], sizes = [18, 32], strides = [1, 1]} : vector<21x32xf32> to vector<18x32xf32>
    %460 = vector.extract_strided_slice %4 {offsets = [2, 0, 0], sizes = [1, 32, 32], strides = [1, 1, 1]} : vector<4x32x32xf32> to vector<1x32x32xf32>
    %461 = vector.shape_cast %460 : vector<1x32x32xf32> to vector<32x32xf32>
    %cst_101 = arith.constant dense<0.000000e+00> : vector<18x32xf32>
    %462 = tpu.matmul %459, %461, %cst_101 {dimension_numbers = #tpu.dot_dimension_numbers<[1], [0], [0], [1], [0, 0, 1, 1], [], []>} : vector<18x32xf32>, vector<32x32xf32>, vector<18x32xf32> -> vector<18x32xf32>
    %463 = arith.addf %458, %462 : vector<18x32xf32>
    %464 = vector.extract_strided_slice %449 {offsets = [3, 0], sizes = [18, 32], strides = [1, 1]} : vector<21x32xf32> to vector<18x32xf32>
    %465 = vector.extract_strided_slice %4 {offsets = [3, 0, 0], sizes = [1, 32, 32], strides = [1, 1, 1]} : vector<4x32x32xf32> to vector<1x32x32xf32>
    %466 = vector.shape_cast %465 : vector<1x32x32xf32> to vector<32x32xf32>
    %cst_102 = arith.constant dense<0.000000e+00> : vector<18x32xf32>
    %467 = tpu.matmul %464, %466, %cst_102 {dimension_numbers = #tpu.dot_dimension_numbers<[1], [0], [0], [1], [0, 0, 1, 1], [], []>} : vector<18x32xf32>, vector<32x32xf32>, vector<18x32xf32> -> vector<18x32xf32>
    %468 = arith.addf %463, %467 : vector<18x32xf32>
    %469 = vector.extract_strided_slice %5 {offsets = [0, 0], sizes = [1, 32], strides = [1, 1]} : vector<3x32xf32> to vector<1x32xf32>
    %470 = vector.broadcast %469 : vector<1x32xf32> to vector<18x32xf32>
    %471 = arith.addf %468, %470 : vector<18x32xf32>
    %cst_103 = arith.constant 0.000000e+00 : f32
    %472 = vector.broadcast %cst_103 : f32 to vector<18x32xf32>
    %473 = arith.cmpf oge, %471, %472 : vector<18x32xf32>
    %cst_104 = arith.constant 0.00999999977 : f32
    %474 = vector.broadcast %cst_104 : f32 to vector<18x32xf32>
    %475 = arith.mulf %474, %471 : vector<18x32xf32>
    %476 = arith.select %473, %471, %475 : vector<18x32xi1>, vector<18x32xf32>
    %477 = vector.extract_strided_slice %5 {offsets = [1, 0], sizes = [1, 32], strides = [1, 1]} : vector<3x32xf32> to vector<1x32xf32>
    %478 = vector.broadcast %477 : vector<1x32xf32> to vector<18x32xf32>
    %479 = arith.mulf %476, %478 : vector<18x32xf32>
    %480 = vector.extract_strided_slice %5 {offsets = [2, 0], sizes = [1, 32], strides = [1, 1]} : vector<3x32xf32> to vector<1x32xf32>
    %481 = vector.broadcast %480 : vector<1x32xf32> to vector<18x32xf32>
    %482 = arith.addf %479, %481 : vector<18x32xf32>
    %c4_105 = arith.constant 4 : index
    %c0_106 = arith.constant 0 : index
    %c0_107 = arith.constant 0 : index
    %483 = vector.load %arg8[%c4_105, %c0_106, %c0_107] : memref<8x18x32xf32, #tpu.memory_space<vmem>>, vector<1x18x32xf32>
    %484 = vector.shape_cast %483 : vector<1x18x32xf32> to vector<18x32xf32>
    %485 = vector.shape_cast %482 : vector<18x32xf32> to vector<1x18x32xf32>
    tpu.vector_store %arg8[%c4_105, %c0_106, %c0_107], %485 {strides = array<i32>} : memref<8x18x32xf32, #tpu.memory_space<vmem>>, vector<1x18x32xf32>,
    %c5 = arith.constant 5 : index
    %c0_108 = arith.constant 0 : index
    %c0_109 = arith.constant 0 : index
    %486 = vector.load %arg1[%c5, %c0_108, %c0_109] : memref<8x24x2xf32, #tpu.memory_space<vmem>>, vector<1x24x2xf32>
    %487 = vector.shape_cast %486 : vector<1x24x2xf32> to vector<24x2xf32>
    %488 = vector.extract_strided_slice %487 {offsets = [0, 0], sizes = [24, 1], strides = [1, 1]} : vector<24x2xf32> to vector<24x1xf32>
    %489 = vector.extract_strided_slice %0 {offsets = [0, 0], sizes = [1, 32], strides = [1, 1]} : vector<2x32xf32> to vector<1x32xf32>
    %490 = vector.broadcast %488 : vector<24x1xf32> to vector<24x32xf32>
    %491 = vector.broadcast %489 : vector<1x32xf32> to vector<24x32xf32>
    %492 = arith.mulf %490, %491 : vector<24x32xf32>
    %493 = vector.extract_strided_slice %487 {offsets = [0, 1], sizes = [24, 1], strides = [1, 1]} : vector<24x2xf32> to vector<24x1xf32>
    %494 = vector.extract_strided_slice %0 {offsets = [1, 0], sizes = [1, 32], strides = [1, 1]} : vector<2x32xf32> to vector<1x32xf32>
    %495 = vector.broadcast %493 : vector<24x1xf32> to vector<24x32xf32>
    %496 = vector.broadcast %494 : vector<1x32xf32> to vector<24x32xf32>
    %497 = arith.mulf %495, %496 : vector<24x32xf32>
    %498 = arith.addf %492, %497 : vector<24x32xf32>
    %499 = vector.extract_strided_slice %1 {offsets = [0, 0], sizes = [1, 32], strides = [1, 1]} : vector<3x32xf32> to vector<1x32xf32>
    %500 = vector.broadcast %499 : vector<1x32xf32> to vector<24x32xf32>
    %501 = arith.addf %498, %500 : vector<24x32xf32>
    %cst_110 = arith.constant 0.000000e+00 : f32
    %502 = vector.broadcast %cst_110 : f32 to vector<24x32xf32>
    %503 = arith.cmpf oge, %501, %502 : vector<24x32xf32>
    %cst_111 = arith.constant 0.00999999977 : f32
    %504 = vector.broadcast %cst_111 : f32 to vector<24x32xf32>
    %505 = arith.mulf %504, %501 : vector<24x32xf32>
    %506 = arith.select %503, %501, %505 : vector<24x32xi1>, vector<24x32xf32>
    %507 = vector.extract_strided_slice %1 {offsets = [1, 0], sizes = [1, 32], strides = [1, 1]} : vector<3x32xf32> to vector<1x32xf32>
    %508 = vector.broadcast %507 : vector<1x32xf32> to vector<24x32xf32>
    %509 = arith.mulf %506, %508 : vector<24x32xf32>
    %510 = vector.extract_strided_slice %1 {offsets = [2, 0], sizes = [1, 32], strides = [1, 1]} : vector<3x32xf32> to vector<1x32xf32>
    %511 = vector.broadcast %510 : vector<1x32xf32> to vector<24x32xf32>
    %512 = arith.addf %509, %511 : vector<24x32xf32>
    %513 = vector.extract_strided_slice %512 {offsets = [0, 0], sizes = [21, 32], strides = [1, 1]} : vector<24x32xf32> to vector<21x32xf32>
    %514 = vector.extract_strided_slice %2 {offsets = [0, 0, 0], sizes = [1, 32, 32], strides = [1, 1, 1]} : vector<4x32x32xf32> to vector<1x32x32xf32>
    %515 = vector.shape_cast %514 : vector<1x32x32xf32> to vector<32x32xf32>
    %cst_112 = arith.constant dense<0.000000e+00> : vector<21x32xf32>
    %516 = tpu.matmul %513, %515, %cst_112 {dimension_numbers = #tpu.dot_dimension_numbers<[1], [0], [0], [1], [0, 0, 1, 1], [], []>} : vector<21x32xf32>, vector<32x32xf32>, vector<21x32xf32> -> vector<21x32xf32>
    %517 = vector.extract_strided_slice %512 {offsets = [1, 0], sizes = [21, 32], strides = [1, 1]} : vector<24x32xf32> to vector<21x32xf32>
    %518 = vector.extract_strided_slice %2 {offsets = [1, 0, 0], sizes = [1, 32, 32], strides = [1, 1, 1]} : vector<4x32x32xf32> to vector<1x32x32xf32>
    %519 = vector.shape_cast %518 : vector<1x32x32xf32> to vector<32x32xf32>
    %cst_113 = arith.constant dense<0.000000e+00> : vector<21x32xf32>
    %520 = tpu.matmul %517, %519, %cst_113 {dimension_numbers = #tpu.dot_dimension_numbers<[1], [0], [0], [1], [0, 0, 1, 1], [], []>} : vector<21x32xf32>, vector<32x32xf32>, vector<21x32xf32> -> vector<21x32xf32>
    %521 = arith.addf %516, %520 : vector<21x32xf32>
    %522 = vector.extract_strided_slice %512 {offsets = [2, 0], sizes = [21, 32], strides = [1, 1]} : vector<24x32xf32> to vector<21x32xf32>
    %523 = vector.extract_strided_slice %2 {offsets = [2, 0, 0], sizes = [1, 32, 32], strides = [1, 1, 1]} : vector<4x32x32xf32> to vector<1x32x32xf32>
    %524 = vector.shape_cast %523 : vector<1x32x32xf32> to vector<32x32xf32>
    %cst_114 = arith.constant dense<0.000000e+00> : vector<21x32xf32>
    %525 = tpu.matmul %522, %524, %cst_114 {dimension_numbers = #tpu.dot_dimension_numbers<[1], [0], [0], [1], [0, 0, 1, 1], [], []>} : vector<21x32xf32>, vector<32x32xf32>, vector<21x32xf32> -> vector<21x32xf32>
    %526 = arith.addf %521, %525 : vector<21x32xf32>
    %527 = vector.extract_strided_slice %512 {offsets = [3, 0], sizes = [21, 32], strides = [1, 1]} : vector<24x32xf32> to vector<21x32xf32>
    %528 = vector.extract_strided_slice %2 {offsets = [3, 0, 0], sizes = [1, 32, 32], strides = [1, 1, 1]} : vector<4x32x32xf32> to vector<1x32x32xf32>
    %529 = vector.shape_cast %528 : vector<1x32x32xf32> to vector<32x32xf32>
    %cst_115 = arith.constant dense<0.000000e+00> : vector<21x32xf32>
    %530 = tpu.matmul %527, %529, %cst_115 {dimension_numbers = #tpu.dot_dimension_numbers<[1], [0], [0], [1], [0, 0, 1, 1], [], []>} : vector<21x32xf32>, vector<32x32xf32>, vector<21x32xf32> -> vector<21x32xf32>
    %531 = arith.addf %526, %530 : vector<21x32xf32>
    %532 = vector.extract_strided_slice %3 {offsets = [0, 0], sizes = [1, 32], strides = [1, 1]} : vector<3x32xf32> to vector<1x32xf32>
    %533 = vector.broadcast %532 : vector<1x32xf32> to vector<21x32xf32>
    %534 = arith.addf %531, %533 : vector<21x32xf32>
    %cst_116 = arith.constant 0.000000e+00 : f32
    %535 = vector.broadcast %cst_116 : f32 to vector<21x32xf32>
    %536 = arith.cmpf oge, %534, %535 : vector<21x32xf32>
    %cst_117 = arith.constant 0.00999999977 : f32
    %537 = vector.broadcast %cst_117 : f32 to vector<21x32xf32>
    %538 = arith.mulf %537, %534 : vector<21x32xf32>
    %539 = arith.select %536, %534, %538 : vector<21x32xi1>, vector<21x32xf32>
    %540 = vector.extract_strided_slice %3 {offsets = [1, 0], sizes = [1, 32], strides = [1, 1]} : vector<3x32xf32> to vector<1x32xf32>
    %541 = vector.broadcast %540 : vector<1x32xf32> to vector<21x32xf32>
    %542 = arith.mulf %539, %541 : vector<21x32xf32>
    %543 = vector.extract_strided_slice %3 {offsets = [2, 0], sizes = [1, 32], strides = [1, 1]} : vector<3x32xf32> to vector<1x32xf32>
    %544 = vector.broadcast %543 : vector<1x32xf32> to vector<21x32xf32>
    %545 = arith.addf %542, %544 : vector<21x32xf32>
    %546 = vector.extract_strided_slice %545 {offsets = [0, 0], sizes = [18, 32], strides = [1, 1]} : vector<21x32xf32> to vector<18x32xf32>
    %547 = vector.extract_strided_slice %4 {offsets = [0, 0, 0], sizes = [1, 32, 32], strides = [1, 1, 1]} : vector<4x32x32xf32> to vector<1x32x32xf32>
    %548 = vector.shape_cast %547 : vector<1x32x32xf32> to vector<32x32xf32>
    %cst_118 = arith.constant dense<0.000000e+00> : vector<18x32xf32>
    %549 = tpu.matmul %546, %548, %cst_118 {dimension_numbers = #tpu.dot_dimension_numbers<[1], [0], [0], [1], [0, 0, 1, 1], [], []>} : vector<18x32xf32>, vector<32x32xf32>, vector<18x32xf32> -> vector<18x32xf32>
    %550 = vector.extract_strided_slice %545 {offsets = [1, 0], sizes = [18, 32], strides = [1, 1]} : vector<21x32xf32> to vector<18x32xf32>
    %551 = vector.extract_strided_slice %4 {offsets = [1, 0, 0], sizes = [1, 32, 32], strides = [1, 1, 1]} : vector<4x32x32xf32> to vector<1x32x32xf32>
    %552 = vector.shape_cast %551 : vector<1x32x32xf32> to vector<32x32xf32>
    %cst_119 = arith.constant dense<0.000000e+00> : vector<18x32xf32>
    %553 = tpu.matmul %550, %552, %cst_119 {dimension_numbers = #tpu.dot_dimension_numbers<[1], [0], [0], [1], [0, 0, 1, 1], [], []>} : vector<18x32xf32>, vector<32x32xf32>, vector<18x32xf32> -> vector<18x32xf32>
    %554 = arith.addf %549, %553 : vector<18x32xf32>
    %555 = vector.extract_strided_slice %545 {offsets = [2, 0], sizes = [18, 32], strides = [1, 1]} : vector<21x32xf32> to vector<18x32xf32>
    %556 = vector.extract_strided_slice %4 {offsets = [2, 0, 0], sizes = [1, 32, 32], strides = [1, 1, 1]} : vector<4x32x32xf32> to vector<1x32x32xf32>
    %557 = vector.shape_cast %556 : vector<1x32x32xf32> to vector<32x32xf32>
    %cst_120 = arith.constant dense<0.000000e+00> : vector<18x32xf32>
    %558 = tpu.matmul %555, %557, %cst_120 {dimension_numbers = #tpu.dot_dimension_numbers<[1], [0], [0], [1], [0, 0, 1, 1], [], []>} : vector<18x32xf32>, vector<32x32xf32>, vector<18x32xf32> -> vector<18x32xf32>
    %559 = arith.addf %554, %558 : vector<18x32xf32>
    %560 = vector.extract_strided_slice %545 {offsets = [3, 0], sizes = [18, 32], strides = [1, 1]} : vector<21x32xf32> to vector<18x32xf32>
    %561 = vector.extract_strided_slice %4 {offsets = [3, 0, 0], sizes = [1, 32, 32], strides = [1, 1, 1]} : vector<4x32x32xf32> to vector<1x32x32xf32>
    %562 = vector.shape_cast %561 : vector<1x32x32xf32> to vector<32x32xf32>
    %cst_121 = arith.constant dense<0.000000e+00> : vector<18x32xf32>
    %563 = tpu.matmul %560, %562, %cst_121 {dimension_numbers = #tpu.dot_dimension_numbers<[1], [0], [0], [1], [0, 0, 1, 1], [], []>} : vector<18x32xf32>, vector<32x32xf32>, vector<18x32xf32> -> vector<18x32xf32>
    %564 = arith.addf %559, %563 : vector<18x32xf32>
    %565 = vector.extract_strided_slice %5 {offsets = [0, 0], sizes = [1, 32], strides = [1, 1]} : vector<3x32xf32> to vector<1x32xf32>
    %566 = vector.broadcast %565 : vector<1x32xf32> to vector<18x32xf32>
    %567 = arith.addf %564, %566 : vector<18x32xf32>
    %cst_122 = arith.constant 0.000000e+00 : f32
    %568 = vector.broadcast %cst_122 : f32 to vector<18x32xf32>
    %569 = arith.cmpf oge, %567, %568 : vector<18x32xf32>
    %cst_123 = arith.constant 0.00999999977 : f32
    %570 = vector.broadcast %cst_123 : f32 to vector<18x32xf32>
    %571 = arith.mulf %570, %567 : vector<18x32xf32>
    %572 = arith.select %569, %567, %571 : vector<18x32xi1>, vector<18x32xf32>
    %573 = vector.extract_strided_slice %5 {offsets = [1, 0], sizes = [1, 32], strides = [1, 1]} : vector<3x32xf32> to vector<1x32xf32>
    %574 = vector.broadcast %573 : vector<1x32xf32> to vector<18x32xf32>
    %575 = arith.mulf %572, %574 : vector<18x32xf32>
    %576 = vector.extract_strided_slice %5 {offsets = [2, 0], sizes = [1, 32], strides = [1, 1]} : vector<3x32xf32> to vector<1x32xf32>
    %577 = vector.broadcast %576 : vector<1x32xf32> to vector<18x32xf32>
    %578 = arith.addf %575, %577 : vector<18x32xf32>
    %c5_124 = arith.constant 5 : index
    %c0_125 = arith.constant 0 : index
    %c0_126 = arith.constant 0 : index
    %579 = vector.load %arg8[%c5_124, %c0_125, %c0_126] : memref<8x18x32xf32, #tpu.memory_space<vmem>>, vector<1x18x32xf32>
    %580 = vector.shape_cast %579 : vector<1x18x32xf32> to vector<18x32xf32>
    %581 = vector.shape_cast %578 : vector<18x32xf32> to vector<1x18x32xf32>
    tpu.vector_store %arg8[%c5_124, %c0_125, %c0_126], %581 {strides = array<i32>} : memref<8x18x32xf32, #tpu.memory_space<vmem>>, vector<1x18x32xf32>,
    %c6 = arith.constant 6 : index
    %c0_127 = arith.constant 0 : index
    %c0_128 = arith.constant 0 : index
    %582 = vector.load %arg1[%c6, %c0_127, %c0_128] : memref<8x24x2xf32, #tpu.memory_space<vmem>>, vector<1x24x2xf32>
    %583 = vector.shape_cast %582 : vector<1x24x2xf32> to vector<24x2xf32>
    %584 = vector.extract_strided_slice %583 {offsets = [0, 0], sizes = [24, 1], strides = [1, 1]} : vector<24x2xf32> to vector<24x1xf32>
    %585 = vector.extract_strided_slice %0 {offsets = [0, 0], sizes = [1, 32], strides = [1, 1]} : vector<2x32xf32> to vector<1x32xf32>
    %586 = vector.broadcast %584 : vector<24x1xf32> to vector<24x32xf32>
    %587 = vector.broadcast %585 : vector<1x32xf32> to vector<24x32xf32>
    %588 = arith.mulf %586, %587 : vector<24x32xf32>
    %589 = vector.extract_strided_slice %583 {offsets = [0, 1], sizes = [24, 1], strides = [1, 1]} : vector<24x2xf32> to vector<24x1xf32>
    %590 = vector.extract_strided_slice %0 {offsets = [1, 0], sizes = [1, 32], strides = [1, 1]} : vector<2x32xf32> to vector<1x32xf32>
    %591 = vector.broadcast %589 : vector<24x1xf32> to vector<24x32xf32>
    %592 = vector.broadcast %590 : vector<1x32xf32> to vector<24x32xf32>
    %593 = arith.mulf %591, %592 : vector<24x32xf32>
    %594 = arith.addf %588, %593 : vector<24x32xf32>
    %595 = vector.extract_strided_slice %1 {offsets = [0, 0], sizes = [1, 32], strides = [1, 1]} : vector<3x32xf32> to vector<1x32xf32>
    %596 = vector.broadcast %595 : vector<1x32xf32> to vector<24x32xf32>
    %597 = arith.addf %594, %596 : vector<24x32xf32>
    %cst_129 = arith.constant 0.000000e+00 : f32
    %598 = vector.broadcast %cst_129 : f32 to vector<24x32xf32>
    %599 = arith.cmpf oge, %597, %598 : vector<24x32xf32>
    %cst_130 = arith.constant 0.00999999977 : f32
    %600 = vector.broadcast %cst_130 : f32 to vector<24x32xf32>
    %601 = arith.mulf %600, %597 : vector<24x32xf32>
    %602 = arith.select %599, %597, %601 : vector<24x32xi1>, vector<24x32xf32>
    %603 = vector.extract_strided_slice %1 {offsets = [1, 0], sizes = [1, 32], strides = [1, 1]} : vector<3x32xf32> to vector<1x32xf32>
    %604 = vector.broadcast %603 : vector<1x32xf32> to vector<24x32xf32>
    %605 = arith.mulf %602, %604 : vector<24x32xf32>
    %606 = vector.extract_strided_slice %1 {offsets = [2, 0], sizes = [1, 32], strides = [1, 1]} : vector<3x32xf32> to vector<1x32xf32>
    %607 = vector.broadcast %606 : vector<1x32xf32> to vector<24x32xf32>
    %608 = arith.addf %605, %607 : vector<24x32xf32>
    %609 = vector.extract_strided_slice %608 {offsets = [0, 0], sizes = [21, 32], strides = [1, 1]} : vector<24x32xf32> to vector<21x32xf32>
    %610 = vector.extract_strided_slice %2 {offsets = [0, 0, 0], sizes = [1, 32, 32], strides = [1, 1, 1]} : vector<4x32x32xf32> to vector<1x32x32xf32>
    %611 = vector.shape_cast %610 : vector<1x32x32xf32> to vector<32x32xf32>
    %cst_131 = arith.constant dense<0.000000e+00> : vector<21x32xf32>
    %612 = tpu.matmul %609, %611, %cst_131 {dimension_numbers = #tpu.dot_dimension_numbers<[1], [0], [0], [1], [0, 0, 1, 1], [], []>} : vector<21x32xf32>, vector<32x32xf32>, vector<21x32xf32> -> vector<21x32xf32>
    %613 = vector.extract_strided_slice %608 {offsets = [1, 0], sizes = [21, 32], strides = [1, 1]} : vector<24x32xf32> to vector<21x32xf32>
    %614 = vector.extract_strided_slice %2 {offsets = [1, 0, 0], sizes = [1, 32, 32], strides = [1, 1, 1]} : vector<4x32x32xf32> to vector<1x32x32xf32>
    %615 = vector.shape_cast %614 : vector<1x32x32xf32> to vector<32x32xf32>
    %cst_132 = arith.constant dense<0.000000e+00> : vector<21x32xf32>
    %616 = tpu.matmul %613, %615, %cst_132 {dimension_numbers = #tpu.dot_dimension_numbers<[1], [0], [0], [1], [0, 0, 1, 1], [], []>} : vector<21x32xf32>, vector<32x32xf32>, vector<21x32xf32> -> vector<21x32xf32>
    %617 = arith.addf %612, %616 : vector<21x32xf32>
    %618 = vector.extract_strided_slice %608 {offsets = [2, 0], sizes = [21, 32], strides = [1, 1]} : vector<24x32xf32> to vector<21x32xf32>
    %619 = vector.extract_strided_slice %2 {offsets = [2, 0, 0], sizes = [1, 32, 32], strides = [1, 1, 1]} : vector<4x32x32xf32> to vector<1x32x32xf32>
    %620 = vector.shape_cast %619 : vector<1x32x32xf32> to vector<32x32xf32>
    %cst_133 = arith.constant dense<0.000000e+00> : vector<21x32xf32>
    %621 = tpu.matmul %618, %620, %cst_133 {dimension_numbers = #tpu.dot_dimension_numbers<[1], [0], [0], [1], [0, 0, 1, 1], [], []>} : vector<21x32xf32>, vector<32x32xf32>, vector<21x32xf32> -> vector<21x32xf32>
    %622 = arith.addf %617, %621 : vector<21x32xf32>
    %623 = vector.extract_strided_slice %608 {offsets = [3, 0], sizes = [21, 32], strides = [1, 1]} : vector<24x32xf32> to vector<21x32xf32>
    %624 = vector.extract_strided_slice %2 {offsets = [3, 0, 0], sizes = [1, 32, 32], strides = [1, 1, 1]} : vector<4x32x32xf32> to vector<1x32x32xf32>
    %625 = vector.shape_cast %624 : vector<1x32x32xf32> to vector<32x32xf32>
    %cst_134 = arith.constant dense<0.000000e+00> : vector<21x32xf32>
    %626 = tpu.matmul %623, %625, %cst_134 {dimension_numbers = #tpu.dot_dimension_numbers<[1], [0], [0], [1], [0, 0, 1, 1], [], []>} : vector<21x32xf32>, vector<32x32xf32>, vector<21x32xf32> -> vector<21x32xf32>
    %627 = arith.addf %622, %626 : vector<21x32xf32>
    %628 = vector.extract_strided_slice %3 {offsets = [0, 0], sizes = [1, 32], strides = [1, 1]} : vector<3x32xf32> to vector<1x32xf32>
    %629 = vector.broadcast %628 : vector<1x32xf32> to vector<21x32xf32>
    %630 = arith.addf %627, %629 : vector<21x32xf32>
    %cst_135 = arith.constant 0.000000e+00 : f32
    %631 = vector.broadcast %cst_135 : f32 to vector<21x32xf32>
    %632 = arith.cmpf oge, %630, %631 : vector<21x32xf32>
    %cst_136 = arith.constant 0.00999999977 : f32
    %633 = vector.broadcast %cst_136 : f32 to vector<21x32xf32>
    %634 = arith.mulf %633, %630 : vector<21x32xf32>
    %635 = arith.select %632, %630, %634 : vector<21x32xi1>, vector<21x32xf32>
    %636 = vector.extract_strided_slice %3 {offsets = [1, 0], sizes = [1, 32], strides = [1, 1]} : vector<3x32xf32> to vector<1x32xf32>
    %637 = vector.broadcast %636 : vector<1x32xf32> to vector<21x32xf32>
    %638 = arith.mulf %635, %637 : vector<21x32xf32>
    %639 = vector.extract_strided_slice %3 {offsets = [2, 0], sizes = [1, 32], strides = [1, 1]} : vector<3x32xf32> to vector<1x32xf32>
    %640 = vector.broadcast %639 : vector<1x32xf32> to vector<21x32xf32>
    %641 = arith.addf %638, %640 : vector<21x32xf32>
    %642 = vector.extract_strided_slice %641 {offsets = [0, 0], sizes = [18, 32], strides = [1, 1]} : vector<21x32xf32> to vector<18x32xf32>
    %643 = vector.extract_strided_slice %4 {offsets = [0, 0, 0], sizes = [1, 32, 32], strides = [1, 1, 1]} : vector<4x32x32xf32> to vector<1x32x32xf32>
    %644 = vector.shape_cast %643 : vector<1x32x32xf32> to vector<32x32xf32>
    %cst_137 = arith.constant dense<0.000000e+00> : vector<18x32xf32>
    %645 = tpu.matmul %642, %644, %cst_137 {dimension_numbers = #tpu.dot_dimension_numbers<[1], [0], [0], [1], [0, 0, 1, 1], [], []>} : vector<18x32xf32>, vector<32x32xf32>, vector<18x32xf32> -> vector<18x32xf32>
    %646 = vector.extract_strided_slice %641 {offsets = [1, 0], sizes = [18, 32], strides = [1, 1]} : vector<21x32xf32> to vector<18x32xf32>
    %647 = vector.extract_strided_slice %4 {offsets = [1, 0, 0], sizes = [1, 32, 32], strides = [1, 1, 1]} : vector<4x32x32xf32> to vector<1x32x32xf32>
    %648 = vector.shape_cast %647 : vector<1x32x32xf32> to vector<32x32xf32>
    %cst_138 = arith.constant dense<0.000000e+00> : vector<18x32xf32>
    %649 = tpu.matmul %646, %648, %cst_138 {dimension_numbers = #tpu.dot_dimension_numbers<[1], [0], [0], [1], [0, 0, 1, 1], [], []>} : vector<18x32xf32>, vector<32x32xf32>, vector<18x32xf32> -> vector<18x32xf32>
    %650 = arith.addf %645, %649 : vector<18x32xf32>
    %651 = vector.extract_strided_slice %641 {offsets = [2, 0], sizes = [18, 32], strides = [1, 1]} : vector<21x32xf32> to vector<18x32xf32>
    %652 = vector.extract_strided_slice %4 {offsets = [2, 0, 0], sizes = [1, 32, 32], strides = [1, 1, 1]} : vector<4x32x32xf32> to vector<1x32x32xf32>
    %653 = vector.shape_cast %652 : vector<1x32x32xf32> to vector<32x32xf32>
    %cst_139 = arith.constant dense<0.000000e+00> : vector<18x32xf32>
    %654 = tpu.matmul %651, %653, %cst_139 {dimension_numbers = #tpu.dot_dimension_numbers<[1], [0], [0], [1], [0, 0, 1, 1], [], []>} : vector<18x32xf32>, vector<32x32xf32>, vector<18x32xf32> -> vector<18x32xf32>
    %655 = arith.addf %650, %654 : vector<18x32xf32>
    %656 = vector.extract_strided_slice %641 {offsets = [3, 0], sizes = [18, 32], strides = [1, 1]} : vector<21x32xf32> to vector<18x32xf32>
    %657 = vector.extract_strided_slice %4 {offsets = [3, 0, 0], sizes = [1, 32, 32], strides = [1, 1, 1]} : vector<4x32x32xf32> to vector<1x32x32xf32>
    %658 = vector.shape_cast %657 : vector<1x32x32xf32> to vector<32x32xf32>
    %cst_140 = arith.constant dense<0.000000e+00> : vector<18x32xf32>
    %659 = tpu.matmul %656, %658, %cst_140 {dimension_numbers = #tpu.dot_dimension_numbers<[1], [0], [0], [1], [0, 0, 1, 1], [], []>} : vector<18x32xf32>, vector<32x32xf32>, vector<18x32xf32> -> vector<18x32xf32>
    %660 = arith.addf %655, %659 : vector<18x32xf32>
    %661 = vector.extract_strided_slice %5 {offsets = [0, 0], sizes = [1, 32], strides = [1, 1]} : vector<3x32xf32> to vector<1x32xf32>
    %662 = vector.broadcast %661 : vector<1x32xf32> to vector<18x32xf32>
    %663 = arith.addf %660, %662 : vector<18x32xf32>
    %cst_141 = arith.constant 0.000000e+00 : f32
    %664 = vector.broadcast %cst_141 : f32 to vector<18x32xf32>
    %665 = arith.cmpf oge, %663, %664 : vector<18x32xf32>
    %cst_142 = arith.constant 0.00999999977 : f32
    %666 = vector.broadcast %cst_142 : f32 to vector<18x32xf32>
    %667 = arith.mulf %666, %663 : vector<18x32xf32>
    %668 = arith.select %665, %663, %667 : vector<18x32xi1>, vector<18x32xf32>
    %669 = vector.extract_strided_slice %5 {offsets = [1, 0], sizes = [1, 32], strides = [1, 1]} : vector<3x32xf32> to vector<1x32xf32>
    %670 = vector.broadcast %669 : vector<1x32xf32> to vector<18x32xf32>
    %671 = arith.mulf %668, %670 : vector<18x32xf32>
    %672 = vector.extract_strided_slice %5 {offsets = [2, 0], sizes = [1, 32], strides = [1, 1]} : vector<3x32xf32> to vector<1x32xf32>
    %673 = vector.broadcast %672 : vector<1x32xf32> to vector<18x32xf32>
    %674 = arith.addf %671, %673 : vector<18x32xf32>
    %c6_143 = arith.constant 6 : index
    %c0_144 = arith.constant 0 : index
    %c0_145 = arith.constant 0 : index
    %675 = vector.load %arg8[%c6_143, %c0_144, %c0_145] : memref<8x18x32xf32, #tpu.memory_space<vmem>>, vector<1x18x32xf32>
    %676 = vector.shape_cast %675 : vector<1x18x32xf32> to vector<18x32xf32>
    %677 = vector.shape_cast %674 : vector<18x32xf32> to vector<1x18x32xf32>
    tpu.vector_store %arg8[%c6_143, %c0_144, %c0_145], %677 {strides = array<i32>} : memref<8x18x32xf32, #tpu.memory_space<vmem>>, vector<1x18x32xf32>,
    %c7 = arith.constant 7 : index
    %c0_146 = arith.constant 0 : index
    %c0_147 = arith.constant 0 : index
    %678 = vector.load %arg1[%c7, %c0_146, %c0_147] : memref<8x24x2xf32, #tpu.memory_space<vmem>>, vector<1x24x2xf32>
    %679 = vector.shape_cast %678 : vector<1x24x2xf32> to vector<24x2xf32>
    %680 = vector.extract_strided_slice %679 {offsets = [0, 0], sizes = [24, 1], strides = [1, 1]} : vector<24x2xf32> to vector<24x1xf32>
    %681 = vector.extract_strided_slice %0 {offsets = [0, 0], sizes = [1, 32], strides = [1, 1]} : vector<2x32xf32> to vector<1x32xf32>
    %682 = vector.broadcast %680 : vector<24x1xf32> to vector<24x32xf32>
    %683 = vector.broadcast %681 : vector<1x32xf32> to vector<24x32xf32>
    %684 = arith.mulf %682, %683 : vector<24x32xf32>
    %685 = vector.extract_strided_slice %679 {offsets = [0, 1], sizes = [24, 1], strides = [1, 1]} : vector<24x2xf32> to vector<24x1xf32>
    %686 = vector.extract_strided_slice %0 {offsets = [1, 0], sizes = [1, 32], strides = [1, 1]} : vector<2x32xf32> to vector<1x32xf32>
    %687 = vector.broadcast %685 : vector<24x1xf32> to vector<24x32xf32>
    %688 = vector.broadcast %686 : vector<1x32xf32> to vector<24x32xf32>
    %689 = arith.mulf %687, %688 : vector<24x32xf32>
    %690 = arith.addf %684, %689 : vector<24x32xf32>
    %691 = vector.extract_strided_slice %1 {offsets = [0, 0], sizes = [1, 32], strides = [1, 1]} : vector<3x32xf32> to vector<1x32xf32>
    %692 = vector.broadcast %691 : vector<1x32xf32> to vector<24x32xf32>
    %693 = arith.addf %690, %692 : vector<24x32xf32>
    %cst_148 = arith.constant 0.000000e+00 : f32
    %694 = vector.broadcast %cst_148 : f32 to vector<24x32xf32>
    %695 = arith.cmpf oge, %693, %694 : vector<24x32xf32>
    %cst_149 = arith.constant 0.00999999977 : f32
    %696 = vector.broadcast %cst_149 : f32 to vector<24x32xf32>
    %697 = arith.mulf %696, %693 : vector<24x32xf32>
    %698 = arith.select %695, %693, %697 : vector<24x32xi1>, vector<24x32xf32>
    %699 = vector.extract_strided_slice %1 {offsets = [1, 0], sizes = [1, 32], strides = [1, 1]} : vector<3x32xf32> to vector<1x32xf32>
    %700 = vector.broadcast %699 : vector<1x32xf32> to vector<24x32xf32>
    %701 = arith.mulf %698, %700 : vector<24x32xf32>
    %702 = vector.extract_strided_slice %1 {offsets = [2, 0], sizes = [1, 32], strides = [1, 1]} : vector<3x32xf32> to vector<1x32xf32>
    %703 = vector.broadcast %702 : vector<1x32xf32> to vector<24x32xf32>
    %704 = arith.addf %701, %703 : vector<24x32xf32>
    %705 = vector.extract_strided_slice %704 {offsets = [0, 0], sizes = [21, 32], strides = [1, 1]} : vector<24x32xf32> to vector<21x32xf32>
    %706 = vector.extract_strided_slice %2 {offsets = [0, 0, 0], sizes = [1, 32, 32], strides = [1, 1, 1]} : vector<4x32x32xf32> to vector<1x32x32xf32>
    %707 = vector.shape_cast %706 : vector<1x32x32xf32> to vector<32x32xf32>
    %cst_150 = arith.constant dense<0.000000e+00> : vector<21x32xf32>
    %708 = tpu.matmul %705, %707, %cst_150 {dimension_numbers = #tpu.dot_dimension_numbers<[1], [0], [0], [1], [0, 0, 1, 1], [], []>} : vector<21x32xf32>, vector<32x32xf32>, vector<21x32xf32> -> vector<21x32xf32>
    %709 = vector.extract_strided_slice %704 {offsets = [1, 0], sizes = [21, 32], strides = [1, 1]} : vector<24x32xf32> to vector<21x32xf32>
    %710 = vector.extract_strided_slice %2 {offsets = [1, 0, 0], sizes = [1, 32, 32], strides = [1, 1, 1]} : vector<4x32x32xf32> to vector<1x32x32xf32>
    %711 = vector.shape_cast %710 : vector<1x32x32xf32> to vector<32x32xf32>
    %cst_151 = arith.constant dense<0.000000e+00> : vector<21x32xf32>
    %712 = tpu.matmul %709, %711, %cst_151 {dimension_numbers = #tpu.dot_dimension_numbers<[1], [0], [0], [1], [0, 0, 1, 1], [], []>} : vector<21x32xf32>, vector<32x32xf32>, vector<21x32xf32> -> vector<21x32xf32>
    %713 = arith.addf %708, %712 : vector<21x32xf32>
    %714 = vector.extract_strided_slice %704 {offsets = [2, 0], sizes = [21, 32], strides = [1, 1]} : vector<24x32xf32> to vector<21x32xf32>
    %715 = vector.extract_strided_slice %2 {offsets = [2, 0, 0], sizes = [1, 32, 32], strides = [1, 1, 1]} : vector<4x32x32xf32> to vector<1x32x32xf32>
    %716 = vector.shape_cast %715 : vector<1x32x32xf32> to vector<32x32xf32>
    %cst_152 = arith.constant dense<0.000000e+00> : vector<21x32xf32>
    %717 = tpu.matmul %714, %716, %cst_152 {dimension_numbers = #tpu.dot_dimension_numbers<[1], [0], [0], [1], [0, 0, 1, 1], [], []>} : vector<21x32xf32>, vector<32x32xf32>, vector<21x32xf32> -> vector<21x32xf32>
    %718 = arith.addf %713, %717 : vector<21x32xf32>
    %719 = vector.extract_strided_slice %704 {offsets = [3, 0], sizes = [21, 32], strides = [1, 1]} : vector<24x32xf32> to vector<21x32xf32>
    %720 = vector.extract_strided_slice %2 {offsets = [3, 0, 0], sizes = [1, 32, 32], strides = [1, 1, 1]} : vector<4x32x32xf32> to vector<1x32x32xf32>
    %721 = vector.shape_cast %720 : vector<1x32x32xf32> to vector<32x32xf32>
    %cst_153 = arith.constant dense<0.000000e+00> : vector<21x32xf32>
    %722 = tpu.matmul %719, %721, %cst_153 {dimension_numbers = #tpu.dot_dimension_numbers<[1], [0], [0], [1], [0, 0, 1, 1], [], []>} : vector<21x32xf32>, vector<32x32xf32>, vector<21x32xf32> -> vector<21x32xf32>
    %723 = arith.addf %718, %722 : vector<21x32xf32>
    %724 = vector.extract_strided_slice %3 {offsets = [0, 0], sizes = [1, 32], strides = [1, 1]} : vector<3x32xf32> to vector<1x32xf32>
    %725 = vector.broadcast %724 : vector<1x32xf32> to vector<21x32xf32>
    %726 = arith.addf %723, %725 : vector<21x32xf32>
    %cst_154 = arith.constant 0.000000e+00 : f32
    %727 = vector.broadcast %cst_154 : f32 to vector<21x32xf32>
    %728 = arith.cmpf oge, %726, %727 : vector<21x32xf32>
    %cst_155 = arith.constant 0.00999999977 : f32
    %729 = vector.broadcast %cst_155 : f32 to vector<21x32xf32>
    %730 = arith.mulf %729, %726 : vector<21x32xf32>
    %731 = arith.select %728, %726, %730 : vector<21x32xi1>, vector<21x32xf32>
    %732 = vector.extract_strided_slice %3 {offsets = [1, 0], sizes = [1, 32], strides = [1, 1]} : vector<3x32xf32> to vector<1x32xf32>
    %733 = vector.broadcast %732 : vector<1x32xf32> to vector<21x32xf32>
    %734 = arith.mulf %731, %733 : vector<21x32xf32>
    %735 = vector.extract_strided_slice %3 {offsets = [2, 0], sizes = [1, 32], strides = [1, 1]} : vector<3x32xf32> to vector<1x32xf32>
    %736 = vector.broadcast %735 : vector<1x32xf32> to vector<21x32xf32>
    %737 = arith.addf %734, %736 : vector<21x32xf32>
    %738 = vector.extract_strided_slice %737 {offsets = [0, 0], sizes = [18, 32], strides = [1, 1]} : vector<21x32xf32> to vector<18x32xf32>
    %739 = vector.extract_strided_slice %4 {offsets = [0, 0, 0], sizes = [1, 32, 32], strides = [1, 1, 1]} : vector<4x32x32xf32> to vector<1x32x32xf32>
    %740 = vector.shape_cast %739 : vector<1x32x32xf32> to vector<32x32xf32>
    %cst_156 = arith.constant dense<0.000000e+00> : vector<18x32xf32>
    %741 = tpu.matmul %738, %740, %cst_156 {dimension_numbers = #tpu.dot_dimension_numbers<[1], [0], [0], [1], [0, 0, 1, 1], [], []>} : vector<18x32xf32>, vector<32x32xf32>, vector<18x32xf32> -> vector<18x32xf32>
    %742 = vector.extract_strided_slice %737 {offsets = [1, 0], sizes = [18, 32], strides = [1, 1]} : vector<21x32xf32> to vector<18x32xf32>
    %743 = vector.extract_strided_slice %4 {offsets = [1, 0, 0], sizes = [1, 32, 32], strides = [1, 1, 1]} : vector<4x32x32xf32> to vector<1x32x32xf32>
    %744 = vector.shape_cast %743 : vector<1x32x32xf32> to vector<32x32xf32>
    %cst_157 = arith.constant dense<0.000000e+00> : vector<18x32xf32>
    %745 = tpu.matmul %742, %744, %cst_157 {dimension_numbers = #tpu.dot_dimension_numbers<[1], [0], [0], [1], [0, 0, 1, 1], [], []>} : vector<18x32xf32>, vector<32x32xf32>, vector<18x32xf32> -> vector<18x32xf32>
    %746 = arith.addf %741, %745 : vector<18x32xf32>
    %747 = vector.extract_strided_slice %737 {offsets = [2, 0], sizes = [18, 32], strides = [1, 1]} : vector<21x32xf32> to vector<18x32xf32>
    %748 = vector.extract_strided_slice %4 {offsets = [2, 0, 0], sizes = [1, 32, 32], strides = [1, 1, 1]} : vector<4x32x32xf32> to vector<1x32x32xf32>
    %749 = vector.shape_cast %748 : vector<1x32x32xf32> to vector<32x32xf32>
    %cst_158 = arith.constant dense<0.000000e+00> : vector<18x32xf32>
    %750 = tpu.matmul %747, %749, %cst_158 {dimension_numbers = #tpu.dot_dimension_numbers<[1], [0], [0], [1], [0, 0, 1, 1], [], []>} : vector<18x32xf32>, vector<32x32xf32>, vector<18x32xf32> -> vector<18x32xf32>
    %751 = arith.addf %746, %750 : vector<18x32xf32>
    %752 = vector.extract_strided_slice %737 {offsets = [3, 0], sizes = [18, 32], strides = [1, 1]} : vector<21x32xf32> to vector<18x32xf32>
    %753 = vector.extract_strided_slice %4 {offsets = [3, 0, 0], sizes = [1, 32, 32], strides = [1, 1, 1]} : vector<4x32x32xf32> to vector<1x32x32xf32>
    %754 = vector.shape_cast %753 : vector<1x32x32xf32> to vector<32x32xf32>
    %cst_159 = arith.constant dense<0.000000e+00> : vector<18x32xf32>
    %755 = tpu.matmul %752, %754, %cst_159 {dimension_numbers = #tpu.dot_dimension_numbers<[1], [0], [0], [1], [0, 0, 1, 1], [], []>} : vector<18x32xf32>, vector<32x32xf32>, vector<18x32xf32> -> vector<18x32xf32>
    %756 = arith.addf %751, %755 : vector<18x32xf32>
    %757 = vector.extract_strided_slice %5 {offsets = [0, 0], sizes = [1, 32], strides = [1, 1]} : vector<3x32xf32> to vector<1x32xf32>
    %758 = vector.broadcast %757 : vector<1x32xf32> to vector<18x32xf32>
    %759 = arith.addf %756, %758 : vector<18x32xf32>
    %cst_160 = arith.constant 0.000000e+00 : f32
    %760 = vector.broadcast %cst_160 : f32 to vector<18x32xf32>
    %761 = arith.cmpf oge, %759, %760 : vector<18x32xf32>
    %cst_161 = arith.constant 0.00999999977 : f32
    %762 = vector.broadcast %cst_161 : f32 to vector<18x32xf32>
    %763 = arith.mulf %762, %759 : vector<18x32xf32>
    %764 = arith.select %761, %759, %763 : vector<18x32xi1>, vector<18x32xf32>
    %765 = vector.extract_strided_slice %5 {offsets = [1, 0], sizes = [1, 32], strides = [1, 1]} : vector<3x32xf32> to vector<1x32xf32>
    %766 = vector.broadcast %765 : vector<1x32xf32> to vector<18x32xf32>
    %767 = arith.mulf %764, %766 : vector<18x32xf32>
    %768 = vector.extract_strided_slice %5 {offsets = [2, 0], sizes = [1, 32], strides = [1, 1]} : vector<3x32xf32> to vector<1x32xf32>
    %769 = vector.broadcast %768 : vector<1x32xf32> to vector<18x32xf32>
    %770 = arith.addf %767, %769 : vector<18x32xf32>
    %c7_162 = arith.constant 7 : index
    %c0_163 = arith.constant 0 : index
    %c0_164 = arith.constant 0 : index
    %771 = vector.load %arg8[%c7_162, %c0_163, %c0_164] : memref<8x18x32xf32, #tpu.memory_space<vmem>>, vector<1x18x32xf32>
    %772 = vector.shape_cast %771 : vector<1x18x32xf32> to vector<18x32xf32>
    %773 = vector.shape_cast %770 : vector<18x32xf32> to vector<1x18x32xf32>
    tpu.vector_store %arg8[%c7_162, %c0_163, %c0_164], %773 {strides = array<i32>} : memref<8x18x32xf32, #tpu.memory_space<vmem>>, vector<1x18x32xf32>,
    return
  }
  func.func @transform_0(%arg0: i32) -> (i32, i32, i32) {
    %c0_i32 = arith.constant 0 : i32
    %c0_i32_0 = arith.constant 0 : i32
    %c0_i32_1 = arith.constant 0 : i32
    return %arg0, %c0_i32, %c0_i32_0 : i32, i32, i32
  }
  func.func @transform_1(%arg0: i32) -> (i32, i32) {
    %c0_i32 = arith.constant 0 : i32
    %c0_i32_0 = arith.constant 0 : i32
    %c0_i32_1 = arith.constant 0 : i32
    return %c0_i32, %c0_i32_0 : i32, i32
  }
  func.func @transform_2(%arg0: i32) -> (i32, i32) {
    %c0_i32 = arith.constant 0 : i32
    %c0_i32_0 = arith.constant 0 : i32
    %c0_i32_1 = arith.constant 0 : i32
    return %c0_i32, %c0_i32_0 : i32, i32
  }
  func.func @transform_3(%arg0: i32) -> (i32, i32, i32) {
    %c0_i32 = arith.constant 0 : i32
    %c0_i32_0 = arith.constant 0 : i32
    %c0_i32_1 = arith.constant 0 : i32
    %c0_i32_2 = arith.constant 0 : i32
    return %c0_i32, %c0_i32_0, %c0_i32_1 : i32, i32, i32
  }
  func.func @transform_4(%arg0: i32) -> (i32, i32) {
    %c0_i32 = arith.constant 0 : i32
    %c0_i32_0 = arith.constant 0 : i32
    %c0_i32_1 = arith.constant 0 : i32
    return %c0_i32, %c0_i32_0 : i32, i32
  }
  func.func @transform_5(%arg0: i32) -> (i32, i32, i32) {
    %c0_i32 = arith.constant 0 : i32
    %c0_i32_0 = arith.constant 0 : i32
    %c0_i32_1 = arith.constant 0 : i32
    %c0_i32_2 = arith.constant 0 : i32
    return %c0_i32, %c0_i32_0, %c0_i32_1 : i32, i32, i32
  }
  func.func @transform_6(%arg0: i32) -> (i32, i32) {
    %c0_i32 = arith.constant 0 : i32
    %c0_i32_0 = arith.constant 0 : i32
    %c0_i32_1 = arith.constant 0 : i32
    return %c0_i32, %c0_i32_0 : i32, i32
  }
  func.func @transform_7(%arg0: i32) -> (i32, i32, i32) {
    %c0_i32 = arith.constant 0 : i32
    %c0_i32_0 = arith.constant 0 : i32
    %c0_i32_1 = arith.constant 0 : i32
    return %arg0, %c0_i32, %c0_i32_0 : i32, i32, i32
  }
}

module attributes {stable_mosaic.version = 11 : i64} {
  func.func @_conv3_stack_kernel(%arg0: i32, %arg1: memref<2x18x320xf32, #tpu.memory_space<vmem>>, %arg2: memref<320x32xf32, #tpu.memory_space<vmem>>, %arg3: memref<3x32xf32, #tpu.memory_space<vmem>>, %arg4: memref<4x32x32xf32, #tpu.memory_space<vmem>>, %arg5: memref<3x32xf32, #tpu.memory_space<vmem>>, %arg6: memref<4x32x32xf32, #tpu.memory_space<vmem>>, %arg7: memref<3x32xf32, #tpu.memory_space<vmem>>, %arg8: memref<2x12x32xf32, #tpu.memory_space<vmem>>) attributes {dimension_semantics = [#tpu.dimension_semantics<parallel>], iteration_bounds = array<i64: 1>, scalar_prefetch = 0 : i64, scratch_operands = 0 : i64, tpu.core_type = #tpu.core_type<tc>, window_params = [{transform_indices = @transform_0, window_bounds = array<i64: 2, 18, 320>}, {pipeline_mode = #tpu.pipeline_mode<synchronous>, transform_indices = @transform_1, window_bounds = array<i64: 320, 32>}, {pipeline_mode = #tpu.pipeline_mode<synchronous>, transform_indices = @transform_2, window_bounds = array<i64: 3, 32>}, {pipeline_mode = #tpu.pipeline_mode<synchronous>, transform_indices = @transform_3, window_bounds = array<i64: 4, 32, 32>}, {pipeline_mode = #tpu.pipeline_mode<synchronous>, transform_indices = @transform_4, window_bounds = array<i64: 3, 32>}, {pipeline_mode = #tpu.pipeline_mode<synchronous>, transform_indices = @transform_5, window_bounds = array<i64: 4, 32, 32>}, {pipeline_mode = #tpu.pipeline_mode<synchronous>, transform_indices = @transform_6, window_bounds = array<i64: 3, 32>}, {transform_indices = @transform_7, window_bounds = array<i64: 2, 12, 32>}]} {
    %c0 = arith.constant 0 : index
    %c0_0 = arith.constant 0 : index
    %0 = vector.load %arg2[%c0, %c0_0] : memref<320x32xf32, #tpu.memory_space<vmem>>, vector<320x32xf32>
    %c0_1 = arith.constant 0 : index
    %c0_2 = arith.constant 0 : index
    %1 = vector.load %arg3[%c0_1, %c0_2] : memref<3x32xf32, #tpu.memory_space<vmem>>, vector<3x32xf32>
    %c0_3 = arith.constant 0 : index
    %c0_4 = arith.constant 0 : index
    %c0_5 = arith.constant 0 : index
    %2 = vector.load %arg4[%c0_3, %c0_4, %c0_5] : memref<4x32x32xf32, #tpu.memory_space<vmem>>, vector<4x32x32xf32>
    %c0_6 = arith.constant 0 : index
    %c0_7 = arith.constant 0 : index
    %3 = vector.load %arg5[%c0_6, %c0_7] : memref<3x32xf32, #tpu.memory_space<vmem>>, vector<3x32xf32>
    %c0_8 = arith.constant 0 : index
    %c0_9 = arith.constant 0 : index
    %c0_10 = arith.constant 0 : index
    %4 = vector.load %arg6[%c0_8, %c0_9, %c0_10] : memref<4x32x32xf32, #tpu.memory_space<vmem>>, vector<4x32x32xf32>
    %c0_11 = arith.constant 0 : index
    %c0_12 = arith.constant 0 : index
    %5 = vector.load %arg7[%c0_11, %c0_12] : memref<3x32xf32, #tpu.memory_space<vmem>>, vector<3x32xf32>
    %c0_13 = arith.constant 0 : index
    %c0_14 = arith.constant 0 : index
    %c0_15 = arith.constant 0 : index
    %6 = vector.load %arg1[%c0_13, %c0_14, %c0_15] : memref<2x18x320xf32, #tpu.memory_space<vmem>>, vector<1x18x320xf32>
    %7 = vector.shape_cast %6 : vector<1x18x320xf32> to vector<18x320xf32>
    %cst = arith.constant dense<0.000000e+00> : vector<18x32xf32>
    %8 = tpu.matmul %7, %0, %cst {dimension_numbers = #tpu.dot_dimension_numbers<[1], [0], [0], [1], [0, 0, 1, 1], [], []>} : vector<18x320xf32>, vector<320x32xf32>, vector<18x32xf32> -> vector<18x32xf32>
    %9 = vector.extract_strided_slice %1 {offsets = [0, 0], sizes = [1, 32], strides = [1, 1]} : vector<3x32xf32> to vector<1x32xf32>
    %10 = vector.broadcast %9 : vector<1x32xf32> to vector<18x32xf32>
    %11 = arith.addf %8, %10 : vector<18x32xf32>
    %cst_16 = arith.constant 0.000000e+00 : f32
    %12 = vector.broadcast %cst_16 : f32 to vector<18x32xf32>
    %13 = arith.cmpf oge, %11, %12 : vector<18x32xf32>
    %cst_17 = arith.constant 0.00999999977 : f32
    %14 = vector.broadcast %cst_17 : f32 to vector<18x32xf32>
    %15 = arith.mulf %14, %11 : vector<18x32xf32>
    %16 = arith.select %13, %11, %15 : vector<18x32xi1>, vector<18x32xf32>
    %17 = vector.extract_strided_slice %1 {offsets = [1, 0], sizes = [1, 32], strides = [1, 1]} : vector<3x32xf32> to vector<1x32xf32>
    %18 = vector.broadcast %17 : vector<1x32xf32> to vector<18x32xf32>
    %19 = arith.mulf %16, %18 : vector<18x32xf32>
    %20 = vector.extract_strided_slice %1 {offsets = [2, 0], sizes = [1, 32], strides = [1, 1]} : vector<3x32xf32> to vector<1x32xf32>
    %21 = vector.broadcast %20 : vector<1x32xf32> to vector<18x32xf32>
    %22 = arith.addf %19, %21 : vector<18x32xf32>
    %23 = vector.extract_strided_slice %22 {offsets = [0, 0], sizes = [15, 32], strides = [1, 1]} : vector<18x32xf32> to vector<15x32xf32>
    %24 = vector.extract_strided_slice %2 {offsets = [0, 0, 0], sizes = [1, 32, 32], strides = [1, 1, 1]} : vector<4x32x32xf32> to vector<1x32x32xf32>
    %25 = vector.shape_cast %24 : vector<1x32x32xf32> to vector<32x32xf32>
    %cst_18 = arith.constant dense<0.000000e+00> : vector<15x32xf32>
    %26 = tpu.matmul %23, %25, %cst_18 {dimension_numbers = #tpu.dot_dimension_numbers<[1], [0], [0], [1], [0, 0, 1, 1], [], []>} : vector<15x32xf32>, vector<32x32xf32>, vector<15x32xf32> -> vector<15x32xf32>
    %27 = vector.extract_strided_slice %22 {offsets = [1, 0], sizes = [15, 32], strides = [1, 1]} : vector<18x32xf32> to vector<15x32xf32>
    %28 = vector.extract_strided_slice %2 {offsets = [1, 0, 0], sizes = [1, 32, 32], strides = [1, 1, 1]} : vector<4x32x32xf32> to vector<1x32x32xf32>
    %29 = vector.shape_cast %28 : vector<1x32x32xf32> to vector<32x32xf32>
    %cst_19 = arith.constant dense<0.000000e+00> : vector<15x32xf32>
    %30 = tpu.matmul %27, %29, %cst_19 {dimension_numbers = #tpu.dot_dimension_numbers<[1], [0], [0], [1], [0, 0, 1, 1], [], []>} : vector<15x32xf32>, vector<32x32xf32>, vector<15x32xf32> -> vector<15x32xf32>
    %31 = arith.addf %26, %30 : vector<15x32xf32>
    %32 = vector.extract_strided_slice %22 {offsets = [2, 0], sizes = [15, 32], strides = [1, 1]} : vector<18x32xf32> to vector<15x32xf32>
    %33 = vector.extract_strided_slice %2 {offsets = [2, 0, 0], sizes = [1, 32, 32], strides = [1, 1, 1]} : vector<4x32x32xf32> to vector<1x32x32xf32>
    %34 = vector.shape_cast %33 : vector<1x32x32xf32> to vector<32x32xf32>
    %cst_20 = arith.constant dense<0.000000e+00> : vector<15x32xf32>
    %35 = tpu.matmul %32, %34, %cst_20 {dimension_numbers = #tpu.dot_dimension_numbers<[1], [0], [0], [1], [0, 0, 1, 1], [], []>} : vector<15x32xf32>, vector<32x32xf32>, vector<15x32xf32> -> vector<15x32xf32>
    %36 = arith.addf %31, %35 : vector<15x32xf32>
    %37 = vector.extract_strided_slice %22 {offsets = [3, 0], sizes = [15, 32], strides = [1, 1]} : vector<18x32xf32> to vector<15x32xf32>
    %38 = vector.extract_strided_slice %2 {offsets = [3, 0, 0], sizes = [1, 32, 32], strides = [1, 1, 1]} : vector<4x32x32xf32> to vector<1x32x32xf32>
    %39 = vector.shape_cast %38 : vector<1x32x32xf32> to vector<32x32xf32>
    %cst_21 = arith.constant dense<0.000000e+00> : vector<15x32xf32>
    %40 = tpu.matmul %37, %39, %cst_21 {dimension_numbers = #tpu.dot_dimension_numbers<[1], [0], [0], [1], [0, 0, 1, 1], [], []>} : vector<15x32xf32>, vector<32x32xf32>, vector<15x32xf32> -> vector<15x32xf32>
    %41 = arith.addf %36, %40 : vector<15x32xf32>
    %42 = vector.extract_strided_slice %3 {offsets = [0, 0], sizes = [1, 32], strides = [1, 1]} : vector<3x32xf32> to vector<1x32xf32>
    %43 = vector.broadcast %42 : vector<1x32xf32> to vector<15x32xf32>
    %44 = arith.addf %41, %43 : vector<15x32xf32>
    %cst_22 = arith.constant 0.000000e+00 : f32
    %45 = vector.broadcast %cst_22 : f32 to vector<15x32xf32>
    %46 = arith.cmpf oge, %44, %45 : vector<15x32xf32>
    %cst_23 = arith.constant 0.00999999977 : f32
    %47 = vector.broadcast %cst_23 : f32 to vector<15x32xf32>
    %48 = arith.mulf %47, %44 : vector<15x32xf32>
    %49 = arith.select %46, %44, %48 : vector<15x32xi1>, vector<15x32xf32>
    %50 = vector.extract_strided_slice %3 {offsets = [1, 0], sizes = [1, 32], strides = [1, 1]} : vector<3x32xf32> to vector<1x32xf32>
    %51 = vector.broadcast %50 : vector<1x32xf32> to vector<15x32xf32>
    %52 = arith.mulf %49, %51 : vector<15x32xf32>
    %53 = vector.extract_strided_slice %3 {offsets = [2, 0], sizes = [1, 32], strides = [1, 1]} : vector<3x32xf32> to vector<1x32xf32>
    %54 = vector.broadcast %53 : vector<1x32xf32> to vector<15x32xf32>
    %55 = arith.addf %52, %54 : vector<15x32xf32>
    %56 = vector.extract_strided_slice %55 {offsets = [0, 0], sizes = [12, 32], strides = [1, 1]} : vector<15x32xf32> to vector<12x32xf32>
    %57 = vector.extract_strided_slice %4 {offsets = [0, 0, 0], sizes = [1, 32, 32], strides = [1, 1, 1]} : vector<4x32x32xf32> to vector<1x32x32xf32>
    %58 = vector.shape_cast %57 : vector<1x32x32xf32> to vector<32x32xf32>
    %cst_24 = arith.constant dense<0.000000e+00> : vector<12x32xf32>
    %59 = tpu.matmul %56, %58, %cst_24 {dimension_numbers = #tpu.dot_dimension_numbers<[1], [0], [0], [1], [0, 0, 1, 1], [], []>} : vector<12x32xf32>, vector<32x32xf32>, vector<12x32xf32> -> vector<12x32xf32>
    %60 = vector.extract_strided_slice %55 {offsets = [1, 0], sizes = [12, 32], strides = [1, 1]} : vector<15x32xf32> to vector<12x32xf32>
    %61 = vector.extract_strided_slice %4 {offsets = [1, 0, 0], sizes = [1, 32, 32], strides = [1, 1, 1]} : vector<4x32x32xf32> to vector<1x32x32xf32>
    %62 = vector.shape_cast %61 : vector<1x32x32xf32> to vector<32x32xf32>
    %cst_25 = arith.constant dense<0.000000e+00> : vector<12x32xf32>
    %63 = tpu.matmul %60, %62, %cst_25 {dimension_numbers = #tpu.dot_dimension_numbers<[1], [0], [0], [1], [0, 0, 1, 1], [], []>} : vector<12x32xf32>, vector<32x32xf32>, vector<12x32xf32> -> vector<12x32xf32>
    %64 = arith.addf %59, %63 : vector<12x32xf32>
    %65 = vector.extract_strided_slice %55 {offsets = [2, 0], sizes = [12, 32], strides = [1, 1]} : vector<15x32xf32> to vector<12x32xf32>
    %66 = vector.extract_strided_slice %4 {offsets = [2, 0, 0], sizes = [1, 32, 32], strides = [1, 1, 1]} : vector<4x32x32xf32> to vector<1x32x32xf32>
    %67 = vector.shape_cast %66 : vector<1x32x32xf32> to vector<32x32xf32>
    %cst_26 = arith.constant dense<0.000000e+00> : vector<12x32xf32>
    %68 = tpu.matmul %65, %67, %cst_26 {dimension_numbers = #tpu.dot_dimension_numbers<[1], [0], [0], [1], [0, 0, 1, 1], [], []>} : vector<12x32xf32>, vector<32x32xf32>, vector<12x32xf32> -> vector<12x32xf32>
    %69 = arith.addf %64, %68 : vector<12x32xf32>
    %70 = vector.extract_strided_slice %55 {offsets = [3, 0], sizes = [12, 32], strides = [1, 1]} : vector<15x32xf32> to vector<12x32xf32>
    %71 = vector.extract_strided_slice %4 {offsets = [3, 0, 0], sizes = [1, 32, 32], strides = [1, 1, 1]} : vector<4x32x32xf32> to vector<1x32x32xf32>
    %72 = vector.shape_cast %71 : vector<1x32x32xf32> to vector<32x32xf32>
    %cst_27 = arith.constant dense<0.000000e+00> : vector<12x32xf32>
    %73 = tpu.matmul %70, %72, %cst_27 {dimension_numbers = #tpu.dot_dimension_numbers<[1], [0], [0], [1], [0, 0, 1, 1], [], []>} : vector<12x32xf32>, vector<32x32xf32>, vector<12x32xf32> -> vector<12x32xf32>
    %74 = arith.addf %69, %73 : vector<12x32xf32>
    %75 = vector.extract_strided_slice %5 {offsets = [0, 0], sizes = [1, 32], strides = [1, 1]} : vector<3x32xf32> to vector<1x32xf32>
    %76 = vector.broadcast %75 : vector<1x32xf32> to vector<12x32xf32>
    %77 = arith.addf %74, %76 : vector<12x32xf32>
    %cst_28 = arith.constant 0.000000e+00 : f32
    %78 = vector.broadcast %cst_28 : f32 to vector<12x32xf32>
    %79 = arith.cmpf oge, %77, %78 : vector<12x32xf32>
    %cst_29 = arith.constant 0.00999999977 : f32
    %80 = vector.broadcast %cst_29 : f32 to vector<12x32xf32>
    %81 = arith.mulf %80, %77 : vector<12x32xf32>
    %82 = arith.select %79, %77, %81 : vector<12x32xi1>, vector<12x32xf32>
    %83 = vector.extract_strided_slice %5 {offsets = [1, 0], sizes = [1, 32], strides = [1, 1]} : vector<3x32xf32> to vector<1x32xf32>
    %84 = vector.broadcast %83 : vector<1x32xf32> to vector<12x32xf32>
    %85 = arith.mulf %82, %84 : vector<12x32xf32>
    %86 = vector.extract_strided_slice %5 {offsets = [2, 0], sizes = [1, 32], strides = [1, 1]} : vector<3x32xf32> to vector<1x32xf32>
    %87 = vector.broadcast %86 : vector<1x32xf32> to vector<12x32xf32>
    %88 = arith.addf %85, %87 : vector<12x32xf32>
    %c0_30 = arith.constant 0 : index
    %c0_31 = arith.constant 0 : index
    %c0_32 = arith.constant 0 : index
    %89 = vector.load %arg8[%c0_30, %c0_31, %c0_32] : memref<2x12x32xf32, #tpu.memory_space<vmem>>, vector<1x12x32xf32>
    %90 = vector.shape_cast %89 : vector<1x12x32xf32> to vector<12x32xf32>
    %91 = vector.shape_cast %88 : vector<12x32xf32> to vector<1x12x32xf32>
    tpu.vector_store %arg8[%c0_30, %c0_31, %c0_32], %91 {strides = array<i32>} : memref<2x12x32xf32, #tpu.memory_space<vmem>>, vector<1x12x32xf32>,
    %c1 = arith.constant 1 : index
    %c0_33 = arith.constant 0 : index
    %c0_34 = arith.constant 0 : index
    %92 = vector.load %arg1[%c1, %c0_33, %c0_34] : memref<2x18x320xf32, #tpu.memory_space<vmem>>, vector<1x18x320xf32>
    %93 = vector.shape_cast %92 : vector<1x18x320xf32> to vector<18x320xf32>
    %cst_35 = arith.constant dense<0.000000e+00> : vector<18x32xf32>
    %94 = tpu.matmul %93, %0, %cst_35 {dimension_numbers = #tpu.dot_dimension_numbers<[1], [0], [0], [1], [0, 0, 1, 1], [], []>} : vector<18x320xf32>, vector<320x32xf32>, vector<18x32xf32> -> vector<18x32xf32>
    %95 = vector.extract_strided_slice %1 {offsets = [0, 0], sizes = [1, 32], strides = [1, 1]} : vector<3x32xf32> to vector<1x32xf32>
    %96 = vector.broadcast %95 : vector<1x32xf32> to vector<18x32xf32>
    %97 = arith.addf %94, %96 : vector<18x32xf32>
    %cst_36 = arith.constant 0.000000e+00 : f32
    %98 = vector.broadcast %cst_36 : f32 to vector<18x32xf32>
    %99 = arith.cmpf oge, %97, %98 : vector<18x32xf32>
    %cst_37 = arith.constant 0.00999999977 : f32
    %100 = vector.broadcast %cst_37 : f32 to vector<18x32xf32>
    %101 = arith.mulf %100, %97 : vector<18x32xf32>
    %102 = arith.select %99, %97, %101 : vector<18x32xi1>, vector<18x32xf32>
    %103 = vector.extract_strided_slice %1 {offsets = [1, 0], sizes = [1, 32], strides = [1, 1]} : vector<3x32xf32> to vector<1x32xf32>
    %104 = vector.broadcast %103 : vector<1x32xf32> to vector<18x32xf32>
    %105 = arith.mulf %102, %104 : vector<18x32xf32>
    %106 = vector.extract_strided_slice %1 {offsets = [2, 0], sizes = [1, 32], strides = [1, 1]} : vector<3x32xf32> to vector<1x32xf32>
    %107 = vector.broadcast %106 : vector<1x32xf32> to vector<18x32xf32>
    %108 = arith.addf %105, %107 : vector<18x32xf32>
    %109 = vector.extract_strided_slice %108 {offsets = [0, 0], sizes = [15, 32], strides = [1, 1]} : vector<18x32xf32> to vector<15x32xf32>
    %110 = vector.extract_strided_slice %2 {offsets = [0, 0, 0], sizes = [1, 32, 32], strides = [1, 1, 1]} : vector<4x32x32xf32> to vector<1x32x32xf32>
    %111 = vector.shape_cast %110 : vector<1x32x32xf32> to vector<32x32xf32>
    %cst_38 = arith.constant dense<0.000000e+00> : vector<15x32xf32>
    %112 = tpu.matmul %109, %111, %cst_38 {dimension_numbers = #tpu.dot_dimension_numbers<[1], [0], [0], [1], [0, 0, 1, 1], [], []>} : vector<15x32xf32>, vector<32x32xf32>, vector<15x32xf32> -> vector<15x32xf32>
    %113 = vector.extract_strided_slice %108 {offsets = [1, 0], sizes = [15, 32], strides = [1, 1]} : vector<18x32xf32> to vector<15x32xf32>
    %114 = vector.extract_strided_slice %2 {offsets = [1, 0, 0], sizes = [1, 32, 32], strides = [1, 1, 1]} : vector<4x32x32xf32> to vector<1x32x32xf32>
    %115 = vector.shape_cast %114 : vector<1x32x32xf32> to vector<32x32xf32>
    %cst_39 = arith.constant dense<0.000000e+00> : vector<15x32xf32>
    %116 = tpu.matmul %113, %115, %cst_39 {dimension_numbers = #tpu.dot_dimension_numbers<[1], [0], [0], [1], [0, 0, 1, 1], [], []>} : vector<15x32xf32>, vector<32x32xf32>, vector<15x32xf32> -> vector<15x32xf32>
    %117 = arith.addf %112, %116 : vector<15x32xf32>
    %118 = vector.extract_strided_slice %108 {offsets = [2, 0], sizes = [15, 32], strides = [1, 1]} : vector<18x32xf32> to vector<15x32xf32>
    %119 = vector.extract_strided_slice %2 {offsets = [2, 0, 0], sizes = [1, 32, 32], strides = [1, 1, 1]} : vector<4x32x32xf32> to vector<1x32x32xf32>
    %120 = vector.shape_cast %119 : vector<1x32x32xf32> to vector<32x32xf32>
    %cst_40 = arith.constant dense<0.000000e+00> : vector<15x32xf32>
    %121 = tpu.matmul %118, %120, %cst_40 {dimension_numbers = #tpu.dot_dimension_numbers<[1], [0], [0], [1], [0, 0, 1, 1], [], []>} : vector<15x32xf32>, vector<32x32xf32>, vector<15x32xf32> -> vector<15x32xf32>
    %122 = arith.addf %117, %121 : vector<15x32xf32>
    %123 = vector.extract_strided_slice %108 {offsets = [3, 0], sizes = [15, 32], strides = [1, 1]} : vector<18x32xf32> to vector<15x32xf32>
    %124 = vector.extract_strided_slice %2 {offsets = [3, 0, 0], sizes = [1, 32, 32], strides = [1, 1, 1]} : vector<4x32x32xf32> to vector<1x32x32xf32>
    %125 = vector.shape_cast %124 : vector<1x32x32xf32> to vector<32x32xf32>
    %cst_41 = arith.constant dense<0.000000e+00> : vector<15x32xf32>
    %126 = tpu.matmul %123, %125, %cst_41 {dimension_numbers = #tpu.dot_dimension_numbers<[1], [0], [0], [1], [0, 0, 1, 1], [], []>} : vector<15x32xf32>, vector<32x32xf32>, vector<15x32xf32> -> vector<15x32xf32>
    %127 = arith.addf %122, %126 : vector<15x32xf32>
    %128 = vector.extract_strided_slice %3 {offsets = [0, 0], sizes = [1, 32], strides = [1, 1]} : vector<3x32xf32> to vector<1x32xf32>
    %129 = vector.broadcast %128 : vector<1x32xf32> to vector<15x32xf32>
    %130 = arith.addf %127, %129 : vector<15x32xf32>
    %cst_42 = arith.constant 0.000000e+00 : f32
    %131 = vector.broadcast %cst_42 : f32 to vector<15x32xf32>
    %132 = arith.cmpf oge, %130, %131 : vector<15x32xf32>
    %cst_43 = arith.constant 0.00999999977 : f32
    %133 = vector.broadcast %cst_43 : f32 to vector<15x32xf32>
    %134 = arith.mulf %133, %130 : vector<15x32xf32>
    %135 = arith.select %132, %130, %134 : vector<15x32xi1>, vector<15x32xf32>
    %136 = vector.extract_strided_slice %3 {offsets = [1, 0], sizes = [1, 32], strides = [1, 1]} : vector<3x32xf32> to vector<1x32xf32>
    %137 = vector.broadcast %136 : vector<1x32xf32> to vector<15x32xf32>
    %138 = arith.mulf %135, %137 : vector<15x32xf32>
    %139 = vector.extract_strided_slice %3 {offsets = [2, 0], sizes = [1, 32], strides = [1, 1]} : vector<3x32xf32> to vector<1x32xf32>
    %140 = vector.broadcast %139 : vector<1x32xf32> to vector<15x32xf32>
    %141 = arith.addf %138, %140 : vector<15x32xf32>
    %142 = vector.extract_strided_slice %141 {offsets = [0, 0], sizes = [12, 32], strides = [1, 1]} : vector<15x32xf32> to vector<12x32xf32>
    %143 = vector.extract_strided_slice %4 {offsets = [0, 0, 0], sizes = [1, 32, 32], strides = [1, 1, 1]} : vector<4x32x32xf32> to vector<1x32x32xf32>
    %144 = vector.shape_cast %143 : vector<1x32x32xf32> to vector<32x32xf32>
    %cst_44 = arith.constant dense<0.000000e+00> : vector<12x32xf32>
    %145 = tpu.matmul %142, %144, %cst_44 {dimension_numbers = #tpu.dot_dimension_numbers<[1], [0], [0], [1], [0, 0, 1, 1], [], []>} : vector<12x32xf32>, vector<32x32xf32>, vector<12x32xf32> -> vector<12x32xf32>
    %146 = vector.extract_strided_slice %141 {offsets = [1, 0], sizes = [12, 32], strides = [1, 1]} : vector<15x32xf32> to vector<12x32xf32>
    %147 = vector.extract_strided_slice %4 {offsets = [1, 0, 0], sizes = [1, 32, 32], strides = [1, 1, 1]} : vector<4x32x32xf32> to vector<1x32x32xf32>
    %148 = vector.shape_cast %147 : vector<1x32x32xf32> to vector<32x32xf32>
    %cst_45 = arith.constant dense<0.000000e+00> : vector<12x32xf32>
    %149 = tpu.matmul %146, %148, %cst_45 {dimension_numbers = #tpu.dot_dimension_numbers<[1], [0], [0], [1], [0, 0, 1, 1], [], []>} : vector<12x32xf32>, vector<32x32xf32>, vector<12x32xf32> -> vector<12x32xf32>
    %150 = arith.addf %145, %149 : vector<12x32xf32>
    %151 = vector.extract_strided_slice %141 {offsets = [2, 0], sizes = [12, 32], strides = [1, 1]} : vector<15x32xf32> to vector<12x32xf32>
    %152 = vector.extract_strided_slice %4 {offsets = [2, 0, 0], sizes = [1, 32, 32], strides = [1, 1, 1]} : vector<4x32x32xf32> to vector<1x32x32xf32>
    %153 = vector.shape_cast %152 : vector<1x32x32xf32> to vector<32x32xf32>
    %cst_46 = arith.constant dense<0.000000e+00> : vector<12x32xf32>
    %154 = tpu.matmul %151, %153, %cst_46 {dimension_numbers = #tpu.dot_dimension_numbers<[1], [0], [0], [1], [0, 0, 1, 1], [], []>} : vector<12x32xf32>, vector<32x32xf32>, vector<12x32xf32> -> vector<12x32xf32>
    %155 = arith.addf %150, %154 : vector<12x32xf32>
    %156 = vector.extract_strided_slice %141 {offsets = [3, 0], sizes = [12, 32], strides = [1, 1]} : vector<15x32xf32> to vector<12x32xf32>
    %157 = vector.extract_strided_slice %4 {offsets = [3, 0, 0], sizes = [1, 32, 32], strides = [1, 1, 1]} : vector<4x32x32xf32> to vector<1x32x32xf32>
    %158 = vector.shape_cast %157 : vector<1x32x32xf32> to vector<32x32xf32>
    %cst_47 = arith.constant dense<0.000000e+00> : vector<12x32xf32>
    %159 = tpu.matmul %156, %158, %cst_47 {dimension_numbers = #tpu.dot_dimension_numbers<[1], [0], [0], [1], [0, 0, 1, 1], [], []>} : vector<12x32xf32>, vector<32x32xf32>, vector<12x32xf32> -> vector<12x32xf32>
    %160 = arith.addf %155, %159 : vector<12x32xf32>
    %161 = vector.extract_strided_slice %5 {offsets = [0, 0], sizes = [1, 32], strides = [1, 1]} : vector<3x32xf32> to vector<1x32xf32>
    %162 = vector.broadcast %161 : vector<1x32xf32> to vector<12x32xf32>
    %163 = arith.addf %160, %162 : vector<12x32xf32>
    %cst_48 = arith.constant 0.000000e+00 : f32
    %164 = vector.broadcast %cst_48 : f32 to vector<12x32xf32>
    %165 = arith.cmpf oge, %163, %164 : vector<12x32xf32>
    %cst_49 = arith.constant 0.00999999977 : f32
    %166 = vector.broadcast %cst_49 : f32 to vector<12x32xf32>
    %167 = arith.mulf %166, %163 : vector<12x32xf32>
    %168 = arith.select %165, %163, %167 : vector<12x32xi1>, vector<12x32xf32>
    %169 = vector.extract_strided_slice %5 {offsets = [1, 0], sizes = [1, 32], strides = [1, 1]} : vector<3x32xf32> to vector<1x32xf32>
    %170 = vector.broadcast %169 : vector<1x32xf32> to vector<12x32xf32>
    %171 = arith.mulf %168, %170 : vector<12x32xf32>
    %172 = vector.extract_strided_slice %5 {offsets = [2, 0], sizes = [1, 32], strides = [1, 1]} : vector<3x32xf32> to vector<1x32xf32>
    %173 = vector.broadcast %172 : vector<1x32xf32> to vector<12x32xf32>
    %174 = arith.addf %171, %173 : vector<12x32xf32>
    %c1_50 = arith.constant 1 : index
    %c0_51 = arith.constant 0 : index
    %c0_52 = arith.constant 0 : index
    %175 = vector.load %arg8[%c1_50, %c0_51, %c0_52] : memref<2x12x32xf32, #tpu.memory_space<vmem>>, vector<1x12x32xf32>
    %176 = vector.shape_cast %175 : vector<1x12x32xf32> to vector<12x32xf32>
    %177 = vector.shape_cast %174 : vector<12x32xf32> to vector<1x12x32xf32>
    tpu.vector_store %arg8[%c1_50, %c0_51, %c0_52], %177 {strides = array<i32>} : memref<2x12x32xf32, #tpu.memory_space<vmem>>, vector<1x12x32xf32>,
    return
  }
  func.func @transform_0(%arg0: i32) -> (i32, i32, i32) {
    %c0_i32 = arith.constant 0 : i32
    %c0_i32_0 = arith.constant 0 : i32
    %c0_i32_1 = arith.constant 0 : i32
    return %arg0, %c0_i32, %c0_i32_0 : i32, i32, i32
  }
  func.func @transform_1(%arg0: i32) -> (i32, i32) {
    %c0_i32 = arith.constant 0 : i32
    %c0_i32_0 = arith.constant 0 : i32
    %c0_i32_1 = arith.constant 0 : i32
    return %c0_i32, %c0_i32_0 : i32, i32
  }
  func.func @transform_2(%arg0: i32) -> (i32, i32) {
    %c0_i32 = arith.constant 0 : i32
    %c0_i32_0 = arith.constant 0 : i32
    %c0_i32_1 = arith.constant 0 : i32
    return %c0_i32, %c0_i32_0 : i32, i32
  }
  func.func @transform_3(%arg0: i32) -> (i32, i32, i32) {
    %c0_i32 = arith.constant 0 : i32
    %c0_i32_0 = arith.constant 0 : i32
    %c0_i32_1 = arith.constant 0 : i32
    %c0_i32_2 = arith.constant 0 : i32
    return %c0_i32, %c0_i32_0, %c0_i32_1 : i32, i32, i32
  }
  func.func @transform_4(%arg0: i32) -> (i32, i32) {
    %c0_i32 = arith.constant 0 : i32
    %c0_i32_0 = arith.constant 0 : i32
    %c0_i32_1 = arith.constant 0 : i32
    return %c0_i32, %c0_i32_0 : i32, i32
  }
  func.func @transform_5(%arg0: i32) -> (i32, i32, i32) {
    %c0_i32 = arith.constant 0 : i32
    %c0_i32_0 = arith.constant 0 : i32
    %c0_i32_1 = arith.constant 0 : i32
    %c0_i32_2 = arith.constant 0 : i32
    return %c0_i32, %c0_i32_0, %c0_i32_1 : i32, i32, i32
  }
  func.func @transform_6(%arg0: i32) -> (i32, i32) {
    %c0_i32 = arith.constant 0 : i32
    %c0_i32_0 = arith.constant 0 : i32
    %c0_i32_1 = arith.constant 0 : i32
    return %c0_i32, %c0_i32_0 : i32, i32
  }
  func.func @transform_7(%arg0: i32) -> (i32, i32, i32) {
    %c0_i32 = arith.constant 0 : i32
    %c0_i32_0 = arith.constant 0 : i32
    %c0_i32_1 = arith.constant 0 : i32
    return %arg0, %c0_i32, %c0_i32_0 : i32, i32, i32
  }
}

module attributes {stable_mosaic.version = 11 : i64} {
  func.func @_inception_proj_kernel(%arg0: i32, %arg1: memref<2x12x32xf32, #tpu.memory_space<vmem>>, %arg2: memref<32x128xf32, #tpu.memory_space<vmem>>, %arg3: memref<3x128xf32, #tpu.memory_space<vmem>>, %arg4: memref<3x64x64xf32, #tpu.memory_space<vmem>>, %arg5: memref<3x64xf32, #tpu.memory_space<vmem>>, %arg6: memref<5x64x64xf32, #tpu.memory_space<vmem>>, %arg7: memref<3x64xf32, #tpu.memory_space<vmem>>, %arg8: memref<32x64xf32, #tpu.memory_space<vmem>>, %arg9: memref<3x64xf32, #tpu.memory_space<vmem>>, %arg10: memref<192x256xf32, #tpu.memory_space<vmem>>, %arg11: memref<1x256xf32, #tpu.memory_space<vmem>>, %arg12: memref<2x12x256xf32, #tpu.memory_space<vmem>>, %arg13: memref<2x14x64xf32, #tpu.memory_space<vmem>>, %arg14: memref<2x16x64xf32, #tpu.memory_space<vmem>>, %arg15: memref<2x14x32xf32, #tpu.memory_space<vmem>>) attributes {dimension_semantics = [#tpu.dimension_semantics<parallel>], iteration_bounds = array<i64: 1>, scalar_prefetch = 0 : i64, scratch_operands = 3 : i64, tpu.core_type = #tpu.core_type<tc>, window_params = [{transform_indices = @transform_0, window_bounds = array<i64: 2, 12, 32>}, {pipeline_mode = #tpu.pipeline_mode<synchronous>, transform_indices = @transform_1, window_bounds = array<i64: 32, 128>}, {pipeline_mode = #tpu.pipeline_mode<synchronous>, transform_indices = @transform_2, window_bounds = array<i64: 3, 128>}, {pipeline_mode = #tpu.pipeline_mode<synchronous>, transform_indices = @transform_3, window_bounds = array<i64: 3, 64, 64>}, {pipeline_mode = #tpu.pipeline_mode<synchronous>, transform_indices = @transform_4, window_bounds = array<i64: 3, 64>}, {pipeline_mode = #tpu.pipeline_mode<synchronous>, transform_indices = @transform_5, window_bounds = array<i64: 5, 64, 64>}, {pipeline_mode = #tpu.pipeline_mode<synchronous>, transform_indices = @transform_6, window_bounds = array<i64: 3, 64>}, {pipeline_mode = #tpu.pipeline_mode<synchronous>, transform_indices = @transform_7, window_bounds = array<i64: 32, 64>}, {pipeline_mode = #tpu.pipeline_mode<synchronous>, transform_indices = @transform_8, window_bounds = array<i64: 3, 64>}, {pipeline_mode = #tpu.pipeline_mode<synchronous>, transform_indices = @transform_9, window_bounds = array<i64: 192, 256>}, {pipeline_mode = #tpu.pipeline_mode<synchronous>, transform_indices = @transform_10, window_bounds = array<i64: 1, 256>}, {transform_indices = @transform_11, window_bounds = array<i64: 2, 12, 256>}]} {
    %c0 = arith.constant 0 : index
    %c0_0 = arith.constant 0 : index
    %0 = vector.load %arg2[%c0, %c0_0] : memref<32x128xf32, #tpu.memory_space<vmem>>, vector<32x128xf32>
    %c0_1 = arith.constant 0 : index
    %c0_2 = arith.constant 0 : index
    %1 = vector.load %arg3[%c0_1, %c0_2] : memref<3x128xf32, #tpu.memory_space<vmem>>, vector<3x128xf32>
    %c0_3 = arith.constant 0 : index
    %c0_4 = arith.constant 0 : index
    %c0_5 = arith.constant 0 : index
    %2 = vector.load %arg4[%c0_3, %c0_4, %c0_5] : memref<3x64x64xf32, #tpu.memory_space<vmem>>, vector<3x64x64xf32>
    %c0_6 = arith.constant 0 : index
    %c0_7 = arith.constant 0 : index
    %3 = vector.load %arg5[%c0_6, %c0_7] : memref<3x64xf32, #tpu.memory_space<vmem>>, vector<3x64xf32>
    %c0_8 = arith.constant 0 : index
    %c0_9 = arith.constant 0 : index
    %c0_10 = arith.constant 0 : index
    %4 = vector.load %arg6[%c0_8, %c0_9, %c0_10] : memref<5x64x64xf32, #tpu.memory_space<vmem>>, vector<5x64x64xf32>
    %c0_11 = arith.constant 0 : index
    %c0_12 = arith.constant 0 : index
    %5 = vector.load %arg7[%c0_11, %c0_12] : memref<3x64xf32, #tpu.memory_space<vmem>>, vector<3x64xf32>
    %c0_13 = arith.constant 0 : index
    %c0_14 = arith.constant 0 : index
    %6 = vector.load %arg8[%c0_13, %c0_14] : memref<32x64xf32, #tpu.memory_space<vmem>>, vector<32x64xf32>
    %c0_15 = arith.constant 0 : index
    %c0_16 = arith.constant 0 : index
    %7 = vector.load %arg9[%c0_15, %c0_16] : memref<3x64xf32, #tpu.memory_space<vmem>>, vector<3x64xf32>
    %c0_17 = arith.constant 0 : index
    %c0_18 = arith.constant 0 : index
    %8 = vector.load %arg10[%c0_17, %c0_18] : memref<192x256xf32, #tpu.memory_space<vmem>>, vector<192x256xf32>
    %c0_19 = arith.constant 0 : index
    %c0_20 = arith.constant 0 : index
    %9 = vector.load %arg11[%c0_19, %c0_20] : memref<1x256xf32, #tpu.memory_space<vmem>>, vector<1x256xf32>
    %c0_21 = arith.constant 0 : index
    %c0_22 = arith.constant 0 : index
    %c0_23 = arith.constant 0 : index
    %10 = vector.load %arg1[%c0_21, %c0_22, %c0_23] : memref<2x12x32xf32, #tpu.memory_space<vmem>>, vector<1x12x32xf32>
    %11 = vector.shape_cast %10 : vector<1x12x32xf32> to vector<12x32xf32>
    %cst = arith.constant dense<0.000000e+00> : vector<12x128xf32>
    %12 = tpu.matmul %11, %0, %cst {dimension_numbers = #tpu.dot_dimension_numbers<[1], [0], [0], [1], [0, 0, 1, 1], [], []>} : vector<12x32xf32>, vector<32x128xf32>, vector<12x128xf32> -> vector<12x128xf32>
    %13 = vector.extract_strided_slice %1 {offsets = [0, 0], sizes = [1, 128], strides = [1, 1]} : vector<3x128xf32> to vector<1x128xf32>
    %14 = vector.broadcast %13 : vector<1x128xf32> to vector<12x128xf32>
    %15 = arith.addf %12, %14 : vector<12x128xf32>
    %cst_24 = arith.constant 0.000000e+00 : f32
    %16 = vector.broadcast %cst_24 : f32 to vector<12x128xf32>
    %17 = arith.cmpf oge, %15, %16 : vector<12x128xf32>
    %cst_25 = arith.constant 0.00999999977 : f32
    %18 = vector.broadcast %cst_25 : f32 to vector<12x128xf32>
    %19 = arith.mulf %18, %15 : vector<12x128xf32>
    %20 = arith.select %17, %15, %19 : vector<12x128xi1>, vector<12x128xf32>
    %21 = vector.extract_strided_slice %1 {offsets = [1, 0], sizes = [1, 128], strides = [1, 1]} : vector<3x128xf32> to vector<1x128xf32>
    %22 = vector.broadcast %21 : vector<1x128xf32> to vector<12x128xf32>
    %23 = arith.mulf %20, %22 : vector<12x128xf32>
    %24 = vector.extract_strided_slice %1 {offsets = [2, 0], sizes = [1, 128], strides = [1, 1]} : vector<3x128xf32> to vector<1x128xf32>
    %25 = vector.broadcast %24 : vector<1x128xf32> to vector<12x128xf32>
    %26 = arith.addf %23, %25 : vector<12x128xf32>
    %cst_26 = arith.constant 0.000000e+00 : f32
    %27 = vector.broadcast %cst_26 : f32 to vector<14x64xf32>
    %c0_27 = arith.constant 0 : index
    %c0_28 = arith.constant 0 : index
    %c0_29 = arith.constant 0 : index
    %28 = vector.load %arg13[%c0_27, %c0_28, %c0_29] : memref<2x14x64xf32, #tpu.memory_space<vmem>>, vector<1x14x64xf32>
    %29 = vector.shape_cast %28 : vector<1x14x64xf32> to vector<14x64xf32>
    %30 = vector.shape_cast %27 : vector<14x64xf32> to vector<1x14x64xf32>
    tpu.vector_store %arg13[%c0_27, %c0_28, %c0_29], %30 {strides = array<i32>} : memref<2x14x64xf32, #tpu.memory_space<vmem>>, vector<1x14x64xf32>,
    %31 = vector.extract_strided_slice %26 {offsets = [0, 0], sizes = [12, 64], strides = [1, 1]} : vector<12x128xf32> to vector<12x64xf32>
    %c0_30 = arith.constant 0 : index
    %c1 = arith.constant 1 : index
    %c0_31 = arith.constant 0 : index
    %32 = vector.load %arg13[%c0_30, %c1, %c0_31] : memref<2x14x64xf32, #tpu.memory_space<vmem>>, vector<1x12x64xf32>
    %33 = vector.shape_cast %32 : vector<1x12x64xf32> to vector<12x64xf32>
    %34 = vector.shape_cast %31 : vector<12x64xf32> to vector<1x12x64xf32>
    tpu.vector_store %arg13[%c0_30, %c1, %c0_31], %34 {strides = array<i32>} : memref<2x14x64xf32, #tpu.memory_space<vmem>>, vector<1x12x64xf32>,
    %cst_32 = arith.constant 0.000000e+00 : f32
    %35 = vector.broadcast %cst_32 : f32 to vector<16x64xf32>
    %c0_33 = arith.constant 0 : index
    %c0_34 = arith.constant 0 : index
    %c0_35 = arith.constant 0 : index
    %36 = vector.load %arg14[%c0_33, %c0_34, %c0_35] : memref<2x16x64xf32, #tpu.memory_space<vmem>>, vector<1x16x64xf32>
    %37 = vector.shape_cast %36 : vector<1x16x64xf32> to vector<16x64xf32>
    %38 = vector.shape_cast %35 : vector<16x64xf32> to vector<1x16x64xf32>
    tpu.vector_store %arg14[%c0_33, %c0_34, %c0_35], %38 {strides = array<i32>} : memref<2x16x64xf32, #tpu.memory_space<vmem>>, vector<1x16x64xf32>,
    %39 = vector.extract_strided_slice %26 {offsets = [0, 64], sizes = [12, 64], strides = [1, 1]} : vector<12x128xf32> to vector<12x64xf32>
    %c0_36 = arith.constant 0 : index
    %c2 = arith.constant 2 : index
    %c0_37 = arith.constant 0 : index
    %40 = vector.load %arg14[%c0_36, %c2, %c0_37] : memref<2x16x64xf32, #tpu.memory_space<vmem>>, vector<1x12x64xf32>
    %41 = vector.shape_cast %40 : vector<1x12x64xf32> to vector<12x64xf32>
    %42 = vector.shape_cast %39 : vector<12x64xf32> to vector<1x12x64xf32>
    tpu.vector_store %arg14[%c0_36, %c2, %c0_37], %42 {strides = array<i32>} : memref<2x16x64xf32, #tpu.memory_space<vmem>>, vector<1x12x64xf32>,
    %c0_38 = arith.constant 0 : index
    %c0_39 = arith.constant 0 : index
    %c0_40 = arith.constant 0 : index
    %43 = vector.load %arg13[%c0_38, %c0_39, %c0_40] : memref<2x14x64xf32, #tpu.memory_space<vmem>>, vector<1x12x64xf32>
    %44 = vector.shape_cast %43 : vector<1x12x64xf32> to vector<12x64xf32>
    %45 = vector.extract_strided_slice %2 {offsets = [0, 0, 0], sizes = [1, 64, 64], strides = [1, 1, 1]} : vector<3x64x64xf32> to vector<1x64x64xf32>
    %46 = vector.shape_cast %45 : vector<1x64x64xf32> to vector<64x64xf32>
    %cst_41 = arith.constant dense<0.000000e+00> : vector<12x64xf32>
    %47 = tpu.matmul %44, %46, %cst_41 {dimension_numbers = #tpu.dot_dimension_numbers<[1], [0], [0], [1], [0, 0, 1, 1], [], []>} : vector<12x64xf32>, vector<64x64xf32>, vector<12x64xf32> -> vector<12x64xf32>
    %c0_42 = arith.constant 0 : index
    %c1_43 = arith.constant 1 : index
    %c0_44 = arith.constant 0 : index
    %48 = vector.load %arg13[%c0_42, %c1_43, %c0_44] : memref<2x14x64xf32, #tpu.memory_space<vmem>>, vector<1x12x64xf32>
    %49 = vector.shape_cast %48 : vector<1x12x64xf32> to vector<12x64xf32>
    %50 = vector.extract_strided_slice %2 {offsets = [1, 0, 0], sizes = [1, 64, 64], strides = [1, 1, 1]} : vector<3x64x64xf32> to vector<1x64x64xf32>
    %51 = vector.shape_cast %50 : vector<1x64x64xf32> to vector<64x64xf32>
    %cst_45 = arith.constant dense<0.000000e+00> : vector<12x64xf32>
    %52 = tpu.matmul %49, %51, %cst_45 {dimension_numbers = #tpu.dot_dimension_numbers<[1], [0], [0], [1], [0, 0, 1, 1], [], []>} : vector<12x64xf32>, vector<64x64xf32>, vector<12x64xf32> -> vector<12x64xf32>
    %53 = arith.addf %47, %52 : vector<12x64xf32>
    %c0_46 = arith.constant 0 : index
    %c2_47 = arith.constant 2 : index
    %c0_48 = arith.constant 0 : index
    %54 = vector.load %arg13[%c0_46, %c2_47, %c0_48] : memref<2x14x64xf32, #tpu.memory_space<vmem>>, vector<1x12x64xf32>
    %55 = vector.shape_cast %54 : vector<1x12x64xf32> to vector<12x64xf32>
    %56 = vector.extract_strided_slice %2 {offsets = [2, 0, 0], sizes = [1, 64, 64], strides = [1, 1, 1]} : vector<3x64x64xf32> to vector<1x64x64xf32>
    %57 = vector.shape_cast %56 : vector<1x64x64xf32> to vector<64x64xf32>
    %cst_49 = arith.constant dense<0.000000e+00> : vector<12x64xf32>
    %58 = tpu.matmul %55, %57, %cst_49 {dimension_numbers = #tpu.dot_dimension_numbers<[1], [0], [0], [1], [0, 0, 1, 1], [], []>} : vector<12x64xf32>, vector<64x64xf32>, vector<12x64xf32> -> vector<12x64xf32>
    %59 = arith.addf %53, %58 : vector<12x64xf32>
    %60 = vector.extract_strided_slice %3 {offsets = [0, 0], sizes = [1, 64], strides = [1, 1]} : vector<3x64xf32> to vector<1x64xf32>
    %61 = vector.broadcast %60 : vector<1x64xf32> to vector<12x64xf32>
    %62 = arith.addf %59, %61 : vector<12x64xf32>
    %cst_50 = arith.constant 0.000000e+00 : f32
    %63 = vector.broadcast %cst_50 : f32 to vector<12x64xf32>
    %64 = arith.cmpf oge, %62, %63 : vector<12x64xf32>
    %cst_51 = arith.constant 0.00999999977 : f32
    %65 = vector.broadcast %cst_51 : f32 to vector<12x64xf32>
    %66 = arith.mulf %65, %62 : vector<12x64xf32>
    %67 = arith.select %64, %62, %66 : vector<12x64xi1>, vector<12x64xf32>
    %68 = vector.extract_strided_slice %3 {offsets = [1, 0], sizes = [1, 64], strides = [1, 1]} : vector<3x64xf32> to vector<1x64xf32>
    %69 = vector.broadcast %68 : vector<1x64xf32> to vector<12x64xf32>
    %70 = arith.mulf %67, %69 : vector<12x64xf32>
    %71 = vector.extract_strided_slice %3 {offsets = [2, 0], sizes = [1, 64], strides = [1, 1]} : vector<3x64xf32> to vector<1x64xf32>
    %72 = vector.broadcast %71 : vector<1x64xf32> to vector<12x64xf32>
    %73 = arith.addf %70, %72 : vector<12x64xf32>
    %c0_52 = arith.constant 0 : index
    %c0_53 = arith.constant 0 : index
    %c0_54 = arith.constant 0 : index
    %74 = vector.load %arg14[%c0_52, %c0_53, %c0_54] : memref<2x16x64xf32, #tpu.memory_space<vmem>>, vector<1x12x64xf32>
    %75 = vector.shape_cast %74 : vector<1x12x64xf32> to vector<12x64xf32>
    %76 = vector.extract_strided_slice %4 {offsets = [0, 0, 0], sizes = [1, 64, 64], strides = [1, 1, 1]} : vector<5x64x64xf32> to vector<1x64x64xf32>
    %77 = vector.shape_cast %76 : vector<1x64x64xf32> to vector<64x64xf32>
    %cst_55 = arith.constant dense<0.000000e+00> : vector<12x64xf32>
    %78 = tpu.matmul %75, %77, %cst_55 {dimension_numbers = #tpu.dot_dimension_numbers<[1], [0], [0], [1], [0, 0, 1, 1], [], []>} : vector<12x64xf32>, vector<64x64xf32>, vector<12x64xf32> -> vector<12x64xf32>
    %c0_56 = arith.constant 0 : index
    %c1_57 = arith.constant 1 : index
    %c0_58 = arith.constant 0 : index
    %79 = vector.load %arg14[%c0_56, %c1_57, %c0_58] : memref<2x16x64xf32, #tpu.memory_space<vmem>>, vector<1x12x64xf32>
    %80 = vector.shape_cast %79 : vector<1x12x64xf32> to vector<12x64xf32>
    %81 = vector.extract_strided_slice %4 {offsets = [1, 0, 0], sizes = [1, 64, 64], strides = [1, 1, 1]} : vector<5x64x64xf32> to vector<1x64x64xf32>
    %82 = vector.shape_cast %81 : vector<1x64x64xf32> to vector<64x64xf32>
    %cst_59 = arith.constant dense<0.000000e+00> : vector<12x64xf32>
    %83 = tpu.matmul %80, %82, %cst_59 {dimension_numbers = #tpu.dot_dimension_numbers<[1], [0], [0], [1], [0, 0, 1, 1], [], []>} : vector<12x64xf32>, vector<64x64xf32>, vector<12x64xf32> -> vector<12x64xf32>
    %84 = arith.addf %78, %83 : vector<12x64xf32>
    %c0_60 = arith.constant 0 : index
    %c2_61 = arith.constant 2 : index
    %c0_62 = arith.constant 0 : index
    %85 = vector.load %arg14[%c0_60, %c2_61, %c0_62] : memref<2x16x64xf32, #tpu.memory_space<vmem>>, vector<1x12x64xf32>
    %86 = vector.shape_cast %85 : vector<1x12x64xf32> to vector<12x64xf32>
    %87 = vector.extract_strided_slice %4 {offsets = [2, 0, 0], sizes = [1, 64, 64], strides = [1, 1, 1]} : vector<5x64x64xf32> to vector<1x64x64xf32>
    %88 = vector.shape_cast %87 : vector<1x64x64xf32> to vector<64x64xf32>
    %cst_63 = arith.constant dense<0.000000e+00> : vector<12x64xf32>
    %89 = tpu.matmul %86, %88, %cst_63 {dimension_numbers = #tpu.dot_dimension_numbers<[1], [0], [0], [1], [0, 0, 1, 1], [], []>} : vector<12x64xf32>, vector<64x64xf32>, vector<12x64xf32> -> vector<12x64xf32>
    %90 = arith.addf %84, %89 : vector<12x64xf32>
    %c0_64 = arith.constant 0 : index
    %c3 = arith.constant 3 : index
    %c0_65 = arith.constant 0 : index
    %91 = vector.load %arg14[%c0_64, %c3, %c0_65] : memref<2x16x64xf32, #tpu.memory_space<vmem>>, vector<1x12x64xf32>
    %92 = vector.shape_cast %91 : vector<1x12x64xf32> to vector<12x64xf32>
    %93 = vector.extract_strided_slice %4 {offsets = [3, 0, 0], sizes = [1, 64, 64], strides = [1, 1, 1]} : vector<5x64x64xf32> to vector<1x64x64xf32>
    %94 = vector.shape_cast %93 : vector<1x64x64xf32> to vector<64x64xf32>
    %cst_66 = arith.constant dense<0.000000e+00> : vector<12x64xf32>
    %95 = tpu.matmul %92, %94, %cst_66 {dimension_numbers = #tpu.dot_dimension_numbers<[1], [0], [0], [1], [0, 0, 1, 1], [], []>} : vector<12x64xf32>, vector<64x64xf32>, vector<12x64xf32> -> vector<12x64xf32>
    %96 = arith.addf %90, %95 : vector<12x64xf32>
    %c0_67 = arith.constant 0 : index
    %c4 = arith.constant 4 : index
    %c0_68 = arith.constant 0 : index
    %97 = vector.load %arg14[%c0_67, %c4, %c0_68] : memref<2x16x64xf32, #tpu.memory_space<vmem>>, vector<1x12x64xf32>
    %98 = vector.shape_cast %97 : vector<1x12x64xf32> to vector<12x64xf32>
    %99 = vector.extract_strided_slice %4 {offsets = [4, 0, 0], sizes = [1, 64, 64], strides = [1, 1, 1]} : vector<5x64x64xf32> to vector<1x64x64xf32>
    %100 = vector.shape_cast %99 : vector<1x64x64xf32> to vector<64x64xf32>
    %cst_69 = arith.constant dense<0.000000e+00> : vector<12x64xf32>
    %101 = tpu.matmul %98, %100, %cst_69 {dimension_numbers = #tpu.dot_dimension_numbers<[1], [0], [0], [1], [0, 0, 1, 1], [], []>} : vector<12x64xf32>, vector<64x64xf32>, vector<12x64xf32> -> vector<12x64xf32>
    %102 = arith.addf %96, %101 : vector<12x64xf32>
    %103 = vector.extract_strided_slice %5 {offsets = [0, 0], sizes = [1, 64], strides = [1, 1]} : vector<3x64xf32> to vector<1x64xf32>
    %104 = vector.broadcast %103 : vector<1x64xf32> to vector<12x64xf32>
    %105 = arith.addf %102, %104 : vector<12x64xf32>
    %cst_70 = arith.constant 0.000000e+00 : f32
    %106 = vector.broadcast %cst_70 : f32 to vector<12x64xf32>
    %107 = arith.cmpf oge, %105, %106 : vector<12x64xf32>
    %cst_71 = arith.constant 0.00999999977 : f32
    %108 = vector.broadcast %cst_71 : f32 to vector<12x64xf32>
    %109 = arith.mulf %108, %105 : vector<12x64xf32>
    %110 = arith.select %107, %105, %109 : vector<12x64xi1>, vector<12x64xf32>
    %111 = vector.extract_strided_slice %5 {offsets = [1, 0], sizes = [1, 64], strides = [1, 1]} : vector<3x64xf32> to vector<1x64xf32>
    %112 = vector.broadcast %111 : vector<1x64xf32> to vector<12x64xf32>
    %113 = arith.mulf %110, %112 : vector<12x64xf32>
    %114 = vector.extract_strided_slice %5 {offsets = [2, 0], sizes = [1, 64], strides = [1, 1]} : vector<3x64xf32> to vector<1x64xf32>
    %115 = vector.broadcast %114 : vector<1x64xf32> to vector<12x64xf32>
    %116 = arith.addf %113, %115 : vector<12x64xf32>
    %cst_72 = arith.constant 0xFF800000 : f32
    %117 = vector.broadcast %cst_72 : f32 to vector<14x32xf32>
    %c0_73 = arith.constant 0 : index
    %c0_74 = arith.constant 0 : index
    %c0_75 = arith.constant 0 : index
    %118 = vector.load %arg15[%c0_73, %c0_74, %c0_75] : memref<2x14x32xf32, #tpu.memory_space<vmem>>, vector<1x14x32xf32>
    %119 = vector.shape_cast %118 : vector<1x14x32xf32> to vector<14x32xf32>
    %120 = vector.shape_cast %117 : vector<14x32xf32> to vector<1x14x32xf32>
    tpu.vector_store %arg15[%c0_73, %c0_74, %c0_75], %120 {strides = array<i32>} : memref<2x14x32xf32, #tpu.memory_space<vmem>>, vector<1x14x32xf32>,
    %c0_76 = arith.constant 0 : index
    %c1_77 = arith.constant 1 : index
    %c0_78 = arith.constant 0 : index
    %121 = vector.load %arg15[%c0_76, %c1_77, %c0_78] : memref<2x14x32xf32, #tpu.memory_space<vmem>>, vector<1x12x32xf32>
    %122 = vector.shape_cast %121 : vector<1x12x32xf32> to vector<12x32xf32>
    %123 = vector.shape_cast %11 : vector<12x32xf32> to vector<1x12x32xf32>
    tpu.vector_store %arg15[%c0_76, %c1_77, %c0_78], %123 {strides = array<i32>} : memref<2x14x32xf32, #tpu.memory_space<vmem>>, vector<1x12x32xf32>,
    %c0_79 = arith.constant 0 : index
    %c0_80 = arith.constant 0 : index
    %c0_81 = arith.constant 0 : index
    %124 = vector.load %arg15[%c0_79, %c0_80, %c0_81] : memref<2x14x32xf32, #tpu.memory_space<vmem>>, vector<1x12x32xf32>
    %125 = vector.shape_cast %124 : vector<1x12x32xf32> to vector<12x32xf32>
    %c0_82 = arith.constant 0 : index
    %c1_83 = arith.constant 1 : index
    %c0_84 = arith.constant 0 : index
    %126 = vector.load %arg15[%c0_82, %c1_83, %c0_84] : memref<2x14x32xf32, #tpu.memory_space<vmem>>, vector<1x12x32xf32>
    %127 = vector.shape_cast %126 : vector<1x12x32xf32> to vector<12x32xf32>
    %128 = arith.maximumf %125, %127 : vector<12x32xf32>
    %c0_85 = arith.constant 0 : index
    %c2_86 = arith.constant 2 : index
    %c0_87 = arith.constant 0 : index
    %129 = vector.load %arg15[%c0_85, %c2_86, %c0_87] : memref<2x14x32xf32, #tpu.memory_space<vmem>>, vector<1x12x32xf32>
    %130 = vector.shape_cast %129 : vector<1x12x32xf32> to vector<12x32xf32>
    %131 = arith.maximumf %128, %130 : vector<12x32xf32>
    %cst_88 = arith.constant dense<0.000000e+00> : vector<12x64xf32>
    %132 = tpu.matmul %131, %6, %cst_88 {dimension_numbers = #tpu.dot_dimension_numbers<[1], [0], [0], [1], [0, 0, 1, 1], [], []>} : vector<12x32xf32>, vector<32x64xf32>, vector<12x64xf32> -> vector<12x64xf32>
    %133 = vector.extract_strided_slice %7 {offsets = [0, 0], sizes = [1, 64], strides = [1, 1]} : vector<3x64xf32> to vector<1x64xf32>
    %134 = vector.broadcast %133 : vector<1x64xf32> to vector<12x64xf32>
    %135 = arith.addf %132, %134 : vector<12x64xf32>
    %cst_89 = arith.constant 0.000000e+00 : f32
    %136 = vector.broadcast %cst_89 : f32 to vector<12x64xf32>
    %137 = arith.cmpf oge, %135, %136 : vector<12x64xf32>
    %cst_90 = arith.constant 0.00999999977 : f32
    %138 = vector.broadcast %cst_90 : f32 to vector<12x64xf32>
    %139 = arith.mulf %138, %135 : vector<12x64xf32>
    %140 = arith.select %137, %135, %139 : vector<12x64xi1>, vector<12x64xf32>
    %141 = vector.extract_strided_slice %7 {offsets = [1, 0], sizes = [1, 64], strides = [1, 1]} : vector<3x64xf32> to vector<1x64xf32>
    %142 = vector.broadcast %141 : vector<1x64xf32> to vector<12x64xf32>
    %143 = arith.mulf %140, %142 : vector<12x64xf32>
    %144 = vector.extract_strided_slice %7 {offsets = [2, 0], sizes = [1, 64], strides = [1, 1]} : vector<3x64xf32> to vector<1x64xf32>
    %145 = vector.broadcast %144 : vector<1x64xf32> to vector<12x64xf32>
    %146 = arith.addf %143, %145 : vector<12x64xf32>
    %147 = vector.extract_strided_slice %8 {offsets = [0, 0], sizes = [64, 256], strides = [1, 1]} : vector<192x256xf32> to vector<64x256xf32>
    %cst_91 = arith.constant dense<0.000000e+00> : vector<12x256xf32>
    %148 = tpu.matmul %73, %147, %cst_91 {dimension_numbers = #tpu.dot_dimension_numbers<[1], [0], [0], [1], [0, 0, 1, 1], [], []>} : vector<12x64xf32>, vector<64x256xf32>, vector<12x256xf32> -> vector<12x256xf32>
    %149 = vector.extract_strided_slice %8 {offsets = [64, 0], sizes = [64, 256], strides = [1, 1]} : vector<192x256xf32> to vector<64x256xf32>
    %cst_92 = arith.constant dense<0.000000e+00> : vector<12x256xf32>
    %150 = tpu.matmul %116, %149, %cst_92 {dimension_numbers = #tpu.dot_dimension_numbers<[1], [0], [0], [1], [0, 0, 1, 1], [], []>} : vector<12x64xf32>, vector<64x256xf32>, vector<12x256xf32> -> vector<12x256xf32>
    %151 = arith.addf %148, %150 : vector<12x256xf32>
    %152 = vector.extract_strided_slice %8 {offsets = [128, 0], sizes = [64, 256], strides = [1, 1]} : vector<192x256xf32> to vector<64x256xf32>
    %cst_93 = arith.constant dense<0.000000e+00> : vector<12x256xf32>
    %153 = tpu.matmul %146, %152, %cst_93 {dimension_numbers = #tpu.dot_dimension_numbers<[1], [0], [0], [1], [0, 0, 1, 1], [], []>} : vector<12x64xf32>, vector<64x256xf32>, vector<12x256xf32> -> vector<12x256xf32>
    %154 = arith.addf %151, %153 : vector<12x256xf32>
    %155 = vector.broadcast %9 : vector<1x256xf32> to vector<12x256xf32>
    %156 = arith.addf %154, %155 : vector<12x256xf32>
    %c0_94 = arith.constant 0 : index
    %c0_95 = arith.constant 0 : index
    %c0_96 = arith.constant 0 : index
    %157 = vector.load %arg12[%c0_94, %c0_95, %c0_96] : memref<2x12x256xf32, #tpu.memory_space<vmem>>, vector<1x12x256xf32>
    %158 = vector.shape_cast %157 : vector<1x12x256xf32> to vector<12x256xf32>
    %159 = vector.shape_cast %156 : vector<12x256xf32> to vector<1x12x256xf32>
    tpu.vector_store %arg12[%c0_94, %c0_95, %c0_96], %159 {strides = array<i32>} : memref<2x12x256xf32, #tpu.memory_space<vmem>>, vector<1x12x256xf32>,
    %c1_97 = arith.constant 1 : index
    %c0_98 = arith.constant 0 : index
    %c0_99 = arith.constant 0 : index
    %160 = vector.load %arg1[%c1_97, %c0_98, %c0_99] : memref<2x12x32xf32, #tpu.memory_space<vmem>>, vector<1x12x32xf32>
    %161 = vector.shape_cast %160 : vector<1x12x32xf32> to vector<12x32xf32>
    %cst_100 = arith.constant dense<0.000000e+00> : vector<12x128xf32>
    %162 = tpu.matmul %161, %0, %cst_100 {dimension_numbers = #tpu.dot_dimension_numbers<[1], [0], [0], [1], [0, 0, 1, 1], [], []>} : vector<12x32xf32>, vector<32x128xf32>, vector<12x128xf32> -> vector<12x128xf32>
    %163 = vector.extract_strided_slice %1 {offsets = [0, 0], sizes = [1, 128], strides = [1, 1]} : vector<3x128xf32> to vector<1x128xf32>
    %164 = vector.broadcast %163 : vector<1x128xf32> to vector<12x128xf32>
    %165 = arith.addf %162, %164 : vector<12x128xf32>
    %cst_101 = arith.constant 0.000000e+00 : f32
    %166 = vector.broadcast %cst_101 : f32 to vector<12x128xf32>
    %167 = arith.cmpf oge, %165, %166 : vector<12x128xf32>
    %cst_102 = arith.constant 0.00999999977 : f32
    %168 = vector.broadcast %cst_102 : f32 to vector<12x128xf32>
    %169 = arith.mulf %168, %165 : vector<12x128xf32>
    %170 = arith.select %167, %165, %169 : vector<12x128xi1>, vector<12x128xf32>
    %171 = vector.extract_strided_slice %1 {offsets = [1, 0], sizes = [1, 128], strides = [1, 1]} : vector<3x128xf32> to vector<1x128xf32>
    %172 = vector.broadcast %171 : vector<1x128xf32> to vector<12x128xf32>
    %173 = arith.mulf %170, %172 : vector<12x128xf32>
    %174 = vector.extract_strided_slice %1 {offsets = [2, 0], sizes = [1, 128], strides = [1, 1]} : vector<3x128xf32> to vector<1x128xf32>
    %175 = vector.broadcast %174 : vector<1x128xf32> to vector<12x128xf32>
    %176 = arith.addf %173, %175 : vector<12x128xf32>
    %cst_103 = arith.constant 0.000000e+00 : f32
    %177 = vector.broadcast %cst_103 : f32 to vector<14x64xf32>
    %c1_104 = arith.constant 1 : index
    %c0_105 = arith.constant 0 : index
    %c0_106 = arith.constant 0 : index
    %178 = vector.load %arg13[%c1_104, %c0_105, %c0_106] : memref<2x14x64xf32, #tpu.memory_space<vmem>>, vector<1x14x64xf32>
    %179 = vector.shape_cast %178 : vector<1x14x64xf32> to vector<14x64xf32>
    %180 = vector.shape_cast %177 : vector<14x64xf32> to vector<1x14x64xf32>
    tpu.vector_store %arg13[%c1_104, %c0_105, %c0_106], %180 {strides = array<i32>} : memref<2x14x64xf32, #tpu.memory_space<vmem>>, vector<1x14x64xf32>,
    %181 = vector.extract_strided_slice %176 {offsets = [0, 0], sizes = [12, 64], strides = [1, 1]} : vector<12x128xf32> to vector<12x64xf32>
    %c1_107 = arith.constant 1 : index
    %c1_108 = arith.constant 1 : index
    %c0_109 = arith.constant 0 : index
    %182 = vector.load %arg13[%c1_107, %c1_108, %c0_109] : memref<2x14x64xf32, #tpu.memory_space<vmem>>, vector<1x12x64xf32>
    %183 = vector.shape_cast %182 : vector<1x12x64xf32> to vector<12x64xf32>
    %184 = vector.shape_cast %181 : vector<12x64xf32> to vector<1x12x64xf32>
    tpu.vector_store %arg13[%c1_107, %c1_108, %c0_109], %184 {strides = array<i32>} : memref<2x14x64xf32, #tpu.memory_space<vmem>>, vector<1x12x64xf32>,
    %cst_110 = arith.constant 0.000000e+00 : f32
    %185 = vector.broadcast %cst_110 : f32 to vector<16x64xf32>
    %c1_111 = arith.constant 1 : index
    %c0_112 = arith.constant 0 : index
    %c0_113 = arith.constant 0 : index
    %186 = vector.load %arg14[%c1_111, %c0_112, %c0_113] : memref<2x16x64xf32, #tpu.memory_space<vmem>>, vector<1x16x64xf32>
    %187 = vector.shape_cast %186 : vector<1x16x64xf32> to vector<16x64xf32>
    %188 = vector.shape_cast %185 : vector<16x64xf32> to vector<1x16x64xf32>
    tpu.vector_store %arg14[%c1_111, %c0_112, %c0_113], %188 {strides = array<i32>} : memref<2x16x64xf32, #tpu.memory_space<vmem>>, vector<1x16x64xf32>,
    %189 = vector.extract_strided_slice %176 {offsets = [0, 64], sizes = [12, 64], strides = [1, 1]} : vector<12x128xf32> to vector<12x64xf32>
    %c1_114 = arith.constant 1 : index
    %c2_115 = arith.constant 2 : index
    %c0_116 = arith.constant 0 : index
    %190 = vector.load %arg14[%c1_114, %c2_115, %c0_116] : memref<2x16x64xf32, #tpu.memory_space<vmem>>, vector<1x12x64xf32>
    %191 = vector.shape_cast %190 : vector<1x12x64xf32> to vector<12x64xf32>
    %192 = vector.shape_cast %189 : vector<12x64xf32> to vector<1x12x64xf32>
    tpu.vector_store %arg14[%c1_114, %c2_115, %c0_116], %192 {strides = array<i32>} : memref<2x16x64xf32, #tpu.memory_space<vmem>>, vector<1x12x64xf32>,
    %c1_117 = arith.constant 1 : index
    %c0_118 = arith.constant 0 : index
    %c0_119 = arith.constant 0 : index
    %193 = vector.load %arg13[%c1_117, %c0_118, %c0_119] : memref<2x14x64xf32, #tpu.memory_space<vmem>>, vector<1x12x64xf32>
    %194 = vector.shape_cast %193 : vector<1x12x64xf32> to vector<12x64xf32>
    %195 = vector.extract_strided_slice %2 {offsets = [0, 0, 0], sizes = [1, 64, 64], strides = [1, 1, 1]} : vector<3x64x64xf32> to vector<1x64x64xf32>
    %196 = vector.shape_cast %195 : vector<1x64x64xf32> to vector<64x64xf32>
    %cst_120 = arith.constant dense<0.000000e+00> : vector<12x64xf32>
    %197 = tpu.matmul %194, %196, %cst_120 {dimension_numbers = #tpu.dot_dimension_numbers<[1], [0], [0], [1], [0, 0, 1, 1], [], []>} : vector<12x64xf32>, vector<64x64xf32>, vector<12x64xf32> -> vector<12x64xf32>
    %c1_121 = arith.constant 1 : index
    %c1_122 = arith.constant 1 : index
    %c0_123 = arith.constant 0 : index
    %198 = vector.load %arg13[%c1_121, %c1_122, %c0_123] : memref<2x14x64xf32, #tpu.memory_space<vmem>>, vector<1x12x64xf32>
    %199 = vector.shape_cast %198 : vector<1x12x64xf32> to vector<12x64xf32>
    %200 = vector.extract_strided_slice %2 {offsets = [1, 0, 0], sizes = [1, 64, 64], strides = [1, 1, 1]} : vector<3x64x64xf32> to vector<1x64x64xf32>
    %201 = vector.shape_cast %200 : vector<1x64x64xf32> to vector<64x64xf32>
    %cst_124 = arith.constant dense<0.000000e+00> : vector<12x64xf32>
    %202 = tpu.matmul %199, %201, %cst_124 {dimension_numbers = #tpu.dot_dimension_numbers<[1], [0], [0], [1], [0, 0, 1, 1], [], []>} : vector<12x64xf32>, vector<64x64xf32>, vector<12x64xf32> -> vector<12x64xf32>
    %203 = arith.addf %197, %202 : vector<12x64xf32>
    %c1_125 = arith.constant 1 : index
    %c2_126 = arith.constant 2 : index
    %c0_127 = arith.constant 0 : index
    %204 = vector.load %arg13[%c1_125, %c2_126, %c0_127] : memref<2x14x64xf32, #tpu.memory_space<vmem>>, vector<1x12x64xf32>
    %205 = vector.shape_cast %204 : vector<1x12x64xf32> to vector<12x64xf32>
    %206 = vector.extract_strided_slice %2 {offsets = [2, 0, 0], sizes = [1, 64, 64], strides = [1, 1, 1]} : vector<3x64x64xf32> to vector<1x64x64xf32>
    %207 = vector.shape_cast %206 : vector<1x64x64xf32> to vector<64x64xf32>
    %cst_128 = arith.constant dense<0.000000e+00> : vector<12x64xf32>
    %208 = tpu.matmul %205, %207, %cst_128 {dimension_numbers = #tpu.dot_dimension_numbers<[1], [0], [0], [1], [0, 0, 1, 1], [], []>} : vector<12x64xf32>, vector<64x64xf32>, vector<12x64xf32> -> vector<12x64xf32>
    %209 = arith.addf %203, %208 : vector<12x64xf32>
    %210 = vector.extract_strided_slice %3 {offsets = [0, 0], sizes = [1, 64], strides = [1, 1]} : vector<3x64xf32> to vector<1x64xf32>
    %211 = vector.broadcast %210 : vector<1x64xf32> to vector<12x64xf32>
    %212 = arith.addf %209, %211 : vector<12x64xf32>
    %cst_129 = arith.constant 0.000000e+00 : f32
    %213 = vector.broadcast %cst_129 : f32 to vector<12x64xf32>
    %214 = arith.cmpf oge, %212, %213 : vector<12x64xf32>
    %cst_130 = arith.constant 0.00999999977 : f32
    %215 = vector.broadcast %cst_130 : f32 to vector<12x64xf32>
    %216 = arith.mulf %215, %212 : vector<12x64xf32>
    %217 = arith.select %214, %212, %216 : vector<12x64xi1>, vector<12x64xf32>
    %218 = vector.extract_strided_slice %3 {offsets = [1, 0], sizes = [1, 64], strides = [1, 1]} : vector<3x64xf32> to vector<1x64xf32>
    %219 = vector.broadcast %218 : vector<1x64xf32> to vector<12x64xf32>
    %220 = arith.mulf %217, %219 : vector<12x64xf32>
    %221 = vector.extract_strided_slice %3 {offsets = [2, 0], sizes = [1, 64], strides = [1, 1]} : vector<3x64xf32> to vector<1x64xf32>
    %222 = vector.broadcast %221 : vector<1x64xf32> to vector<12x64xf32>
    %223 = arith.addf %220, %222 : vector<12x64xf32>
    %c1_131 = arith.constant 1 : index
    %c0_132 = arith.constant 0 : index
    %c0_133 = arith.constant 0 : index
    %224 = vector.load %arg14[%c1_131, %c0_132, %c0_133] : memref<2x16x64xf32, #tpu.memory_space<vmem>>, vector<1x12x64xf32>
    %225 = vector.shape_cast %224 : vector<1x12x64xf32> to vector<12x64xf32>
    %226 = vector.extract_strided_slice %4 {offsets = [0, 0, 0], sizes = [1, 64, 64], strides = [1, 1, 1]} : vector<5x64x64xf32> to vector<1x64x64xf32>
    %227 = vector.shape_cast %226 : vector<1x64x64xf32> to vector<64x64xf32>
    %cst_134 = arith.constant dense<0.000000e+00> : vector<12x64xf32>
    %228 = tpu.matmul %225, %227, %cst_134 {dimension_numbers = #tpu.dot_dimension_numbers<[1], [0], [0], [1], [0, 0, 1, 1], [], []>} : vector<12x64xf32>, vector<64x64xf32>, vector<12x64xf32> -> vector<12x64xf32>
    %c1_135 = arith.constant 1 : index
    %c1_136 = arith.constant 1 : index
    %c0_137 = arith.constant 0 : index
    %229 = vector.load %arg14[%c1_135, %c1_136, %c0_137] : memref<2x16x64xf32, #tpu.memory_space<vmem>>, vector<1x12x64xf32>
    %230 = vector.shape_cast %229 : vector<1x12x64xf32> to vector<12x64xf32>
    %231 = vector.extract_strided_slice %4 {offsets = [1, 0, 0], sizes = [1, 64, 64], strides = [1, 1, 1]} : vector<5x64x64xf32> to vector<1x64x64xf32>
    %232 = vector.shape_cast %231 : vector<1x64x64xf32> to vector<64x64xf32>
    %cst_138 = arith.constant dense<0.000000e+00> : vector<12x64xf32>
    %233 = tpu.matmul %230, %232, %cst_138 {dimension_numbers = #tpu.dot_dimension_numbers<[1], [0], [0], [1], [0, 0, 1, 1], [], []>} : vector<12x64xf32>, vector<64x64xf32>, vector<12x64xf32> -> vector<12x64xf32>
    %234 = arith.addf %228, %233 : vector<12x64xf32>
    %c1_139 = arith.constant 1 : index
    %c2_140 = arith.constant 2 : index
    %c0_141 = arith.constant 0 : index
    %235 = vector.load %arg14[%c1_139, %c2_140, %c0_141] : memref<2x16x64xf32, #tpu.memory_space<vmem>>, vector<1x12x64xf32>
    %236 = vector.shape_cast %235 : vector<1x12x64xf32> to vector<12x64xf32>
    %237 = vector.extract_strided_slice %4 {offsets = [2, 0, 0], sizes = [1, 64, 64], strides = [1, 1, 1]} : vector<5x64x64xf32> to vector<1x64x64xf32>
    %238 = vector.shape_cast %237 : vector<1x64x64xf32> to vector<64x64xf32>
    %cst_142 = arith.constant dense<0.000000e+00> : vector<12x64xf32>
    %239 = tpu.matmul %236, %238, %cst_142 {dimension_numbers = #tpu.dot_dimension_numbers<[1], [0], [0], [1], [0, 0, 1, 1], [], []>} : vector<12x64xf32>, vector<64x64xf32>, vector<12x64xf32> -> vector<12x64xf32>
    %240 = arith.addf %234, %239 : vector<12x64xf32>
    %c1_143 = arith.constant 1 : index
    %c3_144 = arith.constant 3 : index
    %c0_145 = arith.constant 0 : index
    %241 = vector.load %arg14[%c1_143, %c3_144, %c0_145] : memref<2x16x64xf32, #tpu.memory_space<vmem>>, vector<1x12x64xf32>
    %242 = vector.shape_cast %241 : vector<1x12x64xf32> to vector<12x64xf32>
    %243 = vector.extract_strided_slice %4 {offsets = [3, 0, 0], sizes = [1, 64, 64], strides = [1, 1, 1]} : vector<5x64x64xf32> to vector<1x64x64xf32>
    %244 = vector.shape_cast %243 : vector<1x64x64xf32> to vector<64x64xf32>
    %cst_146 = arith.constant dense<0.000000e+00> : vector<12x64xf32>
    %245 = tpu.matmul %242, %244, %cst_146 {dimension_numbers = #tpu.dot_dimension_numbers<[1], [0], [0], [1], [0, 0, 1, 1], [], []>} : vector<12x64xf32>, vector<64x64xf32>, vector<12x64xf32> -> vector<12x64xf32>
    %246 = arith.addf %240, %245 : vector<12x64xf32>
    %c1_147 = arith.constant 1 : index
    %c4_148 = arith.constant 4 : index
    %c0_149 = arith.constant 0 : index
    %247 = vector.load %arg14[%c1_147, %c4_148, %c0_149] : memref<2x16x64xf32, #tpu.memory_space<vmem>>, vector<1x12x64xf32>
    %248 = vector.shape_cast %247 : vector<1x12x64xf32> to vector<12x64xf32>
    %249 = vector.extract_strided_slice %4 {offsets = [4, 0, 0], sizes = [1, 64, 64], strides = [1, 1, 1]} : vector<5x64x64xf32> to vector<1x64x64xf32>
    %250 = vector.shape_cast %249 : vector<1x64x64xf32> to vector<64x64xf32>
    %cst_150 = arith.constant dense<0.000000e+00> : vector<12x64xf32>
    %251 = tpu.matmul %248, %250, %cst_150 {dimension_numbers = #tpu.dot_dimension_numbers<[1], [0], [0], [1], [0, 0, 1, 1], [], []>} : vector<12x64xf32>, vector<64x64xf32>, vector<12x64xf32> -> vector<12x64xf32>
    %252 = arith.addf %246, %251 : vector<12x64xf32>
    %253 = vector.extract_strided_slice %5 {offsets = [0, 0], sizes = [1, 64], strides = [1, 1]} : vector<3x64xf32> to vector<1x64xf32>
    %254 = vector.broadcast %253 : vector<1x64xf32> to vector<12x64xf32>
    %255 = arith.addf %252, %254 : vector<12x64xf32>
    %cst_151 = arith.constant 0.000000e+00 : f32
    %256 = vector.broadcast %cst_151 : f32 to vector<12x64xf32>
    %257 = arith.cmpf oge, %255, %256 : vector<12x64xf32>
    %cst_152 = arith.constant 0.00999999977 : f32
    %258 = vector.broadcast %cst_152 : f32 to vector<12x64xf32>
    %259 = arith.mulf %258, %255 : vector<12x64xf32>
    %260 = arith.select %257, %255, %259 : vector<12x64xi1>, vector<12x64xf32>
    %261 = vector.extract_strided_slice %5 {offsets = [1, 0], sizes = [1, 64], strides = [1, 1]} : vector<3x64xf32> to vector<1x64xf32>
    %262 = vector.broadcast %261 : vector<1x64xf32> to vector<12x64xf32>
    %263 = arith.mulf %260, %262 : vector<12x64xf32>
    %264 = vector.extract_strided_slice %5 {offsets = [2, 0], sizes = [1, 64], strides = [1, 1]} : vector<3x64xf32> to vector<1x64xf32>
    %265 = vector.broadcast %264 : vector<1x64xf32> to vector<12x64xf32>
    %266 = arith.addf %263, %265 : vector<12x64xf32>
    %cst_153 = arith.constant 0xFF800000 : f32
    %267 = vector.broadcast %cst_153 : f32 to vector<14x32xf32>
    %c1_154 = arith.constant 1 : index
    %c0_155 = arith.constant 0 : index
    %c0_156 = arith.constant 0 : index
    %268 = vector.load %arg15[%c1_154, %c0_155, %c0_156] : memref<2x14x32xf32, #tpu.memory_space<vmem>>, vector<1x14x32xf32>
    %269 = vector.shape_cast %268 : vector<1x14x32xf32> to vector<14x32xf32>
    %270 = vector.shape_cast %267 : vector<14x32xf32> to vector<1x14x32xf32>
    tpu.vector_store %arg15[%c1_154, %c0_155, %c0_156], %270 {strides = array<i32>} : memref<2x14x32xf32, #tpu.memory_space<vmem>>, vector<1x14x32xf32>,
    %c1_157 = arith.constant 1 : index
    %c1_158 = arith.constant 1 : index
    %c0_159 = arith.constant 0 : index
    %271 = vector.load %arg15[%c1_157, %c1_158, %c0_159] : memref<2x14x32xf32, #tpu.memory_space<vmem>>, vector<1x12x32xf32>
    %272 = vector.shape_cast %271 : vector<1x12x32xf32> to vector<12x32xf32>
    %273 = vector.shape_cast %161 : vector<12x32xf32> to vector<1x12x32xf32>
    tpu.vector_store %arg15[%c1_157, %c1_158, %c0_159], %273 {strides = array<i32>} : memref<2x14x32xf32, #tpu.memory_space<vmem>>, vector<1x12x32xf32>,
    %c1_160 = arith.constant 1 : index
    %c0_161 = arith.constant 0 : index
    %c0_162 = arith.constant 0 : index
    %274 = vector.load %arg15[%c1_160, %c0_161, %c0_162] : memref<2x14x32xf32, #tpu.memory_space<vmem>>, vector<1x12x32xf32>
    %275 = vector.shape_cast %274 : vector<1x12x32xf32> to vector<12x32xf32>
    %c1_163 = arith.constant 1 : index
    %c1_164 = arith.constant 1 : index
    %c0_165 = arith.constant 0 : index
    %276 = vector.load %arg15[%c1_163, %c1_164, %c0_165] : memref<2x14x32xf32, #tpu.memory_space<vmem>>, vector<1x12x32xf32>
    %277 = vector.shape_cast %276 : vector<1x12x32xf32> to vector<12x32xf32>
    %278 = arith.maximumf %275, %277 : vector<12x32xf32>
    %c1_166 = arith.constant 1 : index
    %c2_167 = arith.constant 2 : index
    %c0_168 = arith.constant 0 : index
    %279 = vector.load %arg15[%c1_166, %c2_167, %c0_168] : memref<2x14x32xf32, #tpu.memory_space<vmem>>, vector<1x12x32xf32>
    %280 = vector.shape_cast %279 : vector<1x12x32xf32> to vector<12x32xf32>
    %281 = arith.maximumf %278, %280 : vector<12x32xf32>
    %cst_169 = arith.constant dense<0.000000e+00> : vector<12x64xf32>
    %282 = tpu.matmul %281, %6, %cst_169 {dimension_numbers = #tpu.dot_dimension_numbers<[1], [0], [0], [1], [0, 0, 1, 1], [], []>} : vector<12x32xf32>, vector<32x64xf32>, vector<12x64xf32> -> vector<12x64xf32>
    %283 = vector.extract_strided_slice %7 {offsets = [0, 0], sizes = [1, 64], strides = [1, 1]} : vector<3x64xf32> to vector<1x64xf32>
    %284 = vector.broadcast %283 : vector<1x64xf32> to vector<12x64xf32>
    %285 = arith.addf %282, %284 : vector<12x64xf32>
    %cst_170 = arith.constant 0.000000e+00 : f32
    %286 = vector.broadcast %cst_170 : f32 to vector<12x64xf32>
    %287 = arith.cmpf oge, %285, %286 : vector<12x64xf32>
    %cst_171 = arith.constant 0.00999999977 : f32
    %288 = vector.broadcast %cst_171 : f32 to vector<12x64xf32>
    %289 = arith.mulf %288, %285 : vector<12x64xf32>
    %290 = arith.select %287, %285, %289 : vector<12x64xi1>, vector<12x64xf32>
    %291 = vector.extract_strided_slice %7 {offsets = [1, 0], sizes = [1, 64], strides = [1, 1]} : vector<3x64xf32> to vector<1x64xf32>
    %292 = vector.broadcast %291 : vector<1x64xf32> to vector<12x64xf32>
    %293 = arith.mulf %290, %292 : vector<12x64xf32>
    %294 = vector.extract_strided_slice %7 {offsets = [2, 0], sizes = [1, 64], strides = [1, 1]} : vector<3x64xf32> to vector<1x64xf32>
    %295 = vector.broadcast %294 : vector<1x64xf32> to vector<12x64xf32>
    %296 = arith.addf %293, %295 : vector<12x64xf32>
    %297 = vector.extract_strided_slice %8 {offsets = [0, 0], sizes = [64, 256], strides = [1, 1]} : vector<192x256xf32> to vector<64x256xf32>
    %cst_172 = arith.constant dense<0.000000e+00> : vector<12x256xf32>
    %298 = tpu.matmul %223, %297, %cst_172 {dimension_numbers = #tpu.dot_dimension_numbers<[1], [0], [0], [1], [0, 0, 1, 1], [], []>} : vector<12x64xf32>, vector<64x256xf32>, vector<12x256xf32> -> vector<12x256xf32>
    %299 = vector.extract_strided_slice %8 {offsets = [64, 0], sizes = [64, 256], strides = [1, 1]} : vector<192x256xf32> to vector<64x256xf32>
    %cst_173 = arith.constant dense<0.000000e+00> : vector<12x256xf32>
    %300 = tpu.matmul %266, %299, %cst_173 {dimension_numbers = #tpu.dot_dimension_numbers<[1], [0], [0], [1], [0, 0, 1, 1], [], []>} : vector<12x64xf32>, vector<64x256xf32>, vector<12x256xf32> -> vector<12x256xf32>
    %301 = arith.addf %298, %300 : vector<12x256xf32>
    %302 = vector.extract_strided_slice %8 {offsets = [128, 0], sizes = [64, 256], strides = [1, 1]} : vector<192x256xf32> to vector<64x256xf32>
    %cst_174 = arith.constant dense<0.000000e+00> : vector<12x256xf32>
    %303 = tpu.matmul %296, %302, %cst_174 {dimension_numbers = #tpu.dot_dimension_numbers<[1], [0], [0], [1], [0, 0, 1, 1], [], []>} : vector<12x64xf32>, vector<64x256xf32>, vector<12x256xf32> -> vector<12x256xf32>
    %304 = arith.addf %301, %303 : vector<12x256xf32>
    %305 = vector.broadcast %9 : vector<1x256xf32> to vector<12x256xf32>
    %306 = arith.addf %304, %305 : vector<12x256xf32>
    %c1_175 = arith.constant 1 : index
    %c0_176 = arith.constant 0 : index
    %c0_177 = arith.constant 0 : index
    %307 = vector.load %arg12[%c1_175, %c0_176, %c0_177] : memref<2x12x256xf32, #tpu.memory_space<vmem>>, vector<1x12x256xf32>
    %308 = vector.shape_cast %307 : vector<1x12x256xf32> to vector<12x256xf32>
    %309 = vector.shape_cast %306 : vector<12x256xf32> to vector<1x12x256xf32>
    tpu.vector_store %arg12[%c1_175, %c0_176, %c0_177], %309 {strides = array<i32>} : memref<2x12x256xf32, #tpu.memory_space<vmem>>, vector<1x12x256xf32>,
    return
  }
  func.func @transform_0(%arg0: i32) -> (i32, i32, i32) {
    %c0_i32 = arith.constant 0 : i32
    %c0_i32_0 = arith.constant 0 : i32
    %c0_i32_1 = arith.constant 0 : i32
    return %arg0, %c0_i32, %c0_i32_0 : i32, i32, i32
  }
  func.func @transform_1(%arg0: i32) -> (i32, i32) {
    %c0_i32 = arith.constant 0 : i32
    %c0_i32_0 = arith.constant 0 : i32
    %c0_i32_1 = arith.constant 0 : i32
    return %c0_i32, %c0_i32_0 : i32, i32
  }
  func.func @transform_2(%arg0: i32) -> (i32, i32) {
    %c0_i32 = arith.constant 0 : i32
    %c0_i32_0 = arith.constant 0 : i32
    %c0_i32_1 = arith.constant 0 : i32
    return %c0_i32, %c0_i32_0 : i32, i32
  }
  func.func @transform_3(%arg0: i32) -> (i32, i32, i32) {
    %c0_i32 = arith.constant 0 : i32
    %c0_i32_0 = arith.constant 0 : i32
    %c0_i32_1 = arith.constant 0 : i32
    %c0_i32_2 = arith.constant 0 : i32
    return %c0_i32, %c0_i32_0, %c0_i32_1 : i32, i32, i32
  }
  func.func @transform_4(%arg0: i32) -> (i32, i32) {
    %c0_i32 = arith.constant 0 : i32
    %c0_i32_0 = arith.constant 0 : i32
    %c0_i32_1 = arith.constant 0 : i32
    return %c0_i32, %c0_i32_0 : i32, i32
  }
  func.func @transform_5(%arg0: i32) -> (i32, i32, i32) {
    %c0_i32 = arith.constant 0 : i32
    %c0_i32_0 = arith.constant 0 : i32
    %c0_i32_1 = arith.constant 0 : i32
    %c0_i32_2 = arith.constant 0 : i32
    return %c0_i32, %c0_i32_0, %c0_i32_1 : i32, i32, i32
  }
  func.func @transform_6(%arg0: i32) -> (i32, i32) {
    %c0_i32 = arith.constant 0 : i32
    %c0_i32_0 = arith.constant 0 : i32
    %c0_i32_1 = arith.constant 0 : i32
    return %c0_i32, %c0_i32_0 : i32, i32
  }
  func.func @transform_7(%arg0: i32) -> (i32, i32) {
    %c0_i32 = arith.constant 0 : i32
    %c0_i32_0 = arith.constant 0 : i32
    %c0_i32_1 = arith.constant 0 : i32
    return %c0_i32, %c0_i32_0 : i32, i32
  }
  func.func @transform_8(%arg0: i32) -> (i32, i32) {
    %c0_i32 = arith.constant 0 : i32
    %c0_i32_0 = arith.constant 0 : i32
    %c0_i32_1 = arith.constant 0 : i32
    return %c0_i32, %c0_i32_0 : i32, i32
  }
  func.func @transform_9(%arg0: i32) -> (i32, i32) {
    %c0_i32 = arith.constant 0 : i32
    %c0_i32_0 = arith.constant 0 : i32
    %c0_i32_1 = arith.constant 0 : i32
    return %c0_i32, %c0_i32_0 : i32, i32
  }
  func.func @transform_10(%arg0: i32) -> (i32, i32) {
    %c0_i32 = arith.constant 0 : i32
    %c0_i32_0 = arith.constant 0 : i32
    %c0_i32_1 = arith.constant 0 : i32
    return %c0_i32, %c0_i32_0 : i32, i32
  }
  func.func @transform_11(%arg0: i32) -> (i32, i32, i32) {
    %c0_i32 = arith.constant 0 : i32
    %c0_i32_0 = arith.constant 0 : i32
    %c0_i32_1 = arith.constant 0 : i32
    return %arg0, %c0_i32, %c0_i32_0 : i32, i32, i32
  }
}

module attributes {stable_mosaic.version = 11 : i64} {
  func.func @_lstm_fc_kernel(%arg0: i32, %arg1: memref<12x2x256xf32, #tpu.memory_space<vmem>>, %arg2: memref<64x256xf32, #tpu.memory_space<vmem>>, %arg3: memref<64x3xf32, #tpu.memory_space<vmem>>, %arg4: memref<1x3xf32, #tpu.memory_space<vmem>>, %arg5: memref<2x3xf32, #tpu.memory_space<vmem>>) attributes {dimension_semantics = [#tpu.dimension_semantics<arbitrary>], iteration_bounds = array<i64: 1>, scalar_prefetch = 0 : i64, scratch_operands = 0 : i64, tpu.core_type = #tpu.core_type<tc>, window_params = [{pipeline_mode = #tpu.pipeline_mode<synchronous>, transform_indices = @transform_0, window_bounds = array<i64: 12, 2, 256>}, {pipeline_mode = #tpu.pipeline_mode<synchronous>, transform_indices = @transform_1, window_bounds = array<i64: 64, 256>}, {pipeline_mode = #tpu.pipeline_mode<synchronous>, transform_indices = @transform_2, window_bounds = array<i64: 64, 3>}, {pipeline_mode = #tpu.pipeline_mode<synchronous>, transform_indices = @transform_3, window_bounds = array<i64: 1, 3>}, {pipeline_mode = #tpu.pipeline_mode<synchronous>, transform_indices = @transform_4, window_bounds = array<i64: 2, 3>}]} {
    %c0 = arith.constant 0 : index
    %c0_0 = arith.constant 0 : index
    %0 = vector.load %arg2[%c0, %c0_0] : memref<64x256xf32, #tpu.memory_space<vmem>>, vector<64x256xf32>
    %cst = arith.constant 0.000000e+00 : f32
    %1 = vector.broadcast %cst : f32 to vector<2x64xf32>
    %cst_1 = arith.constant 0.000000e+00 : f32
    %2 = vector.broadcast %cst_1 : f32 to vector<2x64xf32>
    %c0_i32 = arith.constant 0 : i32
    %3 = arith.index_cast %c0_i32 : i32 to index
    %c0_2 = arith.constant 0 : index
    %c0_3 = arith.constant 0 : index
    %4 = vector.load %arg1[%3, %c0_2, %c0_3] : memref<12x2x256xf32, #tpu.memory_space<vmem>>, vector<1x2x256xf32>
    %5 = vector.shape_cast %4 : vector<1x2x256xf32> to vector<2x256xf32>
    %cst_4 = arith.constant dense<0.000000e+00> : vector<2x256xf32>
    %6 = tpu.matmul %1, %0, %cst_4 {dimension_numbers = #tpu.dot_dimension_numbers<[1], [0], [0], [1], [0, 0, 1, 1], [], []>} : vector<2x64xf32>, vector<64x256xf32>, vector<2x256xf32> -> vector<2x256xf32>
    %7 = arith.addf %5, %6 : vector<2x256xf32>
    %8 = vector.extract_strided_slice %7 {offsets = [0, 0], sizes = [2, 192], strides = [1, 1]} : vector<2x256xf32> to vector<2x192xf32>
    %9 = arith.negf %8 : vector<2x192xf32>
    %10 = math.exp %9 : vector<2x192xf32>
    %cst_5 = arith.constant 1.000000e+00 : f32
    %11 = vector.broadcast %cst_5 : f32 to vector<2x192xf32>
    %12 = arith.addf %11, %10 : vector<2x192xf32>
    %13 = arith.divf %11, %12 : vector<2x192xf32>
    %14 = vector.extract_strided_slice %13 {offsets = [0, 0], sizes = [2, 64], strides = [1, 1]} : vector<2x192xf32> to vector<2x64xf32>
    %15 = vector.extract_strided_slice %13 {offsets = [0, 64], sizes = [2, 64], strides = [1, 1]} : vector<2x192xf32> to vector<2x64xf32>
    %16 = vector.extract_strided_slice %13 {offsets = [0, 128], sizes = [2, 64], strides = [1, 1]} : vector<2x192xf32> to vector<2x64xf32>
    %17 = vector.extract_strided_slice %7 {offsets = [0, 192], sizes = [2, 64], strides = [1, 1]} : vector<2x256xf32> to vector<2x64xf32>
    %18 = math.tanh %17 : vector<2x64xf32>
    %19 = arith.mulf %15, %2 : vector<2x64xf32>
    %20 = arith.mulf %14, %18 : vector<2x64xf32>
    %21 = arith.addf %19, %20 : vector<2x64xf32>
    %22 = math.tanh %21 : vector<2x64xf32>
    %23 = arith.mulf %16, %22 : vector<2x64xf32>
    %c1_i32 = arith.constant 1 : i32
    %24 = arith.index_cast %c1_i32 : i32 to index
    %c0_6 = arith.constant 0 : index
    %c0_7 = arith.constant 0 : index
    %25 = vector.load %arg1[%24, %c0_6, %c0_7] : memref<12x2x256xf32, #tpu.memory_space<vmem>>, vector<1x2x256xf32>
    %26 = vector.shape_cast %25 : vector<1x2x256xf32> to vector<2x256xf32>
    %cst_8 = arith.constant dense<0.000000e+00> : vector<2x256xf32>
    %27 = tpu.matmul %23, %0, %cst_8 {dimension_numbers = #tpu.dot_dimension_numbers<[1], [0], [0], [1], [0, 0, 1, 1], [], []>} : vector<2x64xf32>, vector<64x256xf32>, vector<2x256xf32> -> vector<2x256xf32>
    %28 = arith.addf %26, %27 : vector<2x256xf32>
    %29 = vector.extract_strided_slice %28 {offsets = [0, 0], sizes = [2, 192], strides = [1, 1]} : vector<2x256xf32> to vector<2x192xf32>
    %30 = arith.negf %29 : vector<2x192xf32>
    %31 = math.exp %30 : vector<2x192xf32>
    %cst_9 = arith.constant 1.000000e+00 : f32
    %32 = vector.broadcast %cst_9 : f32 to vector<2x192xf32>
    %33 = arith.addf %32, %31 : vector<2x192xf32>
    %34 = arith.divf %32, %33 : vector<2x192xf32>
    %35 = vector.extract_strided_slice %34 {offsets = [0, 0], sizes = [2, 64], strides = [1, 1]} : vector<2x192xf32> to vector<2x64xf32>
    %36 = vector.extract_strided_slice %34 {offsets = [0, 64], sizes = [2, 64], strides = [1, 1]} : vector<2x192xf32> to vector<2x64xf32>
    %37 = vector.extract_strided_slice %34 {offsets = [0, 128], sizes = [2, 64], strides = [1, 1]} : vector<2x192xf32> to vector<2x64xf32>
    %38 = vector.extract_strided_slice %28 {offsets = [0, 192], sizes = [2, 64], strides = [1, 1]} : vector<2x256xf32> to vector<2x64xf32>
    %39 = math.tanh %38 : vector<2x64xf32>
    %40 = arith.mulf %36, %21 : vector<2x64xf32>
    %41 = arith.mulf %35, %39 : vector<2x64xf32>
    %42 = arith.addf %40, %41 : vector<2x64xf32>
    %43 = math.tanh %42 : vector<2x64xf32>
    %44 = arith.mulf %37, %43 : vector<2x64xf32>
    %c2_i32 = arith.constant 2 : i32
    %45 = arith.index_cast %c2_i32 : i32 to index
    %c0_10 = arith.constant 0 : index
    %c0_11 = arith.constant 0 : index
    %46 = vector.load %arg1[%45, %c0_10, %c0_11] : memref<12x2x256xf32, #tpu.memory_space<vmem>>, vector<1x2x256xf32>
    %47 = vector.shape_cast %46 : vector<1x2x256xf32> to vector<2x256xf32>
    %cst_12 = arith.constant dense<0.000000e+00> : vector<2x256xf32>
    %48 = tpu.matmul %44, %0, %cst_12 {dimension_numbers = #tpu.dot_dimension_numbers<[1], [0], [0], [1], [0, 0, 1, 1], [], []>} : vector<2x64xf32>, vector<64x256xf32>, vector<2x256xf32> -> vector<2x256xf32>
    %49 = arith.addf %47, %48 : vector<2x256xf32>
    %50 = vector.extract_strided_slice %49 {offsets = [0, 0], sizes = [2, 192], strides = [1, 1]} : vector<2x256xf32> to vector<2x192xf32>
    %51 = arith.negf %50 : vector<2x192xf32>
    %52 = math.exp %51 : vector<2x192xf32>
    %cst_13 = arith.constant 1.000000e+00 : f32
    %53 = vector.broadcast %cst_13 : f32 to vector<2x192xf32>
    %54 = arith.addf %53, %52 : vector<2x192xf32>
    %55 = arith.divf %53, %54 : vector<2x192xf32>
    %56 = vector.extract_strided_slice %55 {offsets = [0, 0], sizes = [2, 64], strides = [1, 1]} : vector<2x192xf32> to vector<2x64xf32>
    %57 = vector.extract_strided_slice %55 {offsets = [0, 64], sizes = [2, 64], strides = [1, 1]} : vector<2x192xf32> to vector<2x64xf32>
    %58 = vector.extract_strided_slice %55 {offsets = [0, 128], sizes = [2, 64], strides = [1, 1]} : vector<2x192xf32> to vector<2x64xf32>
    %59 = vector.extract_strided_slice %49 {offsets = [0, 192], sizes = [2, 64], strides = [1, 1]} : vector<2x256xf32> to vector<2x64xf32>
    %60 = math.tanh %59 : vector<2x64xf32>
    %61 = arith.mulf %57, %42 : vector<2x64xf32>
    %62 = arith.mulf %56, %60 : vector<2x64xf32>
    %63 = arith.addf %61, %62 : vector<2x64xf32>
    %64 = math.tanh %63 : vector<2x64xf32>
    %65 = arith.mulf %58, %64 : vector<2x64xf32>
    %c3_i32 = arith.constant 3 : i32
    %66 = arith.index_cast %c3_i32 : i32 to index
    %c0_14 = arith.constant 0 : index
    %c0_15 = arith.constant 0 : index
    %67 = vector.load %arg1[%66, %c0_14, %c0_15] : memref<12x2x256xf32, #tpu.memory_space<vmem>>, vector<1x2x256xf32>
    %68 = vector.shape_cast %67 : vector<1x2x256xf32> to vector<2x256xf32>
    %cst_16 = arith.constant dense<0.000000e+00> : vector<2x256xf32>
    %69 = tpu.matmul %65, %0, %cst_16 {dimension_numbers = #tpu.dot_dimension_numbers<[1], [0], [0], [1], [0, 0, 1, 1], [], []>} : vector<2x64xf32>, vector<64x256xf32>, vector<2x256xf32> -> vector<2x256xf32>
    %70 = arith.addf %68, %69 : vector<2x256xf32>
    %71 = vector.extract_strided_slice %70 {offsets = [0, 0], sizes = [2, 192], strides = [1, 1]} : vector<2x256xf32> to vector<2x192xf32>
    %72 = arith.negf %71 : vector<2x192xf32>
    %73 = math.exp %72 : vector<2x192xf32>
    %cst_17 = arith.constant 1.000000e+00 : f32
    %74 = vector.broadcast %cst_17 : f32 to vector<2x192xf32>
    %75 = arith.addf %74, %73 : vector<2x192xf32>
    %76 = arith.divf %74, %75 : vector<2x192xf32>
    %77 = vector.extract_strided_slice %76 {offsets = [0, 0], sizes = [2, 64], strides = [1, 1]} : vector<2x192xf32> to vector<2x64xf32>
    %78 = vector.extract_strided_slice %76 {offsets = [0, 64], sizes = [2, 64], strides = [1, 1]} : vector<2x192xf32> to vector<2x64xf32>
    %79 = vector.extract_strided_slice %76 {offsets = [0, 128], sizes = [2, 64], strides = [1, 1]} : vector<2x192xf32> to vector<2x64xf32>
    %80 = vector.extract_strided_slice %70 {offsets = [0, 192], sizes = [2, 64], strides = [1, 1]} : vector<2x256xf32> to vector<2x64xf32>
    %81 = math.tanh %80 : vector<2x64xf32>
    %82 = arith.mulf %78, %63 : vector<2x64xf32>
    %83 = arith.mulf %77, %81 : vector<2x64xf32>
    %84 = arith.addf %82, %83 : vector<2x64xf32>
    %85 = math.tanh %84 : vector<2x64xf32>
    %86 = arith.mulf %79, %85 : vector<2x64xf32>
    %c4_i32 = arith.constant 4 : i32
    %87 = arith.index_cast %c4_i32 : i32 to index
    %c0_18 = arith.constant 0 : index
    %c0_19 = arith.constant 0 : index
    %88 = vector.load %arg1[%87, %c0_18, %c0_19] : memref<12x2x256xf32, #tpu.memory_space<vmem>>, vector<1x2x256xf32>
    %89 = vector.shape_cast %88 : vector<1x2x256xf32> to vector<2x256xf32>
    %cst_20 = arith.constant dense<0.000000e+00> : vector<2x256xf32>
    %90 = tpu.matmul %86, %0, %cst_20 {dimension_numbers = #tpu.dot_dimension_numbers<[1], [0], [0], [1], [0, 0, 1, 1], [], []>} : vector<2x64xf32>, vector<64x256xf32>, vector<2x256xf32> -> vector<2x256xf32>
    %91 = arith.addf %89, %90 : vector<2x256xf32>
    %92 = vector.extract_strided_slice %91 {offsets = [0, 0], sizes = [2, 192], strides = [1, 1]} : vector<2x256xf32> to vector<2x192xf32>
    %93 = arith.negf %92 : vector<2x192xf32>
    %94 = math.exp %93 : vector<2x192xf32>
    %cst_21 = arith.constant 1.000000e+00 : f32
    %95 = vector.broadcast %cst_21 : f32 to vector<2x192xf32>
    %96 = arith.addf %95, %94 : vector<2x192xf32>
    %97 = arith.divf %95, %96 : vector<2x192xf32>
    %98 = vector.extract_strided_slice %97 {offsets = [0, 0], sizes = [2, 64], strides = [1, 1]} : vector<2x192xf32> to vector<2x64xf32>
    %99 = vector.extract_strided_slice %97 {offsets = [0, 64], sizes = [2, 64], strides = [1, 1]} : vector<2x192xf32> to vector<2x64xf32>
    %100 = vector.extract_strided_slice %97 {offsets = [0, 128], sizes = [2, 64], strides = [1, 1]} : vector<2x192xf32> to vector<2x64xf32>
    %101 = vector.extract_strided_slice %91 {offsets = [0, 192], sizes = [2, 64], strides = [1, 1]} : vector<2x256xf32> to vector<2x64xf32>
    %102 = math.tanh %101 : vector<2x64xf32>
    %103 = arith.mulf %99, %84 : vector<2x64xf32>
    %104 = arith.mulf %98, %102 : vector<2x64xf32>
    %105 = arith.addf %103, %104 : vector<2x64xf32>
    %106 = math.tanh %105 : vector<2x64xf32>
    %107 = arith.mulf %100, %106 : vector<2x64xf32>
    %c5_i32 = arith.constant 5 : i32
    %108 = arith.index_cast %c5_i32 : i32 to index
    %c0_22 = arith.constant 0 : index
    %c0_23 = arith.constant 0 : index
    %109 = vector.load %arg1[%108, %c0_22, %c0_23] : memref<12x2x256xf32, #tpu.memory_space<vmem>>, vector<1x2x256xf32>
    %110 = vector.shape_cast %109 : vector<1x2x256xf32> to vector<2x256xf32>
    %cst_24 = arith.constant dense<0.000000e+00> : vector<2x256xf32>
    %111 = tpu.matmul %107, %0, %cst_24 {dimension_numbers = #tpu.dot_dimension_numbers<[1], [0], [0], [1], [0, 0, 1, 1], [], []>} : vector<2x64xf32>, vector<64x256xf32>, vector<2x256xf32> -> vector<2x256xf32>
    %112 = arith.addf %110, %111 : vector<2x256xf32>
    %113 = vector.extract_strided_slice %112 {offsets = [0, 0], sizes = [2, 192], strides = [1, 1]} : vector<2x256xf32> to vector<2x192xf32>
    %114 = arith.negf %113 : vector<2x192xf32>
    %115 = math.exp %114 : vector<2x192xf32>
    %cst_25 = arith.constant 1.000000e+00 : f32
    %116 = vector.broadcast %cst_25 : f32 to vector<2x192xf32>
    %117 = arith.addf %116, %115 : vector<2x192xf32>
    %118 = arith.divf %116, %117 : vector<2x192xf32>
    %119 = vector.extract_strided_slice %118 {offsets = [0, 0], sizes = [2, 64], strides = [1, 1]} : vector<2x192xf32> to vector<2x64xf32>
    %120 = vector.extract_strided_slice %118 {offsets = [0, 64], sizes = [2, 64], strides = [1, 1]} : vector<2x192xf32> to vector<2x64xf32>
    %121 = vector.extract_strided_slice %118 {offsets = [0, 128], sizes = [2, 64], strides = [1, 1]} : vector<2x192xf32> to vector<2x64xf32>
    %122 = vector.extract_strided_slice %112 {offsets = [0, 192], sizes = [2, 64], strides = [1, 1]} : vector<2x256xf32> to vector<2x64xf32>
    %123 = math.tanh %122 : vector<2x64xf32>
    %124 = arith.mulf %120, %105 : vector<2x64xf32>
    %125 = arith.mulf %119, %123 : vector<2x64xf32>
    %126 = arith.addf %124, %125 : vector<2x64xf32>
    %127 = math.tanh %126 : vector<2x64xf32>
    %128 = arith.mulf %121, %127 : vector<2x64xf32>
    %c6_i32 = arith.constant 6 : i32
    %129 = arith.index_cast %c6_i32 : i32 to index
    %c0_26 = arith.constant 0 : index
    %c0_27 = arith.constant 0 : index
    %130 = vector.load %arg1[%129, %c0_26, %c0_27] : memref<12x2x256xf32, #tpu.memory_space<vmem>>, vector<1x2x256xf32>
    %131 = vector.shape_cast %130 : vector<1x2x256xf32> to vector<2x256xf32>
    %cst_28 = arith.constant dense<0.000000e+00> : vector<2x256xf32>
    %132 = tpu.matmul %128, %0, %cst_28 {dimension_numbers = #tpu.dot_dimension_numbers<[1], [0], [0], [1], [0, 0, 1, 1], [], []>} : vector<2x64xf32>, vector<64x256xf32>, vector<2x256xf32> -> vector<2x256xf32>
    %133 = arith.addf %131, %132 : vector<2x256xf32>
    %134 = vector.extract_strided_slice %133 {offsets = [0, 0], sizes = [2, 192], strides = [1, 1]} : vector<2x256xf32> to vector<2x192xf32>
    %135 = arith.negf %134 : vector<2x192xf32>
    %136 = math.exp %135 : vector<2x192xf32>
    %cst_29 = arith.constant 1.000000e+00 : f32
    %137 = vector.broadcast %cst_29 : f32 to vector<2x192xf32>
    %138 = arith.addf %137, %136 : vector<2x192xf32>
    %139 = arith.divf %137, %138 : vector<2x192xf32>
    %140 = vector.extract_strided_slice %139 {offsets = [0, 0], sizes = [2, 64], strides = [1, 1]} : vector<2x192xf32> to vector<2x64xf32>
    %141 = vector.extract_strided_slice %139 {offsets = [0, 64], sizes = [2, 64], strides = [1, 1]} : vector<2x192xf32> to vector<2x64xf32>
    %142 = vector.extract_strided_slice %139 {offsets = [0, 128], sizes = [2, 64], strides = [1, 1]} : vector<2x192xf32> to vector<2x64xf32>
    %143 = vector.extract_strided_slice %133 {offsets = [0, 192], sizes = [2, 64], strides = [1, 1]} : vector<2x256xf32> to vector<2x64xf32>
    %144 = math.tanh %143 : vector<2x64xf32>
    %145 = arith.mulf %141, %126 : vector<2x64xf32>
    %146 = arith.mulf %140, %144 : vector<2x64xf32>
    %147 = arith.addf %145, %146 : vector<2x64xf32>
    %148 = math.tanh %147 : vector<2x64xf32>
    %149 = arith.mulf %142, %148 : vector<2x64xf32>
    %c7_i32 = arith.constant 7 : i32
    %150 = arith.index_cast %c7_i32 : i32 to index
    %c0_30 = arith.constant 0 : index
    %c0_31 = arith.constant 0 : index
    %151 = vector.load %arg1[%150, %c0_30, %c0_31] : memref<12x2x256xf32, #tpu.memory_space<vmem>>, vector<1x2x256xf32>
    %152 = vector.shape_cast %151 : vector<1x2x256xf32> to vector<2x256xf32>
    %cst_32 = arith.constant dense<0.000000e+00> : vector<2x256xf32>
    %153 = tpu.matmul %149, %0, %cst_32 {dimension_numbers = #tpu.dot_dimension_numbers<[1], [0], [0], [1], [0, 0, 1, 1], [], []>} : vector<2x64xf32>, vector<64x256xf32>, vector<2x256xf32> -> vector<2x256xf32>
    %154 = arith.addf %152, %153 : vector<2x256xf32>
    %155 = vector.extract_strided_slice %154 {offsets = [0, 0], sizes = [2, 192], strides = [1, 1]} : vector<2x256xf32> to vector<2x192xf32>
    %156 = arith.negf %155 : vector<2x192xf32>
    %157 = math.exp %156 : vector<2x192xf32>
    %cst_33 = arith.constant 1.000000e+00 : f32
    %158 = vector.broadcast %cst_33 : f32 to vector<2x192xf32>
    %159 = arith.addf %158, %157 : vector<2x192xf32>
    %160 = arith.divf %158, %159 : vector<2x192xf32>
    %161 = vector.extract_strided_slice %160 {offsets = [0, 0], sizes = [2, 64], strides = [1, 1]} : vector<2x192xf32> to vector<2x64xf32>
    %162 = vector.extract_strided_slice %160 {offsets = [0, 64], sizes = [2, 64], strides = [1, 1]} : vector<2x192xf32> to vector<2x64xf32>
    %163 = vector.extract_strided_slice %160 {offsets = [0, 128], sizes = [2, 64], strides = [1, 1]} : vector<2x192xf32> to vector<2x64xf32>
    %164 = vector.extract_strided_slice %154 {offsets = [0, 192], sizes = [2, 64], strides = [1, 1]} : vector<2x256xf32> to vector<2x64xf32>
    %165 = math.tanh %164 : vector<2x64xf32>
    %166 = arith.mulf %162, %147 : vector<2x64xf32>
    %167 = arith.mulf %161, %165 : vector<2x64xf32>
    %168 = arith.addf %166, %167 : vector<2x64xf32>
    %169 = math.tanh %168 : vector<2x64xf32>
    %170 = arith.mulf %163, %169 : vector<2x64xf32>
    %c8_i32 = arith.constant 8 : i32
    %171 = arith.index_cast %c8_i32 : i32 to index
    %c0_34 = arith.constant 0 : index
    %c0_35 = arith.constant 0 : index
    %172 = vector.load %arg1[%171, %c0_34, %c0_35] : memref<12x2x256xf32, #tpu.memory_space<vmem>>, vector<1x2x256xf32>
    %173 = vector.shape_cast %172 : vector<1x2x256xf32> to vector<2x256xf32>
    %cst_36 = arith.constant dense<0.000000e+00> : vector<2x256xf32>
    %174 = tpu.matmul %170, %0, %cst_36 {dimension_numbers = #tpu.dot_dimension_numbers<[1], [0], [0], [1], [0, 0, 1, 1], [], []>} : vector<2x64xf32>, vector<64x256xf32>, vector<2x256xf32> -> vector<2x256xf32>
    %175 = arith.addf %173, %174 : vector<2x256xf32>
    %176 = vector.extract_strided_slice %175 {offsets = [0, 0], sizes = [2, 192], strides = [1, 1]} : vector<2x256xf32> to vector<2x192xf32>
    %177 = arith.negf %176 : vector<2x192xf32>
    %178 = math.exp %177 : vector<2x192xf32>
    %cst_37 = arith.constant 1.000000e+00 : f32
    %179 = vector.broadcast %cst_37 : f32 to vector<2x192xf32>
    %180 = arith.addf %179, %178 : vector<2x192xf32>
    %181 = arith.divf %179, %180 : vector<2x192xf32>
    %182 = vector.extract_strided_slice %181 {offsets = [0, 0], sizes = [2, 64], strides = [1, 1]} : vector<2x192xf32> to vector<2x64xf32>
    %183 = vector.extract_strided_slice %181 {offsets = [0, 64], sizes = [2, 64], strides = [1, 1]} : vector<2x192xf32> to vector<2x64xf32>
    %184 = vector.extract_strided_slice %181 {offsets = [0, 128], sizes = [2, 64], strides = [1, 1]} : vector<2x192xf32> to vector<2x64xf32>
    %185 = vector.extract_strided_slice %175 {offsets = [0, 192], sizes = [2, 64], strides = [1, 1]} : vector<2x256xf32> to vector<2x64xf32>
    %186 = math.tanh %185 : vector<2x64xf32>
    %187 = arith.mulf %183, %168 : vector<2x64xf32>
    %188 = arith.mulf %182, %186 : vector<2x64xf32>
    %189 = arith.addf %187, %188 : vector<2x64xf32>
    %190 = math.tanh %189 : vector<2x64xf32>
    %191 = arith.mulf %184, %190 : vector<2x64xf32>
    %c9_i32 = arith.constant 9 : i32
    %192 = arith.index_cast %c9_i32 : i32 to index
    %c0_38 = arith.constant 0 : index
    %c0_39 = arith.constant 0 : index
    %193 = vector.load %arg1[%192, %c0_38, %c0_39] : memref<12x2x256xf32, #tpu.memory_space<vmem>>, vector<1x2x256xf32>
    %194 = vector.shape_cast %193 : vector<1x2x256xf32> to vector<2x256xf32>
    %cst_40 = arith.constant dense<0.000000e+00> : vector<2x256xf32>
    %195 = tpu.matmul %191, %0, %cst_40 {dimension_numbers = #tpu.dot_dimension_numbers<[1], [0], [0], [1], [0, 0, 1, 1], [], []>} : vector<2x64xf32>, vector<64x256xf32>, vector<2x256xf32> -> vector<2x256xf32>
    %196 = arith.addf %194, %195 : vector<2x256xf32>
    %197 = vector.extract_strided_slice %196 {offsets = [0, 0], sizes = [2, 192], strides = [1, 1]} : vector<2x256xf32> to vector<2x192xf32>
    %198 = arith.negf %197 : vector<2x192xf32>
    %199 = math.exp %198 : vector<2x192xf32>
    %cst_41 = arith.constant 1.000000e+00 : f32
    %200 = vector.broadcast %cst_41 : f32 to vector<2x192xf32>
    %201 = arith.addf %200, %199 : vector<2x192xf32>
    %202 = arith.divf %200, %201 : vector<2x192xf32>
    %203 = vector.extract_strided_slice %202 {offsets = [0, 0], sizes = [2, 64], strides = [1, 1]} : vector<2x192xf32> to vector<2x64xf32>
    %204 = vector.extract_strided_slice %202 {offsets = [0, 64], sizes = [2, 64], strides = [1, 1]} : vector<2x192xf32> to vector<2x64xf32>
    %205 = vector.extract_strided_slice %202 {offsets = [0, 128], sizes = [2, 64], strides = [1, 1]} : vector<2x192xf32> to vector<2x64xf32>
    %206 = vector.extract_strided_slice %196 {offsets = [0, 192], sizes = [2, 64], strides = [1, 1]} : vector<2x256xf32> to vector<2x64xf32>
    %207 = math.tanh %206 : vector<2x64xf32>
    %208 = arith.mulf %204, %189 : vector<2x64xf32>
    %209 = arith.mulf %203, %207 : vector<2x64xf32>
    %210 = arith.addf %208, %209 : vector<2x64xf32>
    %211 = math.tanh %210 : vector<2x64xf32>
    %212 = arith.mulf %205, %211 : vector<2x64xf32>
    %c10_i32 = arith.constant 10 : i32
    %213 = arith.index_cast %c10_i32 : i32 to index
    %c0_42 = arith.constant 0 : index
    %c0_43 = arith.constant 0 : index
    %214 = vector.load %arg1[%213, %c0_42, %c0_43] : memref<12x2x256xf32, #tpu.memory_space<vmem>>, vector<1x2x256xf32>
    %215 = vector.shape_cast %214 : vector<1x2x256xf32> to vector<2x256xf32>
    %cst_44 = arith.constant dense<0.000000e+00> : vector<2x256xf32>
    %216 = tpu.matmul %212, %0, %cst_44 {dimension_numbers = #tpu.dot_dimension_numbers<[1], [0], [0], [1], [0, 0, 1, 1], [], []>} : vector<2x64xf32>, vector<64x256xf32>, vector<2x256xf32> -> vector<2x256xf32>
    %217 = arith.addf %215, %216 : vector<2x256xf32>
    %218 = vector.extract_strided_slice %217 {offsets = [0, 0], sizes = [2, 192], strides = [1, 1]} : vector<2x256xf32> to vector<2x192xf32>
    %219 = arith.negf %218 : vector<2x192xf32>
    %220 = math.exp %219 : vector<2x192xf32>
    %cst_45 = arith.constant 1.000000e+00 : f32
    %221 = vector.broadcast %cst_45 : f32 to vector<2x192xf32>
    %222 = arith.addf %221, %220 : vector<2x192xf32>
    %223 = arith.divf %221, %222 : vector<2x192xf32>
    %224 = vector.extract_strided_slice %223 {offsets = [0, 0], sizes = [2, 64], strides = [1, 1]} : vector<2x192xf32> to vector<2x64xf32>
    %225 = vector.extract_strided_slice %223 {offsets = [0, 64], sizes = [2, 64], strides = [1, 1]} : vector<2x192xf32> to vector<2x64xf32>
    %226 = vector.extract_strided_slice %223 {offsets = [0, 128], sizes = [2, 64], strides = [1, 1]} : vector<2x192xf32> to vector<2x64xf32>
    %227 = vector.extract_strided_slice %217 {offsets = [0, 192], sizes = [2, 64], strides = [1, 1]} : vector<2x256xf32> to vector<2x64xf32>
    %228 = math.tanh %227 : vector<2x64xf32>
    %229 = arith.mulf %225, %210 : vector<2x64xf32>
    %230 = arith.mulf %224, %228 : vector<2x64xf32>
    %231 = arith.addf %229, %230 : vector<2x64xf32>
    %232 = math.tanh %231 : vector<2x64xf32>
    %233 = arith.mulf %226, %232 : vector<2x64xf32>
    %c11_i32 = arith.constant 11 : i32
    %234 = arith.index_cast %c11_i32 : i32 to index
    %c0_46 = arith.constant 0 : index
    %c0_47 = arith.constant 0 : index
    %235 = vector.load %arg1[%234, %c0_46, %c0_47] : memref<12x2x256xf32, #tpu.memory_space<vmem>>, vector<1x2x256xf32>
    %236 = vector.shape_cast %235 : vector<1x2x256xf32> to vector<2x256xf32>
    %cst_48 = arith.constant dense<0.000000e+00> : vector<2x256xf32>
    %237 = tpu.matmul %233, %0, %cst_48 {dimension_numbers = #tpu.dot_dimension_numbers<[1], [0], [0], [1], [0, 0, 1, 1], [], []>} : vector<2x64xf32>, vector<64x256xf32>, vector<2x256xf32> -> vector<2x256xf32>
    %238 = arith.addf %236, %237 : vector<2x256xf32>
    %239 = vector.extract_strided_slice %238 {offsets = [0, 0], sizes = [2, 192], strides = [1, 1]} : vector<2x256xf32> to vector<2x192xf32>
    %240 = arith.negf %239 : vector<2x192xf32>
    %241 = math.exp %240 : vector<2x192xf32>
    %cst_49 = arith.constant 1.000000e+00 : f32
    %242 = vector.broadcast %cst_49 : f32 to vector<2x192xf32>
    %243 = arith.addf %242, %241 : vector<2x192xf32>
    %244 = arith.divf %242, %243 : vector<2x192xf32>
    %245 = vector.extract_strided_slice %244 {offsets = [0, 0], sizes = [2, 64], strides = [1, 1]} : vector<2x192xf32> to vector<2x64xf32>
    %246 = vector.extract_strided_slice %244 {offsets = [0, 64], sizes = [2, 64], strides = [1, 1]} : vector<2x192xf32> to vector<2x64xf32>
    %247 = vector.extract_strided_slice %244 {offsets = [0, 128], sizes = [2, 64], strides = [1, 1]} : vector<2x192xf32> to vector<2x64xf32>
    %248 = vector.extract_strided_slice %238 {offsets = [0, 192], sizes = [2, 64], strides = [1, 1]} : vector<2x256xf32> to vector<2x64xf32>
    %249 = math.tanh %248 : vector<2x64xf32>
    %250 = arith.mulf %246, %231 : vector<2x64xf32>
    %251 = arith.mulf %245, %249 : vector<2x64xf32>
    %252 = arith.addf %250, %251 : vector<2x64xf32>
    %253 = math.tanh %252 : vector<2x64xf32>
    %254 = arith.mulf %247, %253 : vector<2x64xf32>
    %c12_i32 = arith.constant 12 : i32
    %c0_50 = arith.constant 0 : index
    %c0_51 = arith.constant 0 : index
    %255 = vector.load %arg3[%c0_50, %c0_51] : memref<64x3xf32, #tpu.memory_space<vmem>>, vector<64x3xf32>
    %cst_52 = arith.constant dense<0.000000e+00> : vector<2x3xf32>
    %256 = tpu.matmul %254, %255, %cst_52 {dimension_numbers = #tpu.dot_dimension_numbers<[1], [0], [0], [1], [0, 0, 1, 1], [], []>} : vector<2x64xf32>, vector<64x3xf32>, vector<2x3xf32> -> vector<2x3xf32>
    %c0_53 = arith.constant 0 : index
    %c0_54 = arith.constant 0 : index
    %257 = vector.load %arg4[%c0_53, %c0_54] : memref<1x3xf32, #tpu.memory_space<vmem>>, vector<1x3xf32>
    %258 = vector.broadcast %257 : vector<1x3xf32> to vector<2x3xf32>
    %259 = arith.addf %256, %258 : vector<2x3xf32>
    %c0_55 = arith.constant 0 : index
    %c0_56 = arith.constant 0 : index
    %260 = vector.load %arg5[%c0_55, %c0_56] : memref<2x3xf32, #tpu.memory_space<vmem>>, vector<2x3xf32>
    tpu.vector_store %arg5[%c0_55, %c0_56], %259 {strides = array<i32>} : memref<2x3xf32, #tpu.memory_space<vmem>>, vector<2x3xf32>,
    return
  }
  func.func @transform_0(%arg0: i32) -> (i32, i32, i32) {
    %c0_i32 = arith.constant 0 : i32
    %c0_i32_0 = arith.constant 0 : i32
    %c0_i32_1 = arith.constant 0 : i32
    %c0_i32_2 = arith.constant 0 : i32
    return %c0_i32, %c0_i32_0, %c0_i32_1 : i32, i32, i32
  }
  func.func @transform_1(%arg0: i32) -> (i32, i32) {
    %c0_i32 = arith.constant 0 : i32
    %c0_i32_0 = arith.constant 0 : i32
    %c0_i32_1 = arith.constant 0 : i32
    return %c0_i32, %c0_i32_0 : i32, i32
  }
  func.func @transform_2(%arg0: i32) -> (i32, i32) {
    %c0_i32 = arith.constant 0 : i32
    %c0_i32_0 = arith.constant 0 : i32
    %c0_i32_1 = arith.constant 0 : i32
    return %c0_i32, %c0_i32_0 : i32, i32
  }
  func.func @transform_3(%arg0: i32) -> (i32, i32) {
    %c0_i32 = arith.constant 0 : i32
    %c0_i32_0 = arith.constant 0 : i32
    %c0_i32_1 = arith.constant 0 : i32
    return %c0_i32, %c0_i32_0 : i32, i32
  }
  func.func @transform_4(%arg0: i32) -> (i32, i32) {
    %c0_i32 = arith.constant 0 : i32
    %c0_i32_0 = arith.constant 0 : i32
    %c0_i32_1 = arith.constant 0 : i32
    return %c0_i32, %c0_i32_0 : i32, i32
  }
}

</mosaic_0001>

<llo_original>
// kernel: deeplob_depth_forward.5
$region0: #{deeplob_depth_forward.5}
  #allocation0 [shape = 'u32[]', space=smem, size = 0x4, offset = 0x4, fixed_abs, tag = 'smem constant byte address 0x4 - core index']
  #allocation1 [shape = 'u32[72,128]{1,0:T(1,128)}', space=vmem, size = 0x9000, scoped, tag = 'internal scratch']
  %s0 = inlined_call_operand.vmem [shape: f32[2,18,320], index: 0, kind: input, shape index: {}]
  %s1 = inlined_call_operand.vmem [shape: f32[320,32], index: 1, kind: input, shape index: {}]
  %s2 = inlined_call_operand.vmem [shape: f32[3,32], index: 2, kind: input, shape index: {}]
  %s3 = inlined_call_operand.vmem [shape: f32[4,32,32], index: 3, kind: input, shape index: {}]
  %s4 = inlined_call_operand.vmem [shape: f32[3,32], index: 4, kind: input, shape index: {}]
  %s5 = inlined_call_operand.vmem [shape: f32[4,32,32], index: 5, kind: input, shape index: {}]
  %s6 = inlined_call_operand.vmem [shape: f32[3,32], index: 6, kind: input, shape index: {}]
  %s7 = inlined_call_operand.vmem [shape: f32[2,12,32], index: 7, kind: output, shape index: {}]
  %s8 = sld [smem:[#allocation0]]
  $region38: #{deeplob_depth_forward.5} parent=0
    _
  %s10 = ssub.s32 1, %s8
  %s11 = scalar_select 0, %s10, %s8
  // Predicated region
  $region2: #{deeplob_depth_forward.5} parent=0 // pred_check
    _
  $region3: #{deeplob_depth_forward.5} parent=0 // pred_check_branch
    %13 = sbr.rel (0) target = $region5
  $region4: #{deeplob_depth_forward.5} parent=0 // pred_region
    _
  $region5: #{deeplob_depth_forward.5} parent=0 // pred_fallthru
    _
  // Predicated region
  $region6: #{deeplob_depth_forward.5} parent=0 // pred_check
    _
  $region7: #{deeplob_depth_forward.5} parent=0 // pred_check_branch
    %15 = sbr.rel (0) target = $region9
  $region8: #{deeplob_depth_forward.5} parent=0 // pred_region
    _
  $region9: #{deeplob_depth_forward.5} parent=0 // pred_fallthru
    _
  // Predicated region
  $region10: #{deeplob_depth_forward.5} parent=0 // pred_check
    _
  $region11: #{deeplob_depth_forward.5} parent=0 // pred_check_branch
    %17 = sbr.rel (0) target = $region13
  $region12: #{deeplob_depth_forward.5} parent=0 // pred_region
    _
  $region13: #{deeplob_depth_forward.5} parent=0 // pred_fallthru
    _
  // Predicated region
  $region14: #{deeplob_depth_forward.5} parent=0 // pred_check
    _
  $region15: #{deeplob_depth_forward.5} parent=0 // pred_check_branch
    %19 = sbr.rel (0) target = $region17
  $region16: #{deeplob_depth_forward.5} parent=0 // pred_region
    _
  $region17: #{deeplob_depth_forward.5} parent=0 // pred_fallthru
    _
  // Predicated region
  $region18: #{deeplob_depth_forward.5} parent=0 // pred_check
    _
  $region19: #{deeplob_depth_forward.5} parent=0 // pred_check_branch
    %21 = sbr.rel (0) target = $region21
  $region20: #{deeplob_depth_forward.5} parent=0 // pred_region
    _
  $region21: #{deeplob_depth_forward.5} parent=0 // pred_fallthru
    _
  // Predicated region
  $region22: #{deeplob_depth_forward.5} parent=0 // pred_check
    _
  $region23: #{deeplob_depth_forward.5} parent=0 // pred_check_branch
    %23 = sbr.rel (0) target = $region25
  $region24: #{deeplob_depth_forward.5} parent=0 // pred_region
    _
  $region25: #{deeplob_depth_forward.5} parent=0 // pred_fallthru
    _
  // Predicated region
  $region26: #{deeplob_depth_forward.5} parent=0 // pred_check
    _
  $region27: #{deeplob_depth_forward.5} parent=0 // pred_check_branch
    %25 = sbr.rel (0) target = $region29
  $region28: #{deeplob_depth_forward.5} parent=0 // pred_region
    _
  $region29: #{deeplob_depth_forward.5} parent=0 // pred_fallthru
    _
  %v26 = vld [vmem:[%s1] sm:$0xff]
  %v27 = vld [vmem:[%s1 + $0x8] sm:$0xff]
  %v28 = vld [vmem:[%s1 + $0x10] sm:$0xff]
  %v29 = vld [vmem:[%s1 + $0x18] sm:$0xff]
  %v30 = vld [vmem:[%s1 + $0x20] sm:$0xff]
  %v31 = vld [vmem:[%s1 + $0x28] sm:$0xff]
  %v32 = vld [vmem:[%s1 + $0x30] sm:$0xff]
  %v33 = vld [vmem:[%s1 + $0x38] sm:$0xff]
  %v34 = vld [vmem:[%s1 + $0x40] sm:$0xff]
  %v35 = vld [vmem:[%s1 + $0x48] sm:$0xff]
  %v36 = vld [vmem:[%s1 + $0x50] sm:$0xff]
  %v37 = vld [vmem:[%s1 + $0x58] sm:$0xff]
  %v38 = vld [vmem:[%s1 + $0x60] sm:$0xff]
  %v39 = vld [vmem:[%s1 + $0x68] sm:$0xff]
  %v40 = vld [vmem:[%s1 + $0x70] sm:$0xff]
  %v41 = vld [vmem:[%s1 + $0x78] sm:$0xff]
  %v42 = vld [vmem:[%s1 + $0x80] sm:$0xff]
  %v43 = vld [vmem:[%s1 + $0x88] sm:$0xff]
  %v44 = vld [vmem:[%s1 + $0x90] sm:$0xff]
  %v45 = vld [vmem:[%s1 + $0x98] sm:$0xff]
  %v46 = vld [vmem:[%s1 + $0xa0] sm:$0xff]
  %v47 = vld [vmem:[%s1 + $0xa8] sm:$0xff]
  %v48 = vld [vmem:[%s1 + $0xb0] sm:$0xff]
  %v49 = vld [vmem:[%s1 + $0xb8] sm:$0xff]
  %v50 = vld [vmem:[%s1 + $0xc0] sm:$0xff]
  %v51 = vld [vmem:[%s1 + $0xc8] sm:$0xff]
  %v52 = vld [vmem:[%s1 + $0xd0] sm:$0xff]
  %v53 = vld [vmem:[%s1 + $0xd8] sm:$0xff]
  %v54 = vld [vmem:[%s1 + $0xe0] sm:$0xff]
  %v55 = vld [vmem:[%s1 + $0xe8] sm:$0xff]
  %v56 = vld [vmem:[%s1 + $0xf0] sm:$0xff]
  %v57 = vld [vmem:[%s1 + $0xf8] sm:$0xff]
  %v58 = vld [vmem:[%s1 + $0x100] sm:$0xff]
  %v59 = vld [vmem:[%s1 + $0x108] sm:$0xff]
  %v60 = vld [vmem:[%s1 + $0x110] sm:$0xff]
  %v61 = vld [vmem:[%s1 + $0x118] sm:$0xff]
  %v62 = vld [vmem:[%s1 + $0x120] sm:$0xff]
  %v63 = vld [vmem:[%s1 + $0x128] sm:$0xff]
  %v64 = vld [vmem:[%s1 + $0x130] sm:$0xff]
  %v65 = vld [vmem:[%s1 + $0x138] sm:$0xff]
  %v66 = vld [vmem:[%s2] sm:$0x7]
  %v67 = vld [vmem:[%s3] sm:$0xff]
  %v68 = vld [vmem:[%s3 + $0x8] sm:$0xff]
  %v69 = vld [vmem:[%s3 + $0x10] sm:$0xff]
  %v70 = vld [vmem:[%s3 + $0x18] sm:$0xff]
  %v71 = vld [vmem:[%s3 + $0x20] sm:$0xff]
  %v72 = vld [vmem:[%s3 + $0x28] sm:$0xff]
  %v73 = vld [vmem:[%s3 + $0x30] sm:$0xff]
  %v74 = vld [vmem:[%s3 + $0x38] sm:$0xff]
  %v75 = vld [vmem:[%s3 + $0x40] sm:$0xff]
  %v76 = vld [vmem:[%s3 + $0x48] sm:$0xff]
  %v77 = vld [vmem:[%s3 + $0x50] sm:$0xff]
  %v78 = vld [vmem:[%s3 + $0x58] sm:$0xff]
  %v79 = vld [vmem:[%s3 + $0x60] sm:$0xff]
  %v80 = vld [vmem:[%s3 + $0x68] sm:$0xff]
  %v81 = vld [vmem:[%s3 + $0x70] sm:$0xff]
  %v82 = vld [vmem:[%s3 + $0x78] sm:$0xff]
  %v83 = vld [vmem:[%s4] sm:$0x7]
  %v84 = vld [vmem:[%s5] sm:$0xff]
  %v85 = vld [vmem:[%s5 + $0x8] sm:$0xff]
  %v86 = vld [vmem:[%s5 + $0x10] sm:$0xff]
  %v87 = vld [vmem:[%s5 + $0x18] sm:$0xff]
  %v88 = vld [vmem:[%s5 + $0x20] sm:$0xff]
  %v89 = vld [vmem:[%s5 + $0x28] sm:$0xff]
  %v90 = vld [vmem:[%s5 + $0x30] sm:$0xff]
  %v91 = vld [vmem:[%s5 + $0x38] sm:$0xff]
  %v92 = vld [vmem:[%s5 + $0x40] sm:$0xff]
  %v93 = vld [vmem:[%s5 + $0x48] sm:$0xff]
  %v94 = vld [vmem:[%s5 + $0x50] sm:$0xff]
  %v95 = vld [vmem:[%s5 + $0x58] sm:$0xff]
  %v96 = vld [vmem:[%s5 + $0x60] sm:$0xff]
  %v97 = vld [vmem:[%s5 + $0x68] sm:$0xff]
  %v98 = vld [vmem:[%s5 + $0x70] sm:$0xff]
  %v99 = vld [vmem:[%s5 + $0x78] sm:$0xff]
  %v100 = vld [vmem:[%s6] sm:$0x7]
  %v101 = vld [vmem:[%s0] sm:$0xff]
  %v102 = vld [vmem:[%s0 + $0x8] sm:$0xff]
  %v103 = vld [vmem:[%s0 + $0x10] sm:$0xff]
  %v104 = vld [vmem:[%s0 + $0x18] sm:$0xff]
  %v105 = vld [vmem:[%s0 + $0x20] sm:$0xff]
  %v106 = vld [vmem:[%s0 + $0x28] sm:$0xff]
  %v107 = vld [vmem:[%s0 + $0x30] sm:$0x3]
  %v108 = vld [vmem:[%s0 + $0x38] sm:$0x3]
  %v109 = vld [vmem:[%s0 + $0x40] sm:$0x3]
  %v110 = vperm.slane %v66, 0
  %vm111 = vcmask 523264
  %v113 = vsel %vm111, %v103, 0
  %v116 = vsel %vm111, %v106, 0
  %v119 = vsel %vm111, %v109, 0
  %121 = vmatpush.msra.mxu0 %v41
  %122 = vmatpush.msra.mxu0 %v40
  %123 = vmatpush.msra.mxu0 %v39
  %124 = vmatpush.msra.mxu0 %v38
  %125 = vmatpush.msra.mxu0 %v37
  %126 = vmatpush.msra.mxu0 %v36
  %127 = vmatpush.msra.mxu0 %v35
  %128 = vmatpush.msra.mxu0 %v34
  %129 = vmatpush.msra.mxu0 %v33
  %130 = vmatpush.msra.mxu0 %v32
  %131 = vmatpush.msra.mxu0 %v31
  %132 = vmatpush.msra.mxu0 %v30
  %133 = vmatpush.msra.mxu0 %v29
  %134 = vmatpush.msra.mxu0 %v28
  %135 = vmatpush.msra.mxu0 %v27
  %136 = vmatpush.msra.mxu0 %v26
  %137 = vmatmul.f32.gmra.mxu0 %v101
  %v138 = vpop.f32.mrf.mxu0
  %v139 = vadd.f32 %v110, %v138
  %140 = vmatmul.f32.gmra.mxu0 %v104
  %v141 = vpop.f32.mrf.mxu0
  %v142 = vadd.f32 %v110, %v141
  %143 = vmatmul.f32.gmra.mxu0 %v107
  %v144 = vpop.f32.mrf.mxu0
  %v145 = vadd.f32 %v110, %v144
  %146 = vdwg.mxu0
  %147 = vmatpush.msra.mxu0 %v57
  %148 = vmatpush.msra.mxu0 %v56
  %149 = vmatpush.msra.mxu0 %v55
  %150 = vmatpush.msra.mxu0 %v54
  %151 = vmatpush.msra.mxu0 %v53
  %152 = vmatpush.msra.mxu0 %v52
  %153 = vmatpush.msra.mxu0 %v51
  %154 = vmatpush.msra.mxu0 %v50
  %155 = vmatpush.msra.mxu0 %v49
  %156 = vmatpush.msra.mxu0 %v48
  %157 = vmatpush.msra.mxu0 %v47
  %158 = vmatpush.msra.mxu0 %v46
  %159 = vmatpush.msra.mxu0 %v45
  %160 = vmatpush.msra.mxu0 %v44
  %161 = vmatpush.msra.mxu0 %v43
  %162 = vmatpush.msra.mxu0 %v42
  %163 = vmatmul.f32.gmra.mxu0 %v102
  %v164 = vpop.f32.mrf.mxu0
  %v165 = vadd.f32 %v139, %v164
  %166 = vmatmul.f32.gmra.mxu0 %v105
  %v167 = vpop.f32.mrf.mxu0
  %v168 = vadd.f32 %v142, %v167
  %169 = vmatmul.f32.gmra.mxu0 %v108
  %v170 = vpop.f32.mrf.mxu0
  %v171 = vadd.f32 %v145, %v170
  %172 = vdwg.mxu0
  %173 = vmatpush.msra.mxu0 0.0
  %174 = vmatpush.msra.mxu0 0.0
  %175 = vmatpush.msra.mxu0 0.0
  %176 = vmatpush.msra.mxu0 0.0
  %177 = vmatpush.msra.mxu0 0.0
  %178 = vmatpush.msra.mxu0 0.0
  %179 = vmatpush.msra.mxu0 0.0
  %180 = vmatpush.msra.mxu0 0.0
  %181 = vmatpush.msra.mxu0 %v65
  %182 = vmatpush.msra.mxu0 %v64
  %183 = vmatpush.msra.mxu0 %v63
  %184 = vmatpush.msra.mxu0 %v62
  %185 = vmatpush.msra.mxu0 %v61
  %186 = vmatpush.msra.mxu0 %v60
  %187 = vmatpush.msra.mxu0 %v59
  %188 = vmatpush.msra.mxu0 %v58
  %189 = vmatmul.f32.gmra.mxu0 %v113
  %v190 = vpop.f32.mrf.mxu0
  %v191 = vadd.f32 %v165, %v190
  %192 = vmatmul.f32.gmra.mxu0 %v116
  %v193 = vpop.f32.mrf.mxu0
  %v194 = vadd.f32 %v168, %v193
  %195 = vmatmul.f32.gmra.mxu0 %v119
  %v196 = vpop.f32.mrf.mxu0
  %v197 = vadd.f32 %v171, %v196
  %198 = vdwg.mxu0
  %vm199 = vcmp.ge.f32.partialorder %v191, 0.0
  %vm200 = vcmp.ge.f32.partialorder %v194, 0.0
  %vm201 = vcmp.ge.f32.partialorder %v197, 0.0
  %v202 = vmul.f32 %v191, 0.01
  %v203 = vmul.f32 %v194, 0.01
  %v204 = vmul.f32 %v197, 0.01
  %v205 = vsel %vm199, %v191, %v202
  %v206 = vsel %vm200, %v194, %v203
  %v207 = vsel %vm201, %v197, %v204
  %v208 = vperm.slane %v66, 1
  %v209 = vmul.f32 %v205, %v208
  %v210 = vmul.f32 %v206, %v208
  %v211 = vmul.f32 %v207, %v208
  %v212 = vperm.slane %v66, 2
  %v213 = vadd.f32 %v209, %v212
  %v214 = vadd.f32 %v210, %v212
  %v215 = vadd.f32 %v211, %v212
  %vm218 = vcmask 1046528
  %v219 = vrot.slane %v213, 1
  %v220 = vrot.slane %v214, 1
  %v221 = vsel %vm218, %v219, %v220
  %vm222 = vcmask 261120
  %v223 = vsel %vm222, %v221, 0
  %v225 = vsel %vm222, %v220, 0
  %227 = vmatpush.msra.mxu0 0.0
  %228 = vmatpush.msra.mxu0 0.0
  %229 = vmatpush.msra.mxu0 0.0
  %230 = vmatpush.msra.mxu0 0.0
  %231 = vmatpush.msra.mxu0 0.0
  %232 = vmatpush.msra.mxu0 0.0
  %233 = vmatpush.msra.mxu0 0.0
  %234 = vmatpush.msra.mxu0 0.0
  %235 = vmatpush.msra.mxu0 0.0
  %236 = vmatpush.msra.mxu0 0.0
  %237 = vmatpush.msra.mxu0 0.0
  %238 = vmatpush.msra.mxu0 0.0
  %239 = vmatpush.msra.mxu0 %v74
  %240 = vmatpush.msra.mxu0 %v73
  %241 = vmatpush.msra.mxu0 %v72
  %242 = vmatpush.msra.mxu0 %v71
  %243 = vmatmul.f32.gmra.mxu0 %v223
  %v244 = vpop.f32.mrf.mxu0
  %v245 = vadd.f32 0.0, %v244
  %246 = vmatmul.f32.gmra.mxu0 %v225
  %v247 = vpop.f32.mrf.mxu0
  %v248 = vadd.f32 0.0, %v247
  %249 = vdwg.mxu0
  %v250 = vsel %vm222, %v213, 0
  %v252 = vsel %vm222, %v214, 0
  %254 = vmatpush.msra.mxu0 0.0
  %255 = vmatpush.msra.mxu0 0.0
  %256 = vmatpush.msra.mxu0 0.0
  %257 = vmatpush.msra.mxu0 0.0
  %258 = vmatpush.msra.mxu0 0.0
  %259 = vmatpush.msra.mxu0 0.0
  %260 = vmatpush.msra.mxu0 0.0
  %261 = vmatpush.msra.mxu0 0.0
  %262 = vmatpush.msra.mxu0 0.0
  %263 = vmatpush.msra.mxu0 0.0
  %264 = vmatpush.msra.mxu0 0.0
  %265 = vmatpush.msra.mxu0 0.0
  %266 = vmatpush.msra.mxu0 %v70
  %267 = vmatpush.msra.mxu0 %v69
  %268 = vmatpush.msra.mxu0 %v68
  %269 = vmatpush.msra.mxu0 %v67
  %270 = vmatmul.f32.gmra.mxu0 %v250
  %v271 = vpop.f32.mrf.mxu0
  %v272 = vadd.f32 %v245, %v271
  %273 = vmatmul.f32.gmra.mxu0 %v252
  %v274 = vpop.f32.mrf.mxu0
  %v275 = vadd.f32 %v248, %v274
  %276 = vdwg.mxu0
  %vm278 = vcmask 1045504
  %v279 = vrot.slane %v213, 2
  %v280 = vrot.slane %v214, 2
  %v281 = vsel %vm278, %v279, %v280
  %v282 = vrot.slane %v215, 2
  %v283 = vsel %vm278, %v280, %v282
  %v284 = vsel %vm222, %v281, 0
  %v286 = vsel %vm222, %v283, 0
  %288 = vmatpush.msra.mxu0 0.0
  %289 = vmatpush.msra.mxu0 0.0
  %290 = vmatpush.msra.mxu0 0.0
  %291 = vmatpush.msra.mxu0 0.0
  %292 = vmatpush.msra.mxu0 0.0
  %293 = vmatpush.msra.mxu0 0.0
  %294 = vmatpush.msra.mxu0 0.0
  %295 = vmatpush.msra.mxu0 0.0
  %296 = vmatpush.msra.mxu0 0.0
  %297 = vmatpush.msra.mxu0 0.0
  %298 = vmatpush.msra.mxu0 0.0
  %299 = vmatpush.msra.mxu0 0.0
  %300 = vmatpush.msra.mxu0 %v78
  %301 = vmatpush.msra.mxu0 %v77
  %302 = vmatpush.msra.mxu0 %v76
  %303 = vmatpush.msra.mxu0 %v75
  %304 = vmatmul.f32.gmra.mxu0 %v284
  %v305 = vpop.f32.mrf.mxu0
  %v306 = vadd.f32 0.0, %v305
  %307 = vmatmul.f32.gmra.mxu0 %v286
  %v308 = vpop.f32.mrf.mxu0
  %v309 = vadd.f32 0.0, %v308
  %310 = vdwg.mxu0
  %v311 = vadd.f32 %v272, %v306
  %v312 = vadd.f32 %v275, %v309
  %vm313 = vcmask 1044480
  %v314 = vrot.slane %v213, 3
  %v315 = vrot.slane %v214, 3
  %v316 = vsel %vm313, %v314, %v315
  %v317 = vrot.slane %v215, 3
  %v318 = vsel %vm313, %v315, %v317
  %v319 = vsel %vm222, %v316, 0
  %v321 = vsel %vm222, %v318, 0
  %323 = vmatpush.msra.mxu0 0.0
  %324 = vmatpush.msra.mxu0 0.0
  %325 = vmatpush.msra.mxu0 0.0
  %326 = vmatpush.msra.mxu0 0.0
  %327 = vmatpush.msra.mxu0 0.0
  %328 = vmatpush.msra.mxu0 0.0
  %329 = vmatpush.msra.mxu0 0.0
  %330 = vmatpush.msra.mxu0 0.0
  %331 = vmatpush.msra.mxu0 0.0
  %332 = vmatpush.msra.mxu0 0.0
  %333 = vmatpush.msra.mxu0 0.0
  %334 = vmatpush.msra.mxu0 0.0
  %335 = vmatpush.msra.mxu0 %v82
  %336 = vmatpush.msra.mxu0 %v81
  %337 = vmatpush.msra.mxu0 %v80
  %338 = vmatpush.msra.mxu0 %v79
  %339 = vmatmul.f32.gmra.mxu0 %v319
  %v340 = vpop.f32.mrf.mxu0
  %v341 = vadd.f32 0.0, %v340
  %342 = vmatmul.f32.gmra.mxu0 %v321
  %v343 = vpop.f32.mrf.mxu0
  %v344 = vadd.f32 0.0, %v343
  %345 = vdwg.mxu0
  %v346 = vadd.f32 %v311, %v341
  %v347 = vadd.f32 %v312, %v344
  %v348 = vperm.slane %v83, 0
  %v349 = vadd.f32 %v346, %v348
  %v350 = vadd.f32 %v347, %v348
  %vm351 = vcmp.ge.f32.partialorder %v349, 0.0
  %vm352 = vcmp.ge.f32.partialorder %v350, 0.0
  %v353 = vmul.f32 %v349, 0.01
  %v354 = vmul.f32 %v350, 0.01
  %v355 = vsel %vm351, %v349, %v353
  %v356 = vsel %vm352, %v350, %v354
  %v357 = vperm.slane %v83, 1
  %v358 = vmul.f32 %v355, %v357
  %v359 = vmul.f32 %v356, %v357
  %v360 = vperm.slane %v83, 2
  %v361 = vadd.f32 %v358, %v360
  %v362 = vadd.f32 %v359, %v360
  %v365 = vrot.slane %v361, 1
  %v366 = vrot.slane %v362, 1
  %v367 = vsel %vm218, %v365, %v366
  %v368 = vsel %vm222, %v367, 0
  %v370 = vsel %vm222, %v366, 0
  %372 = vmatpush.msra.mxu0 0.0
  %373 = vmatpush.msra.mxu0 0.0
  %374 = vmatpush.msra.mxu0 0.0
  %375 = vmatpush.msra.mxu0 0.0
  %376 = vmatpush.msra.mxu0 0.0
  %377 = vmatpush.msra.mxu0 0.0
  %378 = vmatpush.msra.mxu0 0.0
  %379 = vmatpush.msra.mxu0 0.0
  %380 = vmatpush.msra.mxu0 0.0
  %381 = vmatpush.msra.mxu0 0.0
  %382 = vmatpush.msra.mxu0 0.0
  %383 = vmatpush.msra.mxu0 0.0
  %384 = vmatpush.msra.mxu0 %v91
  %385 = vmatpush.msra.mxu0 %v90
  %386 = vmatpush.msra.mxu0 %v89
  %387 = vmatpush.msra.mxu0 %v88
  %388 = vmatmul.f32.gmra.mxu0 %v368
  %v389 = vpop.f32.mrf.mxu0
  %v390 = vadd.f32 0.0, %v389
  %391 = vmatmul.f32.gmra.mxu0 %v370
  %v392 = vpop.f32.mrf.mxu0
  %v393 = vadd.f32 0.0, %v392
  %394 = vdwg.mxu0
  %v395 = vsel %vm222, %v361, 0
  %v397 = vsel %vm222, %v362, 0
  %399 = vmatpush.msra.mxu0 0.0
  %400 = vmatpush.msra.mxu0 0.0
  %401 = vmatpush.msra.mxu0 0.0
  %402 = vmatpush.msra.mxu0 0.0
  %403 = vmatpush.msra.mxu0 0.0
  %404 = vmatpush.msra.mxu0 0.0
  %405 = vmatpush.msra.mxu0 0.0
  %406 = vmatpush.msra.mxu0 0.0
  %407 = vmatpush.msra.mxu0 0.0
  %408 = vmatpush.msra.mxu0 0.0
  %409 = vmatpush.msra.mxu0 0.0
  %410 = vmatpush.msra.mxu0 0.0
  %411 = vmatpush.msra.mxu0 %v87
  %412 = vmatpush.msra.mxu0 %v86
  %413 = vmatpush.msra.mxu0 %v85
  %414 = vmatpush.msra.mxu0 %v84
  %415 = vmatmul.f32.gmra.mxu0 %v395
  %v416 = vpop.f32.mrf.mxu0
  %v417 = vadd.f32 %v390, %v416
  %418 = vmatmul.f32.gmra.mxu0 %v397
  %v419 = vpop.f32.mrf.mxu0
  %v420 = vadd.f32 %v393, %v419
  %421 = vdwg.mxu0
  %v422 = vrot.slane %v361, 2
  %v423 = vrot.slane %v362, 2
  %v424 = vsel %vm278, %v422, %v423
  %v425 = vsel %vm222, %v424, 0
  %v427 = vsel %vm222, %v423, 0
  %429 = vmatpush.msra.mxu0 0.0
  %430 = vmatpush.msra.mxu0 0.0
  %431 = vmatpush.msra.mxu0 0.0
  %432 = vmatpush.msra.mxu0 0.0
  %433 = vmatpush.msra.mxu0 0.0
  %434 = vmatpush.msra.mxu0 0.0
  %435 = vmatpush.msra.mxu0 0.0
  %436 = vmatpush.msra.mxu0 0.0
  %437 = vmatpush.msra.mxu0 0.0
  %438 = vmatpush.msra.mxu0 0.0
  %439 = vmatpush.msra.mxu0 0.0
  %440 = vmatpush.msra.mxu0 0.0
  %441 = vmatpush.msra.mxu0 %v95
  %442 = vmatpush.msra.mxu0 %v94
  %443 = vmatpush.msra.mxu0 %v93
  %444 = vmatpush.msra.mxu0 %v92
  %445 = vmatmul.f32.gmra.mxu0 %v425
  %v446 = vpop.f32.mrf.mxu0
  %v447 = vadd.f32 0.0, %v446
  %448 = vmatmul.f32.gmra.mxu0 %v427
  %v449 = vpop.f32.mrf.mxu0
  %v450 = vadd.f32 0.0, %v449
  %451 = vdwg.mxu0
  %v452 = vadd.f32 %v417, %v447
  %v453 = vadd.f32 %v420, %v450
  %v454 = vrot.slane %v361, 3
  %v455 = vrot.slane %v362, 3
  %v456 = vsel %vm313, %v454, %v455
  %v457 = vsel %vm222, %v456, 0
  %v459 = vsel %vm222, %v455, 0
  %461 = vmatpush.msra.mxu0 0.0
  %462 = vmatpush.msra.mxu0 0.0
  %463 = vmatpush.msra.mxu0 0.0
  %464 = vmatpush.msra.mxu0 0.0
  %465 = vmatpush.msra.mxu0 0.0
  %466 = vmatpush.msra.mxu0 0.0
  %467 = vmatpush.msra.mxu0 0.0
  %468 = vmatpush.msra.mxu0 0.0
  %469 = vmatpush.msra.mxu0 0.0
  %470 = vmatpush.msra.mxu0 0.0
  %471 = vmatpush.msra.mxu0 0.0
  %472 = vmatpush.msra.mxu0 0.0
  %473 = vmatpush.msra.mxu0 %v99
  %474 = vmatpush.msra.mxu0 %v98
  %475 = vmatpush.msra.mxu0 %v97
  %476 = vmatpush.msra.mxu0 %v96
  %477 = vmatmul.f32.gmra.mxu0 %v457
  %v478 = vpop.f32.mrf.mxu0
  %v479 = vadd.f32 0.0, %v478
  %480 = vmatmul.f32.gmra.mxu0 %v459
  %v481 = vpop.f32.mrf.mxu0
  %v482 = vadd.f32 0.0, %v481
  %483 = vdwg.mxu0
  %v484 = vadd.f32 %v452, %v479
  %v485 = vadd.f32 %v453, %v482
  %v486 = vperm.slane %v100, 0
  %v487 = vadd.f32 %v484, %v486
  %v488 = vadd.f32 %v485, %v486
  %vm489 = vcmp.ge.f32.partialorder %v487, 0.0
  %vm490 = vcmp.ge.f32.partialorder %v488, 0.0
  %v491 = vmul.f32 %v487, 0.01
  %v492 = vmul.f32 %v488, 0.01
  %v493 = vsel %vm489, %v487, %v491
  %v494 = vsel %vm490, %v488, %v492
  %v495 = vperm.slane %v100, 1
  %v496 = vmul.f32 %v493, %v495
  %v497 = vmul.f32 %v494, %v495
  %v498 = vperm.slane %v100, 2
  %v499 = vadd.f32 %v496, %v498
  %v500 = vadd.f32 %v497, %v498
  %501 = vst.msk [vmem:[%s7] sm:$0xff] %vm222, %v499
  %vm502 = vcmask 257024
  %503 = vst.msk [vmem:[%s7 + $0x8] sm:$0xf] %vm502, %v500
  %s504 = scalar_lea.vmem %s0, 72
  %v505 = vld [vmem:[%s504] sm:$0xff]
  %v506 = vld [vmem:[%s504 + $0x8] sm:$0xff]
  %v507 = vld [vmem:[%s504 + $0x10] sm:$0xff]
  %v508 = vld [vmem:[%s504 + $0x18] sm:$0xff]
  %v509 = vld [vmem:[%s504 + $0x20] sm:$0xff]
  %v510 = vld [vmem:[%s504 + $0x28] sm:$0xff]
  %v511 = vld [vmem:[%s504 + $0x30] sm:$0x3]
  %v512 = vld [vmem:[%s504 + $0x38] sm:$0x3]
  %v513 = vld [vmem:[%s504 + $0x40] sm:$0x3]
  %v515 = vsel %vm111, %v507, 0
  %v518 = vsel %vm111, %v510, 0
  %v521 = vsel %vm111, %v513, 0
  %523 = vmatpush.msra.mxu0 %v41
  %524 = vmatpush.msra.mxu0 %v40
  %525 = vmatpush.msra.mxu0 %v39
  %526 = vmatpush.msra.mxu0 %v38
  %527 = vmatpush.msra.mxu0 %v37
  %528 = vmatpush.msra.mxu0 %v36
  %529 = vmatpush.msra.mxu0 %v35
  %530 = vmatpush.msra.mxu0 %v34
  %531 = vmatpush.msra.mxu0 %v33
  %532 = vmatpush.msra.mxu0 %v32
  %533 = vmatpush.msra.mxu0 %v31
  %534 = vmatpush.msra.mxu0 %v30
  %535 = vmatpush.msra.mxu0 %v29
  %536 = vmatpush.msra.mxu0 %v28
  %537 = vmatpush.msra.mxu0 %v27
  %538 = vmatpush.msra.mxu0 %v26
  %539 = vmatmul.f32.gmra.mxu0 %v505
  %v540 = vpop.f32.mrf.mxu0
  %v541 = vadd.f32 %v110, %v540
  %542 = vmatmul.f32.gmra.mxu0 %v508
  %v543 = vpop.f32.mrf.mxu0
  %v544 = vadd.f32 %v110, %v543
  %545 = vmatmul.f32.gmra.mxu0 %v511
  %v546 = vpop.f32.mrf.mxu0
  %v547 = vadd.f32 %v110, %v546
  %548 = vdwg.mxu0
  %549 = vmatpush.msra.mxu0 %v57
  %550 = vmatpush.msra.mxu0 %v56
  %551 = vmatpush.msra.mxu0 %v55
  %552 = vmatpush.msra.mxu0 %v54
  %553 = vmatpush.msra.mxu0 %v53
  %554 = vmatpush.msra.mxu0 %v52
  %555 = vmatpush.msra.mxu0 %v51
  %556 = vmatpush.msra.mxu0 %v50
  %557 = vmatpush.msra.mxu0 %v49
  %558 = vmatpush.msra.mxu0 %v48
  %559 = vmatpush.msra.mxu0 %v47
  %560 = vmatpush.msra.mxu0 %v46
  %561 = vmatpush.msra.mxu0 %v45
  %562 = vmatpush.msra.mxu0 %v44
  %563 = vmatpush.msra.mxu0 %v43
  %564 = vmatpush.msra.mxu0 %v42
  %565 = vmatmul.f32.gmra.mxu0 %v506
  %v566 = vpop.f32.mrf.mxu0
  %v567 = vadd.f32 %v541, %v566
  %568 = vmatmul.f32.gmra.mxu0 %v509
  %v569 = vpop.f32.mrf.mxu0
  %v570 = vadd.f32 %v544, %v569
  %571 = vmatmul.f32.gmra.mxu0 %v512
  %v572 = vpop.f32.mrf.mxu0
  %v573 = vadd.f32 %v547, %v572
  %574 = vdwg.mxu0
  %575 = vmatpush.msra.mxu0 0.0
  %576 = vmatpush.msra.mxu0 0.0
  %577 = vmatpush.msra.mxu0 0.0
  %578 = vmatpush.msra.mxu0 0.0
  %579 = vmatpush.msra.mxu0 0.0
  %580 = vmatpush.msra.mxu0 0.0
  %581 = vmatpush.msra.mxu0 0.0
  %582 = vmatpush.msra.mxu0 0.0
  %583 = vmatpush.msra.mxu0 %v65
  %584 = vmatpush.msra.mxu0 %v64
  %585 = vmatpush.msra.mxu0 %v63
  %586 = vmatpush.msra.mxu0 %v62
  %587 = vmatpush.msra.mxu0 %v61
  %588 = vmatpush.msra.mxu0 %v60
  %589 = vmatpush.msra.mxu0 %v59
  %590 = vmatpush.msra.mxu0 %v58
  %591 = vmatmul.f32.gmra.mxu0 %v515
  %v592 = vpop.f32.mrf.mxu0
  %v593 = vadd.f32 %v567, %v592
  %594 = vmatmul.f32.gmra.mxu0 %v518
  %v595 = vpop.f32.mrf.mxu0
  %v596 = vadd.f32 %v570, %v595
  %597 = vmatmul.f32.gmra.mxu0 %v521
  %v598 = vpop.f32.mrf.mxu0
  %v599 = vadd.f32 %v573, %v598
  %600 = vdwg.mxu0
  %vm601 = vcmp.ge.f32.partialorder %v593, 0.0
  %vm602 = vcmp.ge.f32.partialorder %v596, 0.0
  %vm603 = vcmp.ge.f32.partialorder %v599, 0.0
  %v604 = vmul.f32 %v593, 0.01
  %v605 = vmul.f32 %v596, 0.01
  %v606 = vmul.f32 %v599, 0.01
  %v607 = vsel %vm601, %v593, %v604
  %v608 = vsel %vm602, %v596, %v605
  %v609 = vsel %vm603, %v599, %v606
  %v610 = vmul.f32 %v607, %v208
  %v611 = vmul.f32 %v608, %v208
  %v612 = vmul.f32 %v609, %v208
  %v613 = vadd.f32 %v610, %v212
  %v614 = vadd.f32 %v611, %v212
  %v615 = vadd.f32 %v612, %v212
  %v618 = vrot.slane %v613, 1
  %v619 = vrot.slane %v614, 1
  %v620 = vsel %vm218, %v618, %v619
  %v621 = vsel %vm222, %v620, 0
  %v623 = vsel %vm222, %v619, 0
  %625 = vmatpush.msra.mxu0 0.0
  %626 = vmatpush.msra.mxu0 0.0
  %627 = vmatpush.msra.mxu0 0.0
  %628 = vmatpush.msra.mxu0 0.0
  %629 = vmatpush.msra.mxu0 0.0
  %630 = vmatpush.msra.mxu0 0.0
  %631 = vmatpush.msra.mxu0 0.0
  %632 = vmatpush.msra.mxu0 0.0
  %633 = vmatpush.msra.mxu0 0.0
  %634 = vmatpush.msra.mxu0 0.0
  %635 = vmatpush.msra.mxu0 0.0
  %636 = vmatpush.msra.mxu0 0.0
  %637 = vmatpush.msra.mxu0 %v74
  %638 = vmatpush.msra.mxu0 %v73
  %639 = vmatpush.msra.mxu0 %v72
  %640 = vmatpush.msra.mxu0 %v71
  %641 = vmatmul.f32.gmra.mxu0 %v621
  %v642 = vpop.f32.mrf.mxu0
  %v643 = vadd.f32 0.0, %v642
  %644 = vmatmul.f32.gmra.mxu0 %v623
  %v645 = vpop.f32.mrf.mxu0
  %v646 = vadd.f32 0.0, %v645
  %647 = vdwg.mxu0
  %v648 = vsel %vm222, %v613, 0
  %v650 = vsel %vm222, %v614, 0
  %652 = vmatpush.msra.mxu0 0.0
  %653 = vmatpush.msra.mxu0 0.0
  %654 = vmatpush.msra.mxu0 0.0
  %655 = vmatpush.msra.mxu0 0.0
  %656 = vmatpush.msra.mxu0 0.0
  %657 = vmatpush.msra.mxu0 0.0
  %658 = vmatpush.msra.mxu0 0.0
  %659 = vmatpush.msra.mxu0 0.0
  %660 = vmatpush.msra.mxu0 0.0
  %661 = vmatpush.msra.mxu0 0.0
  %662 = vmatpush.msra.mxu0 0.0
  %663 = vmatpush.msra.mxu0 0.0
  %664 = vmatpush.msra.mxu0 %v70
  %665 = vmatpush.msra.mxu0 %v69
  %666 = vmatpush.msra.mxu0 %v68
  %667 = vmatpush.msra.mxu0 %v67
  %668 = vmatmul.f32.gmra.mxu0 %v648
  %v669 = vpop.f32.mrf.mxu0
  %v670 = vadd.f32 %v643, %v669
  %671 = vmatmul.f32.gmra.mxu0 %v650
  %v672 = vpop.f32.mrf.mxu0
  %v673 = vadd.f32 %v646, %v672
  %674 = vdwg.mxu0
  %v676 = vrot.slane %v613, 2
  %v677 = vrot.slane %v614, 2
  %v678 = vsel %vm278, %v676, %v677
  %v679 = vrot.slane %v615, 2
  %v680 = vsel %vm278, %v677, %v679
  %v681 = vsel %vm222, %v678, 0
  %v683 = vsel %vm222, %v680, 0
  %685 = vmatpush.msra.mxu0 0.0
  %686 = vmatpush.msra.mxu0 0.0
  %687 = vmatpush.msra.mxu0 0.0
  %688 = vmatpush.msra.mxu0 0.0
  %689 = vmatpush.msra.mxu0 0.0
  %690 = vmatpush.msra.mxu0 0.0
  %691 = vmatpush.msra.mxu0 0.0
  %692 = vmatpush.msra.mxu0 0.0
  %693 = vmatpush.msra.mxu0 0.0
  %694 = vmatpush.msra.mxu0 0.0
  %695 = vmatpush.msra.mxu0 0.0
  %696 = vmatpush.msra.mxu0 0.0
  %697 = vmatpush.msra.mxu0 %v78
  %698 = vmatpush.msra.mxu0 %v77
  %699 = vmatpush.msra.mxu0 %v76
  %700 = vmatpush.msra.mxu0 %v75
  %701 = vmatmul.f32.gmra.mxu0 %v681
  %v702 = vpop.f32.mrf.mxu0
  %v703 = vadd.f32 0.0, %v702
  %704 = vmatmul.f32.gmra.mxu0 %v683
  %v705 = vpop.f32.mrf.mxu0
  %v706 = vadd.f32 0.0, %v705
  %707 = vdwg.mxu0
  %v708 = vadd.f32 %v670, %v703
  %v709 = vadd.f32 %v673, %v706
  %v710 = vrot.slane %v613, 3
  %v711 = vrot.slane %v614, 3
  %v712 = vsel %vm313, %v710, %v711
  %v713 = vrot.slane %v615, 3
  %v714 = vsel %vm313, %v711, %v713
  %v715 = vsel %vm222, %v712, 0
  %v717 = vsel %vm222, %v714, 0
  %719 = vmatpush.msra.mxu0 0.0
  %720 = vmatpush.msra.mxu0 0.0
  %721 = vmatpush.msra.mxu0 0.0
  %722 = vmatpush.msra.mxu0 0.0
  %723 = vmatpush.msra.mxu0 0.0
  %724 = vmatpush.msra.mxu0 0.0
  %725 = vmatpush.msra.mxu0 0.0
  %726 = vmatpush.msra.mxu0 0.0
  %727 = vmatpush.msra.mxu0 0.0
  %728 = vmatpush.msra.mxu0 0.0
  %729 = vmatpush.msra.mxu0 0.0
  %730 = vmatpush.msra.mxu0 0.0
  %731 = vmatpush.msra.mxu0 %v82
  %732 = vmatpush.msra.mxu0 %v81
  %733 = vmatpush.msra.mxu0 %v80
  %734 = vmatpush.msra.mxu0 %v79
  %735 = vmatmul.f32.gmra.mxu0 %v715
  %v736 = vpop.f32.mrf.mxu0
  %v737 = vadd.f32 0.0, %v736
  %738 = vmatmul.f32.gmra.mxu0 %v717
  %v739 = vpop.f32.mrf.mxu0
  %v740 = vadd.f32 0.0, %v739
  %741 = vdwg.mxu0
  %v742 = vadd.f32 %v708, %v737
  %v743 = vadd.f32 %v709, %v740
  %v744 = vadd.f32 %v742, %v348
  %v745 = vadd.f32 %v743, %v348
  %vm746 = vcmp.ge.f32.partialorder %v744, 0.0
  %vm747 = vcmp.ge.f32.partialorder %v745, 0.0
  %v748 = vmul.f32 %v744, 0.01
  %v749 = vmul.f32 %v745, 0.01
  %v750 = vsel %vm746, %v744, %v748
  %v751 = vsel %vm747, %v745, %v749
  %v752 = vmul.f32 %v750, %v357
  %v753 = vmul.f32 %v751, %v357
  %v754 = vadd.f32 %v752, %v360
  %v755 = vadd.f32 %v753, %v360
  %v758 = vrot.slane %v754, 1
  %v759 = vrot.slane %v755, 1
  %v760 = vsel %vm218, %v758, %v759
  %v761 = vsel %vm222, %v760, 0
  %v763 = vsel %vm222, %v759, 0
  %765 = vmatpush.msra.mxu0 0.0
  %766 = vmatpush.msra.mxu0 0.0
  %767 = vmatpush.msra.mxu0 0.0
  %768 = vmatpush.msra.mxu0 0.0
  %769 = vmatpush.msra.mxu0 0.0
  %770 = vmatpush.msra.mxu0 0.0
  %771 = vmatpush.msra.mxu0 0.0
  %772 = vmatpush.msra.mxu0 0.0
  %773 = vmatpush.msra.mxu0 0.0
  %774 = vmatpush.msra.mxu0 0.0
  %775 = vmatpush.msra.mxu0 0.0
  %776 = vmatpush.msra.mxu0 0.0
  %777 = vmatpush.msra.mxu0 %v91
  %778 = vmatpush.msra.mxu0 %v90
  %779 = vmatpush.msra.mxu0 %v89
  %780 = vmatpush.msra.mxu0 %v88
  %781 = vmatmul.f32.gmra.mxu0 %v761
  %v782 = vpop.f32.mrf.mxu0
  %v783 = vadd.f32 0.0, %v782
  %784 = vmatmul.f32.gmra.mxu0 %v763
  %v785 = vpop.f32.mrf.mxu0
  %v786 = vadd.f32 0.0, %v785
  %787 = vdwg.mxu0
  %v788 = vsel %vm222, %v754, 0
  %v790 = vsel %vm222, %v755, 0
  %792 = vmatpush.msra.mxu0 0.0
  %793 = vmatpush.msra.mxu0 0.0
  %794 = vmatpush.msra.mxu0 0.0
  %795 = vmatpush.msra.mxu0 0.0
  %796 = vmatpush.msra.mxu0 0.0
  %797 = vmatpush.msra.mxu0 0.0
  %798 = vmatpush.msra.mxu0 0.0
  %799 = vmatpush.msra.mxu0 0.0
  %800 = vmatpush.msra.mxu0 0.0
  %801 = vmatpush.msra.mxu0 0.0
  %802 = vmatpush.msra.mxu0 0.0
  %803 = vmatpush.msra.mxu0 0.0
  %804 = vmatpush.msra.mxu0 %v87
  %805 = vmatpush.msra.mxu0 %v86
  %806 = vmatpush.msra.mxu0 %v85
  %807 = vmatpush.msra.mxu0 %v84
  %808 = vmatmul.f32.gmra.mxu0 %v788
  %v809 = vpop.f32.mrf.mxu0
  %v810 = vadd.f32 %v783, %v809
  %811 = vmatmul.f32.gmra.mxu0 %v790
  %v812 = vpop.f32.mrf.mxu0
  %v813 = vadd.f32 %v786, %v812
  %814 = vdwg.mxu0
  %v815 = vrot.slane %v754, 2
  %v816 = vrot.slane %v755, 2
  %v817 = vsel %vm278, %v815, %v816
  %v818 = vsel %vm222, %v817, 0
  %v820 = vsel %vm222, %v816, 0
  %822 = vmatpush.msra.mxu0 0.0
  %823 = vmatpush.msra.mxu0 0.0
  %824 = vmatpush.msra.mxu0 0.0
  %825 = vmatpush.msra.mxu0 0.0
  %826 = vmatpush.msra.mxu0 0.0
  %827 = vmatpush.msra.mxu0 0.0
  %828 = vmatpush.msra.mxu0 0.0
  %829 = vmatpush.msra.mxu0 0.0
  %830 = vmatpush.msra.mxu0 0.0
  %831 = vmatpush.msra.mxu0 0.0
  %832 = vmatpush.msra.mxu0 0.0
  %833 = vmatpush.msra.mxu0 0.0
  %834 = vmatpush.msra.mxu0 %v95
  %835 = vmatpush.msra.mxu0 %v94
  %836 = vmatpush.msra.mxu0 %v93
  %837 = vmatpush.msra.mxu0 %v92
  %838 = vmatmul.f32.gmra.mxu0 %v818
  %v839 = vpop.f32.mrf.mxu0
  %v840 = vadd.f32 0.0, %v839
  %841 = vmatmul.f32.gmra.mxu0 %v820
  %v842 = vpop.f32.mrf.mxu0
  %v843 = vadd.f32 0.0, %v842
  %844 = vdwg.mxu0
  %v845 = vadd.f32 %v810, %v840
  %v846 = vadd.f32 %v813, %v843
  %v847 = vrot.slane %v754, 3
  %v848 = vrot.slane %v755, 3
  %v849 = vsel %vm313, %v847, %v848
  %v850 = vsel %vm222, %v849, 0
  %v852 = vsel %vm222, %v848, 0
  %854 = vmatpush.msra.mxu0 0.0
  %855 = vmatpush.msra.mxu0 0.0
  %856 = vmatpush.msra.mxu0 0.0
  %857 = vmatpush.msra.mxu0 0.0
  %858 = vmatpush.msra.mxu0 0.0
  %859 = vmatpush.msra.mxu0 0.0
  %860 = vmatpush.msra.mxu0 0.0
  %861 = vmatpush.msra.mxu0 0.0
  %862 = vmatpush.msra.mxu0 0.0
  %863 = vmatpush.msra.mxu0 0.0
  %864 = vmatpush.msra.mxu0 0.0
  %865 = vmatpush.msra.mxu0 0.0
  %866 = vmatpush.msra.mxu0 %v99
  %867 = vmatpush.msra.mxu0 %v98
  %868 = vmatpush.msra.mxu0 %v97
  %869 = vmatpush.msra.mxu0 %v96
  %870 = vmatmul.f32.gmra.mxu0 %v850
  %v871 = vpop.f32.mrf.mxu0
  %v872 = vadd.f32 0.0, %v871
  %873 = vmatmul.f32.gmra.mxu0 %v852
  %v874 = vpop.f32.mrf.mxu0
  %v875 = vadd.f32 0.0, %v874
  %876 = vdwg.mxu0
  %v877 = vadd.f32 %v845, %v872
  %v878 = vadd.f32 %v846, %v875
  %v879 = vadd.f32 %v877, %v486
  %v880 = vadd.f32 %v878, %v486
  %vm881 = vcmp.ge.f32.partialorder %v879, 0.0
  %vm882 = vcmp.ge.f32.partialorder %v880, 0.0
  %v883 = vmul.f32 %v879, 0.01
  %v884 = vmul.f32 %v880, 0.01
  %v885 = vsel %vm881, %v879, %v883
  %v886 = vsel %vm882, %v880, %v884
  %v887 = vmul.f32 %v885, %v495
  %v888 = vmul.f32 %v886, %v495
  %v889 = vadd.f32 %v887, %v498
  %v890 = vadd.f32 %v888, %v498
  %s891 = scalar_lea.vmem %s7, 16
  %892 = vst.msk [vmem:[%s891] sm:$0xff] %vm222, %v889
  %893 = vst.msk [vmem:[%s891 + $0x8] sm:$0xf] %vm502, %v890
  // Predicated region
  $region30: #{deeplob_depth_forward.5} parent=0 // pred_check
    _
  $region31: #{deeplob_depth_forward.5} parent=0 // pred_check_branch
    %895 = sbr.rel (0) target = $region33
  $region32: #{deeplob_depth_forward.5} parent=0 // pred_region
    _
  $region33: #{deeplob_depth_forward.5} parent=0 // pred_fallthru
    _
  // Predicated region
  $region34: #{deeplob_depth_forward.5} parent=0 // pred_check
    _
  $region35: #{deeplob_depth_forward.5} parent=0 // pred_check_branch
    %897 = sbr.rel (0) target = $region37
  $region36: #{deeplob_depth_forward.5} parent=0 // pred_region
    _
  $region37: #{deeplob_depth_forward.5} parent=0 // pred_fallthru
    _

// kernel: deeplob_depth_forward.6
$region0: #{deeplob_depth_forward.6}
  #allocation0 [shape = 'u32[]', space=smem, size = 0x4, offset = 0x4, fixed_abs, tag = 'smem constant byte address 0x4 - core index']
  #allocation1 [shape = 'u32[72,128]{1,0:T(1,128)}', space=vmem, size = 0x9000, scoped, tag = 'internal scratch']
  #allocation2 [shape = 'f32[2,14,64]{2,1,0:T(8,128)}', space=vmem, size = 0x4000, scoped, tag = 'scratch operand']
  #allocation3 [shape = 'f32[2,16,64]{2,1,0:T(8,128)}', space=vmem, size = 0x4000, scoped, tag = 'scratch operand']
  #allocation4 [shape = 'f32[2,14,32]{2,1,0:T(8,128)}', space=vmem, size = 0x4000, scoped, tag = 'scratch operand']
  %s0 = inlined_call_operand.vmem [shape: f32[2,12,32], index: 0, kind: input, shape index: {}]
  %s1 = inlined_call_operand.vmem [shape: f32[32,128], index: 1, kind: input, shape index: {}]
  %s2 = inlined_call_operand.vmem [shape: f32[3,128], index: 2, kind: input, shape index: {}]
  %s3 = inlined_call_operand.vmem [shape: f32[3,64,64], index: 3, kind: input, shape index: {}]
  %s4 = inlined_call_operand.vmem [shape: f32[3,64], index: 4, kind: input, shape index: {}]
  %s5 = inlined_call_operand.vmem [shape: f32[5,64,64], index: 5, kind: input, shape index: {}]
  %s6 = inlined_call_operand.vmem [shape: f32[3,64], index: 6, kind: input, shape index: {}]
  %s7 = inlined_call_operand.vmem [shape: f32[32,64], index: 7, kind: input, shape index: {}]
  %s8 = inlined_call_operand.vmem [shape: f32[3,64], index: 8, kind: input, shape index: {}]
  %s9 = inlined_call_operand.vmem [shape: f32[192,256], index: 9, kind: input, shape index: {}]
  %s10 = inlined_call_operand.vmem [shape: f32[1,256], index: 10, kind: input, shape index: {}]
  %s11 = inlined_call_operand.vmem [shape: f32[2,12,256], index: 11, kind: output, shape index: {}]
  %s12 = sld [smem:[#allocation0]]
  $region54: #{deeplob_depth_forward.6} parent=0
    _
  %s14 = ssub.s32 1, %s12
  %s15 = scalar_select 0, %s14, %s12
  // Predicated region
  $region2: #{deeplob_depth_forward.6} parent=0 // pred_check
    _
  $region3: #{deeplob_depth_forward.6} parent=0 // pred_check_branch
    %17 = sbr.rel (0) target = $region5
  $region4: #{deeplob_depth_forward.6} parent=0 // pred_region
    _
  $region5: #{deeplob_depth_forward.6} parent=0 // pred_fallthru
    _
  // Predicated region
  $region6: #{deeplob_depth_forward.6} parent=0 // pred_check
    _
  $region7: #{deeplob_depth_forward.6} parent=0 // pred_check_branch
    %19 = sbr.rel (0) target = $region9
  $region8: #{deeplob_depth_forward.6} parent=0 // pred_region
    _
  $region9: #{deeplob_depth_forward.6} parent=0 // pred_fallthru
    _
  // Predicated region
  $region10: #{deeplob_depth_forward.6} parent=0 // pred_check
    _
  $region11: #{deeplob_depth_forward.6} parent=0 // pred_check_branch
    %21 = sbr.rel (0) target = $region13
  $region12: #{deeplob_depth_forward.6} parent=0 // pred_region
    _
  $region13: #{deeplob_depth_forward.6} parent=0 // pred_fallthru
    _
  // Predicated region
  $region14: #{deeplob_depth_forward.6} parent=0 // pred_check
    _
  $region15: #{deeplob_depth_forward.6} parent=0 // pred_check_branch
    %23 = sbr.rel (0) target = $region17
  $region16: #{deeplob_depth_forward.6} parent=0 // pred_region
    _
  $region17: #{deeplob_depth_forward.6} parent=0 // pred_fallthru
    _
  // Predicated region
  $region18: #{deeplob_depth_forward.6} parent=0 // pred_check
    _
  $region19: #{deeplob_depth_forward.6} parent=0 // pred_check_branch
    %25 = sbr.rel (0) target = $region21
  $region20: #{deeplob_depth_forward.6} parent=0 // pred_region
    _
  $region21: #{deeplob_depth_forward.6} parent=0 // pred_fallthru
    _
  // Predicated region
  $region22: #{deeplob_depth_forward.6} parent=0 // pred_check
    _
  $region23: #{deeplob_depth_forward.6} parent=0 // pred_check_branch
    %27 = sbr.rel (0) target = $region25
  $region24: #{deeplob_depth_forward.6} parent=0 // pred_region
    _
  $region25: #{deeplob_depth_forward.6} parent=0 // pred_fallthru
    _
  // Predicated region
  $region26: #{deeplob_depth_forward.6} parent=0 // pred_check
    _
  $region27: #{deeplob_depth_forward.6} parent=0 // pred_check_branch
    %29 = sbr.rel (0) target = $region29
  $region28: #{deeplob_depth_forward.6} parent=0 // pred_region
    _
  $region29: #{deeplob_depth_forward.6} parent=0 // pred_fallthru
    _
  // Predicated region
  $region30: #{deeplob_depth_forward.6} parent=0 // pred_check
    _
  $region31: #{deeplob_depth_forward.6} parent=0 // pred_check_branch
    %31 = sbr.rel (0) target = $region33
  $region32: #{deeplob_depth_forward.6} parent=0 // pred_region
    _
  $region33: #{deeplob_depth_forward.6} parent=0 // pred_fallthru
    _
  // Predicated region
  $region34: #{deeplob_depth_forward.6} parent=0 // pred_check
    _
  $region35: #{deeplob_depth_forward.6} parent=0 // pred_check_branch
    %33 = sbr.rel (0) target = $region37
  $region36: #{deeplob_depth_forward.6} parent=0 // pred_region
    _
  $region37: #{deeplob_depth_forward.6} parent=0 // pred_fallthru
    _
  // Predicated region
  $region38: #{deeplob_depth_forward.6} parent=0 // pred_check
    _
  $region39: #{deeplob_depth_forward.6} parent=0 // pred_check_branch
    %35 = sbr.rel (0) target = $region41
  $region40: #{deeplob_depth_forward.6} parent=0 // pred_region
    _
  $region41: #{deeplob_depth_forward.6} parent=0 // pred_fallthru
    _
  // Predicated region
  $region42: #{deeplob_depth_forward.6} parent=0 // pred_check
    _
  $region43: #{deeplob_depth_forward.6} parent=0 // pred_check_branch
    %37 = sbr.rel (0) target = $region45
  $region44: #{deeplob_depth_forward.6} parent=0 // pred_region
    _
  $region45: #{deeplob_depth_forward.6} parent=0 // pred_fallthru
    _
  %v38 = vld [vmem:[%s1] sm:$0xff]
  %v39 = vld [vmem:[%s1 + $0x8] sm:$0xff]
  %v40 = vld [vmem:[%s1 + $0x10] sm:$0xff]
  %v41 = vld [vmem:[%s1 + $0x18] sm:$0xff]
  %v42 = vld [vmem:[%s2] sm:$0x7]
  %v43 = vld [vmem:[%s3] sm:$0xff]
  %v44 = vld [vmem:[%s3 + $0x8] sm:$0xff]
  %v45 = vld [vmem:[%s3 + $0x10] sm:$0xff]
  %v46 = vld [vmem:[%s3 + $0x18] sm:$0xff]
  %v47 = vld [vmem:[%s3 + $0x20] sm:$0xff]
  %v48 = vld [vmem:[%s3 + $0x28] sm:$0xff]
  %v49 = vld [vmem:[%s3 + $0x30] sm:$0xff]
  %v50 = vld [vmem:[%s3 + $0x38] sm:$0xff]
  %v51 = vld [vmem:[%s3 + $0x40] sm:$0xff]
  %v52 = vld [vmem:[%s3 + $0x48] sm:$0xff]
  %v53 = vld [vmem:[%s3 + $0x50] sm:$0xff]
  %v54 = vld [vmem:[%s3 + $0x58] sm:$0xff]
  %v55 = vld [vmem:[%s3 + $0x60] sm:$0xff]
  %v56 = vld [vmem:[%s3 + $0x68] sm:$0xff]
  %v57 = vld [vmem:[%s3 + $0x70] sm:$0xff]
  %v58 = vld [vmem:[%s3 + $0x78] sm:$0xff]
  %v59 = vld [vmem:[%s3 + $0x80] sm:$0xff]
  %v60 = vld [vmem:[%s3 + $0x88] sm:$0xff]
  %v61 = vld [vmem:[%s3 + $0x90] sm:$0xff]
  %v62 = vld [vmem:[%s3 + $0x98] sm:$0xff]
  %v63 = vld [vmem:[%s3 + $0xa0] sm:$0xff]
  %v64 = vld [vmem:[%s3 + $0xa8] sm:$0xff]
  %v65 = vld [vmem:[%s3 + $0xb0] sm:$0xff]
  %v66 = vld [vmem:[%s3 + $0xb8] sm:$0xff]
  %v67 = vld [vmem:[%s4] sm:$0x7]
  %v68 = vld [vmem:[%s5] sm:$0xff]
  %v69 = vld [vmem:[%s5 + $0x8] sm:$0xff]
  %v70 = vld [vmem:[%s5 + $0x10] sm:$0xff]
  %v71 = vld [vmem:[%s5 + $0x18] sm:$0xff]
  %v72 = vld [vmem:[%s5 + $0x20] sm:$0xff]
  %v73 = vld [vmem:[%s5 + $0x28] sm:$0xff]
  %v74 = vld [vmem:[%s5 + $0x30] sm:$0xff]
  %v75 = vld [vmem:[%s5 + $0x38] sm:$0xff]
  %v76 = vld [vmem:[%s5 + $0x40] sm:$0xff]
  %v77 = vld [vmem:[%s5 + $0x48] sm:$0xff]
  %v78 = vld [vmem:[%s5 + $0x50] sm:$0xff]
  %v79 = vld [vmem:[%s5 + $0x58] sm:$0xff]
  %v80 = vld [vmem:[%s5 + $0x60] sm:$0xff]
  %v81 = vld [vmem:[%s5 + $0x68] sm:$0xff]
  %v82 = vld [vmem:[%s5 + $0x70] sm:$0xff]
  %v83 = vld [vmem:[%s5 + $0x78] sm:$0xff]
  %v84 = vld [vmem:[%s5 + $0x80] sm:$0xff]
  %v85 = vld [vmem:[%s5 + $0x88] sm:$0xff]
  %v86 = vld [vmem:[%s5 + $0x90] sm:$0xff]
  %v87 = vld [vmem:[%s5 + $0x98] sm:$0xff]
  %v88 = vld [vmem:[%s5 + $0xa0] sm:$0xff]
  %v89 = vld [vmem:[%s5 + $0xa8] sm:$0xff]
  %v90 = vld [vmem:[%s5 + $0xb0] sm:$0xff]
  %v91 = vld [vmem:[%s5 + $0xb8] sm:$0xff]
  %v92 = vld [vmem:[%s5 + $0xc0] sm:$0xff]
  %v93 = vld [vmem:[%s5 + $0xc8] sm:$0xff]
  %v94 = vld [vmem:[%s5 + $0xd0] sm:$0xff]
  %v95 = vld [vmem:[%s5 + $0xd8] sm:$0xff]
  %v96 = vld [vmem:[%s5 + $0xe0] sm:$0xff]
  %v97 = vld [vmem:[%s5 + $0xe8] sm:$0xff]
  %v98 = vld [vmem:[%s5 + $0xf0] sm:$0xff]
  %v99 = vld [vmem:[%s5 + $0xf8] sm:$0xff]
  %v100 = vld [vmem:[%s5 + $0x100] sm:$0xff]
  %v101 = vld [vmem:[%s5 + $0x108] sm:$0xff]
  %v102 = vld [vmem:[%s5 + $0x110] sm:$0xff]
  %v103 = vld [vmem:[%s5 + $0x118] sm:$0xff]
  %v104 = vld [vmem:[%s5 + $0x120] sm:$0xff]
  %v105 = vld [vmem:[%s5 + $0x128] sm:$0xff]
  %v106 = vld [vmem:[%s5 + $0x130] sm:$0xff]
  %v107 = vld [vmem:[%s5 + $0x138] sm:$0xff]
  %v108 = vld [vmem:[%s6] sm:$0x7]
  %v109 = vld [vmem:[%s7] sm:$0xff]
  %v110 = vld [vmem:[%s7 + $0x8] sm:$0xff]
  %v111 = vld [vmem:[%s7 + $0x10] sm:$0xff]
  %v112 = vld [vmem:[%s7 + $0x18] sm:$0xff]
  %v113 = vld [vmem:[%s8] sm:$0x7]
  %v114 = vld [vmem:[%s9] sm:$0xff]
  %v115 = vld [vmem:[%s9 + $0x8] sm:$0xff]
  %v116 = vld [vmem:[%s9 + $0x10] sm:$0xff]
  %v117 = vld [vmem:[%s9 + $0x18] sm:$0xff]
  %v118 = vld [vmem:[%s9 + $0x20] sm:$0xff]
  %v119 = vld [vmem:[%s9 + $0x28] sm:$0xff]
  %v120 = vld [vmem:[%s9 + $0x30] sm:$0xff]
  %v121 = vld [vmem:[%s9 + $0x38] sm:$0xff]
  %v122 = vld [vmem:[%s9 + $0x40] sm:$0xff]
  %v123 = vld [vmem:[%s9 + $0x48] sm:$0xff]
  %v124 = vld [vmem:[%s9 + $0x50] sm:$0xff]
  %v125 = vld [vmem:[%s9 + $0x58] sm:$0xff]
  %v126 = vld [vmem:[%s9 + $0x60] sm:$0xff]
  %v127 = vld [vmem:[%s9 + $0x68] sm:$0xff]
  %v128 = vld [vmem:[%s9 + $0x70] sm:$0xff]
  %v129 = vld [vmem:[%s9 + $0x78] sm:$0xff]
  %v130 = vld [vmem:[%s9 + $0x80] sm:$0xff]
  %v131 = vld [vmem:[%s9 + $0x88] sm:$0xff]
  %v132 = vld [vmem:[%s9 + $0x90] sm:$0xff]
  %v133 = vld [vmem:[%s9 + $0x98] sm:$0xff]
  %v134 = vld [vmem:[%s9 + $0xa0] sm:$0xff]
  %v135 = vld [vmem:[%s9 + $0xa8] sm:$0xff]
  %v136 = vld [vmem:[%s9 + $0xb0] sm:$0xff]
  %v137 = vld [vmem:[%s9 + $0xb8] sm:$0xff]
  %v138 = vld [vmem:[%s9 + $0xc0] sm:$0xff]
  %v139 = vld [vmem:[%s9 + $0xc8] sm:$0xff]
  %v140 = vld [vmem:[%s9 + $0xd0] sm:$0xff]
  %v141 = vld [vmem:[%s9 + $0xd8] sm:$0xff]
  %v142 = vld [vmem:[%s9 + $0xe0] sm:$0xff]
  %v143 = vld [vmem:[%s9 + $0xe8] sm:$0xff]
  %v144 = vld [vmem:[%s9 + $0xf0] sm:$0xff]
  %v145 = vld [vmem:[%s9 + $0xf8] sm:$0xff]
  %v146 = vld [vmem:[%s9 + $0x100] sm:$0xff]
  %v147 = vld [vmem:[%s9 + $0x108] sm:$0xff]
  %v148 = vld [vmem:[%s9 + $0x110] sm:$0xff]
  %v149 = vld [vmem:[%s9 + $0x118] sm:$0xff]
  %v150 = vld [vmem:[%s9 + $0x120] sm:$0xff]
  %v151 = vld [vmem:[%s9 + $0x128] sm:$0xff]
  %v152 = vld [vmem:[%s9 + $0x130] sm:$0xff]
  %v153 = vld [vmem:[%s9 + $0x138] sm:$0xff]
  %v154 = vld [vmem:[%s9 + $0x140] sm:$0xff]
  %v155 = vld [vmem:[%s9 + $0x148] sm:$0xff]
  %v156 = vld [vmem:[%s9 + $0x150] sm:$0xff]
  %v157 = vld [vmem:[%s9 + $0x158] sm:$0xff]
  %v158 = vld [vmem:[%s9 + $0x160] sm:$0xff]
  %v159 = vld [vmem:[%s9 + $0x168] sm:$0xff]
  %v160 = vld [vmem:[%s9 + $0x170] sm:$0xff]
  %v161 = vld [vmem:[%s9 + $0x178] sm:$0xff]
  %v162 = vld [vmem:[%s10] sm:$0x3]
  %v163 = vld [vmem:[%s0] sm:$0xff]
  %v164 = vld [vmem:[%s0 + $0x8] sm:$0xf]
  %v165 = vperm.slane %v42, 0
  %vm166 = vcmask 261120
  %v168 = vsel %vm166, %v163, 0
  %v171 = vsel %vm166, %v164, 0
  %173 = vmatpush.msra.mxu0 0.0
  %174 = vmatpush.msra.mxu0 0.0
  %175 = vmatpush.msra.mxu0 0.0
  %176 = vmatpush.msra.mxu0 0.0
  %177 = vmatpush.msra.mxu0 0.0
  %178 = vmatpush.msra.mxu0 0.0
  %179 = vmatpush.msra.mxu0 0.0
  %180 = vmatpush.msra.mxu0 0.0
  %181 = vmatpush.msra.mxu0 0.0
  %182 = vmatpush.msra.mxu0 0.0
  %183 = vmatpush.msra.mxu0 0.0
  %184 = vmatpush.msra.mxu0 0.0
  %185 = vmatpush.msra.mxu0 %v41
  %186 = vmatpush.msra.mxu0 %v40
  %187 = vmatpush.msra.mxu0 %v39
  %188 = vmatpush.msra.mxu0 %v38
  %189 = vmatmul.f32.gmra.mxu0 %v168
  %v190 = vpop.f32.mrf.mxu0
  %v191 = vadd.f32 %v165, %v190
  %192 = vmatmul.f32.gmra.mxu0 %v171
  %v193 = vpop.f32.mrf.mxu0
  %v194 = vadd.f32 %v165, %v193
  %195 = vdwg.mxu0
  %vm196 = vcmp.ge.f32.partialorder %v191, 0.0
  %vm197 = vcmp.ge.f32.partialorder %v194, 0.0
  %v198 = vmul.f32 %v191, 0.01
  %v199 = vmul.f32 %v194, 0.01
  %v200 = vsel %vm196, %v191, %v198
  %v201 = vsel %vm197, %v194, %v199
  %v202 = vperm.slane %v42, 1
  %v203 = vmul.f32 %v200, %v202
  %v204 = vmul.f32 %v201, %v202
  %v205 = vperm.slane %v42, 2
  %v206 = vadd.f32 %v203, %v205
  %v207 = vadd.f32 %v204, %v205
  %vm208 = vcmask 523264
  %209 = vst.msk [vmem:[#allocation2] sm:$0xff] %vm208, 0.0
  %vm210 = vcmask 521216
  %211 = vst.msk [vmem:[#allocation2 + $0x8] sm:$0x3f] %vm210, 0.0
  %212 = vst.msk [vmem:[#allocation2 + $0x1] sm:$0xff] %vm208, %v206
  %vm213 = vcmask 519168
  %214 = vst.msk [vmem:[#allocation2 + $0x9] sm:$0xf] %vm213, %v207
  %215 = vst.msk [vmem:[#allocation3] sm:$0xff] %vm208, 0.0
  %216 = vst.msk [vmem:[#allocation3 + $0x8] sm:$0xff] %vm208, 0.0
  %219 = vrot.lane.b32.xlu0 %v206, 64
  %v220 = vpop.permute.xlu0 %219
  %221 = vrot.lane.b32.xlu0 %v207, 64
  %v222 = vpop.permute.xlu0 %221
  %225 = vst.msk [vmem:[#allocation3 + $0x2] sm:$0xff] %vm208, %v220
  %226 = vst.msk [vmem:[#allocation3 + $0xa] sm:$0xf] %vm213, %v222
  %v227 = vld [vmem:[#allocation2] sm:$0xff]
  %v228 = vld [vmem:[#allocation2 + $0x8] sm:$0xf]
  %v229 = vld [vmem:[#allocation2 + $0x1] sm:$0xff]
  %v230 = vld [vmem:[#allocation2 + $0x9] sm:$0xf]
  %v232 = vsel %vm208, %v229, 0
  %v235 = vsel %vm208, %v230, 0
  %237 = vmatpush.msra.mxu0 0.0
  %238 = vmatpush.msra.mxu0 0.0
  %239 = vmatpush.msra.mxu0 0.0
  %240 = vmatpush.msra.mxu0 0.0
  %241 = vmatpush.msra.mxu0 0.0
  %242 = vmatpush.msra.mxu0 0.0
  %243 = vmatpush.msra.mxu0 0.0
  %244 = vmatpush.msra.mxu0 0.0
  %245 = vmatpush.msra.mxu0 %v58
  %246 = vmatpush.msra.mxu0 %v57
  %247 = vmatpush.msra.mxu0 %v56
  %248 = vmatpush.msra.mxu0 %v55
  %249 = vmatpush.msra.mxu0 %v54
  %250 = vmatpush.msra.mxu0 %v53
  %251 = vmatpush.msra.mxu0 %v52
  %252 = vmatpush.msra.mxu0 %v51
  %253 = vmatmul.f32.gmra.mxu0 %v232
  %v254 = vpop.f32.mrf.mxu0
  %v255 = vadd.f32 0.0, %v254
  %256 = vmatmul.f32.gmra.mxu0 %v235
  %v257 = vpop.f32.mrf.mxu0
  %v258 = vadd.f32 0.0, %v257
  %259 = vdwg.mxu0
  %v261 = vsel %vm208, %v227, 0
  %v264 = vsel %vm208, %v228, 0
  %266 = vmatpush.msra.mxu0 0.0
  %267 = vmatpush.msra.mxu0 0.0
  %268 = vmatpush.msra.mxu0 0.0
  %269 = vmatpush.msra.mxu0 0.0
  %270 = vmatpush.msra.mxu0 0.0
  %271 = vmatpush.msra.mxu0 0.0
  %272 = vmatpush.msra.mxu0 0.0
  %273 = vmatpush.msra.mxu0 0.0
  %274 = vmatpush.msra.mxu0 %v50
  %275 = vmatpush.msra.mxu0 %v49
  %276 = vmatpush.msra.mxu0 %v48
  %277 = vmatpush.msra.mxu0 %v47
  %278 = vmatpush.msra.mxu0 %v46
  %279 = vmatpush.msra.mxu0 %v45
  %280 = vmatpush.msra.mxu0 %v44
  %281 = vmatpush.msra.mxu0 %v43
  %282 = vmatmul.f32.gmra.mxu0 %v261
  %v283 = vpop.f32.mrf.mxu0
  %v284 = vadd.f32 %v255, %v283
  %285 = vmatmul.f32.gmra.mxu0 %v264
  %v286 = vpop.f32.mrf.mxu0
  %v287 = vadd.f32 %v258, %v286
  %288 = vdwg.mxu0
  %v289 = vld [vmem:[#allocation2 + $0x2] sm:$0xff]
  %v290 = vld [vmem:[#allocation2 + $0xa] sm:$0xf]
  %v292 = vsel %vm208, %v289, 0
  %v295 = vsel %vm208, %v290, 0
  %297 = vmatpush.msra.mxu0 0.0
  %298 = vmatpush.msra.mxu0 0.0
  %299 = vmatpush.msra.mxu0 0.0
  %300 = vmatpush.msra.mxu0 0.0
  %301 = vmatpush.msra.mxu0 0.0
  %302 = vmatpush.msra.mxu0 0.0
  %303 = vmatpush.msra.mxu0 0.0
  %304 = vmatpush.msra.mxu0 0.0
  %305 = vmatpush.msra.mxu0 %v66
  %306 = vmatpush.msra.mxu0 %v65
  %307 = vmatpush.msra.mxu0 %v64
  %308 = vmatpush.msra.mxu0 %v63
  %309 = vmatpush.msra.mxu0 %v62
  %310 = vmatpush.msra.mxu0 %v61
  %311 = vmatpush.msra.mxu0 %v60
  %312 = vmatpush.msra.mxu0 %v59
  %313 = vmatmul.f32.gmra.mxu0 %v292
  %v314 = vpop.f32.mrf.mxu0
  %v315 = vadd.f32 0.0, %v314
  %316 = vmatmul.f32.gmra.mxu0 %v295
  %v317 = vpop.f32.mrf.mxu0
  %v318 = vadd.f32 0.0, %v317
  %319 = vdwg.mxu0
  %v320 = vadd.f32 %v284, %v315
  %v321 = vadd.f32 %v287, %v318
  %v322 = vperm.slane %v67, 0
  %v323 = vadd.f32 %v320, %v322
  %v324 = vadd.f32 %v321, %v322
  %vm325 = vcmp.ge.f32.partialorder %v323, 0.0
  %vm326 = vcmp.ge.f32.partialorder %v324, 0.0
  %v327 = vmul.f32 %v323, 0.01
  %v328 = vmul.f32 %v324, 0.01
  %v329 = vsel %vm325, %v323, %v327
  %v330 = vsel %vm326, %v324, %v328
  %v331 = vperm.slane %v67, 1
  %v332 = vmul.f32 %v329, %v331
  %v333 = vmul.f32 %v330, %v331
  %v334 = vperm.slane %v67, 2
  %v335 = vadd.f32 %v332, %v334
  %v336 = vadd.f32 %v333, %v334
  %v337 = vld [vmem:[#allocation3] sm:$0xff]
  %v338 = vld [vmem:[#allocation3 + $0x8] sm:$0xf]
  %v339 = vld [vmem:[#allocation3 + $0x1] sm:$0xff]
  %v340 = vld [vmem:[#allocation3 + $0x9] sm:$0xf]
  %v342 = vsel %vm208, %v339, 0
  %v345 = vsel %vm208, %v340, 0
  %347 = vmatpush.msra.mxu0 0.0
  %348 = vmatpush.msra.mxu0 0.0
  %349 = vmatpush.msra.mxu0 0.0
  %350 = vmatpush.msra.mxu0 0.0
  %351 = vmatpush.msra.mxu0 0.0
  %352 = vmatpush.msra.mxu0 0.0
  %353 = vmatpush.msra.mxu0 0.0
  %354 = vmatpush.msra.mxu0 0.0
  %355 = vmatpush.msra.mxu0 %v83
  %356 = vmatpush.msra.mxu0 %v82
  %357 = vmatpush.msra.mxu0 %v81
  %358 = vmatpush.msra.mxu0 %v80
  %359 = vmatpush.msra.mxu0 %v79
  %360 = vmatpush.msra.mxu0 %v78
  %361 = vmatpush.msra.mxu0 %v77
  %362 = vmatpush.msra.mxu0 %v76
  %363 = vmatmul.f32.gmra.mxu0 %v342
  %v364 = vpop.f32.mrf.mxu0
  %v365 = vadd.f32 0.0, %v364
  %366 = vmatmul.f32.gmra.mxu0 %v345
  %v367 = vpop.f32.mrf.mxu0
  %v368 = vadd.f32 0.0, %v367
  %369 = vdwg.mxu0
  %v371 = vsel %vm208, %v337, 0
  %v374 = vsel %vm208, %v338, 0
  %376 = vmatpush.msra.mxu0 0.0
  %377 = vmatpush.msra.mxu0 0.0
  %378 = vmatpush.msra.mxu0 0.0
  %379 = vmatpush.msra.mxu0 0.0
  %380 = vmatpush.msra.mxu0 0.0
  %381 = vmatpush.msra.mxu0 0.0
  %382 = vmatpush.msra.mxu0 0.0
  %383 = vmatpush.msra.mxu0 0.0
  %384 = vmatpush.msra.mxu0 %v75
  %385 = vmatpush.msra.mxu0 %v74
  %386 = vmatpush.msra.mxu0 %v73
  %387 = vmatpush.msra.mxu0 %v72
  %388 = vmatpush.msra.mxu0 %v71
  %389 = vmatpush.msra.mxu0 %v70
  %390 = vmatpush.msra.mxu0 %v69
  %391 = vmatpush.msra.mxu0 %v68
  %392 = vmatmul.f32.gmra.mxu0 %v371
  %v393 = vpop.f32.mrf.mxu0
  %v394 = vadd.f32 %v365, %v393
  %395 = vmatmul.f32.gmra.mxu0 %v374
  %v396 = vpop.f32.mrf.mxu0
  %v397 = vadd.f32 %v368, %v396
  %398 = vdwg.mxu0
  %v399 = vld [vmem:[#allocation3 + $0x2] sm:$0xff]
  %v400 = vld [vmem:[#allocation3 + $0xa] sm:$0xf]
  %v402 = vsel %vm208, %v399, 0
  %v405 = vsel %vm208, %v400, 0
  %407 = vmatpush.msra.mxu0 0.0
  %408 = vmatpush.msra.mxu0 0.0
  %409 = vmatpush.msra.mxu0 0.0
  %410 = vmatpush.msra.mxu0 0.0
  %411 = vmatpush.msra.mxu0 0.0
  %412 = vmatpush.msra.mxu0 0.0
  %413 = vmatpush.msra.mxu0 0.0
  %414 = vmatpush.msra.mxu0 0.0
  %415 = vmatpush.msra.mxu0 %v91
  %416 = vmatpush.msra.mxu0 %v90
  %417 = vmatpush.msra.mxu0 %v89
  %418 = vmatpush.msra.mxu0 %v88
  %419 = vmatpush.msra.mxu0 %v87
  %420 = vmatpush.msra.mxu0 %v86
  %421 = vmatpush.msra.mxu0 %v85
  %422 = vmatpush.msra.mxu0 %v84
  %423 = vmatmul.f32.gmra.mxu0 %v402
  %v424 = vpop.f32.mrf.mxu0
  %v425 = vadd.f32 0.0, %v424
  %426 = vmatmul.f32.gmra.mxu0 %v405
  %v427 = vpop.f32.mrf.mxu0
  %v428 = vadd.f32 0.0, %v427
  %429 = vdwg.mxu0
  %v430 = vadd.f32 %v394, %v425
  %v431 = vadd.f32 %v397, %v428
  %v432 = vld [vmem:[#allocation3 + $0x3] sm:$0xff]
  %v433 = vld [vmem:[#allocation3 + $0xb] sm:$0xf]
  %v435 = vsel %vm208, %v432, 0
  %v438 = vsel %vm208, %v433, 0
  %440 = vmatpush.msra.mxu0 0.0
  %441 = vmatpush.msra.mxu0 0.0
  %442 = vmatpush.msra.mxu0 0.0
  %443 = vmatpush.msra.mxu0 0.0
  %444 = vmatpush.msra.mxu0 0.0
  %445 = vmatpush.msra.mxu0 0.0
  %446 = vmatpush.msra.mxu0 0.0
  %447 = vmatpush.msra.mxu0 0.0
  %448 = vmatpush.msra.mxu0 %v99
  %449 = vmatpush.msra.mxu0 %v98
  %450 = vmatpush.msra.mxu0 %v97
  %451 = vmatpush.msra.mxu0 %v96
  %452 = vmatpush.msra.mxu0 %v95
  %453 = vmatpush.msra.mxu0 %v94
  %454 = vmatpush.msra.mxu0 %v93
  %455 = vmatpush.msra.mxu0 %v92
  %456 = vmatmul.f32.gmra.mxu0 %v435
  %v457 = vpop.f32.mrf.mxu0
  %v458 = vadd.f32 0.0, %v457
  %459 = vmatmul.f32.gmra.mxu0 %v438
  %v460 = vpop.f32.mrf.mxu0
  %v461 = vadd.f32 0.0, %v460
  %462 = vdwg.mxu0
  %v463 = vadd.f32 %v430, %v458
  %v464 = vadd.f32 %v431, %v461
  %v465 = vld [vmem:[#allocation3 + $0x4] sm:$0xff]
  %v466 = vld [vmem:[#allocation3 + $0xc] sm:$0xf]
  %v468 = vsel %vm208, %v465, 0
  %v471 = vsel %vm208, %v466, 0
  %473 = vmatpush.msra.mxu0 0.0
  %474 = vmatpush.msra.mxu0 0.0
  %475 = vmatpush.msra.mxu0 0.0
  %476 = vmatpush.msra.mxu0 0.0
  %477 = vmatpush.msra.mxu0 0.0
  %478 = vmatpush.msra.mxu0 0.0
  %479 = vmatpush.msra.mxu0 0.0
  %480 = vmatpush.msra.mxu0 0.0
  %481 = vmatpush.msra.mxu0 %v107
  %482 = vmatpush.msra.mxu0 %v106
  %483 = vmatpush.msra.mxu0 %v105
  %484 = vmatpush.msra.mxu0 %v104
  %485 = vmatpush.msra.mxu0 %v103
  %486 = vmatpush.msra.mxu0 %v102
  %487 = vmatpush.msra.mxu0 %v101
  %488 = vmatpush.msra.mxu0 %v100
  %489 = vmatmul.f32.gmra.mxu0 %v468
  %v490 = vpop.f32.mrf.mxu0
  %v491 = vadd.f32 0.0, %v490
  %492 = vmatmul.f32.gmra.mxu0 %v471
  %v493 = vpop.f32.mrf.mxu0
  %v494 = vadd.f32 0.0, %v493
  %495 = vdwg.mxu0
  %v496 = vadd.f32 %v463, %v491
  %v497 = vadd.f32 %v464, %v494
  %v498 = vperm.slane %v108, 0
  %v499 = vadd.f32 %v496, %v498
  %v500 = vadd.f32 %v497, %v498
  %vm501 = vcmp.ge.f32.partialorder %v499, 0.0
  %vm502 = vcmp.ge.f32.partialorder %v500, 0.0
  %v503 = vmul.f32 %v499, 0.01
  %v504 = vmul.f32 %v500, 0.01
  %v505 = vsel %vm501, %v499, %v503
  %v506 = vsel %vm502, %v500, %v504
  %v507 = vperm.slane %v108, 1
  %v508 = vmul.f32 %v505, %v507
  %v509 = vmul.f32 %v506, %v507
  %v510 = vperm.slane %v108, 2
  %v511 = vadd.f32 %v508, %v510
  %v512 = vadd.f32 %v509, %v510
  %513 = vst.msk [vmem:[#allocation4] sm:$0xff] %vm166, -inf
  %vm514 = vcmask 259072
  %515 = vst.msk [vmem:[#allocation4 + $0x8] sm:$0x3f] %vm514, -inf
  %516 = vst.msk [vmem:[#allocation4 + $0x1] sm:$0xff] %vm166, %v163
  %vm517 = vcmask 257024
  %518 = vst.msk [vmem:[#allocation4 + $0x9] sm:$0xf] %vm517, %v164
  %v519 = vld [vmem:[#allocation4] sm:$0xff]
  %v520 = vld [vmem:[#allocation4 + $0x8] sm:$0xf]
  %v521 = vld [vmem:[#allocation4 + $0x1] sm:$0xff]
  %v522 = vld [vmem:[#allocation4 + $0x9] sm:$0xf]
  %v523 = vmax.f32 %v519, %v521
  %v524 = vmax.f32 %v520, %v522
  %v525 = vld [vmem:[#allocation4 + $0x2] sm:$0xff]
  %v526 = vld [vmem:[#allocation4 + $0xa] sm:$0xf]
  %v527 = vmax.f32 %v523, %v525
  %v528 = vmax.f32 %v524, %v526
  %v529 = vperm.slane %v113, 0
  %v531 = vsel %vm166, %v527, 0
  %v534 = vsel %vm166, %v528, 0
  %536 = vmatpush.msra.mxu0 0.0
  %537 = vmatpush.msra.mxu0 0.0
  %538 = vmatpush.msra.mxu0 0.0
  %539 = vmatpush.msra.mxu0 0.0
  %540 = vmatpush.msra.mxu0 0.0
  %541 = vmatpush.msra.mxu0 0.0
  %542 = vmatpush.msra.mxu0 0.0
  %543 = vmatpush.msra.mxu0 0.0
  %544 = vmatpush.msra.mxu0 0.0
  %545 = vmatpush.msra.mxu0 0.0
  %546 = vmatpush.msra.mxu0 0.0
  %547 = vmatpush.msra.mxu0 0.0
  %548 = vmatpush.msra.mxu0 %v112
  %549 = vmatpush.msra.mxu0 %v111
  %550 = vmatpush.msra.mxu0 %v110
  %551 = vmatpush.msra.mxu0 %v109
  %552 = vmatmul.f32.gmra.mxu0 %v531
  %v553 = vpop.f32.mrf.mxu0
  %v554 = vadd.f32 %v529, %v553
  %555 = vmatmul.f32.gmra.mxu0 %v534
  %v556 = vpop.f32.mrf.mxu0
  %v557 = vadd.f32 %v529, %v556
  %558 = vdwg.mxu0
  %vm559 = vcmp.ge.f32.partialorder %v554, 0.0
  %vm560 = vcmp.ge.f32.partialorder %v557, 0.0
  %v561 = vmul.f32 %v554, 0.01
  %v562 = vmul.f32 %v557, 0.01
  %v563 = vsel %vm559, %v554, %v561
  %v564 = vsel %vm560, %v557, %v562
  %v565 = vperm.slane %v113, 1
  %v566 = vmul.f32 %v563, %v565
  %v567 = vmul.f32 %v564, %v565
  %v568 = vperm.slane %v113, 2
  %v569 = vadd.f32 %v566, %v568
  %v570 = vadd.f32 %v567, %v568
  %v572 = vsel %vm208, %v511, 0
  %v575 = vsel %vm208, %v512, 0
  %577 = vmatpush.msra.mxu0 0.0
  %578 = vmatpush.msra.mxu0 0.0
  %579 = vmatpush.msra.mxu0 0.0
  %580 = vmatpush.msra.mxu0 0.0
  %581 = vmatpush.msra.mxu0 0.0
  %582 = vmatpush.msra.mxu0 0.0
  %583 = vmatpush.msra.mxu0 0.0
  %584 = vmatpush.msra.mxu0 0.0
  %585 = vmatpush.msra.mxu0 %v144
  %586 = vmatpush.msra.mxu0 %v142
  %587 = vmatpush.msra.mxu0 %v140
  %588 = vmatpush.msra.mxu0 %v138
  %589 = vmatpush.msra.mxu0 %v136
  %590 = vmatpush.msra.mxu0 %v134
  %591 = vmatpush.msra.mxu0 %v132
  %592 = vmatpush.msra.mxu0 %v130
  %593 = vmatmul.f32.gmra.mxu0 %v572
  %v594 = vpop.f32.mrf.mxu0
  %v595 = vadd.f32 0.0, %v594
  %596 = vmatmul.f32.gmra.mxu0 %v575
  %v597 = vpop.f32.mrf.mxu0
  %v598 = vadd.f32 0.0, %v597
  %599 = vdwg.mxu0
  %600 = vmatpush.msra.mxu0 0.0
  %601 = vmatpush.msra.mxu0 0.0
  %602 = vmatpush.msra.mxu0 0.0
  %603 = vmatpush.msra.mxu0 0.0
  %604 = vmatpush.msra.mxu0 0.0
  %605 = vmatpush.msra.mxu0 0.0
  %606 = vmatpush.msra.mxu0 0.0
  %607 = vmatpush.msra.mxu0 0.0
  %608 = vmatpush.msra.mxu0 %v145
  %609 = vmatpush.msra.mxu0 %v143
  %610 = vmatpush.msra.mxu0 %v141
  %611 = vmatpush.msra.mxu0 %v139
  %612 = vmatpush.msra.mxu0 %v137
  %613 = vmatpush.msra.mxu0 %v135
  %614 = vmatpush.msra.mxu0 %v133
  %615 = vmatpush.msra.mxu0 %v131
  %616 = vmatmul.f32.gmra.mxu0 %v572
  %v617 = vpop.f32.mrf.mxu0
  %v618 = vadd.f32 0.0, %v617
  %619 = vmatmul.f32.gmra.mxu0 %v575
  %v620 = vpop.f32.mrf.mxu0
  %v621 = vadd.f32 0.0, %v620
  %622 = vdwg.mxu0
  %v624 = vsel %vm208, %v335, 0
  %v627 = vsel %vm208, %v336, 0
  %629 = vmatpush.msra.mxu0 0.0
  %630 = vmatpush.msra.mxu0 0.0
  %631 = vmatpush.msra.mxu0 0.0
  %632 = vmatpush.msra.mxu0 0.0
  %633 = vmatpush.msra.mxu0 0.0
  %634 = vmatpush.msra.mxu0 0.0
  %635 = vmatpush.msra.mxu0 0.0
  %636 = vmatpush.msra.mxu0 0.0
  %637 = vmatpush.msra.mxu0 %v128
  %638 = vmatpush.msra.mxu0 %v126
  %639 = vmatpush.msra.mxu0 %v124
  %640 = vmatpush.msra.mxu0 %v122
  %641 = vmatpush.msra.mxu0 %v120
  %642 = vmatpush.msra.mxu0 %v118
  %643 = vmatpush.msra.mxu0 %v116
  %644 = vmatpush.msra.mxu0 %v114
  %645 = vmatmul.f32.gmra.mxu0 %v624
  %v646 = vpop.f32.mrf.mxu0
  %v647 = vadd.f32 %v595, %v646
  %648 = vmatmul.f32.gmra.mxu0 %v627
  %v649 = vpop.f32.mrf.mxu0
  %v650 = vadd.f32 %v598, %v649
  %651 = vdwg.mxu0
  %652 = vmatpush.msra.mxu0 0.0
  %653 = vmatpush.msra.mxu0 0.0
  %654 = vmatpush.msra.mxu0 0.0
  %655 = vmatpush.msra.mxu0 0.0
  %656 = vmatpush.msra.mxu0 0.0
  %657 = vmatpush.msra.mxu0 0.0
  %658 = vmatpush.msra.mxu0 0.0
  %659 = vmatpush.msra.mxu0 0.0
  %660 = vmatpush.msra.mxu0 %v129
  %661 = vmatpush.msra.mxu0 %v127
  %662 = vmatpush.msra.mxu0 %v125
  %663 = vmatpush.msra.mxu0 %v123
  %664 = vmatpush.msra.mxu0 %v121
  %665 = vmatpush.msra.mxu0 %v119
  %666 = vmatpush.msra.mxu0 %v117
  %667 = vmatpush.msra.mxu0 %v115
  %668 = vmatmul.f32.gmra.mxu0 %v624
  %v669 = vpop.f32.mrf.mxu0
  %v670 = vadd.f32 %v618, %v669
  %671 = vmatmul.f32.gmra.mxu0 %v627
  %v672 = vpop.f32.mrf.mxu0
  %v673 = vadd.f32 %v621, %v672
  %674 = vdwg.mxu0
  %v676 = vsel %vm208, %v569, 0
  %v679 = vsel %vm208, %v570, 0
  %681 = vmatpush.msra.mxu0 0.0
  %682 = vmatpush.msra.mxu0 0.0
  %683 = vmatpush.msra.mxu0 0.0
  %684 = vmatpush.msra.mxu0 0.0
  %685 = vmatpush.msra.mxu0 0.0
  %686 = vmatpush.msra.mxu0 0.0
  %687 = vmatpush.msra.mxu0 0.0
  %688 = vmatpush.msra.mxu0 0.0
  %689 = vmatpush.msra.mxu0 %v160
  %690 = vmatpush.msra.mxu0 %v158
  %691 = vmatpush.msra.mxu0 %v156
  %692 = vmatpush.msra.mxu0 %v154
  %693 = vmatpush.msra.mxu0 %v152
  %694 = vmatpush.msra.mxu0 %v150
  %695 = vmatpush.msra.mxu0 %v148
  %696 = vmatpush.msra.mxu0 %v146
  %697 = vmatmul.f32.gmra.mxu0 %v676
  %v698 = vpop.f32.mrf.mxu0
  %v699 = vadd.f32 0.0, %v698
  %700 = vmatmul.f32.gmra.mxu0 %v679
  %v701 = vpop.f32.mrf.mxu0
  %v702 = vadd.f32 0.0, %v701
  %703 = vdwg.mxu0
  %704 = vmatpush.msra.mxu0 0.0
  %705 = vmatpush.msra.mxu0 0.0
  %706 = vmatpush.msra.mxu0 0.0
  %707 = vmatpush.msra.mxu0 0.0
  %708 = vmatpush.msra.mxu0 0.0
  %709 = vmatpush.msra.mxu0 0.0
  %710 = vmatpush.msra.mxu0 0.0
  %711 = vmatpush.msra.mxu0 0.0
  %712 = vmatpush.msra.mxu0 %v161
  %713 = vmatpush.msra.mxu0 %v159
  %714 = vmatpush.msra.mxu0 %v157
  %715 = vmatpush.msra.mxu0 %v155
  %716 = vmatpush.msra.mxu0 %v153
  %717 = vmatpush.msra.mxu0 %v151
  %718 = vmatpush.msra.mxu0 %v149
  %719 = vmatpush.msra.mxu0 %v147
  %720 = vmatmul.f32.gmra.mxu0 %v676
  %v721 = vpop.f32.mrf.mxu0
  %v722 = vadd.f32 0.0, %v721
  %723 = vmatmul.f32.gmra.mxu0 %v679
  %v724 = vpop.f32.mrf.mxu0
  %v725 = vadd.f32 0.0, %v724
  %726 = vdwg.mxu0
  %v727 = vadd.f32 %v647, %v699
  %v728 = vadd.f32 %v670, %v722
  %v729 = vadd.f32 %v650, %v702
  %v730 = vadd.f32 %v673, %v725
  %v732 = vperm.slane %v162, 0
  %v733 = vperm.slane %v162, 1
  %v736 = vadd.f32 %v727, %v732
  %v737 = vadd.f32 %v728, %v733
  %v738 = vadd.f32 %v729, %v732
  %v739 = vadd.f32 %v730, %v733
  %740 = vst [vmem:[%s11] sm:$0xff] %v736
  %741 = vst [vmem:[%s11 + $0x8] sm:$0xff] %v737
  %742 = vst [vmem:[%s11 + $0x10] sm:$0xf] %v738
  %743 = vst [vmem:[%s11 + $0x18] sm:$0xf] %v739
  %s744 = scalar_lea.vmem %s0, 16
  %v745 = vld [vmem:[%s744] sm:$0xff]
  %v746 = vld [vmem:[%s744 + $0x8] sm:$0xf]
  %v748 = vsel %vm166, %v745, 0
  %v751 = vsel %vm166, %v746, 0
  %753 = vmatpush.msra.mxu0 0.0
  %754 = vmatpush.msra.mxu0 0.0
  %755 = vmatpush.msra.mxu0 0.0
  %756 = vmatpush.msra.mxu0 0.0
  %757 = vmatpush.msra.mxu0 0.0
  %758 = vmatpush.msra.mxu0 0.0
  %759 = vmatpush.msra.mxu0 0.0
  %760 = vmatpush.msra.mxu0 0.0
  %761 = vmatpush.msra.mxu0 0.0
  %762 = vmatpush.msra.mxu0 0.0
  %763 = vmatpush.msra.mxu0 0.0
  %764 = vmatpush.msra.mxu0 0.0
  %765 = vmatpush.msra.mxu0 %v41
  %766 = vmatpush.msra.mxu0 %v40
  %767 = vmatpush.msra.mxu0 %v39
  %768 = vmatpush.msra.mxu0 %v38
  %769 = vmatmul.f32.gmra.mxu0 %v748
  %v770 = vpop.f32.mrf.mxu0
  %v771 = vadd.f32 %v165, %v770
  %772 = vmatmul.f32.gmra.mxu0 %v751
  %v773 = vpop.f32.mrf.mxu0
  %v774 = vadd.f32 %v165, %v773
  %775 = vdwg.mxu0
  %vm776 = vcmp.ge.f32.partialorder %v771, 0.0
  %vm777 = vcmp.ge.f32.partialorder %v774, 0.0
  %v778 = vmul.f32 %v771, 0.01
  %v779 = vmul.f32 %v774, 0.01
  %v780 = vsel %vm776, %v771, %v778
  %v781 = vsel %vm777, %v774, %v779
  %v782 = vmul.f32 %v780, %v202
  %v783 = vmul.f32 %v781, %v202
  %v784 = vadd.f32 %v782, %v205
  %v785 = vadd.f32 %v783, %v205
  %s786 = scalar_lea.vmem [#allocation2], 16
  %787 = vst.msk [vmem:[%s786] sm:$0xff] %vm208, 0.0
  %788 = vst.msk [vmem:[%s786 + $0x8] sm:$0x3f] %vm210, 0.0
  %789 = vst.msk [vmem:[%s786 + $0x1] sm:$0xff] %vm208, %v784
  %790 = vst.msk [vmem:[%s786 + $0x9] sm:$0xf] %vm213, %v785
  %s791 = scalar_lea.vmem [#allocation3], 16
  %792 = vst.msk [vmem:[%s791] sm:$0xff] %vm208, 0.0
  %793 = vst.msk [vmem:[%s791 + $0x8] sm:$0xff] %vm208, 0.0
  %796 = vrot.lane.b32.xlu0 %v784, 64
  %v797 = vpop.permute.xlu0 %796
  %798 = vrot.lane.b32.xlu0 %v785, 64
  %v799 = vpop.permute.xlu0 %798
  %802 = vst.msk [vmem:[%s791 + $0x2] sm:$0xff] %vm208, %v797
  %803 = vst.msk [vmem:[%s791 + $0xa] sm:$0xf] %vm213, %v799
  %v804 = vld [vmem:[%s786] sm:$0xff]
  %v805 = vld [vmem:[%s786 + $0x8] sm:$0xf]
  %v806 = vld [vmem:[%s786 + $0x1] sm:$0xff]
  %v807 = vld [vmem:[%s786 + $0x9] sm:$0xf]
  %v809 = vsel %vm208, %v806, 0
  %v812 = vsel %vm208, %v807, 0
  %814 = vmatpush.msra.mxu0 0.0
  %815 = vmatpush.msra.mxu0 0.0
  %816 = vmatpush.msra.mxu0 0.0
  %817 = vmatpush.msra.mxu0 0.0
  %818 = vmatpush.msra.mxu0 0.0
  %819 = vmatpush.msra.mxu0 0.0
  %820 = vmatpush.msra.mxu0 0.0
  %821 = vmatpush.msra.mxu0 0.0
  %822 = vmatpush.msra.mxu0 %v58
  %823 = vmatpush.msra.mxu0 %v57
  %824 = vmatpush.msra.mxu0 %v56
  %825 = vmatpush.msra.mxu0 %v55
  %826 = vmatpush.msra.mxu0 %v54
  %827 = vmatpush.msra.mxu0 %v53
  %828 = vmatpush.msra.mxu0 %v52
  %829 = vmatpush.msra.mxu0 %v51
  %830 = vmatmul.f32.gmra.mxu0 %v809
  %v831 = vpop.f32.mrf.mxu0
  %v832 = vadd.f32 0.0, %v831
  %833 = vmatmul.f32.gmra.mxu0 %v812
  %v834 = vpop.f32.mrf.mxu0
  %v835 = vadd.f32 0.0, %v834
  %836 = vdwg.mxu0
  %v838 = vsel %vm208, %v804, 0
  %v841 = vsel %vm208, %v805, 0
  %843 = vmatpush.msra.mxu0 0.0
  %844 = vmatpush.msra.mxu0 0.0
  %845 = vmatpush.msra.mxu0 0.0
  %846 = vmatpush.msra.mxu0 0.0
  %847 = vmatpush.msra.mxu0 0.0
  %848 = vmatpush.msra.mxu0 0.0
  %849 = vmatpush.msra.mxu0 0.0
  %850 = vmatpush.msra.mxu0 0.0
  %851 = vmatpush.msra.mxu0 %v50
  %852 = vmatpush.msra.mxu0 %v49
  %853 = vmatpush.msra.mxu0 %v48
  %854 = vmatpush.msra.mxu0 %v47
  %855 = vmatpush.msra.mxu0 %v46
  %856 = vmatpush.msra.mxu0 %v45
  %857 = vmatpush.msra.mxu0 %v44
  %858 = vmatpush.msra.mxu0 %v43
  %859 = vmatmul.f32.gmra.mxu0 %v838
  %v860 = vpop.f32.mrf.mxu0
  %v861 = vadd.f32 %v832, %v860
  %862 = vmatmul.f32.gmra.mxu0 %v841
  %v863 = vpop.f32.mrf.mxu0
  %v864 = vadd.f32 %v835, %v863
  %865 = vdwg.mxu0
  %v866 = vld [vmem:[%s786 + $0x2] sm:$0xff]
  %v867 = vld [vmem:[%s786 + $0xa] sm:$0xf]
  %v869 = vsel %vm208, %v866, 0
  %v872 = vsel %vm208, %v867, 0
  %874 = vmatpush.msra.mxu0 0.0
  %875 = vmatpush.msra.mxu0 0.0
  %876 = vmatpush.msra.mxu0 0.0
  %877 = vmatpush.msra.mxu0 0.0
  %878 = vmatpush.msra.mxu0 0.0
  %879 = vmatpush.msra.mxu0 0.0
  %880 = vmatpush.msra.mxu0 0.0
  %881 = vmatpush.msra.mxu0 0.0
  %882 = vmatpush.msra.mxu0 %v66
  %883 = vmatpush.msra.mxu0 %v65
  %884 = vmatpush.msra.mxu0 %v64
  %885 = vmatpush.msra.mxu0 %v63
  %886 = vmatpush.msra.mxu0 %v62
  %887 = vmatpush.msra.mxu0 %v61
  %888 = vmatpush.msra.mxu0 %v60
  %889 = vmatpush.msra.mxu0 %v59
  %890 = vmatmul.f32.gmra.mxu0 %v869
  %v891 = vpop.f32.mrf.mxu0
  %v892 = vadd.f32 0.0, %v891
  %893 = vmatmul.f32.gmra.mxu0 %v872
  %v894 = vpop.f32.mrf.mxu0
  %v895 = vadd.f32 0.0, %v894
  %896 = vdwg.mxu0
  %v897 = vadd.f32 %v861, %v892
  %v898 = vadd.f32 %v864, %v895
  %v899 = vadd.f32 %v897, %v322
  %v900 = vadd.f32 %v898, %v322
  %vm901 = vcmp.ge.f32.partialorder %v899, 0.0
  %vm902 = vcmp.ge.f32.partialorder %v900, 0.0
  %v903 = vmul.f32 %v899, 0.01
  %v904 = vmul.f32 %v900, 0.01
  %v905 = vsel %vm901, %v899, %v903
  %v906 = vsel %vm902, %v900, %v904
  %v907 = vmul.f32 %v905, %v331
  %v908 = vmul.f32 %v906, %v331
  %v909 = vadd.f32 %v907, %v334
  %v910 = vadd.f32 %v908, %v334
  %v911 = vld [vmem:[%s791] sm:$0xff]
  %v912 = vld [vmem:[%s791 + $0x8] sm:$0xf]
  %v913 = vld [vmem:[%s791 + $0x1] sm:$0xff]
  %v914 = vld [vmem:[%s791 + $0x9] sm:$0xf]
  %v916 = vsel %vm208, %v913, 0
  %v919 = vsel %vm208, %v914, 0
  %921 = vmatpush.msra.mxu0 0.0
  %922 = vmatpush.msra.mxu0 0.0
  %923 = vmatpush.msra.mxu0 0.0
  %924 = vmatpush.msra.mxu0 0.0
  %925 = vmatpush.msra.mxu0 0.0
  %926 = vmatpush.msra.mxu0 0.0
  %927 = vmatpush.msra.mxu0 0.0
  %928 = vmatpush.msra.mxu0 0.0
  %929 = vmatpush.msra.mxu0 %v83
  %930 = vmatpush.msra.mxu0 %v82
  %931 = vmatpush.msra.mxu0 %v81
  %932 = vmatpush.msra.mxu0 %v80
  %933 = vmatpush.msra.mxu0 %v79
  %934 = vmatpush.msra.mxu0 %v78
  %935 = vmatpush.msra.mxu0 %v77
  %936 = vmatpush.msra.mxu0 %v76
  %937 = vmatmul.f32.gmra.mxu0 %v916
  %v938 = vpop.f32.mrf.mxu0
  %v939 = vadd.f32 0.0, %v938
  %940 = vmatmul.f32.gmra.mxu0 %v919
  %v941 = vpop.f32.mrf.mxu0
  %v942 = vadd.f32 0.0, %v941
  %943 = vdwg.mxu0
  %v945 = vsel %vm208, %v911, 0
  %v948 = vsel %vm208, %v912, 0
  %950 = vmatpush.msra.mxu0 0.0
  %951 = vmatpush.msra.mxu0 0.0
  %952 = vmatpush.msra.mxu0 0.0
  %953 = vmatpush.msra.mxu0 0.0
  %954 = vmatpush.msra.mxu0 0.0
  %955 = vmatpush.msra.mxu0 0.0
  %956 = vmatpush.msra.mxu0 0.0
  %957 = vmatpush.msra.mxu0 0.0
  %958 = vmatpush.msra.mxu0 %v75
  %959 = vmatpush.msra.mxu0 %v74
  %960 = vmatpush.msra.mxu0 %v73
  %961 = vmatpush.msra.mxu0 %v72
  %962 = vmatpush.msra.mxu0 %v71
  %963 = vmatpush.msra.mxu0 %v70
  %964 = vmatpush.msra.mxu0 %v69
  %965 = vmatpush.msra.mxu0 %v68
  %966 = vmatmul.f32.gmra.mxu0 %v945
  %v967 = vpop.f32.mrf.mxu0
  %v968 = vadd.f32 %v939, %v967
  %969 = vmatmul.f32.gmra.mxu0 %v948
  %v970 = vpop.f32.mrf.mxu0
  %v971 = vadd.f32 %v942, %v970
  %972 = vdwg.mxu0
  %v973 = vld [vmem:[%s791 + $0x2] sm:$0xff]
  %v974 = vld [vmem:[%s791 + $0xa] sm:$0xf]
  %v976 = vsel %vm208, %v973, 0
  %v979 = vsel %vm208, %v974, 0
  %981 = vmatpush.msra.mxu0 0.0
  %982 = vmatpush.msra.mxu0 0.0
  %983 = vmatpush.msra.mxu0 0.0
  %984 = vmatpush.msra.mxu0 0.0
  %985 = vmatpush.msra.mxu0 0.0
  %986 = vmatpush.msra.mxu0 0.0
  %987 = vmatpush.msra.mxu0 0.0
  %988 = vmatpush.msra.mxu0 0.0
  %989 = vmatpush.msra.mxu0 %v91
  %990 = vmatpush.msra.mxu0 %v90
  %991 = vmatpush.msra.mxu0 %v89
  %992 = vmatpush.msra.mxu0 %v88
  %993 = vmatpush.msra.mxu0 %v87
  %994 = vmatpush.msra.mxu0 %v86
  %995 = vmatpush.msra.mxu0 %v85
  %996 = vmatpush.msra.mxu0 %v84
  %997 = vmatmul.f32.gmra.mxu0 %v976
  %v998 = vpop.f32.mrf.mxu0
  %v999 = vadd.f32 0.0, %v998
  %1000 = vmatmul.f32.gmra.mxu0 %v979
  %v1001 = vpop.f32.mrf.mxu0
  %v1002 = vadd.f32 0.0, %v1001
  %1003 = vdwg.mxu0
  %v1004 = vadd.f32 %v968, %v999
  %v1005 = vadd.f32 %v971, %v1002
  %v1006 = vld [vmem:[%s791 + $0x3] sm:$0xff]
  %v1007 = vld [vmem:[%s791 + $0xb] sm:$0xf]
  %v1009 = vsel %vm208, %v1006, 0
  %v1012 = vsel %vm208, %v1007, 0
  %1014 = vmatpush.msra.mxu0 0.0
  %1015 = vmatpush.msra.mxu0 0.0
  %1016 = vmatpush.msra.mxu0 0.0
  %1017 = vmatpush.msra.mxu0 0.0
  %1018 = vmatpush.msra.mxu0 0.0
  %1019 = vmatpush.msra.mxu0 0.0
  %1020 = vmatpush.msra.mxu0 0.0
  %1021 = vmatpush.msra.mxu0 0.0
  %1022 = vmatpush.msra.mxu0 %v99
  %1023 = vmatpush.msra.mxu0 %v98
  %1024 = vmatpush.msra.mxu0 %v97
  %1025 = vmatpush.msra.mxu0 %v96
  %1026 = vmatpush.msra.mxu0 %v95
  %1027 = vmatpush.msra.mxu0 %v94
  %1028 = vmatpush.msra.mxu0 %v93
  %1029 = vmatpush.msra.mxu0 %v92
  %1030 = vmatmul.f32.gmra.mxu0 %v1009
  %v1031 = vpop.f32.mrf.mxu0
  %v1032 = vadd.f32 0.0, %v1031
  %1033 = vmatmul.f32.gmra.mxu0 %v1012
  %v1034 = vpop.f32.mrf.mxu0
  %v1035 = vadd.f32 0.0, %v1034
  %1036 = vdwg.mxu0
  %v1037 = vadd.f32 %v1004, %v1032
  %v1038 = vadd.f32 %v1005, %v1035
  %v1039 = vld [vmem:[%s791 + $0x4] sm:$0xff]
  %v1040 = vld [vmem:[%s791 + $0xc] sm:$0xf]
  %v1042 = vsel %vm208, %v1039, 0
  %v1045 = vsel %vm208, %v1040, 0
  %1047 = vmatpush.msra.mxu0 0.0
  %1048 = vmatpush.msra.mxu0 0.0
  %1049 = vmatpush.msra.mxu0 0.0
  %1050 = vmatpush.msra.mxu0 0.0
  %1051 = vmatpush.msra.mxu0 0.0
  %1052 = vmatpush.msra.mxu0 0.0
  %1053 = vmatpush.msra.mxu0 0.0
  %1054 = vmatpush.msra.mxu0 0.0
  %1055 = vmatpush.msra.mxu0 %v107
  %1056 = vmatpush.msra.mxu0 %v106
  %1057 = vmatpush.msra.mxu0 %v105
  %1058 = vmatpush.msra.mxu0 %v104
  %1059 = vmatpush.msra.mxu0 %v103
  %1060 = vmatpush.msra.mxu0 %v102
  %1061 = vmatpush.msra.mxu0 %v101
  %1062 = vmatpush.msra.mxu0 %v100
  %1063 = vmatmul.f32.gmra.mxu0 %v1042
  %v1064 = vpop.f32.mrf.mxu0
  %v1065 = vadd.f32 0.0, %v1064
  %1066 = vmatmul.f32.gmra.mxu0 %v1045
  %v1067 = vpop.f32.mrf.mxu0
  %v1068 = vadd.f32 0.0, %v1067
  %1069 = vdwg.mxu0
  %v1070 = vadd.f32 %v1037, %v1065
  %v1071 = vadd.f32 %v1038, %v1068
  %v1072 = vadd.f32 %v1070, %v498
  %v1073 = vadd.f32 %v1071, %v498
  %vm1074 = vcmp.ge.f32.partialorder %v1072, 0.0
  %vm1075 = vcmp.ge.f32.partialorder %v1073, 0.0
  %v1076 = vmul.f32 %v1072, 0.01
  %v1077 = vmul.f32 %v1073, 0.01
  %v1078 = vsel %vm1074, %v1072, %v1076
  %v1079 = vsel %vm1075, %v1073, %v1077
  %v1080 = vmul.f32 %v1078, %v507
  %v1081 = vmul.f32 %v1079, %v507
  %v1082 = vadd.f32 %v1080, %v510
  %v1083 = vadd.f32 %v1081, %v510
  %s1084 = scalar_lea.vmem [#allocation4], 16
  %1085 = vst.msk [vmem:[%s1084] sm:$0xff] %vm166, -inf
  %1086 = vst.msk [vmem:[%s1084 + $0x8] sm:$0x3f] %vm514, -inf
  %1087 = vst.msk [vmem:[%s1084 + $0x1] sm:$0xff] %vm166, %v745
  %1088 = vst.msk [vmem:[%s1084 + $0x9] sm:$0xf] %vm517, %v746
  %v1089 = vld [vmem:[%s1084] sm:$0xff]
  %v1090 = vld [vmem:[%s1084 + $0x8] sm:$0xf]
  %v1091 = vld [vmem:[%s1084 + $0x1] sm:$0xff]
  %v1092 = vld [vmem:[%s1084 + $0x9] sm:$0xf]
  %v1093 = vmax.f32 %v1089, %v1091
  %v1094 = vmax.f32 %v1090, %v1092
  %v1095 = vld [vmem:[%s1084 + $0x2] sm:$0xff]
  %v1096 = vld [vmem:[%s1084 + $0xa] sm:$0xf]
  %v1097 = vmax.f32 %v1093, %v1095
  %v1098 = vmax.f32 %v1094, %v1096
  %v1100 = vsel %vm166, %v1097, 0
  %v1103 = vsel %vm166, %v1098, 0
  %1105 = vmatpush.msra.mxu0 0.0
  %1106 = vmatpush.msra.mxu0 0.0
  %1107 = vmatpush.msra.mxu0 0.0
  %1108 = vmatpush.msra.mxu0 0.0
  %1109 = vmatpush.msra.mxu0 0.0
  %1110 = vmatpush.msra.mxu0 0.0
  %1111 = vmatpush.msra.mxu0 0.0
  %1112 = vmatpush.msra.mxu0 0.0
  %1113 = vmatpush.msra.mxu0 0.0
  %1114 = vmatpush.msra.mxu0 0.0
  %1115 = vmatpush.msra.mxu0 0.0
  %1116 = vmatpush.msra.mxu0 0.0
  %1117 = vmatpush.msra.mxu0 %v112
  %1118 = vmatpush.msra.mxu0 %v111
  %1119 = vmatpush.msra.mxu0 %v110
  %1120 = vmatpush.msra.mxu0 %v109
  %1121 = vmatmul.f32.gmra.mxu0 %v1100
  %v1122 = vpop.f32.mrf.mxu0
  %v1123 = vadd.f32 %v529, %v1122
  %1124 = vmatmul.f32.gmra.mxu0 %v1103
  %v1125 = vpop.f32.mrf.mxu0
  %v1126 = vadd.f32 %v529, %v1125
  %1127 = vdwg.mxu0
  %vm1128 = vcmp.ge.f32.partialorder %v1123, 0.0
  %vm1129 = vcmp.ge.f32.partialorder %v1126, 0.0
  %v1130 = vmul.f32 %v1123, 0.01
  %v1131 = vmul.f32 %v1126, 0.01
  %v1132 = vsel %vm1128, %v1123, %v1130
  %v1133 = vsel %vm1129, %v1126, %v1131
  %v1134 = vmul.f32 %v1132, %v565
  %v1135 = vmul.f32 %v1133, %v565
  %v1136 = vadd.f32 %v1134, %v568
  %v1137 = vadd.f32 %v1135, %v568
  %v1139 = vsel %vm208, %v1082, 0
  %v1142 = vsel %vm208, %v1083, 0
  %1144 = vmatpush.msra.mxu0 0.0
  %1145 = vmatpush.msra.mxu0 0.0
  %1146 = vmatpush.msra.mxu0 0.0
  %1147 = vmatpush.msra.mxu0 0.0
  %1148 = vmatpush.msra.mxu0 0.0
  %1149 = vmatpush.msra.mxu0 0.0
  %1150 = vmatpush.msra.mxu0 0.0
  %1151 = vmatpush.msra.mxu0 0.0
  %1152 = vmatpush.msra.mxu0 %v144
  %1153 = vmatpush.msra.mxu0 %v142
  %1154 = vmatpush.msra.mxu0 %v140
  %1155 = vmatpush.msra.mxu0 %v138
  %1156 = vmatpush.msra.mxu0 %v136
  %1157 = vmatpush.msra.mxu0 %v134
  %1158 = vmatpush.msra.mxu0 %v132
  %1159 = vmatpush.msra.mxu0 %v130
  %1160 = vmatmul.f32.gmra.mxu0 %v1139
  %v1161 = vpop.f32.mrf.mxu0
  %v1162 = vadd.f32 0.0, %v1161
  %1163 = vmatmul.f32.gmra.mxu0 %v1142
  %v1164 = vpop.f32.mrf.mxu0
  %v1165 = vadd.f32 0.0, %v1164
  %1166 = vdwg.mxu0
  %1167 = vmatpush.msra.mxu0 0.0
  %1168 = vmatpush.msra.mxu0 0.0
  %1169 = vmatpush.msra.mxu0 0.0
  %1170 = vmatpush.msra.mxu0 0.0
  %1171 = vmatpush.msra.mxu0 0.0
  %1172 = vmatpush.msra.mxu0 0.0
  %1173 = vmatpush.msra.mxu0 0.0
  %1174 = vmatpush.msra.mxu0 0.0
  %1175 = vmatpush.msra.mxu0 %v145
  %1176 = vmatpush.msra.mxu0 %v143
  %1177 = vmatpush.msra.mxu0 %v141
  %1178 = vmatpush.msra.mxu0 %v139
  %1179 = vmatpush.msra.mxu0 %v137
  %1180 = vmatpush.msra.mxu0 %v135
  %1181 = vmatpush.msra.mxu0 %v133
  %1182 = vmatpush.msra.mxu0 %v131
  %1183 = vmatmul.f32.gmra.mxu0 %v1139
  %v1184 = vpop.f32.mrf.mxu0
  %v1185 = vadd.f32 0.0, %v1184
  %1186 = vmatmul.f32.gmra.mxu0 %v1142
  %v1187 = vpop.f32.mrf.mxu0
  %v1188 = vadd.f32 0.0, %v1187
  %1189 = vdwg.mxu0
  %v1191 = vsel %vm208, %v909, 0
  %v1194 = vsel %vm208, %v910, 0
  %1196 = vmatpush.msra.mxu0 0.0
  %1197 = vmatpush.msra.mxu0 0.0
  %1198 = vmatpush.msra.mxu0 0.0
  %1199 = vmatpush.msra.mxu0 0.0
  %1200 = vmatpush.msra.mxu0 0.0
  %1201 = vmatpush.msra.mxu0 0.0
  %1202 = vmatpush.msra.mxu0 0.0
  %1203 = vmatpush.msra.mxu0 0.0
  %1204 = vmatpush.msra.mxu0 %v128
  %1205 = vmatpush.msra.mxu0 %v126
  %1206 = vmatpush.msra.mxu0 %v124
  %1207 = vmatpush.msra.mxu0 %v122
  %1208 = vmatpush.msra.mxu0 %v120
  %1209 = vmatpush.msra.mxu0 %v118
  %1210 = vmatpush.msra.mxu0 %v116
  %1211 = vmatpush.msra.mxu0 %v114
  %1212 = vmatmul.f32.gmra.mxu0 %v1191
  %v1213 = vpop.f32.mrf.mxu0
  %v1214 = vadd.f32 %v1162, %v1213
  %1215 = vmatmul.f32.gmra.mxu0 %v1194
  %v1216 = vpop.f32.mrf.mxu0
  %v1217 = vadd.f32 %v1165, %v1216
  %1218 = vdwg.mxu0
  %1219 = vmatpush.msra.mxu0 0.0
  %1220 = vmatpush.msra.mxu0 0.0
  %1221 = vmatpush.msra.mxu0 0.0
  %1222 = vmatpush.msra.mxu0 0.0
  %1223 = vmatpush.msra.mxu0 0.0
  %1224 = vmatpush.msra.mxu0 0.0
  %1225 = vmatpush.msra.mxu0 0.0
  %1226 = vmatpush.msra.mxu0 0.0
  %1227 = vmatpush.msra.mxu0 %v129
  %1228 = vmatpush.msra.mxu0 %v127
  %1229 = vmatpush.msra.mxu0 %v125
  %1230 = vmatpush.msra.mxu0 %v123
  %1231 = vmatpush.msra.mxu0 %v121
  %1232 = vmatpush.msra.mxu0 %v119
  %1233 = vmatpush.msra.mxu0 %v117
  %1234 = vmatpush.msra.mxu0 %v115
  %1235 = vmatmul.f32.gmra.mxu0 %v1191
  %v1236 = vpop.f32.mrf.mxu0
  %v1237 = vadd.f32 %v1185, %v1236
  %1238 = vmatmul.f32.gmra.mxu0 %v1194
  %v1239 = vpop.f32.mrf.mxu0
  %v1240 = vadd.f32 %v1188, %v1239
  %1241 = vdwg.mxu0
  %v1243 = vsel %vm208, %v1136, 0
  %v1246 = vsel %vm208, %v1137, 0
  %1248 = vmatpush.msra.mxu0 0.0
  %1249 = vmatpush.msra.mxu0 0.0
  %1250 = vmatpush.msra.mxu0 0.0
  %1251 = vmatpush.msra.mxu0 0.0
  %1252 = vmatpush.msra.mxu0 0.0
  %1253 = vmatpush.msra.mxu0 0.0
  %1254 = vmatpush.msra.mxu0 0.0
  %1255 = vmatpush.msra.mxu0 0.0
  %1256 = vmatpush.msra.mxu0 %v160
  %1257 = vmatpush.msra.mxu0 %v158
  %1258 = vmatpush.msra.mxu0 %v156
  %1259 = vmatpush.msra.mxu0 %v154
  %1260 = vmatpush.msra.mxu0 %v152
  %1261 = vmatpush.msra.mxu0 %v150
  %1262 = vmatpush.msra.mxu0 %v148
  %1263 = vmatpush.msra.mxu0 %v146
  %1264 = vmatmul.f32.gmra.mxu0 %v1243
  %v1265 = vpop.f32.mrf.mxu0
  %v1266 = vadd.f32 0.0, %v1265
  %1267 = vmatmul.f32.gmra.mxu0 %v1246
  %v1268 = vpop.f32.mrf.mxu0
  %v1269 = vadd.f32 0.0, %v1268
  %1270 = vdwg.mxu0
  %1271 = vmatpush.msra.mxu0 0.0
  %1272 = vmatpush.msra.mxu0 0.0
  %1273 = vmatpush.msra.mxu0 0.0
  %1274 = vmatpush.msra.mxu0 0.0
  %1275 = vmatpush.msra.mxu0 0.0
  %1276 = vmatpush.msra.mxu0 0.0
  %1277 = vmatpush.msra.mxu0 0.0
  %1278 = vmatpush.msra.mxu0 0.0
  %1279 = vmatpush.msra.mxu0 %v161
  %1280 = vmatpush.msra.mxu0 %v159
  %1281 = vmatpush.msra.mxu0 %v157
  %1282 = vmatpush.msra.mxu0 %v155
  %1283 = vmatpush.msra.mxu0 %v153
  %1284 = vmatpush.msra.mxu0 %v151
  %1285 = vmatpush.msra.mxu0 %v149
  %1286 = vmatpush.msra.mxu0 %v147
  %1287 = vmatmul.f32.gmra.mxu0 %v1243
  %v1288 = vpop.f32.mrf.mxu0
  %v1289 = vadd.f32 0.0, %v1288
  %1290 = vmatmul.f32.gmra.mxu0 %v1246
  %v1291 = vpop.f32.mrf.mxu0
  %v1292 = vadd.f32 0.0, %v1291
  %1293 = vdwg.mxu0
  %v1294 = vadd.f32 %v1214, %v1266
  %v1295 = vadd.f32 %v1237, %v1289
  %v1296 = vadd.f32 %v1217, %v1269
  %v1297 = vadd.f32 %v1240, %v1292
  %v1298 = vadd.f32 %v1294, %v732
  %v1299 = vadd.f32 %v1295, %v733
  %v1300 = vadd.f32 %v1296, %v732
  %v1301 = vadd.f32 %v1297, %v733
  %s1302 = scalar_lea.vmem %s11, 32
  %1303 = vst [vmem:[%s1302] sm:$0xff] %v1298
  %1304 = vst [vmem:[%s1302 + $0x8] sm:$0xff] %v1299
  %1305 = vst [vmem:[%s1302 + $0x10] sm:$0xf] %v1300
  %1306 = vst [vmem:[%s1302 + $0x18] sm:$0xf] %v1301
  // Predicated region
  $region46: #{deeplob_depth_forward.6} parent=0 // pred_check
    _
  $region47: #{deeplob_depth_forward.6} parent=0 // pred_check_branch
    %1308 = sbr.rel (0) target = $region49
  $region48: #{deeplob_depth_forward.6} parent=0 // pred_region
    _
  $region49: #{deeplob_depth_forward.6} parent=0 // pred_fallthru
    _
  // Predicated region
  $region50: #{deeplob_depth_forward.6} parent=0 // pred_check
    _
  $region51: #{deeplob_depth_forward.6} parent=0 // pred_check_branch
    %1310 = sbr.rel (0) target = $region53
  $region52: #{deeplob_depth_forward.6} parent=0 // pred_region
    _
  $region53: #{deeplob_depth_forward.6} parent=0 // pred_fallthru
    _

// kernel: deeplob_depth_forward.4
$region0: #{deeplob_depth_forward.4}
  #allocation0 [shape = 'u32[]', space=smem, size = 0x4, offset = 0x4, fixed_abs, tag = 'smem constant byte address 0x4 - core index']
  #allocation1 [shape = 'u32[72,128]{1,0:T(1,128)}', space=vmem, size = 0x9000, scoped, tag = 'internal scratch']
  %s0 = inlined_call_operand.vmem [shape: f32[24,24,2], index: 0, kind: input, shape index: {}]
  %s1 = inlined_call_operand.vmem [shape: f32[2,32], index: 1, kind: input, shape index: {}]
  %s2 = inlined_call_operand.vmem [shape: f32[3,32], index: 2, kind: input, shape index: {}]
  %s3 = inlined_call_operand.vmem [shape: f32[4,32,32], index: 3, kind: input, shape index: {}]
  %s4 = inlined_call_operand.vmem [shape: f32[3,32], index: 4, kind: input, shape index: {}]
  %s5 = inlined_call_operand.vmem [shape: f32[4,32,32], index: 5, kind: input, shape index: {}]
  %s6 = inlined_call_operand.vmem [shape: f32[3,32], index: 6, kind: input, shape index: {}]
  %s7 = inlined_call_operand.vmem [shape: f32[24,18,32], index: 7, kind: output, shape index: {}]
  %s8 = sld [smem:[#allocation0]]
  $region61: #{deeplob_depth_forward.4} parent=0
    _
  %s10 = ssub.s32 1, %s8
  %s11 = scalar_select 0, %s10, %s8
  loop: start=0, step=1, limit=5
  $region2: #{deeplob_depth_forward.4} parent=0 // loop_pre_header
    _
  $region3: #{deeplob_depth_forward.4} parent=0 // loop_header
    %s13 = sphi 0, %s17
    %p14 = scmp.ge.s32.totalorder %s13, 5
    %s23 = sphi 0, %s25
    %s26 = sphi 0, %s23
    %s27 = sphi 0, %s26
    %s43 = sphi 0, %s27
    %s47 = sphi 0, %s47
    %s49 = sphi 0, %s47
    %s50 = sphi 0, %s49
    %s64 = sphi 0, %s50
    %s68 = sphi 0, %s68
    %s70 = sphi 0, %s68
    %s71 = sphi 0, %s70
    %s85 = sphi 0, %s71
    %s89 = sphi 0, %s89
    %s91 = sphi 0, %s89
    %s92 = sphi 0, %s91
    %s106 = sphi 0, %s92
    %s110 = sphi 0, %s110
    %s112 = sphi 0, %s110
    %s113 = sphi 0, %s112
    %s127 = sphi 0, %s113
    %s131 = sphi 0, %s131
    %s133 = sphi 0, %s131
    %s134 = sphi 0, %s133
    %s148 = sphi 0, %s134
    %s152 = sphi 0, %s152
    %s154 = sphi 0, %s152
    %s155 = sphi 0, %s154
    %s169 = sphi 0, %s155
    %s175 = sphi 0, %s177
    %s178 = sphi 0, %s175
    %s179 = sphi 0, %s178
    %s195 = sphi 0, %s179
  $region4: #{deeplob_depth_forward.4} parent=0 // loop_header_branch
    %16 = sbr.rel (%p14) target = $region8
  $region5: #{deeplob_depth_forward.4} parent=0 // loop_body
    %s18 = ssub.s32 %s13, 1
    %s19 = ssub.s32 %s13, 2
    %s20 = sadd.s32 %s13, 1
    %s21 = ssub.s32 %s13, %s20
    %p22 = scmp.eq.s32.totalorder %s21, 0
    %s24 = sadd.s32 %s23, 1
    %s25 = scalar_select %p22, %s23, %s24
    %p28 = pneg %p22
    %p29 = scmp.eq.s32.totalorder %s13, 2
    %p30 = por %p28, %p29
    %p31 = scmp.ne.s32.totalorder %s23, %s26
    %p32 = scmp.eq.s32.totalorder %s13, 0
    %p33 = por %p31, %p32
    %p34 = scmp.ne.s32.totalorder %s23, %s26
    %p35 = scmp.eq.s32.totalorder %s18, 2
    %p36 = por %p34, %p35
    %p37 = scmp.ne.s32.totalorder %s26, %s27
    %p38 = scmp.eq.s32.totalorder %s18, 0
    %p39 = por %p37, %p38
    %p40 = scmp.ne.s32.totalorder %s26, %s27
    %p41 = scmp.eq.s32.totalorder %s19, 2
    %p42 = por %p40, %p41
    %p44 = scmp.ne.s32.totalorder %s27, %s43
    %p45 = scmp.eq.s32.totalorder %s19, 0
    %p46 = por %p44, %p45
    %s48 = sadd.s32 %s47, 1
    %p51 = scmp.eq.s32.totalorder %s13, 2
    %p52 = scmp.ne.s32.totalorder %s47, %s49
    %p53 = scmp.eq.s32.totalorder %s13, 0
    %p54 = por %p52, %p53
    %p55 = scmp.ne.s32.totalorder %s47, %s49
    %p56 = scmp.eq.s32.totalorder %s18, 2
    %p57 = por %p55, %p56
    %p58 = scmp.ne.s32.totalorder %s49, %s50
    %p59 = scmp.eq.s32.totalorder %s18, 0
    %p60 = por %p58, %p59
    %p61 = scmp.ne.s32.totalorder %s49, %s50
    %p62 = scmp.eq.s32.totalorder %s19, 2
    %p63 = por %p61, %p62
    %p65 = scmp.ne.s32.totalorder %s50, %s64
    %p66 = scmp.eq.s32.totalorder %s19, 0
    %p67 = por %p65, %p66
    %s69 = sadd.s32 %s68, 1
    %p72 = scmp.eq.s32.totalorder %s13, 2
    %p73 = scmp.ne.s32.totalorder %s68, %s70
    %p74 = scmp.eq.s32.totalorder %s13, 0
    %p75 = por %p73, %p74
    %p76 = scmp.ne.s32.totalorder %s68, %s70
    %p77 = scmp.eq.s32.totalorder %s18, 2
    %p78 = por %p76, %p77
    %p79 = scmp.ne.s32.totalorder %s70, %s71
    %p80 = scmp.eq.s32.totalorder %s18, 0
    %p81 = por %p79, %p80
    %p82 = scmp.ne.s32.totalorder %s70, %s71
    %p83 = scmp.eq.s32.totalorder %s19, 2
    %p84 = por %p82, %p83
    %p86 = scmp.ne.s32.totalorder %s71, %s85
    %p87 = scmp.eq.s32.totalorder %s19, 0
    %p88 = por %p86, %p87
    %s90 = sadd.s32 %s89, 1
    %p93 = scmp.eq.s32.totalorder %s13, 2
    %p94 = scmp.ne.s32.totalorder %s89, %s91
    %p95 = scmp.eq.s32.totalorder %s13, 0
    %p96 = por %p94, %p95
    %p97 = scmp.ne.s32.totalorder %s89, %s91
    %p98 = scmp.eq.s32.totalorder %s18, 2
    %p99 = por %p97, %p98
    %p100 = scmp.ne.s32.totalorder %s91, %s92
    %p101 = scmp.eq.s32.totalorder %s18, 0
    %p102 = por %p100, %p101
    %p103 = scmp.ne.s32.totalorder %s91, %s92
    %p104 = scmp.eq.s32.totalorder %s19, 2
    %p105 = por %p103, %p104
    %p107 = scmp.ne.s32.totalorder %s92, %s106
    %p108 = scmp.eq.s32.totalorder %s19, 0
    %p109 = por %p107, %p108
    %s111 = sadd.s32 %s110, 1
    %p114 = scmp.eq.s32.totalorder %s13, 2
    %p115 = scmp.ne.s32.totalorder %s110, %s112
    %p116 = scmp.eq.s32.totalorder %s13, 0
    %p117 = por %p115, %p116
    %p118 = scmp.ne.s32.totalorder %s110, %s112
    %p119 = scmp.eq.s32.totalorder %s18, 2
    %p120 = por %p118, %p119
    %p121 = scmp.ne.s32.totalorder %s112, %s113
    %p122 = scmp.eq.s32.totalorder %s18, 0
    %p123 = por %p121, %p122
    %p124 = scmp.ne.s32.totalorder %s112, %s113
    %p125 = scmp.eq.s32.totalorder %s19, 2
    %p126 = por %p124, %p125
    %p128 = scmp.ne.s32.totalorder %s113, %s127
    %p129 = scmp.eq.s32.totalorder %s19, 0
    %p130 = por %p128, %p129
    %s132 = sadd.s32 %s131, 1
    %p135 = scmp.eq.s32.totalorder %s13, 2
    %p136 = scmp.ne.s32.totalorder %s131, %s133
    %p137 = scmp.eq.s32.totalorder %s13, 0
    %p138 = por %p136, %p137
    %p139 = scmp.ne.s32.totalorder %s131, %s133
    %p140 = scmp.eq.s32.totalorder %s18, 2
    %p141 = por %p139, %p140
    %p142 = scmp.ne.s32.totalorder %s133, %s134
    %p143 = scmp.eq.s32.totalorder %s18, 0
    %p144 = por %p142, %p143
    %p145 = scmp.ne.s32.totalorder %s133, %s134
    %p146 = scmp.eq.s32.totalorder %s19, 2
    %p147 = por %p145, %p146
    %p149 = scmp.ne.s32.totalorder %s134, %s148
    %p150 = scmp.eq.s32.totalorder %s19, 0
    %p151 = por %p149, %p150
    %s153 = sadd.s32 %s152, 1
    %p156 = scmp.eq.s32.totalorder %s13, 2
    %p157 = scmp.ne.s32.totalorder %s152, %s154
    %p158 = scmp.eq.s32.totalorder %s13, 0
    %p159 = por %p157, %p158
    %p160 = scmp.ne.s32.totalorder %s152, %s154
    %p161 = scmp.eq.s32.totalorder %s18, 2
    %p162 = por %p160, %p161
    %p163 = scmp.ne.s32.totalorder %s154, %s155
    %p164 = scmp.eq.s32.totalorder %s18, 0
    %p165 = por %p163, %p164
    %p166 = scmp.ne.s32.totalorder %s154, %s155
    %p167 = scmp.eq.s32.totalorder %s19, 2
    %p168 = por %p166, %p167
    %p170 = scmp.ne.s32.totalorder %s155, %s169
    %p171 = scmp.eq.s32.totalorder %s19, 0
    %p172 = por %p170, %p171
    %s173 = ssub.s32 %s13, %s20
    %p174 = scmp.eq.s32.totalorder %s173, 0
    %s176 = sadd.s32 %s175, 1
    %s177 = scalar_select %p174, %s175, %s176
    %p180 = pneg %p174
    %p181 = scmp.eq.s32.totalorder %s13, 2
    %p182 = por %p180, %p181
    %p183 = scmp.ne.s32.totalorder %s175, %s178
    %p184 = scmp.eq.s32.totalorder %s13, 0
    %p185 = por %p183, %p184
    %p186 = scmp.ne.s32.totalorder %s175, %s178
    %p187 = scmp.eq.s32.totalorder %s18, 2
    %p188 = por %p186, %p187
    %p189 = scmp.ne.s32.totalorder %s178, %s179
    %p190 = scmp.eq.s32.totalorder %s18, 0
    %p191 = por %p189, %p190
    %p192 = scmp.ne.s32.totalorder %s178, %s179
    %p193 = scmp.eq.s32.totalorder %s19, 2
    %p194 = por %p192, %p193
    %p196 = scmp.ne.s32.totalorder %s179, %s195
    %p197 = scmp.eq.s32.totalorder %s19, 0
    %p198 = por %p196, %p197
    %p199 = scmp.le.s32.totalorder 1, %s13
    %p200 = scmp.lt.s32.totalorder %s13, 4
    %p201 = pnand %p199, %p200
    %p202 = pneg %p201
    // Predicated region
    $region9: #{deeplob_depth_forward.4} parent=5 // pred_check
      _
    $region10: #{deeplob_depth_forward.4} parent=5 // pred_check_branch
      %204 = sbr.rel (%p201) target = $region12
    $region11: #{deeplob_depth_forward.4} parent=5 // pred_region
      %s205 = ssub.s32 %s13, 1
      // Predicated region
      $region13: #{deeplob_depth_forward.4} parent=11 // pred_check
        %p206 = pneg %p60
      $region14: #{deeplob_depth_forward.4} parent=11 // pred_check_branch
        %208 = sbr.rel (%p206) target = $region16
      $region15: #{deeplob_depth_forward.4} parent=11 // pred_region
        _
      $region16: #{deeplob_depth_forward.4} parent=11 // pred_fallthru
        _
      // Predicated region
      $region17: #{deeplob_depth_forward.4} parent=11 // pred_check
        %p209 = pneg %p81
      $region18: #{deeplob_depth_forward.4} parent=11 // pred_check_branch
        %211 = sbr.rel (%p209) target = $region20
      $region19: #{deeplob_depth_forward.4} parent=11 // pred_region
        _
      $region20: #{deeplob_depth_forward.4} parent=11 // pred_fallthru
        _
      // Predicated region
      $region21: #{deeplob_depth_forward.4} parent=11 // pred_check
        %p212 = pneg %p102
      $region22: #{deeplob_depth_forward.4} parent=11 // pred_check_branch
        %214 = sbr.rel (%p212) target = $region24
      $region23: #{deeplob_depth_forward.4} parent=11 // pred_region
        _
      $region24: #{deeplob_depth_forward.4} parent=11 // pred_fallthru
        _
      // Predicated region
      $region25: #{deeplob_depth_forward.4} parent=11 // pred_check
        %p215 = pneg %p123
      $region26: #{deeplob_depth_forward.4} parent=11 // pred_check_branch
        %217 = sbr.rel (%p215) target = $region28
      $region27: #{deeplob_depth_forward.4} parent=11 // pred_region
        _
      $region28: #{deeplob_depth_forward.4} parent=11 // pred_fallthru
        _
      // Predicated region
      $region29: #{deeplob_depth_forward.4} parent=11 // pred_check
        %p218 = pneg %p144
      $region30: #{deeplob_depth_forward.4} parent=11 // pred_check_branch
        %220 = sbr.rel (%p218) target = $region32
      $region31: #{deeplob_depth_forward.4} parent=11 // pred_region
        _
      $region32: #{deeplob_depth_forward.4} parent=11 // pred_fallthru
        _
      // Predicated region
      $region33: #{deeplob_depth_forward.4} parent=11 // pred_check
        %p221 = pneg %p165
      $region34: #{deeplob_depth_forward.4} parent=11 // pred_check_branch
        %223 = sbr.rel (%p221) target = $region36
      $region35: #{deeplob_depth_forward.4} parent=11 // pred_region
        _
      $region36: #{deeplob_depth_forward.4} parent=11 // pred_fallthru
        _
    $region12: #{deeplob_depth_forward.4} parent=5 // pred_fallthru
      _
    %p224 = scmp.lt.s32.totalorder %s13, 3
    // Predicated region
    $region37: #{deeplob_depth_forward.4} parent=5 // pred_check
      %p225 = pneg %p224
    $region38: #{deeplob_depth_forward.4} parent=5 // pred_check_branch
      %227 = sbr.rel (%p225) target = $region40
    $region39: #{deeplob_depth_forward.4} parent=5 // pred_region
      // Predicated region
      $region41: #{deeplob_depth_forward.4} parent=39 // pred_check
        %p228 = pneg %p33
      $region42: #{deeplob_depth_forward.4} parent=39 // pred_check_branch
        %230 = sbr.rel (%p228) target = $region44
      $region43: #{deeplob_depth_forward.4} parent=39 // pred_region
        %s231 = smul.u32 8, %s13
        %p232 = scmp.lt.s32.totalorder %s231, 23
        %s233 = scalar_select %p232, %s231, 23
        %s234 = smul.addr %s233, 3
        %s235 = smul.addr %s234, 8
        %s236 = scalar_lea.vmem %s0, %s235
        %s237 = smul.u32 8, %s13
      $region44: #{deeplob_depth_forward.4} parent=39 // pred_fallthru
        _
    $region40: #{deeplob_depth_forward.4} parent=5 // pred_fallthru
      _
    %p238 = scmp.le.s32.totalorder 1, %s13
    %p239 = scmp.lt.s32.totalorder %s13, 4
    %p240 = pnand %p238, %p239
    %p241 = pneg %p240
    // Predicated region
    $region45: #{deeplob_depth_forward.4} parent=5 // pred_check
      _
    $region46: #{deeplob_depth_forward.4} parent=5 // pred_check_branch
      %243 = sbr.rel (%p240) target = $region48
    $region47: #{deeplob_depth_forward.4} parent=5 // pred_region
      %s244 = ssub.s32 %s13, 1
      %s245 = smul.u32 8, %s18
      %p246 = scmp.lt.s32.totalorder %s245, 23
      %s247 = scalar_select %p246, %s245, 23
      %s248 = smul.addr %s247, 3
      %s249 = smul.addr %s248, 8
      %s250 = scalar_lea.vmem %s0, %s249
      %p251 = pneg %p39
      %p252 = pneg %p36
      %p253 = pneg %p60
      %p254 = pneg %p57
      %p255 = pneg %p81
      %p256 = pneg %p78
      %p257 = pneg %p102
      %p258 = pneg %p99
      %p259 = pneg %p123
      %p260 = pneg %p120
      %p261 = pneg %p144
      %p262 = pneg %p141
      %p263 = pneg %p165
      %p264 = pneg %p162
      %p265 = pneg %p191
      %p266 = pneg %p188
      %s267 = smul.u32 8, %s18
      %p268 = scmp.lt.s32.totalorder %s267, 23
      %s269 = scalar_select %p268, %s267, 23
      %s270 = smul.addr %s269, 3
      %s271 = smul.addr %s270, 8
      %s272 = scalar_lea.vmem %s7, %s271
      %s273 = smul.u32 8, %s18
      %p274 = scmp.lt.s32.totalorder %s273, 23
      %s275 = scalar_select %p274, %s273, 23
      %s276 = smul.addr %s275, 3
      %s277 = smul.addr %s276, 8
      %s278 = scalar_lea.vmem %s0, %s277
      %s279 = smul.u32 8, %s18
      %s280 = smul.u32 8, %s18
      %p281 = scmp.lt.s32.totalorder %s280, 23
      %s282 = scalar_select %p281, %s280, 23
      %s283 = smul.addr %s282, 3
      %s284 = smul.addr %s283, 8
      %s285 = scalar_lea.vmem %s7, %s284
      %s286 = smul.u32 8, %s18
      %v287 = vld [vmem:[%s1] sm:$0x3]
      %v288 = vld [vmem:[%s2] sm:$0x7]
      %v289 = vld [vmem:[%s3] sm:$0xff]
      %v290 = vld [vmem:[%s3 + $0x8] sm:$0xff]
      %v291 = vld [vmem:[%s3 + $0x10] sm:$0xff]
      %v292 = vld [vmem:[%s3 + $0x18] sm:$0xff]
      %v293 = vld [vmem:[%s3 + $0x20] sm:$0xff]
      %v294 = vld [vmem:[%s3 + $0x28] sm:$0xff]
      %v295 = vld [vmem:[%s3 + $0x30] sm:$0xff]
      %v296 = vld [vmem:[%s3 + $0x38] sm:$0xff]
      %v297 = vld [vmem:[%s3 + $0x40] sm:$0xff]
      %v298 = vld [vmem:[%s3 + $0x48] sm:$0xff]
      %v299 = vld [vmem:[%s3 + $0x50] sm:$0xff]
      %v300 = vld [vmem:[%s3 + $0x58] sm:$0xff]
      %v301 = vld [vmem:[%s3 + $0x60] sm:$0xff]
      %v302 = vld [vmem:[%s3 + $0x68] sm:$0xff]
      %v303 = vld [vmem:[%s3 + $0x70] sm:$0xff]
      %v304 = vld [vmem:[%s3 + $0x78] sm:$0xff]
      %v305 = vld [vmem:[%s4] sm:$0x7]
      %v306 = vld [vmem:[%s5] sm:$0xff]
      %v307 = vld [vmem:[%s5 + $0x8] sm:$0xff]
      %v308 = vld [vmem:[%s5 + $0x10] sm:$0xff]
      %v309 = vld [vmem:[%s5 + $0x18] sm:$0xff]
      %v310 = vld [vmem:[%s5 + $0x20] sm:$0xff]
      %v311 = vld [vmem:[%s5 + $0x28] sm:$0xff]
      %v312 = vld [vmem:[%s5 + $0x30] sm:$0xff]
      %v313 = vld [vmem:[%s5 + $0x38] sm:$0xff]
      %v314 = vld [vmem:[%s5 + $0x40] sm:$0xff]
      %v315 = vld [vmem:[%s5 + $0x48] sm:$0xff]
      %v316 = vld [vmem:[%s5 + $0x50] sm:$0xff]
      %v317 = vld [vmem:[%s5 + $0x58] sm:$0xff]
      %v318 = vld [vmem:[%s5 + $0x60] sm:$0xff]
      %v319 = vld [vmem:[%s5 + $0x68] sm:$0xff]
      %v320 = vld [vmem:[%s5 + $0x70] sm:$0xff]
      %v321 = vld [vmem:[%s5 + $0x78] sm:$0xff]
      %v322 = vld [vmem:[%s6] sm:$0x7]
      %v323 = vld [vmem:[%s278] sm:$0xff]
      %v324 = vld [vmem:[%s278 + $0x8] sm:$0xff]
      %v325 = vld [vmem:[%s278 + $0x10] sm:$0xff]
      %327 = vset.pattern.permute.xlu0 0
      %328 = vperm.xlu0 %327, %v323
      %v329 = vpop.permute.xlu0 %328
      %332 = vset.pattern.permute.xlu0 0
      %333 = vperm.xlu0 %332, %v324
      %v334 = vpop.permute.xlu0 %333
      %337 = vset.pattern.permute.xlu0 0
      %338 = vperm.xlu0 %337, %v325
      %v339 = vpop.permute.xlu0 %338
      %v341 = vperm.slane %v287, 0
      %v342 = vmul.f32 %v329, %v341
      %v343 = vmul.f32 %v334, %v341
      %v344 = vmul.f32 %v339, %v341
      %345 = vset.pattern.permute.xlu0 1
      %346 = vperm.xlu0 %345, %v323
      %v347 = vpop.permute.xlu0 %346
      %349 = vset.pattern.permute.xlu0 1
      %350 = vperm.xlu0 %349, %v324
      %v351 = vpop.permute.xlu0 %350
      %353 = vset.pattern.permute.xlu0 1
      %354 = vperm.xlu0 %353, %v325
      %v355 = vpop.permute.xlu0 %354
      %v357 = vperm.slane %v287, 1
      %v358 = vmul.f32 %v347, %v357
      %v359 = vmul.f32 %v351, %v357
      %v360 = vmul.f32 %v355, %v357
      %v361 = vadd.f32 %v342, %v358
      %v362 = vadd.f32 %v343, %v359
      %v363 = vadd.f32 %v344, %v360
      %v364 = vperm.slane %v288, 0
      %v365 = vadd.f32 %v361, %v364
      %v366 = vadd.f32 %v362, %v364
      %v367 = vadd.f32 %v363, %v364
      %vm368 = vcmp.ge.f32.partialorder %v365, 0.0
      %vm369 = vcmp.ge.f32.partialorder %v366, 0.0
      %vm370 = vcmp.ge.f32.partialorder %v367, 0.0
      %v371 = vmul.f32 %v365, 0.01
      %v372 = vmul.f32 %v366, 0.01
      %v373 = vmul.f32 %v367, 0.01
      %v374 = vsel %vm368, %v365, %v371
      %v375 = vsel %vm369, %v366, %v372
      %v376 = vsel %vm370, %v367, %v373
      %v377 = vperm.slane %v288, 1
      %v378 = vmul.f32 %v374, %v377
      %v379 = vmul.f32 %v375, %v377
      %v380 = vmul.f32 %v376, %v377
      %v381 = vperm.slane %v288, 2
      %v382 = vadd.f32 %v378, %v381
      %v383 = vadd.f32 %v379, %v381
      %v384 = vadd.f32 %v380, %v381
      %vm388 = vcmask 1046528
      %v389 = vrot.slane %v382, 1
      %v390 = vrot.slane %v383, 1
      %v391 = vsel %vm388, %v389, %v390
      %v392 = vrot.slane %v384, 1
      %v393 = vsel %vm388, %v390, %v392
      %vm394 = vcmask 261120
      %v395 = vsel %vm394, %v391, 0
      %v397 = vsel %vm394, %v393, 0
      %v399 = vsel %vm394, %v392, 0
      %401 = vmatpush.msra.mxu0 0.0
      %402 = vmatpush.msra.mxu0 0.0
      %403 = vmatpush.msra.mxu0 0.0
      %404 = vmatpush.msra.mxu0 0.0
      %405 = vmatpush.msra.mxu0 0.0
      %406 = vmatpush.msra.mxu0 0.0
      %407 = vmatpush.msra.mxu0 0.0
      %408 = vmatpush.msra.mxu0 0.0
      %409 = vmatpush.msra.mxu0 0.0
      %410 = vmatpush.msra.mxu0 0.0
      %411 = vmatpush.msra.mxu0 0.0
      %412 = vmatpush.msra.mxu0 0.0
      %413 = vmatpush.msra.mxu0 %v296
      %414 = vmatpush.msra.mxu0 %v295
      %415 = vmatpush.msra.mxu0 %v294
      %416 = vmatpush.msra.mxu0 %v293
      %417 = vmatmul.f32.gmra.mxu0 %v395
      %v418 = vpop.f32.mrf.mxu0
      %v419 = vadd.f32 0.0, %v418
      %420 = vmatmul.f32.gmra.mxu0 %v397
      %v421 = vpop.f32.mrf.mxu0
      %v422 = vadd.f32 0.0, %v421
      %423 = vmatmul.f32.gmra.mxu0 %v399
      %v424 = vpop.f32.mrf.mxu0
      %v425 = vadd.f32 0.0, %v424
      %426 = vdwg.mxu0
      %v427 = vsel %vm394, %v382, 0
      %v429 = vsel %vm394, %v383, 0
      %v431 = vsel %vm394, %v384, 0
      %433 = vmatpush.msra.mxu0 0.0
      %434 = vmatpush.msra.mxu0 0.0
      %435 = vmatpush.msra.mxu0 0.0
      %436 = vmatpush.msra.mxu0 0.0
      %437 = vmatpush.msra.mxu0 0.0
      %438 = vmatpush.msra.mxu0 0.0
      %439 = vmatpush.msra.mxu0 0.0
      %440 = vmatpush.msra.mxu0 0.0
      %441 = vmatpush.msra.mxu0 0.0
      %442 = vmatpush.msra.mxu0 0.0
      %443 = vmatpush.msra.mxu0 0.0
      %444 = vmatpush.msra.mxu0 0.0
      %445 = vmatpush.msra.mxu0 %v292
      %446 = vmatpush.msra.mxu0 %v291
      %447 = vmatpush.msra.mxu0 %v290
      %448 = vmatpush.msra.mxu0 %v289
      %449 = vmatmul.f32.gmra.mxu0 %v427
      %v450 = vpop.f32.mrf.mxu0
      %v451 = vadd.f32 %v419, %v450
      %452 = vmatmul.f32.gmra.mxu0 %v429
      %v453 = vpop.f32.mrf.mxu0
      %v454 = vadd.f32 %v422, %v453
      %455 = vmatmul.f32.gmra.mxu0 %v431
      %v456 = vpop.f32.mrf.mxu0
      %v457 = vadd.f32 %v425, %v456
      %458 = vdwg.mxu0
      %vm459 = vcmask 1045504
      %v460 = vrot.slane %v382, 2
      %v461 = vrot.slane %v383, 2
      %v462 = vsel %vm459, %v460, %v461
      %v463 = vrot.slane %v384, 2
      %v464 = vsel %vm459, %v461, %v463
      %v465 = vsel %vm394, %v462, 0
      %v467 = vsel %vm394, %v464, 0
      %v469 = vsel %vm394, %v463, 0
      %471 = vmatpush.msra.mxu0 0.0
      %472 = vmatpush.msra.mxu0 0.0
      %473 = vmatpush.msra.mxu0 0.0
      %474 = vmatpush.msra.mxu0 0.0
      %475 = vmatpush.msra.mxu0 0.0
      %476 = vmatpush.msra.mxu0 0.0
      %477 = vmatpush.msra.mxu0 0.0
      %478 = vmatpush.msra.mxu0 0.0
      %479 = vmatpush.msra.mxu0 0.0
      %480 = vmatpush.msra.mxu0 0.0
      %481 = vmatpush.msra.mxu0 0.0
      %482 = vmatpush.msra.mxu0 0.0
      %483 = vmatpush.msra.mxu0 %v300
      %484 = vmatpush.msra.mxu0 %v299
      %485 = vmatpush.msra.mxu0 %v298
      %486 = vmatpush.msra.mxu0 %v297
      %487 = vmatmul.f32.gmra.mxu0 %v465
      %v488 = vpop.f32.mrf.mxu0
      %v489 = vadd.f32 0.0, %v488
      %490 = vmatmul.f32.gmra.mxu0 %v467
      %v491 = vpop.f32.mrf.mxu0
      %v492 = vadd.f32 0.0, %v491
      %493 = vmatmul.f32.gmra.mxu0 %v469
      %v494 = vpop.f32.mrf.mxu0
      %v495 = vadd.f32 0.0, %v494
      %496 = vdwg.mxu0
      %v497 = vadd.f32 %v451, %v489
      %v498 = vadd.f32 %v454, %v492
      %v499 = vadd.f32 %v457, %v495
      %vm500 = vcmask 1044480
      %v501 = vrot.slane %v382, 3
      %v502 = vrot.slane %v383, 3
      %v503 = vsel %vm500, %v501, %v502
      %v504 = vrot.slane %v384, 3
      %v505 = vsel %vm500, %v502, %v504
      %v506 = vsel %vm394, %v503, 0
      %v508 = vsel %vm394, %v505, 0
      %v510 = vsel %vm394, %v504, 0
      %512 = vmatpush.msra.mxu0 0.0
      %513 = vmatpush.msra.mxu0 0.0
      %514 = vmatpush.msra.mxu0 0.0
      %515 = vmatpush.msra.mxu0 0.0
      %516 = vmatpush.msra.mxu0 0.0
      %517 = vmatpush.msra.mxu0 0.0
      %518 = vmatpush.msra.mxu0 0.0
      %519 = vmatpush.msra.mxu0 0.0
      %520 = vmatpush.msra.mxu0 0.0
      %521 = vmatpush.msra.mxu0 0.0
      %522 = vmatpush.msra.mxu0 0.0
      %523 = vmatpush.msra.mxu0 0.0
      %524 = vmatpush.msra.mxu0 %v304
      %525 = vmatpush.msra.mxu0 %v303
      %526 = vmatpush.msra.mxu0 %v302
      %527 = vmatpush.msra.mxu0 %v301
      %528 = vmatmul.f32.gmra.mxu0 %v506
      %v529 = vpop.f32.mrf.mxu0
      %v530 = vadd.f32 0.0, %v529
      %531 = vmatmul.f32.gmra.mxu0 %v508
      %v532 = vpop.f32.mrf.mxu0
      %v533 = vadd.f32 0.0, %v532
      %534 = vmatmul.f32.gmra.mxu0 %v510
      %v535 = vpop.f32.mrf.mxu0
      %v536 = vadd.f32 0.0, %v535
      %537 = vdwg.mxu0
      %v538 = vadd.f32 %v497, %v530
      %v539 = vadd.f32 %v498, %v533
      %v540 = vadd.f32 %v499, %v536
      %v541 = vperm.slane %v305, 0
      %v542 = vadd.f32 %v538, %v541
      %v543 = vadd.f32 %v539, %v541
      %v544 = vadd.f32 %v540, %v541
      %vm545 = vcmp.ge.f32.partialorder %v542, 0.0
      %vm546 = vcmp.ge.f32.partialorder %v543, 0.0
      %vm547 = vcmp.ge.f32.partialorder %v544, 0.0
      %v548 = vmul.f32 %v542, 0.01
      %v549 = vmul.f32 %v543, 0.01
      %v550 = vmul.f32 %v544, 0.01
      %v551 = vsel %vm545, %v542, %v548
      %v552 = vsel %vm546, %v543, %v549
      %v553 = vsel %vm547, %v544, %v550
      %v554 = vperm.slane %v305, 1
      %v555 = vmul.f32 %v551, %v554
      %v556 = vmul.f32 %v552, %v554
      %v557 = vmul.f32 %v553, %v554
      %v558 = vperm.slane %v305, 2
      %v559 = vadd.f32 %v555, %v558
      %v560 = vadd.f32 %v556, %v558
      %v561 = vadd.f32 %v557, %v558
      %v565 = vrot.slane %v559, 1
      %v566 = vrot.slane %v560, 1
      %v567 = vsel %vm388, %v565, %v566
      %v568 = vrot.slane %v561, 1
      %v569 = vsel %vm388, %v566, %v568
      %v570 = vsel %vm394, %v567, 0
      %v572 = vsel %vm394, %v569, 0
      %v574 = vsel %vm394, %v568, 0
      %576 = vmatpush.msra.mxu0 0.0
      %577 = vmatpush.msra.mxu0 0.0
      %578 = vmatpush.msra.mxu0 0.0
      %579 = vmatpush.msra.mxu0 0.0
      %580 = vmatpush.msra.mxu0 0.0
      %581 = vmatpush.msra.mxu0 0.0
      %582 = vmatpush.msra.mxu0 0.0
      %583 = vmatpush.msra.mxu0 0.0
      %584 = vmatpush.msra.mxu0 0.0
      %585 = vmatpush.msra.mxu0 0.0
      %586 = vmatpush.msra.mxu0 0.0
      %587 = vmatpush.msra.mxu0 0.0
      %588 = vmatpush.msra.mxu0 %v313
      %589 = vmatpush.msra.mxu0 %v312
      %590 = vmatpush.msra.mxu0 %v311
      %591 = vmatpush.msra.mxu0 %v310
      %592 = vmatmul.f32.gmra.mxu0 %v570
      %v593 = vpop.f32.mrf.mxu0
      %v594 = vadd.f32 0.0, %v593
      %595 = vmatmul.f32.gmra.mxu0 %v572
      %v596 = vpop.f32.mrf.mxu0
      %v597 = vadd.f32 0.0, %v596
      %598 = vmatmul.f32.gmra.mxu0 %v574
      %v599 = vpop.f32.mrf.mxu0
      %v600 = vadd.f32 0.0, %v599
      %601 = vdwg.mxu0
      %v602 = vsel %vm394, %v559, 0
      %v604 = vsel %vm394, %v560, 0
      %v606 = vsel %vm394, %v561, 0
      %608 = vmatpush.msra.mxu0 0.0
      %609 = vmatpush.msra.mxu0 0.0
      %610 = vmatpush.msra.mxu0 0.0
      %611 = vmatpush.msra.mxu0 0.0
      %612 = vmatpush.msra.mxu0 0.0
      %613 = vmatpush.msra.mxu0 0.0
      %614 = vmatpush.msra.mxu0 0.0
      %615 = vmatpush.msra.mxu0 0.0
      %616 = vmatpush.msra.mxu0 0.0
      %617 = vmatpush.msra.mxu0 0.0
      %618 = vmatpush.msra.mxu0 0.0
      %619 = vmatpush.msra.mxu0 0.0
      %620 = vmatpush.msra.mxu0 %v309
      %621 = vmatpush.msra.mxu0 %v308
      %622 = vmatpush.msra.mxu0 %v307
      %623 = vmatpush.msra.mxu0 %v306
      %624 = vmatmul.f32.gmra.mxu0 %v602
      %v625 = vpop.f32.mrf.mxu0
      %v626 = vadd.f32 %v594, %v625
      %627 = vmatmul.f32.gmra.mxu0 %v604
      %v628 = vpop.f32.mrf.mxu0
      %v629 = vadd.f32 %v597, %v628
      %630 = vmatmul.f32.gmra.mxu0 %v606
      %v631 = vpop.f32.mrf.mxu0
      %v632 = vadd.f32 %v600, %v631
      %633 = vdwg.mxu0
      %v634 = vrot.slane %v559, 2
      %v635 = vrot.slane %v560, 2
      %v636 = vsel %vm459, %v634, %v635
      %v637 = vrot.slane %v561, 2
      %v638 = vsel %vm459, %v635, %v637
      %v639 = vsel %vm394, %v636, 0
      %v641 = vsel %vm394, %v638, 0
      %v643 = vsel %vm394, %v637, 0
      %645 = vmatpush.msra.mxu0 0.0
      %646 = vmatpush.msra.mxu0 0.0
      %647 = vmatpush.msra.mxu0 0.0
      %648 = vmatpush.msra.mxu0 0.0
      %649 = vmatpush.msra.mxu0 0.0
      %650 = vmatpush.msra.mxu0 0.0
      %651 = vmatpush.msra.mxu0 0.0
      %652 = vmatpush.msra.mxu0 0.0
      %653 = vmatpush.msra.mxu0 0.0
      %654 = vmatpush.msra.mxu0 0.0
      %655 = vmatpush.msra.mxu0 0.0
      %656 = vmatpush.msra.mxu0 0.0
      %657 = vmatpush.msra.mxu0 %v317
      %658 = vmatpush.msra.mxu0 %v316
      %659 = vmatpush.msra.mxu0 %v315
      %660 = vmatpush.msra.mxu0 %v314
      %661 = vmatmul.f32.gmra.mxu0 %v639
      %v662 = vpop.f32.mrf.mxu0
      %v663 = vadd.f32 0.0, %v662
      %664 = vmatmul.f32.gmra.mxu0 %v641
      %v665 = vpop.f32.mrf.mxu0
      %v666 = vadd.f32 0.0, %v665
      %667 = vmatmul.f32.gmra.mxu0 %v643
      %v668 = vpop.f32.mrf.mxu0
      %v669 = vadd.f32 0.0, %v668
      %670 = vdwg.mxu0
      %v671 = vadd.f32 %v626, %v663
      %v672 = vadd.f32 %v629, %v666
      %v673 = vadd.f32 %v632, %v669
      %v674 = vrot.slane %v559, 3
      %v675 = vrot.slane %v560, 3
      %v676 = vsel %vm500, %v674, %v675
      %v677 = vrot.slane %v561, 3
      %v678 = vsel %vm500, %v675, %v677
      %v679 = vsel %vm394, %v676, 0
      %v681 = vsel %vm394, %v678, 0
      %v683 = vsel %vm394, %v677, 0
      %685 = vmatpush.msra.mxu0 0.0
      %686 = vmatpush.msra.mxu0 0.0
      %687 = vmatpush.msra.mxu0 0.0
      %688 = vmatpush.msra.mxu0 0.0
      %689 = vmatpush.msra.mxu0 0.0
      %690 = vmatpush.msra.mxu0 0.0
      %691 = vmatpush.msra.mxu0 0.0
      %692 = vmatpush.msra.mxu0 0.0
      %693 = vmatpush.msra.mxu0 0.0
      %694 = vmatpush.msra.mxu0 0.0
      %695 = vmatpush.msra.mxu0 0.0
      %696 = vmatpush.msra.mxu0 0.0
      %697 = vmatpush.msra.mxu0 %v321
      %698 = vmatpush.msra.mxu0 %v320
      %699 = vmatpush.msra.mxu0 %v319
      %700 = vmatpush.msra.mxu0 %v318
      %701 = vmatmul.f32.gmra.mxu0 %v679
      %v702 = vpop.f32.mrf.mxu0
      %v703 = vadd.f32 0.0, %v702
      %704 = vmatmul.f32.gmra.mxu0 %v681
      %v705 = vpop.f32.mrf.mxu0
      %v706 = vadd.f32 0.0, %v705
      %707 = vmatmul.f32.gmra.mxu0 %v683
      %v708 = vpop.f32.mrf.mxu0
      %v709 = vadd.f32 0.0, %v708
      %710 = vdwg.mxu0
      %v711 = vadd.f32 %v671, %v703
      %v712 = vadd.f32 %v672, %v706
      %v713 = vadd.f32 %v673, %v709
      %v714 = vperm.slane %v322, 0
      %v715 = vadd.f32 %v711, %v714
      %v716 = vadd.f32 %v712, %v714
      %v717 = vadd.f32 %v713, %v714
      %vm718 = vcmp.ge.f32.partialorder %v715, 0.0
      %vm719 = vcmp.ge.f32.partialorder %v716, 0.0
      %vm720 = vcmp.ge.f32.partialorder %v717, 0.0
      %v721 = vmul.f32 %v715, 0.01
      %v722 = vmul.f32 %v716, 0.01
      %v723 = vmul.f32 %v717, 0.01
      %v724 = vsel %vm718, %v715, %v721
      %v725 = vsel %vm719, %v716, %v722
      %v726 = vsel %vm720, %v717, %v723
      %v727 = vperm.slane %v322, 1
      %v728 = vmul.f32 %v724, %v727
      %v729 = vmul.f32 %v725, %v727
      %v730 = vmul.f32 %v726, %v727
      %v731 = vperm.slane %v322, 2
      %v732 = vadd.f32 %v728, %v731
      %v733 = vadd.f32 %v729, %v731
      %v734 = vadd.f32 %v730, %v731
      %735 = vst.msk [vmem:[%s285] sm:$0xff] %vm394, %v732
      %736 = vst.msk [vmem:[%s285 + $0x8] sm:$0xff] %vm394, %v733
      %vm737 = vcmask 254976
      %738 = vst.msk [vmem:[%s285 + $0x10] sm:$0x3] %vm737, %v734
      %s739 = scalar_lea.vmem %s278, 24
      %v740 = vld [vmem:[%s739] sm:$0xff]
      %v741 = vld [vmem:[%s739 + $0x8] sm:$0xff]
      %v742 = vld [vmem:[%s739 + $0x10] sm:$0xff]
      %744 = vset.pattern.permute.xlu0 0
      %745 = vperm.xlu0 %744, %v740
      %v746 = vpop.permute.xlu0 %745
      %749 = vset.pattern.permute.xlu0 0
      %750 = vperm.xlu0 %749, %v741
      %v751 = vpop.permute.xlu0 %750
      %754 = vset.pattern.permute.xlu0 0
      %755 = vperm.xlu0 %754, %v742
      %v756 = vpop.permute.xlu0 %755
      %v758 = vmul.f32 %v746, %v341
      %v759 = vmul.f32 %v751, %v341
      %v760 = vmul.f32 %v756, %v341
      %761 = vset.pattern.permute.xlu0 1
      %762 = vperm.xlu0 %761, %v740
      %v763 = vpop.permute.xlu0 %762
      %765 = vset.pattern.permute.xlu0 1
      %766 = vperm.xlu0 %765, %v741
      %v767 = vpop.permute.xlu0 %766
      %769 = vset.pattern.permute.xlu0 1
      %770 = vperm.xlu0 %769, %v742
      %v771 = vpop.permute.xlu0 %770
      %v773 = vmul.f32 %v763, %v357
      %v774 = vmul.f32 %v767, %v357
      %v775 = vmul.f32 %v771, %v357
      %v776 = vadd.f32 %v758, %v773
      %v777 = vadd.f32 %v759, %v774
      %v778 = vadd.f32 %v760, %v775
      %v779 = vadd.f32 %v776, %v364
      %v780 = vadd.f32 %v777, %v364
      %v781 = vadd.f32 %v778, %v364
      %vm782 = vcmp.ge.f32.partialorder %v779, 0.0
      %vm783 = vcmp.ge.f32.partialorder %v780, 0.0
      %vm784 = vcmp.ge.f32.partialorder %v781, 0.0
      %v785 = vmul.f32 %v779, 0.01
      %v786 = vmul.f32 %v780, 0.01
      %v787 = vmul.f32 %v781, 0.01
      %v788 = vsel %vm782, %v779, %v785
      %v789 = vsel %vm783, %v780, %v786
      %v790 = vsel %vm784, %v781, %v787
      %v791 = vmul.f32 %v788, %v377
      %v792 = vmul.f32 %v789, %v377
      %v793 = vmul.f32 %v790, %v377
      %v794 = vadd.f32 %v791, %v381
      %v795 = vadd.f32 %v792, %v381
      %v796 = vadd.f32 %v793, %v381
      %v800 = vrot.slane %v794, 1
      %v801 = vrot.slane %v795, 1
      %v802 = vsel %vm388, %v800, %v801
      %v803 = vrot.slane %v796, 1
      %v804 = vsel %vm388, %v801, %v803
      %v805 = vsel %vm394, %v802, 0
      %v807 = vsel %vm394, %v804, 0
      %v809 = vsel %vm394, %v803, 0
      %811 = vmatpush.msra.mxu0 0.0
      %812 = vmatpush.msra.mxu0 0.0
      %813 = vmatpush.msra.mxu0 0.0
      %814 = vmatpush.msra.mxu0 0.0
      %815 = vmatpush.msra.mxu0 0.0
      %816 = vmatpush.msra.mxu0 0.0
      %817 = vmatpush.msra.mxu0 0.0
      %818 = vmatpush.msra.mxu0 0.0
      %819 = vmatpush.msra.mxu0 0.0
      %820 = vmatpush.msra.mxu0 0.0
      %821 = vmatpush.msra.mxu0 0.0
      %822 = vmatpush.msra.mxu0 0.0
      %823 = vmatpush.msra.mxu0 %v296
      %824 = vmatpush.msra.mxu0 %v295
      %825 = vmatpush.msra.mxu0 %v294
      %826 = vmatpush.msra.mxu0 %v293
      %827 = vmatmul.f32.gmra.mxu0 %v805
      %v828 = vpop.f32.mrf.mxu0
      %v829 = vadd.f32 0.0, %v828
      %830 = vmatmul.f32.gmra.mxu0 %v807
      %v831 = vpop.f32.mrf.mxu0
      %v832 = vadd.f32 0.0, %v831
      %833 = vmatmul.f32.gmra.mxu0 %v809
      %v834 = vpop.f32.mrf.mxu0
      %v835 = vadd.f32 0.0, %v834
      %836 = vdwg.mxu0
      %v837 = vsel %vm394, %v794, 0
      %v839 = vsel %vm394, %v795, 0
      %v841 = vsel %vm394, %v796, 0
      %843 = vmatpush.msra.mxu0 0.0
      %844 = vmatpush.msra.mxu0 0.0
      %845 = vmatpush.msra.mxu0 0.0
      %846 = vmatpush.msra.mxu0 0.0
      %847 = vmatpush.msra.mxu0 0.0
      %848 = vmatpush.msra.mxu0 0.0
      %849 = vmatpush.msra.mxu0 0.0
      %850 = vmatpush.msra.mxu0 0.0
      %851 = vmatpush.msra.mxu0 0.0
      %852 = vmatpush.msra.mxu0 0.0
      %853 = vmatpush.msra.mxu0 0.0
      %854 = vmatpush.msra.mxu0 0.0
      %855 = vmatpush.msra.mxu0 %v292
      %856 = vmatpush.msra.mxu0 %v291
      %857 = vmatpush.msra.mxu0 %v290
      %858 = vmatpush.msra.mxu0 %v289
      %859 = vmatmul.f32.gmra.mxu0 %v837
      %v860 = vpop.f32.mrf.mxu0
      %v861 = vadd.f32 %v829, %v860
      %862 = vmatmul.f32.gmra.mxu0 %v839
      %v863 = vpop.f32.mrf.mxu0
      %v864 = vadd.f32 %v832, %v863
      %865 = vmatmul.f32.gmra.mxu0 %v841
      %v866 = vpop.f32.mrf.mxu0
      %v867 = vadd.f32 %v835, %v866
      %868 = vdwg.mxu0
      %v869 = vrot.slane %v794, 2
      %v870 = vrot.slane %v795, 2
      %v871 = vsel %vm459, %v869, %v870
      %v872 = vrot.slane %v796, 2
      %v873 = vsel %vm459, %v870, %v872
      %v874 = vsel %vm394, %v871, 0
      %v876 = vsel %vm394, %v873, 0
      %v878 = vsel %vm394, %v872, 0
      %880 = vmatpush.msra.mxu0 0.0
      %881 = vmatpush.msra.mxu0 0.0
      %882 = vmatpush.msra.mxu0 0.0
      %883 = vmatpush.msra.mxu0 0.0
      %884 = vmatpush.msra.mxu0 0.0
      %885 = vmatpush.msra.mxu0 0.0
      %886 = vmatpush.msra.mxu0 0.0
      %887 = vmatpush.msra.mxu0 0.0
      %888 = vmatpush.msra.mxu0 0.0
      %889 = vmatpush.msra.mxu0 0.0
      %890 = vmatpush.msra.mxu0 0.0
      %891 = vmatpush.msra.mxu0 0.0
      %892 = vmatpush.msra.mxu0 %v300
      %893 = vmatpush.msra.mxu0 %v299
      %894 = vmatpush.msra.mxu0 %v298
      %895 = vmatpush.msra.mxu0 %v297
      %896 = vmatmul.f32.gmra.mxu0 %v874
      %v897 = vpop.f32.mrf.mxu0
      %v898 = vadd.f32 0.0, %v897
      %899 = vmatmul.f32.gmra.mxu0 %v876
      %v900 = vpop.f32.mrf.mxu0
      %v901 = vadd.f32 0.0, %v900
      %902 = vmatmul.f32.gmra.mxu0 %v878
      %v903 = vpop.f32.mrf.mxu0
      %v904 = vadd.f32 0.0, %v903
      %905 = vdwg.mxu0
      %v906 = vadd.f32 %v861, %v898
      %v907 = vadd.f32 %v864, %v901
      %v908 = vadd.f32 %v867, %v904
      %v909 = vrot.slane %v794, 3
      %v910 = vrot.slane %v795, 3
      %v911 = vsel %vm500, %v909, %v910
      %v912 = vrot.slane %v796, 3
      %v913 = vsel %vm500, %v910, %v912
      %v914 = vsel %vm394, %v911, 0
      %v916 = vsel %vm394, %v913, 0
      %v918 = vsel %vm394, %v912, 0
      %920 = vmatpush.msra.mxu0 0.0
      %921 = vmatpush.msra.mxu0 0.0
      %922 = vmatpush.msra.mxu0 0.0
      %923 = vmatpush.msra.mxu0 0.0
      %924 = vmatpush.msra.mxu0 0.0
      %925 = vmatpush.msra.mxu0 0.0
      %926 = vmatpush.msra.mxu0 0.0
      %927 = vmatpush.msra.mxu0 0.0
      %928 = vmatpush.msra.mxu0 0.0
      %929 = vmatpush.msra.mxu0 0.0
      %930 = vmatpush.msra.mxu0 0.0
      %931 = vmatpush.msra.mxu0 0.0
      %932 = vmatpush.msra.mxu0 %v304
      %933 = vmatpush.msra.mxu0 %v303
      %934 = vmatpush.msra.mxu0 %v302
      %935 = vmatpush.msra.mxu0 %v301
      %936 = vmatmul.f32.gmra.mxu0 %v914
      %v937 = vpop.f32.mrf.mxu0
      %v938 = vadd.f32 0.0, %v937
      %939 = vmatmul.f32.gmra.mxu0 %v916
      %v940 = vpop.f32.mrf.mxu0
      %v941 = vadd.f32 0.0, %v940
      %942 = vmatmul.f32.gmra.mxu0 %v918
      %v943 = vpop.f32.mrf.mxu0
      %v944 = vadd.f32 0.0, %v943
      %945 = vdwg.mxu0
      %v946 = vadd.f32 %v906, %v938
      %v947 = vadd.f32 %v907, %v941
      %v948 = vadd.f32 %v908, %v944
      %v949 = vadd.f32 %v946, %v541
      %v950 = vadd.f32 %v947, %v541
      %v951 = vadd.f32 %v948, %v541
      %vm952 = vcmp.ge.f32.partialorder %v949, 0.0
      %vm953 = vcmp.ge.f32.partialorder %v950, 0.0
      %vm954 = vcmp.ge.f32.partialorder %v951, 0.0
      %v955 = vmul.f32 %v949, 0.01
      %v956 = vmul.f32 %v950, 0.01
      %v957 = vmul.f32 %v951, 0.01
      %v958 = vsel %vm952, %v949, %v955
      %v959 = vsel %vm953, %v950, %v956
      %v960 = vsel %vm954, %v951, %v957
      %v961 = vmul.f32 %v958, %v554
      %v962 = vmul.f32 %v959, %v554
      %v963 = vmul.f32 %v960, %v554
      %v964 = vadd.f32 %v961, %v558
      %v965 = vadd.f32 %v962, %v558
      %v966 = vadd.f32 %v963, %v558
      %v970 = vrot.slane %v964, 1
      %v971 = vrot.slane %v965, 1
      %v972 = vsel %vm388, %v970, %v971
      %v973 = vrot.slane %v966, 1
      %v974 = vsel %vm388, %v971, %v973
      %v975 = vsel %vm394, %v972, 0
      %v977 = vsel %vm394, %v974, 0
      %v979 = vsel %vm394, %v973, 0
      %981 = vmatpush.msra.mxu0 0.0
      %982 = vmatpush.msra.mxu0 0.0
      %983 = vmatpush.msra.mxu0 0.0
      %984 = vmatpush.msra.mxu0 0.0
      %985 = vmatpush.msra.mxu0 0.0
      %986 = vmatpush.msra.mxu0 0.0
      %987 = vmatpush.msra.mxu0 0.0
      %988 = vmatpush.msra.mxu0 0.0
      %989 = vmatpush.msra.mxu0 0.0
      %990 = vmatpush.msra.mxu0 0.0
      %991 = vmatpush.msra.mxu0 0.0
      %992 = vmatpush.msra.mxu0 0.0
      %993 = vmatpush.msra.mxu0 %v313
      %994 = vmatpush.msra.mxu0 %v312
      %995 = vmatpush.msra.mxu0 %v311
      %996 = vmatpush.msra.mxu0 %v310
      %997 = vmatmul.f32.gmra.mxu0 %v975
      %v998 = vpop.f32.mrf.mxu0
      %v999 = vadd.f32 0.0, %v998
      %1000 = vmatmul.f32.gmra.mxu0 %v977
      %v1001 = vpop.f32.mrf.mxu0
      %v1002 = vadd.f32 0.0, %v1001
      %1003 = vmatmul.f32.gmra.mxu0 %v979
      %v1004 = vpop.f32.mrf.mxu0
      %v1005 = vadd.f32 0.0, %v1004
      %1006 = vdwg.mxu0
      %v1007 = vsel %vm394, %v964, 0
      %v1009 = vsel %vm394, %v965, 0
      %v1011 = vsel %vm394, %v966, 0
      %1013 = vmatpush.msra.mxu0 0.0
      %1014 = vmatpush.msra.mxu0 0.0
      %1015 = vmatpush.msra.mxu0 0.0
      %1016 = vmatpush.msra.mxu0 0.0
      %1017 = vmatpush.msra.mxu0 0.0
      %1018 = vmatpush.msra.mxu0 0.0
      %1019 = vmatpush.msra.mxu0 0.0
      %1020 = vmatpush.msra.mxu0 0.0
      %1021 = vmatpush.msra.mxu0 0.0
      %1022 = vmatpush.msra.mxu0 0.0
      %1023 = vmatpush.msra.mxu0 0.0
      %1024 = vmatpush.msra.mxu0 0.0
      %1025 = vmatpush.msra.mxu0 %v309
      %1026 = vmatpush.msra.mxu0 %v308
      %1027 = vmatpush.msra.mxu0 %v307
      %1028 = vmatpush.msra.mxu0 %v306
      %1029 = vmatmul.f32.gmra.mxu0 %v1007
      %v1030 = vpop.f32.mrf.mxu0
      %v1031 = vadd.f32 %v999, %v1030
      %1032 = vmatmul.f32.gmra.mxu0 %v1009
      %v1033 = vpop.f32.mrf.mxu0
      %v1034 = vadd.f32 %v1002, %v1033
      %1035 = vmatmul.f32.gmra.mxu0 %v1011
      %v1036 = vpop.f32.mrf.mxu0
      %v1037 = vadd.f32 %v1005, %v1036
      %1038 = vdwg.mxu0
      %v1039 = vrot.slane %v964, 2
      %v1040 = vrot.slane %v965, 2
      %v1041 = vsel %vm459, %v1039, %v1040
      %v1042 = vrot.slane %v966, 2
      %v1043 = vsel %vm459, %v1040, %v1042
      %v1044 = vsel %vm394, %v1041, 0
      %v1046 = vsel %vm394, %v1043, 0
      %v1048 = vsel %vm394, %v1042, 0
      %1050 = vmatpush.msra.mxu0 0.0
      %1051 = vmatpush.msra.mxu0 0.0
      %1052 = vmatpush.msra.mxu0 0.0
      %1053 = vmatpush.msra.mxu0 0.0
      %1054 = vmatpush.msra.mxu0 0.0
      %1055 = vmatpush.msra.mxu0 0.0
      %1056 = vmatpush.msra.mxu0 0.0
      %1057 = vmatpush.msra.mxu0 0.0
      %1058 = vmatpush.msra.mxu0 0.0
      %1059 = vmatpush.msra.mxu0 0.0
      %1060 = vmatpush.msra.mxu0 0.0
      %1061 = vmatpush.msra.mxu0 0.0
      %1062 = vmatpush.msra.mxu0 %v317
      %1063 = vmatpush.msra.mxu0 %v316
      %1064 = vmatpush.msra.mxu0 %v315
      %1065 = vmatpush.msra.mxu0 %v314
      %1066 = vmatmul.f32.gmra.mxu0 %v1044
      %v1067 = vpop.f32.mrf.mxu0
      %v1068 = vadd.f32 0.0, %v1067
      %1069 = vmatmul.f32.gmra.mxu0 %v1046
      %v1070 = vpop.f32.mrf.mxu0
      %v1071 = vadd.f32 0.0, %v1070
      %1072 = vmatmul.f32.gmra.mxu0 %v1048
      %v1073 = vpop.f32.mrf.mxu0
      %v1074 = vadd.f32 0.0, %v1073
      %1075 = vdwg.mxu0
      %v1076 = vadd.f32 %v1031, %v1068
      %v1077 = vadd.f32 %v1034, %v1071
      %v1078 = vadd.f32 %v1037, %v1074
      %v1079 = vrot.slane %v964, 3
      %v1080 = vrot.slane %v965, 3
      %v1081 = vsel %vm500, %v1079, %v1080
      %v1082 = vrot.slane %v966, 3
      %v1083 = vsel %vm500, %v1080, %v1082
      %v1084 = vsel %vm394, %v1081, 0
      %v1086 = vsel %vm394, %v1083, 0
      %v1088 = vsel %vm394, %v1082, 0
      %1090 = vmatpush.msra.mxu0 0.0
      %1091 = vmatpush.msra.mxu0 0.0
      %1092 = vmatpush.msra.mxu0 0.0
      %1093 = vmatpush.msra.mxu0 0.0
      %1094 = vmatpush.msra.mxu0 0.0
      %1095 = vmatpush.msra.mxu0 0.0
      %1096 = vmatpush.msra.mxu0 0.0
      %1097 = vmatpush.msra.mxu0 0.0
      %1098 = vmatpush.msra.mxu0 0.0
      %1099 = vmatpush.msra.mxu0 0.0
      %1100 = vmatpush.msra.mxu0 0.0
      %1101 = vmatpush.msra.mxu0 0.0
      %1102 = vmatpush.msra.mxu0 %v321
      %1103 = vmatpush.msra.mxu0 %v320
      %1104 = vmatpush.msra.mxu0 %v319
      %1105 = vmatpush.msra.mxu0 %v318
      %1106 = vmatmul.f32.gmra.mxu0 %v1084
      %v1107 = vpop.f32.mrf.mxu0
      %v1108 = vadd.f32 0.0, %v1107
      %1109 = vmatmul.f32.gmra.mxu0 %v1086
      %v1110 = vpop.f32.mrf.mxu0
      %v1111 = vadd.f32 0.0, %v1110
      %1112 = vmatmul.f32.gmra.mxu0 %v1088
      %v1113 = vpop.f32.mrf.mxu0
      %v1114 = vadd.f32 0.0, %v1113
      %1115 = vdwg.mxu0
      %v1116 = vadd.f32 %v1076, %v1108
      %v1117 = vadd.f32 %v1077, %v1111
      %v1118 = vadd.f32 %v1078, %v1114
      %v1119 = vadd.f32 %v1116, %v714
      %v1120 = vadd.f32 %v1117, %v714
      %v1121 = vadd.f32 %v1118, %v714
      %vm1122 = vcmp.ge.f32.partialorder %v1119, 0.0
      %vm1123 = vcmp.ge.f32.partialorder %v1120, 0.0
      %vm1124 = vcmp.ge.f32.partialorder %v1121, 0.0
      %v1125 = vmul.f32 %v1119, 0.01
      %v1126 = vmul.f32 %v1120, 0.01
      %v1127 = vmul.f32 %v1121, 0.01
      %v1128 = vsel %vm1122, %v1119, %v1125
      %v1129 = vsel %vm1123, %v1120, %v1126
      %v1130 = vsel %vm1124, %v1121, %v1127
      %v1131 = vmul.f32 %v1128, %v727
      %v1132 = vmul.f32 %v1129, %v727
      %v1133 = vmul.f32 %v1130, %v727
      %v1134 = vadd.f32 %v1131, %v731
      %v1135 = vadd.f32 %v1132, %v731
      %v1136 = vadd.f32 %v1133, %v731
      %s1137 = scalar_lea.vmem %s285, 24
      %1138 = vst.msk [vmem:[%s1137] sm:$0xff] %vm394, %v1134
      %1139 = vst.msk [vmem:[%s1137 + $0x8] sm:$0xff] %vm394, %v1135
      %1140 = vst.msk [vmem:[%s1137 + $0x10] sm:$0x3] %vm737, %v1136
      %s1141 = scalar_lea.vmem %s278, 48
      %v1142 = vld [vmem:[%s1141] sm:$0xff]
      %v1143 = vld [vmem:[%s1141 + $0x8] sm:$0xff]
      %v1144 = vld [vmem:[%s1141 + $0x10] sm:$0xff]
      %1146 = vset.pattern.permute.xlu0 0
      %1147 = vperm.xlu0 %1146, %v1142
      %v1148 = vpop.permute.xlu0 %1147
      %1151 = vset.pattern.permute.xlu0 0
      %1152 = vperm.xlu0 %1151, %v1143
      %v1153 = vpop.permute.xlu0 %1152
      %1156 = vset.pattern.permute.xlu0 0
      %1157 = vperm.xlu0 %1156, %v1144
      %v1158 = vpop.permute.xlu0 %1157
      %v1160 = vmul.f32 %v1148, %v341
      %v1161 = vmul.f32 %v1153, %v341
      %v1162 = vmul.f32 %v1158, %v341
      %1163 = vset.pattern.permute.xlu0 1
      %1164 = vperm.xlu0 %1163, %v1142
      %v1165 = vpop.permute.xlu0 %1164
      %1167 = vset.pattern.permute.xlu0 1
      %1168 = vperm.xlu0 %1167, %v1143
      %v1169 = vpop.permute.xlu0 %1168
      %1171 = vset.pattern.permute.xlu0 1
      %1172 = vperm.xlu0 %1171, %v1144
      %v1173 = vpop.permute.xlu0 %1172
      %v1175 = vmul.f32 %v1165, %v357
      %v1176 = vmul.f32 %v1169, %v357
      %v1177 = vmul.f32 %v1173, %v357
      %v1178 = vadd.f32 %v1160, %v1175
      %v1179 = vadd.f32 %v1161, %v1176
      %v1180 = vadd.f32 %v1162, %v1177
      %v1181 = vadd.f32 %v1178, %v364
      %v1182 = vadd.f32 %v1179, %v364
      %v1183 = vadd.f32 %v1180, %v364
      %vm1184 = vcmp.ge.f32.partialorder %v1181, 0.0
      %vm1185 = vcmp.ge.f32.partialorder %v1182, 0.0
      %vm1186 = vcmp.ge.f32.partialorder %v1183, 0.0
      %v1187 = vmul.f32 %v1181, 0.01
      %v1188 = vmul.f32 %v1182, 0.01
      %v1189 = vmul.f32 %v1183, 0.01
      %v1190 = vsel %vm1184, %v1181, %v1187
      %v1191 = vsel %vm1185, %v1182, %v1188
      %v1192 = vsel %vm1186, %v1183, %v1189
      %v1193 = vmul.f32 %v1190, %v377
      %v1194 = vmul.f32 %v1191, %v377
      %v1195 = vmul.f32 %v1192, %v377
      %v1196 = vadd.f32 %v1193, %v381
      %v1197 = vadd.f32 %v1194, %v381
      %v1198 = vadd.f32 %v1195, %v381
      %v1202 = vrot.slane %v1196, 1
      %v1203 = vrot.slane %v1197, 1
      %v1204 = vsel %vm388, %v1202, %v1203
      %v1205 = vrot.slane %v1198, 1
      %v1206 = vsel %vm388, %v1203, %v1205
      %v1207 = vsel %vm394, %v1204, 0
      %v1209 = vsel %vm394, %v1206, 0
      %v1211 = vsel %vm394, %v1205, 0
      %1213 = vmatpush.msra.mxu0 0.0
      %1214 = vmatpush.msra.mxu0 0.0
      %1215 = vmatpush.msra.mxu0 0.0
      %1216 = vmatpush.msra.mxu0 0.0
      %1217 = vmatpush.msra.mxu0 0.0
      %1218 = vmatpush.msra.mxu0 0.0
      %1219 = vmatpush.msra.mxu0 0.0
      %1220 = vmatpush.msra.mxu0 0.0
      %1221 = vmatpush.msra.mxu0 0.0
      %1222 = vmatpush.msra.mxu0 0.0
      %1223 = vmatpush.msra.mxu0 0.0
      %1224 = vmatpush.msra.mxu0 0.0
      %1225 = vmatpush.msra.mxu0 %v296
      %1226 = vmatpush.msra.mxu0 %v295
      %1227 = vmatpush.msra.mxu0 %v294
      %1228 = vmatpush.msra.mxu0 %v293
      %1229 = vmatmul.f32.gmra.mxu0 %v1207
      %v1230 = vpop.f32.mrf.mxu0
      %v1231 = vadd.f32 0.0, %v1230
      %1232 = vmatmul.f32.gmra.mxu0 %v1209
      %v1233 = vpop.f32.mrf.mxu0
      %v1234 = vadd.f32 0.0, %v1233
      %1235 = vmatmul.f32.gmra.mxu0 %v1211
      %v1236 = vpop.f32.mrf.mxu0
      %v1237 = vadd.f32 0.0, %v1236
      %1238 = vdwg.mxu0
      %v1239 = vsel %vm394, %v1196, 0
      %v1241 = vsel %vm394, %v1197, 0
      %v1243 = vsel %vm394, %v1198, 0
      %1245 = vmatpush.msra.mxu0 0.0
      %1246 = vmatpush.msra.mxu0 0.0
      %1247 = vmatpush.msra.mxu0 0.0
      %1248 = vmatpush.msra.mxu0 0.0
      %1249 = vmatpush.msra.mxu0 0.0
      %1250 = vmatpush.msra.mxu0 0.0
      %1251 = vmatpush.msra.mxu0 0.0
      %1252 = vmatpush.msra.mxu0 0.0
      %1253 = vmatpush.msra.mxu0 0.0
      %1254 = vmatpush.msra.mxu0 0.0
      %1255 = vmatpush.msra.mxu0 0.0
      %1256 = vmatpush.msra.mxu0 0.0
      %1257 = vmatpush.msra.mxu0 %v292
      %1258 = vmatpush.msra.mxu0 %v291
      %1259 = vmatpush.msra.mxu0 %v290
      %1260 = vmatpush.msra.mxu0 %v289
      %1261 = vmatmul.f32.gmra.mxu0 %v1239
      %v1262 = vpop.f32.mrf.mxu0
      %v1263 = vadd.f32 %v1231, %v1262
      %1264 = vmatmul.f32.gmra.mxu0 %v1241
      %v1265 = vpop.f32.mrf.mxu0
      %v1266 = vadd.f32 %v1234, %v1265
      %1267 = vmatmul.f32.gmra.mxu0 %v1243
      %v1268 = vpop.f32.mrf.mxu0
      %v1269 = vadd.f32 %v1237, %v1268
      %1270 = vdwg.mxu0
      %v1271 = vrot.slane %v1196, 2
      %v1272 = vrot.slane %v1197, 2
      %v1273 = vsel %vm459, %v1271, %v1272
      %v1274 = vrot.slane %v1198, 2
      %v1275 = vsel %vm459, %v1272, %v1274
      %v1276 = vsel %vm394, %v1273, 0
      %v1278 = vsel %vm394, %v1275, 0
      %v1280 = vsel %vm394, %v1274, 0
      %1282 = vmatpush.msra.mxu0 0.0
      %1283 = vmatpush.msra.mxu0 0.0
      %1284 = vmatpush.msra.mxu0 0.0
      %1285 = vmatpush.msra.mxu0 0.0
      %1286 = vmatpush.msra.mxu0 0.0
      %1287 = vmatpush.msra.mxu0 0.0
      %1288 = vmatpush.msra.mxu0 0.0
      %1289 = vmatpush.msra.mxu0 0.0
      %1290 = vmatpush.msra.mxu0 0.0
      %1291 = vmatpush.msra.mxu0 0.0
      %1292 = vmatpush.msra.mxu0 0.0
      %1293 = vmatpush.msra.mxu0 0.0
      %1294 = vmatpush.msra.mxu0 %v300
      %1295 = vmatpush.msra.mxu0 %v299
      %1296 = vmatpush.msra.mxu0 %v298
      %1297 = vmatpush.msra.mxu0 %v297
      %1298 = vmatmul.f32.gmra.mxu0 %v1276
      %v1299 = vpop.f32.mrf.mxu0
      %v1300 = vadd.f32 0.0, %v1299
      %1301 = vmatmul.f32.gmra.mxu0 %v1278
      %v1302 = vpop.f32.mrf.mxu0
      %v1303 = vadd.f32 0.0, %v1302
      %1304 = vmatmul.f32.gmra.mxu0 %v1280
      %v1305 = vpop.f32.mrf.mxu0
      %v1306 = vadd.f32 0.0, %v1305
      %1307 = vdwg.mxu0
      %v1308 = vadd.f32 %v1263, %v1300
      %v1309 = vadd.f32 %v1266, %v1303
      %v1310 = vadd.f32 %v1269, %v1306
      %v1311 = vrot.slane %v1196, 3
      %v1312 = vrot.slane %v1197, 3
      %v1313 = vsel %vm500, %v1311, %v1312
      %v1314 = vrot.slane %v1198, 3
      %v1315 = vsel %vm500, %v1312, %v1314
      %v1316 = vsel %vm394, %v1313, 0
      %v1318 = vsel %vm394, %v1315, 0
      %v1320 = vsel %vm394, %v1314, 0
      %1322 = vmatpush.msra.mxu0 0.0
      %1323 = vmatpush.msra.mxu0 0.0
      %1324 = vmatpush.msra.mxu0 0.0
      %1325 = vmatpush.msra.mxu0 0.0
      %1326 = vmatpush.msra.mxu0 0.0
      %1327 = vmatpush.msra.mxu0 0.0
      %1328 = vmatpush.msra.mxu0 0.0
      %1329 = vmatpush.msra.mxu0 0.0
      %1330 = vmatpush.msra.mxu0 0.0
      %1331 = vmatpush.msra.mxu0 0.0
      %1332 = vmatpush.msra.mxu0 0.0
      %1333 = vmatpush.msra.mxu0 0.0
      %1334 = vmatpush.msra.mxu0 %v304
      %1335 = vmatpush.msra.mxu0 %v303
      %1336 = vmatpush.msra.mxu0 %v302
      %1337 = vmatpush.msra.mxu0 %v301
      %1338 = vmatmul.f32.gmra.mxu0 %v1316
      %v1339 = vpop.f32.mrf.mxu0
      %v1340 = vadd.f32 0.0, %v1339
      %1341 = vmatmul.f32.gmra.mxu0 %v1318
      %v1342 = vpop.f32.mrf.mxu0
      %v1343 = vadd.f32 0.0, %v1342
      %1344 = vmatmul.f32.gmra.mxu0 %v1320
      %v1345 = vpop.f32.mrf.mxu0
      %v1346 = vadd.f32 0.0, %v1345
      %1347 = vdwg.mxu0
      %v1348 = vadd.f32 %v1308, %v1340
      %v1349 = vadd.f32 %v1309, %v1343
      %v1350 = vadd.f32 %v1310, %v1346
      %v1351 = vadd.f32 %v1348, %v541
      %v1352 = vadd.f32 %v1349, %v541
      %v1353 = vadd.f32 %v1350, %v541
      %vm1354 = vcmp.ge.f32.partialorder %v1351, 0.0
      %vm1355 = vcmp.ge.f32.partialorder %v1352, 0.0
      %vm1356 = vcmp.ge.f32.partialorder %v1353, 0.0
      %v1357 = vmul.f32 %v1351, 0.01
      %v1358 = vmul.f32 %v1352, 0.01
      %v1359 = vmul.f32 %v1353, 0.01
      %v1360 = vsel %vm1354, %v1351, %v1357
      %v1361 = vsel %vm1355, %v1352, %v1358
      %v1362 = vsel %vm1356, %v1353, %v1359
      %v1363 = vmul.f32 %v1360, %v554
      %v1364 = vmul.f32 %v1361, %v554
      %v1365 = vmul.f32 %v1362, %v554
      %v1366 = vadd.f32 %v1363, %v558
      %v1367 = vadd.f32 %v1364, %v558
      %v1368 = vadd.f32 %v1365, %v558
      %v1372 = vrot.slane %v1366, 1
      %v1373 = vrot.slane %v1367, 1
      %v1374 = vsel %vm388, %v1372, %v1373
      %v1375 = vrot.slane %v1368, 1
      %v1376 = vsel %vm388, %v1373, %v1375
      %v1377 = vsel %vm394, %v1374, 0
      %v1379 = vsel %vm394, %v1376, 0
      %v1381 = vsel %vm394, %v1375, 0
      %1383 = vmatpush.msra.mxu0 0.0
      %1384 = vmatpush.msra.mxu0 0.0
      %1385 = vmatpush.msra.mxu0 0.0
      %1386 = vmatpush.msra.mxu0 0.0
      %1387 = vmatpush.msra.mxu0 0.0
      %1388 = vmatpush.msra.mxu0 0.0
      %1389 = vmatpush.msra.mxu0 0.0
      %1390 = vmatpush.msra.mxu0 0.0
      %1391 = vmatpush.msra.mxu0 0.0
      %1392 = vmatpush.msra.mxu0 0.0
      %1393 = vmatpush.msra.mxu0 0.0
      %1394 = vmatpush.msra.mxu0 0.0
      %1395 = vmatpush.msra.mxu0 %v313
      %1396 = vmatpush.msra.mxu0 %v312
      %1397 = vmatpush.msra.mxu0 %v311
      %1398 = vmatpush.msra.mxu0 %v310
      %1399 = vmatmul.f32.gmra.mxu0 %v1377
      %v1400 = vpop.f32.mrf.mxu0
      %v1401 = vadd.f32 0.0, %v1400
      %1402 = vmatmul.f32.gmra.mxu0 %v1379
      %v1403 = vpop.f32.mrf.mxu0
      %v1404 = vadd.f32 0.0, %v1403
      %1405 = vmatmul.f32.gmra.mxu0 %v1381
      %v1406 = vpop.f32.mrf.mxu0
      %v1407 = vadd.f32 0.0, %v1406
      %1408 = vdwg.mxu0
      %v1409 = vsel %vm394, %v1366, 0
      %v1411 = vsel %vm394, %v1367, 0
      %v1413 = vsel %vm394, %v1368, 0
      %1415 = vmatpush.msra.mxu0 0.0
      %1416 = vmatpush.msra.mxu0 0.0
      %1417 = vmatpush.msra.mxu0 0.0
      %1418 = vmatpush.msra.mxu0 0.0
      %1419 = vmatpush.msra.mxu0 0.0
      %1420 = vmatpush.msra.mxu0 0.0
      %1421 = vmatpush.msra.mxu0 0.0
      %1422 = vmatpush.msra.mxu0 0.0
      %1423 = vmatpush.msra.mxu0 0.0
      %1424 = vmatpush.msra.mxu0 0.0
      %1425 = vmatpush.msra.mxu0 0.0
      %1426 = vmatpush.msra.mxu0 0.0
      %1427 = vmatpush.msra.mxu0 %v309
      %1428 = vmatpush.msra.mxu0 %v308
      %1429 = vmatpush.msra.mxu0 %v307
      %1430 = vmatpush.msra.mxu0 %v306
      %1431 = vmatmul.f32.gmra.mxu0 %v1409
      %v1432 = vpop.f32.mrf.mxu0
      %v1433 = vadd.f32 %v1401, %v1432
      %1434 = vmatmul.f32.gmra.mxu0 %v1411
      %v1435 = vpop.f32.mrf.mxu0
      %v1436 = vadd.f32 %v1404, %v1435
      %1437 = vmatmul.f32.gmra.mxu0 %v1413
      %v1438 = vpop.f32.mrf.mxu0
      %v1439 = vadd.f32 %v1407, %v1438
      %1440 = vdwg.mxu0
      %v1441 = vrot.slane %v1366, 2
      %v1442 = vrot.slane %v1367, 2
      %v1443 = vsel %vm459, %v1441, %v1442
      %v1444 = vrot.slane %v1368, 2
      %v1445 = vsel %vm459, %v1442, %v1444
      %v1446 = vsel %vm394, %v1443, 0
      %v1448 = vsel %vm394, %v1445, 0
      %v1450 = vsel %vm394, %v1444, 0
      %1452 = vmatpush.msra.mxu0 0.0
      %1453 = vmatpush.msra.mxu0 0.0
      %1454 = vmatpush.msra.mxu0 0.0
      %1455 = vmatpush.msra.mxu0 0.0
      %1456 = vmatpush.msra.mxu0 0.0
      %1457 = vmatpush.msra.mxu0 0.0
      %1458 = vmatpush.msra.mxu0 0.0
      %1459 = vmatpush.msra.mxu0 0.0
      %1460 = vmatpush.msra.mxu0 0.0
      %1461 = vmatpush.msra.mxu0 0.0
      %1462 = vmatpush.msra.mxu0 0.0
      %1463 = vmatpush.msra.mxu0 0.0
      %1464 = vmatpush.msra.mxu0 %v317
      %1465 = vmatpush.msra.mxu0 %v316
      %1466 = vmatpush.msra.mxu0 %v315
      %1467 = vmatpush.msra.mxu0 %v314
      %1468 = vmatmul.f32.gmra.mxu0 %v1446
      %v1469 = vpop.f32.mrf.mxu0
      %v1470 = vadd.f32 0.0, %v1469
      %1471 = vmatmul.f32.gmra.mxu0 %v1448
      %v1472 = vpop.f32.mrf.mxu0
      %v1473 = vadd.f32 0.0, %v1472
      %1474 = vmatmul.f32.gmra.mxu0 %v1450
      %v1475 = vpop.f32.mrf.mxu0
      %v1476 = vadd.f32 0.0, %v1475
      %1477 = vdwg.mxu0
      %v1478 = vadd.f32 %v1433, %v1470
      %v1479 = vadd.f32 %v1436, %v1473
      %v1480 = vadd.f32 %v1439, %v1476
      %v1481 = vrot.slane %v1366, 3
      %v1482 = vrot.slane %v1367, 3
      %v1483 = vsel %vm500, %v1481, %v1482
      %v1484 = vrot.slane %v1368, 3
      %v1485 = vsel %vm500, %v1482, %v1484
      %v1486 = vsel %vm394, %v1483, 0
      %v1488 = vsel %vm394, %v1485, 0
      %v1490 = vsel %vm394, %v1484, 0
      %1492 = vmatpush.msra.mxu0 0.0
      %1493 = vmatpush.msra.mxu0 0.0
      %1494 = vmatpush.msra.mxu0 0.0
      %1495 = vmatpush.msra.mxu0 0.0
      %1496 = vmatpush.msra.mxu0 0.0
      %1497 = vmatpush.msra.mxu0 0.0
      %1498 = vmatpush.msra.mxu0 0.0
      %1499 = vmatpush.msra.mxu0 0.0
      %1500 = vmatpush.msra.mxu0 0.0
      %1501 = vmatpush.msra.mxu0 0.0
      %1502 = vmatpush.msra.mxu0 0.0
      %1503 = vmatpush.msra.mxu0 0.0
      %1504 = vmatpush.msra.mxu0 %v321
      %1505 = vmatpush.msra.mxu0 %v320
      %1506 = vmatpush.msra.mxu0 %v319
      %1507 = vmatpush.msra.mxu0 %v318
      %1508 = vmatmul.f32.gmra.mxu0 %v1486
      %v1509 = vpop.f32.mrf.mxu0
      %v1510 = vadd.f32 0.0, %v1509
      %1511 = vmatmul.f32.gmra.mxu0 %v1488
      %v1512 = vpop.f32.mrf.mxu0
      %v1513 = vadd.f32 0.0, %v1512
      %1514 = vmatmul.f32.gmra.mxu0 %v1490
      %v1515 = vpop.f32.mrf.mxu0
      %v1516 = vadd.f32 0.0, %v1515
      %1517 = vdwg.mxu0
      %v1518 = vadd.f32 %v1478, %v1510
      %v1519 = vadd.f32 %v1479, %v1513
      %v1520 = vadd.f32 %v1480, %v1516
      %v1521 = vadd.f32 %v1518, %v714
      %v1522 = vadd.f32 %v1519, %v714
      %v1523 = vadd.f32 %v1520, %v714
      %vm1524 = vcmp.ge.f32.partialorder %v1521, 0.0
      %vm1525 = vcmp.ge.f32.partialorder %v1522, 0.0
      %vm1526 = vcmp.ge.f32.partialorder %v1523, 0.0
      %v1527 = vmul.f32 %v1521, 0.01
      %v1528 = vmul.f32 %v1522, 0.01
      %v1529 = vmul.f32 %v1523, 0.01
      %v1530 = vsel %vm1524, %v1521, %v1527
      %v1531 = vsel %vm1525, %v1522, %v1528
      %v1532 = vsel %vm1526, %v1523, %v1529
      %v1533 = vmul.f32 %v1530, %v727
      %v1534 = vmul.f32 %v1531, %v727
      %v1535 = vmul.f32 %v1532, %v727
      %v1536 = vadd.f32 %v1533, %v731
      %v1537 = vadd.f32 %v1534, %v731
      %v1538 = vadd.f32 %v1535, %v731
      %s1539 = scalar_lea.vmem %s285, 48
      %1540 = vst.msk [vmem:[%s1539] sm:$0xff] %vm394, %v1536
      %1541 = vst.msk [vmem:[%s1539 + $0x8] sm:$0xff] %vm394, %v1537
      %1542 = vst.msk [vmem:[%s1539 + $0x10] sm:$0x3] %vm737, %v1538
      %s1543 = scalar_lea.vmem %s278, 72
      %v1544 = vld [vmem:[%s1543] sm:$0xff]
      %v1545 = vld [vmem:[%s1543 + $0x8] sm:$0xff]
      %v1546 = vld [vmem:[%s1543 + $0x10] sm:$0xff]
      %1548 = vset.pattern.permute.xlu0 0
      %1549 = vperm.xlu0 %1548, %v1544
      %v1550 = vpop.permute.xlu0 %1549
      %1553 = vset.pattern.permute.xlu0 0
      %1554 = vperm.xlu0 %1553, %v1545
      %v1555 = vpop.permute.xlu0 %1554
      %1558 = vset.pattern.permute.xlu0 0
      %1559 = vperm.xlu0 %1558, %v1546
      %v1560 = vpop.permute.xlu0 %1559
      %v1562 = vmul.f32 %v1550, %v341
      %v1563 = vmul.f32 %v1555, %v341
      %v1564 = vmul.f32 %v1560, %v341
      %1565 = vset.pattern.permute.xlu0 1
      %1566 = vperm.xlu0 %1565, %v1544
      %v1567 = vpop.permute.xlu0 %1566
      %1569 = vset.pattern.permute.xlu0 1
      %1570 = vperm.xlu0 %1569, %v1545
      %v1571 = vpop.permute.xlu0 %1570
      %1573 = vset.pattern.permute.xlu0 1
      %1574 = vperm.xlu0 %1573, %v1546
      %v1575 = vpop.permute.xlu0 %1574
      %v1577 = vmul.f32 %v1567, %v357
      %v1578 = vmul.f32 %v1571, %v357
      %v1579 = vmul.f32 %v1575, %v357
      %v1580 = vadd.f32 %v1562, %v1577
      %v1581 = vadd.f32 %v1563, %v1578
      %v1582 = vadd.f32 %v1564, %v1579
      %v1583 = vadd.f32 %v1580, %v364
      %v1584 = vadd.f32 %v1581, %v364
      %v1585 = vadd.f32 %v1582, %v364
      %vm1586 = vcmp.ge.f32.partialorder %v1583, 0.0
      %vm1587 = vcmp.ge.f32.partialorder %v1584, 0.0
      %vm1588 = vcmp.ge.f32.partialorder %v1585, 0.0
      %v1589 = vmul.f32 %v1583, 0.01
      %v1590 = vmul.f32 %v1584, 0.01
      %v1591 = vmul.f32 %v1585, 0.01
      %v1592 = vsel %vm1586, %v1583, %v1589
      %v1593 = vsel %vm1587, %v1584, %v1590
      %v1594 = vsel %vm1588, %v1585, %v1591
      %v1595 = vmul.f32 %v1592, %v377
      %v1596 = vmul.f32 %v1593, %v377
      %v1597 = vmul.f32 %v1594, %v377
      %v1598 = vadd.f32 %v1595, %v381
      %v1599 = vadd.f32 %v1596, %v381
      %v1600 = vadd.f32 %v1597, %v381
      %v1604 = vrot.slane %v1598, 1
      %v1605 = vrot.slane %v1599, 1
      %v1606 = vsel %vm388, %v1604, %v1605
      %v1607 = vrot.slane %v1600, 1
      %v1608 = vsel %vm388, %v1605, %v1607
      %v1609 = vsel %vm394, %v1606, 0
      %v1611 = vsel %vm394, %v1608, 0
      %v1613 = vsel %vm394, %v1607, 0
      %1615 = vmatpush.msra.mxu0 0.0
      %1616 = vmatpush.msra.mxu0 0.0
      %1617 = vmatpush.msra.mxu0 0.0
      %1618 = vmatpush.msra.mxu0 0.0
      %1619 = vmatpush.msra.mxu0 0.0
      %1620 = vmatpush.msra.mxu0 0.0
      %1621 = vmatpush.msra.mxu0 0.0
      %1622 = vmatpush.msra.mxu0 0.0
      %1623 = vmatpush.msra.mxu0 0.0
      %1624 = vmatpush.msra.mxu0 0.0
      %1625 = vmatpush.msra.mxu0 0.0
      %1626 = vmatpush.msra.mxu0 0.0
      %1627 = vmatpush.msra.mxu0 %v296
      %1628 = vmatpush.msra.mxu0 %v295
      %1629 = vmatpush.msra.mxu0 %v294
      %1630 = vmatpush.msra.mxu0 %v293
      %1631 = vmatmul.f32.gmra.mxu0 %v1609
      %v1632 = vpop.f32.mrf.mxu0
      %v1633 = vadd.f32 0.0, %v1632
      %1634 = vmatmul.f32.gmra.mxu0 %v1611
      %v1635 = vpop.f32.mrf.mxu0
      %v1636 = vadd.f32 0.0, %v1635
      %1637 = vmatmul.f32.gmra.mxu0 %v1613
      %v1638 = vpop.f32.mrf.mxu0
      %v1639 = vadd.f32 0.0, %v1638
      %1640 = vdwg.mxu0
      %v1641 = vsel %vm394, %v1598, 0
      %v1643 = vsel %vm394, %v1599, 0
      %v1645 = vsel %vm394, %v1600, 0
      %1647 = vmatpush.msra.mxu0 0.0
      %1648 = vmatpush.msra.mxu0 0.0
      %1649 = vmatpush.msra.mxu0 0.0
      %1650 = vmatpush.msra.mxu0 0.0
      %1651 = vmatpush.msra.mxu0 0.0
      %1652 = vmatpush.msra.mxu0 0.0
      %1653 = vmatpush.msra.mxu0 0.0
      %1654 = vmatpush.msra.mxu0 0.0
      %1655 = vmatpush.msra.mxu0 0.0
      %1656 = vmatpush.msra.mxu0 0.0
      %1657 = vmatpush.msra.mxu0 0.0
      %1658 = vmatpush.msra.mxu0 0.0
      %1659 = vmatpush.msra.mxu0 %v292
      %1660 = vmatpush.msra.mxu0 %v291
      %1661 = vmatpush.msra.mxu0 %v290
      %1662 = vmatpush.msra.mxu0 %v289
      %1663 = vmatmul.f32.gmra.mxu0 %v1641
      %v1664 = vpop.f32.mrf.mxu0
      %v1665 = vadd.f32 %v1633, %v1664
      %1666 = vmatmul.f32.gmra.mxu0 %v1643
      %v1667 = vpop.f32.mrf.mxu0
      %v1668 = vadd.f32 %v1636, %v1667
      %1669 = vmatmul.f32.gmra.mxu0 %v1645
      %v1670 = vpop.f32.mrf.mxu0
      %v1671 = vadd.f32 %v1639, %v1670
      %1672 = vdwg.mxu0
      %v1673 = vrot.slane %v1598, 2
      %v1674 = vrot.slane %v1599, 2
      %v1675 = vsel %vm459, %v1673, %v1674
      %v1676 = vrot.slane %v1600, 2
      %v1677 = vsel %vm459, %v1674, %v1676
      %v1678 = vsel %vm394, %v1675, 0
      %v1680 = vsel %vm394, %v1677, 0
      %v1682 = vsel %vm394, %v1676, 0
      %1684 = vmatpush.msra.mxu0 0.0
      %1685 = vmatpush.msra.mxu0 0.0
      %1686 = vmatpush.msra.mxu0 0.0
      %1687 = vmatpush.msra.mxu0 0.0
      %1688 = vmatpush.msra.mxu0 0.0
      %1689 = vmatpush.msra.mxu0 0.0
      %1690 = vmatpush.msra.mxu0 0.0
      %1691 = vmatpush.msra.mxu0 0.0
      %1692 = vmatpush.msra.mxu0 0.0
      %1693 = vmatpush.msra.mxu0 0.0
      %1694 = vmatpush.msra.mxu0 0.0
      %1695 = vmatpush.msra.mxu0 0.0
      %1696 = vmatpush.msra.mxu0 %v300
      %1697 = vmatpush.msra.mxu0 %v299
      %1698 = vmatpush.msra.mxu0 %v298
      %1699 = vmatpush.msra.mxu0 %v297
      %1700 = vmatmul.f32.gmra.mxu0 %v1678
      %v1701 = vpop.f32.mrf.mxu0
      %v1702 = vadd.f32 0.0, %v1701
      %1703 = vmatmul.f32.gmra.mxu0 %v1680
      %v1704 = vpop.f32.mrf.mxu0
      %v1705 = vadd.f32 0.0, %v1704
      %1706 = vmatmul.f32.gmra.mxu0 %v1682
      %v1707 = vpop.f32.mrf.mxu0
      %v1708 = vadd.f32 0.0, %v1707
      %1709 = vdwg.mxu0
      %v1710 = vadd.f32 %v1665, %v1702
      %v1711 = vadd.f32 %v1668, %v1705
      %v1712 = vadd.f32 %v1671, %v1708
      %v1713 = vrot.slane %v1598, 3
      %v1714 = vrot.slane %v1599, 3
      %v1715 = vsel %vm500, %v1713, %v1714
      %v1716 = vrot.slane %v1600, 3
      %v1717 = vsel %vm500, %v1714, %v1716
      %v1718 = vsel %vm394, %v1715, 0
      %v1720 = vsel %vm394, %v1717, 0
      %v1722 = vsel %vm394, %v1716, 0
      %1724 = vmatpush.msra.mxu0 0.0
      %1725 = vmatpush.msra.mxu0 0.0
      %1726 = vmatpush.msra.mxu0 0.0
      %1727 = vmatpush.msra.mxu0 0.0
      %1728 = vmatpush.msra.mxu0 0.0
      %1729 = vmatpush.msra.mxu0 0.0
      %1730 = vmatpush.msra.mxu0 0.0
      %1731 = vmatpush.msra.mxu0 0.0
      %1732 = vmatpush.msra.mxu0 0.0
      %1733 = vmatpush.msra.mxu0 0.0
      %1734 = vmatpush.msra.mxu0 0.0
      %1735 = vmatpush.msra.mxu0 0.0
      %1736 = vmatpush.msra.mxu0 %v304
      %1737 = vmatpush.msra.mxu0 %v303
      %1738 = vmatpush.msra.mxu0 %v302
      %1739 = vmatpush.msra.mxu0 %v301
      %1740 = vmatmul.f32.gmra.mxu0 %v1718
      %v1741 = vpop.f32.mrf.mxu0
      %v1742 = vadd.f32 0.0, %v1741
      %1743 = vmatmul.f32.gmra.mxu0 %v1720
      %v1744 = vpop.f32.mrf.mxu0
      %v1745 = vadd.f32 0.0, %v1744
      %1746 = vmatmul.f32.gmra.mxu0 %v1722
      %v1747 = vpop.f32.mrf.mxu0
      %v1748 = vadd.f32 0.0, %v1747
      %1749 = vdwg.mxu0
      %v1750 = vadd.f32 %v1710, %v1742
      %v1751 = vadd.f32 %v1711, %v1745
      %v1752 = vadd.f32 %v1712, %v1748
      %v1753 = vadd.f32 %v1750, %v541
      %v1754 = vadd.f32 %v1751, %v541
      %v1755 = vadd.f32 %v1752, %v541
      %vm1756 = vcmp.ge.f32.partialorder %v1753, 0.0
      %vm1757 = vcmp.ge.f32.partialorder %v1754, 0.0
      %vm1758 = vcmp.ge.f32.partialorder %v1755, 0.0
      %v1759 = vmul.f32 %v1753, 0.01
      %v1760 = vmul.f32 %v1754, 0.01
      %v1761 = vmul.f32 %v1755, 0.01
      %v1762 = vsel %vm1756, %v1753, %v1759
      %v1763 = vsel %vm1757, %v1754, %v1760
      %v1764 = vsel %vm1758, %v1755, %v1761
      %v1765 = vmul.f32 %v1762, %v554
      %v1766 = vmul.f32 %v1763, %v554
      %v1767 = vmul.f32 %v1764, %v554
      %v1768 = vadd.f32 %v1765, %v558
      %v1769 = vadd.f32 %v1766, %v558
      %v1770 = vadd.f32 %v1767, %v558
      %v1774 = vrot.slane %v1768, 1
      %v1775 = vrot.slane %v1769, 1
      %v1776 = vsel %vm388, %v1774, %v1775
      %v1777 = vrot.slane %v1770, 1
      %v1778 = vsel %vm388, %v1775, %v1777
      %v1779 = vsel %vm394, %v1776, 0
      %v1781 = vsel %vm394, %v1778, 0
      %v1783 = vsel %vm394, %v1777, 0
      %1785 = vmatpush.msra.mxu0 0.0
      %1786 = vmatpush.msra.mxu0 0.0
      %1787 = vmatpush.msra.mxu0 0.0
      %1788 = vmatpush.msra.mxu0 0.0
      %1789 = vmatpush.msra.mxu0 0.0
      %1790 = vmatpush.msra.mxu0 0.0
      %1791 = vmatpush.msra.mxu0 0.0
      %1792 = vmatpush.msra.mxu0 0.0
      %1793 = vmatpush.msra.mxu0 0.0
      %1794 = vmatpush.msra.mxu0 0.0
      %1795 = vmatpush.msra.mxu0 0.0
      %1796 = vmatpush.msra.mxu0 0.0
      %1797 = vmatpush.msra.mxu0 %v313
      %1798 = vmatpush.msra.mxu0 %v312
      %1799 = vmatpush.msra.mxu0 %v311
      %1800 = vmatpush.msra.mxu0 %v310
      %1801 = vmatmul.f32.gmra.mxu0 %v1779
      %v1802 = vpop.f32.mrf.mxu0
      %v1803 = vadd.f32 0.0, %v1802
      %1804 = vmatmul.f32.gmra.mxu0 %v1781
      %v1805 = vpop.f32.mrf.mxu0
      %v1806 = vadd.f32 0.0, %v1805
      %1807 = vmatmul.f32.gmra.mxu0 %v1783
      %v1808 = vpop.f32.mrf.mxu0
      %v1809 = vadd.f32 0.0, %v1808
      %1810 = vdwg.mxu0
      %v1811 = vsel %vm394, %v1768, 0
      %v1813 = vsel %vm394, %v1769, 0
      %v1815 = vsel %vm394, %v1770, 0
      %1817 = vmatpush.msra.mxu0 0.0
      %1818 = vmatpush.msra.mxu0 0.0
      %1819 = vmatpush.msra.mxu0 0.0
      %1820 = vmatpush.msra.mxu0 0.0
      %1821 = vmatpush.msra.mxu0 0.0
      %1822 = vmatpush.msra.mxu0 0.0
      %1823 = vmatpush.msra.mxu0 0.0
      %1824 = vmatpush.msra.mxu0 0.0
      %1825 = vmatpush.msra.mxu0 0.0
      %1826 = vmatpush.msra.mxu0 0.0
      %1827 = vmatpush.msra.mxu0 0.0
      %1828 = vmatpush.msra.mxu0 0.0
      %1829 = vmatpush.msra.mxu0 %v309
      %1830 = vmatpush.msra.mxu0 %v308
      %1831 = vmatpush.msra.mxu0 %v307
      %1832 = vmatpush.msra.mxu0 %v306
      %1833 = vmatmul.f32.gmra.mxu0 %v1811
      %v1834 = vpop.f32.mrf.mxu0
      %v1835 = vadd.f32 %v1803, %v1834
      %1836 = vmatmul.f32.gmra.mxu0 %v1813
      %v1837 = vpop.f32.mrf.mxu0
      %v1838 = vadd.f32 %v1806, %v1837
      %1839 = vmatmul.f32.gmra.mxu0 %v1815
      %v1840 = vpop.f32.mrf.mxu0
      %v1841 = vadd.f32 %v1809, %v1840
      %1842 = vdwg.mxu0
      %v1843 = vrot.slane %v1768, 2
      %v1844 = vrot.slane %v1769, 2
      %v1845 = vsel %vm459, %v1843, %v1844
      %v1846 = vrot.slane %v1770, 2
      %v1847 = vsel %vm459, %v1844, %v1846
      %v1848 = vsel %vm394, %v1845, 0
      %v1850 = vsel %vm394, %v1847, 0
      %v1852 = vsel %vm394, %v1846, 0
      %1854 = vmatpush.msra.mxu0 0.0
      %1855 = vmatpush.msra.mxu0 0.0
      %1856 = vmatpush.msra.mxu0 0.0
      %1857 = vmatpush.msra.mxu0 0.0
      %1858 = vmatpush.msra.mxu0 0.0
      %1859 = vmatpush.msra.mxu0 0.0
      %1860 = vmatpush.msra.mxu0 0.0
      %1861 = vmatpush.msra.mxu0 0.0
      %1862 = vmatpush.msra.mxu0 0.0
      %1863 = vmatpush.msra.mxu0 0.0
      %1864 = vmatpush.msra.mxu0 0.0
      %1865 = vmatpush.msra.mxu0 0.0
      %1866 = vmatpush.msra.mxu0 %v317
      %1867 = vmatpush.msra.mxu0 %v316
      %1868 = vmatpush.msra.mxu0 %v315
      %1869 = vmatpush.msra.mxu0 %v314
      %1870 = vmatmul.f32.gmra.mxu0 %v1848
      %v1871 = vpop.f32.mrf.mxu0
      %v1872 = vadd.f32 0.0, %v1871
      %1873 = vmatmul.f32.gmra.mxu0 %v1850
      %v1874 = vpop.f32.mrf.mxu0
      %v1875 = vadd.f32 0.0, %v1874
      %1876 = vmatmul.f32.gmra.mxu0 %v1852
      %v1877 = vpop.f32.mrf.mxu0
      %v1878 = vadd.f32 0.0, %v1877
      %1879 = vdwg.mxu0
      %v1880 = vadd.f32 %v1835, %v1872
      %v1881 = vadd.f32 %v1838, %v1875
      %v1882 = vadd.f32 %v1841, %v1878
      %v1883 = vrot.slane %v1768, 3
      %v1884 = vrot.slane %v1769, 3
      %v1885 = vsel %vm500, %v1883, %v1884
      %v1886 = vrot.slane %v1770, 3
      %v1887 = vsel %vm500, %v1884, %v1886
      %v1888 = vsel %vm394, %v1885, 0
      %v1890 = vsel %vm394, %v1887, 0
      %v1892 = vsel %vm394, %v1886, 0
      %1894 = vmatpush.msra.mxu0 0.0
      %1895 = vmatpush.msra.mxu0 0.0
      %1896 = vmatpush.msra.mxu0 0.0
      %1897 = vmatpush.msra.mxu0 0.0
      %1898 = vmatpush.msra.mxu0 0.0
      %1899 = vmatpush.msra.mxu0 0.0
      %1900 = vmatpush.msra.mxu0 0.0
      %1901 = vmatpush.msra.mxu0 0.0
      %1902 = vmatpush.msra.mxu0 0.0
      %1903 = vmatpush.msra.mxu0 0.0
      %1904 = vmatpush.msra.mxu0 0.0
      %1905 = vmatpush.msra.mxu0 0.0
      %1906 = vmatpush.msra.mxu0 %v321
      %1907 = vmatpush.msra.mxu0 %v320
      %1908 = vmatpush.msra.mxu0 %v319
      %1909 = vmatpush.msra.mxu0 %v318
      %1910 = vmatmul.f32.gmra.mxu0 %v1888
      %v1911 = vpop.f32.mrf.mxu0
      %v1912 = vadd.f32 0.0, %v1911
      %1913 = vmatmul.f32.gmra.mxu0 %v1890
      %v1914 = vpop.f32.mrf.mxu0
      %v1915 = vadd.f32 0.0, %v1914
      %1916 = vmatmul.f32.gmra.mxu0 %v1892
      %v1917 = vpop.f32.mrf.mxu0
      %v1918 = vadd.f32 0.0, %v1917
      %1919 = vdwg.mxu0
      %v1920 = vadd.f32 %v1880, %v1912
      %v1921 = vadd.f32 %v1881, %v1915
      %v1922 = vadd.f32 %v1882, %v1918
      %v1923 = vadd.f32 %v1920, %v714
      %v1924 = vadd.f32 %v1921, %v714
      %v1925 = vadd.f32 %v1922, %v714
      %vm1926 = vcmp.ge.f32.partialorder %v1923, 0.0
      %vm1927 = vcmp.ge.f32.partialorder %v1924, 0.0
      %vm1928 = vcmp.ge.f32.partialorder %v1925, 0.0
      %v1929 = vmul.f32 %v1923, 0.01
      %v1930 = vmul.f32 %v1924, 0.01
      %v1931 = vmul.f32 %v1925, 0.01
      %v1932 = vsel %vm1926, %v1923, %v1929
      %v1933 = vsel %vm1927, %v1924, %v1930
      %v1934 = vsel %vm1928, %v1925, %v1931
      %v1935 = vmul.f32 %v1932, %v727
      %v1936 = vmul.f32 %v1933, %v727
      %v1937 = vmul.f32 %v1934, %v727
      %v1938 = vadd.f32 %v1935, %v731
      %v1939 = vadd.f32 %v1936, %v731
      %v1940 = vadd.f32 %v1937, %v731
      %s1941 = scalar_lea.vmem %s285, 72
      %1942 = vst.msk [vmem:[%s1941] sm:$0xff] %vm394, %v1938
      %1943 = vst.msk [vmem:[%s1941 + $0x8] sm:$0xff] %vm394, %v1939
      %1944 = vst.msk [vmem:[%s1941 + $0x10] sm:$0x3] %vm737, %v1940
      %s1945 = scalar_lea.vmem %s278, 96
      %v1946 = vld [vmem:[%s1945] sm:$0xff]
      %v1947 = vld [vmem:[%s1945 + $0x8] sm:$0xff]
      %v1948 = vld [vmem:[%s1945 + $0x10] sm:$0xff]
      %1950 = vset.pattern.permute.xlu0 0
      %1951 = vperm.xlu0 %1950, %v1946
      %v1952 = vpop.permute.xlu0 %1951
      %1955 = vset.pattern.permute.xlu0 0
      %1956 = vperm.xlu0 %1955, %v1947
      %v1957 = vpop.permute.xlu0 %1956
      %1960 = vset.pattern.permute.xlu0 0
      %1961 = vperm.xlu0 %1960, %v1948
      %v1962 = vpop.permute.xlu0 %1961
      %v1964 = vmul.f32 %v1952, %v341
      %v1965 = vmul.f32 %v1957, %v341
      %v1966 = vmul.f32 %v1962, %v341
      %1967 = vset.pattern.permute.xlu0 1
      %1968 = vperm.xlu0 %1967, %v1946
      %v1969 = vpop.permute.xlu0 %1968
      %1971 = vset.pattern.permute.xlu0 1
      %1972 = vperm.xlu0 %1971, %v1947
      %v1973 = vpop.permute.xlu0 %1972
      %1975 = vset.pattern.permute.xlu0 1
      %1976 = vperm.xlu0 %1975, %v1948
      %v1977 = vpop.permute.xlu0 %1976
      %v1979 = vmul.f32 %v1969, %v357
      %v1980 = vmul.f32 %v1973, %v357
      %v1981 = vmul.f32 %v1977, %v357
      %v1982 = vadd.f32 %v1964, %v1979
      %v1983 = vadd.f32 %v1965, %v1980
      %v1984 = vadd.f32 %v1966, %v1981
      %v1985 = vadd.f32 %v1982, %v364
      %v1986 = vadd.f32 %v1983, %v364
      %v1987 = vadd.f32 %v1984, %v364
      %vm1988 = vcmp.ge.f32.partialorder %v1985, 0.0
      %vm1989 = vcmp.ge.f32.partialorder %v1986, 0.0
      %vm1990 = vcmp.ge.f32.partialorder %v1987, 0.0
      %v1991 = vmul.f32 %v1985, 0.01
      %v1992 = vmul.f32 %v1986, 0.01
      %v1993 = vmul.f32 %v1987, 0.01
      %v1994 = vsel %vm1988, %v1985, %v1991
      %v1995 = vsel %vm1989, %v1986, %v1992
      %v1996 = vsel %vm1990, %v1987, %v1993
      %v1997 = vmul.f32 %v1994, %v377
      %v1998 = vmul.f32 %v1995, %v377
      %v1999 = vmul.f32 %v1996, %v377
      %v2000 = vadd.f32 %v1997, %v381
      %v2001 = vadd.f32 %v1998, %v381
      %v2002 = vadd.f32 %v1999, %v381
      %v2006 = vrot.slane %v2000, 1
      %v2007 = vrot.slane %v2001, 1
      %v2008 = vsel %vm388, %v2006, %v2007
      %v2009 = vrot.slane %v2002, 1
      %v2010 = vsel %vm388, %v2007, %v2009
      %v2011 = vsel %vm394, %v2008, 0
      %v2013 = vsel %vm394, %v2010, 0
      %v2015 = vsel %vm394, %v2009, 0
      %2017 = vmatpush.msra.mxu0 0.0
      %2018 = vmatpush.msra.mxu0 0.0
      %2019 = vmatpush.msra.mxu0 0.0
      %2020 = vmatpush.msra.mxu0 0.0
      %2021 = vmatpush.msra.mxu0 0.0
      %2022 = vmatpush.msra.mxu0 0.0
      %2023 = vmatpush.msra.mxu0 0.0
      %2024 = vmatpush.msra.mxu0 0.0
      %2025 = vmatpush.msra.mxu0 0.0
      %2026 = vmatpush.msra.mxu0 0.0
      %2027 = vmatpush.msra.mxu0 0.0
      %2028 = vmatpush.msra.mxu0 0.0
      %2029 = vmatpush.msra.mxu0 %v296
      %2030 = vmatpush.msra.mxu0 %v295
      %2031 = vmatpush.msra.mxu0 %v294
      %2032 = vmatpush.msra.mxu0 %v293
      %2033 = vmatmul.f32.gmra.mxu0 %v2011
      %v2034 = vpop.f32.mrf.mxu0
      %v2035 = vadd.f32 0.0, %v2034
      %2036 = vmatmul.f32.gmra.mxu0 %v2013
      %v2037 = vpop.f32.mrf.mxu0
      %v2038 = vadd.f32 0.0, %v2037
      %2039 = vmatmul.f32.gmra.mxu0 %v2015
      %v2040 = vpop.f32.mrf.mxu0
      %v2041 = vadd.f32 0.0, %v2040
      %2042 = vdwg.mxu0
      %v2043 = vsel %vm394, %v2000, 0
      %v2045 = vsel %vm394, %v2001, 0
      %v2047 = vsel %vm394, %v2002, 0
      %2049 = vmatpush.msra.mxu0 0.0
      %2050 = vmatpush.msra.mxu0 0.0
      %2051 = vmatpush.msra.mxu0 0.0
      %2052 = vmatpush.msra.mxu0 0.0
      %2053 = vmatpush.msra.mxu0 0.0
      %2054 = vmatpush.msra.mxu0 0.0
      %2055 = vmatpush.msra.mxu0 0.0
      %2056 = vmatpush.msra.mxu0 0.0
      %2057 = vmatpush.msra.mxu0 0.0
      %2058 = vmatpush.msra.mxu0 0.0
      %2059 = vmatpush.msra.mxu0 0.0
      %2060 = vmatpush.msra.mxu0 0.0
      %2061 = vmatpush.msra.mxu0 %v292
      %2062 = vmatpush.msra.mxu0 %v291
      %2063 = vmatpush.msra.mxu0 %v290
      %2064 = vmatpush.msra.mxu0 %v289
      %2065 = vmatmul.f32.gmra.mxu0 %v2043
      %v2066 = vpop.f32.mrf.mxu0
      %v2067 = vadd.f32 %v2035, %v2066
      %2068 = vmatmul.f32.gmra.mxu0 %v2045
      %v2069 = vpop.f32.mrf.mxu0
      %v2070 = vadd.f32 %v2038, %v2069
      %2071 = vmatmul.f32.gmra.mxu0 %v2047
      %v2072 = vpop.f32.mrf.mxu0
      %v2073 = vadd.f32 %v2041, %v2072
      %2074 = vdwg.mxu0
      %v2075 = vrot.slane %v2000, 2
      %v2076 = vrot.slane %v2001, 2
      %v2077 = vsel %vm459, %v2075, %v2076
      %v2078 = vrot.slane %v2002, 2
      %v2079 = vsel %vm459, %v2076, %v2078
      %v2080 = vsel %vm394, %v2077, 0
      %v2082 = vsel %vm394, %v2079, 0
      %v2084 = vsel %vm394, %v2078, 0
      %2086 = vmatpush.msra.mxu0 0.0
      %2087 = vmatpush.msra.mxu0 0.0
      %2088 = vmatpush.msra.mxu0 0.0
      %2089 = vmatpush.msra.mxu0 0.0
      %2090 = vmatpush.msra.mxu0 0.0
      %2091 = vmatpush.msra.mxu0 0.0
      %2092 = vmatpush.msra.mxu0 0.0
      %2093 = vmatpush.msra.mxu0 0.0
      %2094 = vmatpush.msra.mxu0 0.0
      %2095 = vmatpush.msra.mxu0 0.0
      %2096 = vmatpush.msra.mxu0 0.0
      %2097 = vmatpush.msra.mxu0 0.0
      %2098 = vmatpush.msra.mxu0 %v300
      %2099 = vmatpush.msra.mxu0 %v299
      %2100 = vmatpush.msra.mxu0 %v298
      %2101 = vmatpush.msra.mxu0 %v297
      %2102 = vmatmul.f32.gmra.mxu0 %v2080
      %v2103 = vpop.f32.mrf.mxu0
      %v2104 = vadd.f32 0.0, %v2103
      %2105 = vmatmul.f32.gmra.mxu0 %v2082
      %v2106 = vpop.f32.mrf.mxu0
      %v2107 = vadd.f32 0.0, %v2106
      %2108 = vmatmul.f32.gmra.mxu0 %v2084
      %v2109 = vpop.f32.mrf.mxu0
      %v2110 = vadd.f32 0.0, %v2109
      %2111 = vdwg.mxu0
      %v2112 = vadd.f32 %v2067, %v2104
      %v2113 = vadd.f32 %v2070, %v2107
      %v2114 = vadd.f32 %v2073, %v2110
      %v2115 = vrot.slane %v2000, 3
      %v2116 = vrot.slane %v2001, 3
      %v2117 = vsel %vm500, %v2115, %v2116
      %v2118 = vrot.slane %v2002, 3
      %v2119 = vsel %vm500, %v2116, %v2118
      %v2120 = vsel %vm394, %v2117, 0
      %v2122 = vsel %vm394, %v2119, 0
      %v2124 = vsel %vm394, %v2118, 0
      %2126 = vmatpush.msra.mxu0 0.0
      %2127 = vmatpush.msra.mxu0 0.0
      %2128 = vmatpush.msra.mxu0 0.0
      %2129 = vmatpush.msra.mxu0 0.0
      %2130 = vmatpush.msra.mxu0 0.0
      %2131 = vmatpush.msra.mxu0 0.0
      %2132 = vmatpush.msra.mxu0 0.0
      %2133 = vmatpush.msra.mxu0 0.0
      %2134 = vmatpush.msra.mxu0 0.0
      %2135 = vmatpush.msra.mxu0 0.0
      %2136 = vmatpush.msra.mxu0 0.0
      %2137 = vmatpush.msra.mxu0 0.0
      %2138 = vmatpush.msra.mxu0 %v304
      %2139 = vmatpush.msra.mxu0 %v303
      %2140 = vmatpush.msra.mxu0 %v302
      %2141 = vmatpush.msra.mxu0 %v301
      %2142 = vmatmul.f32.gmra.mxu0 %v2120
      %v2143 = vpop.f32.mrf.mxu0
      %v2144 = vadd.f32 0.0, %v2143
      %2145 = vmatmul.f32.gmra.mxu0 %v2122
      %v2146 = vpop.f32.mrf.mxu0
      %v2147 = vadd.f32 0.0, %v2146
      %2148 = vmatmul.f32.gmra.mxu0 %v2124
      %v2149 = vpop.f32.mrf.mxu0
      %v2150 = vadd.f32 0.0, %v2149
      %2151 = vdwg.mxu0
      %v2152 = vadd.f32 %v2112, %v2144
      %v2153 = vadd.f32 %v2113, %v2147
      %v2154 = vadd.f32 %v2114, %v2150
      %v2155 = vadd.f32 %v2152, %v541
      %v2156 = vadd.f32 %v2153, %v541
      %v2157 = vadd.f32 %v2154, %v541
      %vm2158 = vcmp.ge.f32.partialorder %v2155, 0.0
      %vm2159 = vcmp.ge.f32.partialorder %v2156, 0.0
      %vm2160 = vcmp.ge.f32.partialorder %v2157, 0.0
      %v2161 = vmul.f32 %v2155, 0.01
      %v2162 = vmul.f32 %v2156, 0.01
      %v2163 = vmul.f32 %v2157, 0.01
      %v2164 = vsel %vm2158, %v2155, %v2161
      %v2165 = vsel %vm2159, %v2156, %v2162
      %v2166 = vsel %vm2160, %v2157, %v2163
      %v2167 = vmul.f32 %v2164, %v554
      %v2168 = vmul.f32 %v2165, %v554
      %v2169 = vmul.f32 %v2166, %v554
      %v2170 = vadd.f32 %v2167, %v558
      %v2171 = vadd.f32 %v2168, %v558
      %v2172 = vadd.f32 %v2169, %v558
      %v2176 = vrot.slane %v2170, 1
      %v2177 = vrot.slane %v2171, 1
      %v2178 = vsel %vm388, %v2176, %v2177
      %v2179 = vrot.slane %v2172, 1
      %v2180 = vsel %vm388, %v2177, %v2179
      %v2181 = vsel %vm394, %v2178, 0
      %v2183 = vsel %vm394, %v2180, 0
      %v2185 = vsel %vm394, %v2179, 0
      %2187 = vmatpush.msra.mxu0 0.0
      %2188 = vmatpush.msra.mxu0 0.0
      %2189 = vmatpush.msra.mxu0 0.0
      %2190 = vmatpush.msra.mxu0 0.0
      %2191 = vmatpush.msra.mxu0 0.0
      %2192 = vmatpush.msra.mxu0 0.0
      %2193 = vmatpush.msra.mxu0 0.0
      %2194 = vmatpush.msra.mxu0 0.0
      %2195 = vmatpush.msra.mxu0 0.0
      %2196 = vmatpush.msra.mxu0 0.0
      %2197 = vmatpush.msra.mxu0 0.0
      %2198 = vmatpush.msra.mxu0 0.0
      %2199 = vmatpush.msra.mxu0 %v313
      %2200 = vmatpush.msra.mxu0 %v312
      %2201 = vmatpush.msra.mxu0 %v311
      %2202 = vmatpush.msra.mxu0 %v310
      %2203 = vmatmul.f32.gmra.mxu0 %v2181
      %v2204 = vpop.f32.mrf.mxu0
      %v2205 = vadd.f32 0.0, %v2204
      %2206 = vmatmul.f32.gmra.mxu0 %v2183
      %v2207 = vpop.f32.mrf.mxu0
      %v2208 = vadd.f32 0.0, %v2207
      %2209 = vmatmul.f32.gmra.mxu0 %v2185
      %v2210 = vpop.f32.mrf.mxu0
      %v2211 = vadd.f32 0.0, %v2210
      %2212 = vdwg.mxu0
      %v2213 = vsel %vm394, %v2170, 0
      %v2215 = vsel %vm394, %v2171, 0
      %v2217 = vsel %vm394, %v2172, 0
      %2219 = vmatpush.msra.mxu0 0.0
      %2220 = vmatpush.msra.mxu0 0.0
      %2221 = vmatpush.msra.mxu0 0.0
      %2222 = vmatpush.msra.mxu0 0.0
      %2223 = vmatpush.msra.mxu0 0.0
      %2224 = vmatpush.msra.mxu0 0.0
      %2225 = vmatpush.msra.mxu0 0.0
      %2226 = vmatpush.msra.mxu0 0.0
      %2227 = vmatpush.msra.mxu0 0.0
      %2228 = vmatpush.msra.mxu0 0.0
      %2229 = vmatpush.msra.mxu0 0.0
      %2230 = vmatpush.msra.mxu0 0.0
      %2231 = vmatpush.msra.mxu0 %v309
      %2232 = vmatpush.msra.mxu0 %v308
      %2233 = vmatpush.msra.mxu0 %v307
      %2234 = vmatpush.msra.mxu0 %v306
      %2235 = vmatmul.f32.gmra.mxu0 %v2213
      %v2236 = vpop.f32.mrf.mxu0
      %v2237 = vadd.f32 %v2205, %v2236
      %2238 = vmatmul.f32.gmra.mxu0 %v2215
      %v2239 = vpop.f32.mrf.mxu0
      %v2240 = vadd.f32 %v2208, %v2239
      %2241 = vmatmul.f32.gmra.mxu0 %v2217
      %v2242 = vpop.f32.mrf.mxu0
      %v2243 = vadd.f32 %v2211, %v2242
      %2244 = vdwg.mxu0
      %v2245 = vrot.slane %v2170, 2
      %v2246 = vrot.slane %v2171, 2
      %v2247 = vsel %vm459, %v2245, %v2246
      %v2248 = vrot.slane %v2172, 2
      %v2249 = vsel %vm459, %v2246, %v2248
      %v2250 = vsel %vm394, %v2247, 0
      %v2252 = vsel %vm394, %v2249, 0
      %v2254 = vsel %vm394, %v2248, 0
      %2256 = vmatpush.msra.mxu0 0.0
      %2257 = vmatpush.msra.mxu0 0.0
      %2258 = vmatpush.msra.mxu0 0.0
      %2259 = vmatpush.msra.mxu0 0.0
      %2260 = vmatpush.msra.mxu0 0.0
      %2261 = vmatpush.msra.mxu0 0.0
      %2262 = vmatpush.msra.mxu0 0.0
      %2263 = vmatpush.msra.mxu0 0.0
      %2264 = vmatpush.msra.mxu0 0.0
      %2265 = vmatpush.msra.mxu0 0.0
      %2266 = vmatpush.msra.mxu0 0.0
      %2267 = vmatpush.msra.mxu0 0.0
      %2268 = vmatpush.msra.mxu0 %v317
      %2269 = vmatpush.msra.mxu0 %v316
      %2270 = vmatpush.msra.mxu0 %v315
      %2271 = vmatpush.msra.mxu0 %v314
      %2272 = vmatmul.f32.gmra.mxu0 %v2250
      %v2273 = vpop.f32.mrf.mxu0
      %v2274 = vadd.f32 0.0, %v2273
      %2275 = vmatmul.f32.gmra.mxu0 %v2252
      %v2276 = vpop.f32.mrf.mxu0
      %v2277 = vadd.f32 0.0, %v2276
      %2278 = vmatmul.f32.gmra.mxu0 %v2254
      %v2279 = vpop.f32.mrf.mxu0
      %v2280 = vadd.f32 0.0, %v2279
      %2281 = vdwg.mxu0
      %v2282 = vadd.f32 %v2237, %v2274
      %v2283 = vadd.f32 %v2240, %v2277
      %v2284 = vadd.f32 %v2243, %v2280
      %v2285 = vrot.slane %v2170, 3
      %v2286 = vrot.slane %v2171, 3
      %v2287 = vsel %vm500, %v2285, %v2286
      %v2288 = vrot.slane %v2172, 3
      %v2289 = vsel %vm500, %v2286, %v2288
      %v2290 = vsel %vm394, %v2287, 0
      %v2292 = vsel %vm394, %v2289, 0
      %v2294 = vsel %vm394, %v2288, 0
      %2296 = vmatpush.msra.mxu0 0.0
      %2297 = vmatpush.msra.mxu0 0.0
      %2298 = vmatpush.msra.mxu0 0.0
      %2299 = vmatpush.msra.mxu0 0.0
      %2300 = vmatpush.msra.mxu0 0.0
      %2301 = vmatpush.msra.mxu0 0.0
      %2302 = vmatpush.msra.mxu0 0.0
      %2303 = vmatpush.msra.mxu0 0.0
      %2304 = vmatpush.msra.mxu0 0.0
      %2305 = vmatpush.msra.mxu0 0.0
      %2306 = vmatpush.msra.mxu0 0.0
      %2307 = vmatpush.msra.mxu0 0.0
      %2308 = vmatpush.msra.mxu0 %v321
      %2309 = vmatpush.msra.mxu0 %v320
      %2310 = vmatpush.msra.mxu0 %v319
      %2311 = vmatpush.msra.mxu0 %v318
      %2312 = vmatmul.f32.gmra.mxu0 %v2290
      %v2313 = vpop.f32.mrf.mxu0
      %v2314 = vadd.f32 0.0, %v2313
      %2315 = vmatmul.f32.gmra.mxu0 %v2292
      %v2316 = vpop.f32.mrf.mxu0
      %v2317 = vadd.f32 0.0, %v2316
      %2318 = vmatmul.f32.gmra.mxu0 %v2294
      %v2319 = vpop.f32.mrf.mxu0
      %v2320 = vadd.f32 0.0, %v2319
      %2321 = vdwg.mxu0
      %v2322 = vadd.f32 %v2282, %v2314
      %v2323 = vadd.f32 %v2283, %v2317
      %v2324 = vadd.f32 %v2284, %v2320
      %v2325 = vadd.f32 %v2322, %v714
      %v2326 = vadd.f32 %v2323, %v714
      %v2327 = vadd.f32 %v2324, %v714
      %vm2328 = vcmp.ge.f32.partialorder %v2325, 0.0
      %vm2329 = vcmp.ge.f32.partialorder %v2326, 0.0
      %vm2330 = vcmp.ge.f32.partialorder %v2327, 0.0
      %v2331 = vmul.f32 %v2325, 0.01
      %v2332 = vmul.f32 %v2326, 0.01
      %v2333 = vmul.f32 %v2327, 0.01
      %v2334 = vsel %vm2328, %v2325, %v2331
      %v2335 = vsel %vm2329, %v2326, %v2332
      %v2336 = vsel %vm2330, %v2327, %v2333
      %v2337 = vmul.f32 %v2334, %v727
      %v2338 = vmul.f32 %v2335, %v727
      %v2339 = vmul.f32 %v2336, %v727
      %v2340 = vadd.f32 %v2337, %v731
      %v2341 = vadd.f32 %v2338, %v731
      %v2342 = vadd.f32 %v2339, %v731
      %s2343 = scalar_lea.vmem %s285, 96
      %2344 = vst.msk [vmem:[%s2343] sm:$0xff] %vm394, %v2340
      %2345 = vst.msk [vmem:[%s2343 + $0x8] sm:$0xff] %vm394, %v2341
      %2346 = vst.msk [vmem:[%s2343 + $0x10] sm:$0x3] %vm737, %v2342
      %s2347 = scalar_lea.vmem %s278, 120
      %v2348 = vld [vmem:[%s2347] sm:$0xff]
      %v2349 = vld [vmem:[%s2347 + $0x8] sm:$0xff]
      %v2350 = vld [vmem:[%s2347 + $0x10] sm:$0xff]
      %2352 = vset.pattern.permute.xlu0 0
      %2353 = vperm.xlu0 %2352, %v2348
      %v2354 = vpop.permute.xlu0 %2353
      %2357 = vset.pattern.permute.xlu0 0
      %2358 = vperm.xlu0 %2357, %v2349
      %v2359 = vpop.permute.xlu0 %2358
      %2362 = vset.pattern.permute.xlu0 0
      %2363 = vperm.xlu0 %2362, %v2350
      %v2364 = vpop.permute.xlu0 %2363
      %v2366 = vmul.f32 %v2354, %v341
      %v2367 = vmul.f32 %v2359, %v341
      %v2368 = vmul.f32 %v2364, %v341
      %2369 = vset.pattern.permute.xlu0 1
      %2370 = vperm.xlu0 %2369, %v2348
      %v2371 = vpop.permute.xlu0 %2370
      %2373 = vset.pattern.permute.xlu0 1
      %2374 = vperm.xlu0 %2373, %v2349
      %v2375 = vpop.permute.xlu0 %2374
      %2377 = vset.pattern.permute.xlu0 1
      %2378 = vperm.xlu0 %2377, %v2350
      %v2379 = vpop.permute.xlu0 %2378
      %v2381 = vmul.f32 %v2371, %v357
      %v2382 = vmul.f32 %v2375, %v357
      %v2383 = vmul.f32 %v2379, %v357
      %v2384 = vadd.f32 %v2366, %v2381
      %v2385 = vadd.f32 %v2367, %v2382
      %v2386 = vadd.f32 %v2368, %v2383
      %v2387 = vadd.f32 %v2384, %v364
      %v2388 = vadd.f32 %v2385, %v364
      %v2389 = vadd.f32 %v2386, %v364
      %vm2390 = vcmp.ge.f32.partialorder %v2387, 0.0
      %vm2391 = vcmp.ge.f32.partialorder %v2388, 0.0
      %vm2392 = vcmp.ge.f32.partialorder %v2389, 0.0
      %v2393 = vmul.f32 %v2387, 0.01
      %v2394 = vmul.f32 %v2388, 0.01
      %v2395 = vmul.f32 %v2389, 0.01
      %v2396 = vsel %vm2390, %v2387, %v2393
      %v2397 = vsel %vm2391, %v2388, %v2394
      %v2398 = vsel %vm2392, %v2389, %v2395
      %v2399 = vmul.f32 %v2396, %v377
      %v2400 = vmul.f32 %v2397, %v377
      %v2401 = vmul.f32 %v2398, %v377
      %v2402 = vadd.f32 %v2399, %v381
      %v2403 = vadd.f32 %v2400, %v381
      %v2404 = vadd.f32 %v2401, %v381
      %v2408 = vrot.slane %v2402, 1
      %v2409 = vrot.slane %v2403, 1
      %v2410 = vsel %vm388, %v2408, %v2409
      %v2411 = vrot.slane %v2404, 1
      %v2412 = vsel %vm388, %v2409, %v2411
      %v2413 = vsel %vm394, %v2410, 0
      %v2415 = vsel %vm394, %v2412, 0
      %v2417 = vsel %vm394, %v2411, 0
      %2419 = vmatpush.msra.mxu0 0.0
      %2420 = vmatpush.msra.mxu0 0.0
      %2421 = vmatpush.msra.mxu0 0.0
      %2422 = vmatpush.msra.mxu0 0.0
      %2423 = vmatpush.msra.mxu0 0.0
      %2424 = vmatpush.msra.mxu0 0.0
      %2425 = vmatpush.msra.mxu0 0.0
      %2426 = vmatpush.msra.mxu0 0.0
      %2427 = vmatpush.msra.mxu0 0.0
      %2428 = vmatpush.msra.mxu0 0.0
      %2429 = vmatpush.msra.mxu0 0.0
      %2430 = vmatpush.msra.mxu0 0.0
      %2431 = vmatpush.msra.mxu0 %v296
      %2432 = vmatpush.msra.mxu0 %v295
      %2433 = vmatpush.msra.mxu0 %v294
      %2434 = vmatpush.msra.mxu0 %v293
      %2435 = vmatmul.f32.gmra.mxu0 %v2413
      %v2436 = vpop.f32.mrf.mxu0
      %v2437 = vadd.f32 0.0, %v2436
      %2438 = vmatmul.f32.gmra.mxu0 %v2415
      %v2439 = vpop.f32.mrf.mxu0
      %v2440 = vadd.f32 0.0, %v2439
      %2441 = vmatmul.f32.gmra.mxu0 %v2417
      %v2442 = vpop.f32.mrf.mxu0
      %v2443 = vadd.f32 0.0, %v2442
      %2444 = vdwg.mxu0
      %v2445 = vsel %vm394, %v2402, 0
      %v2447 = vsel %vm394, %v2403, 0
      %v2449 = vsel %vm394, %v2404, 0
      %2451 = vmatpush.msra.mxu0 0.0
      %2452 = vmatpush.msra.mxu0 0.0
      %2453 = vmatpush.msra.mxu0 0.0
      %2454 = vmatpush.msra.mxu0 0.0
      %2455 = vmatpush.msra.mxu0 0.0
      %2456 = vmatpush.msra.mxu0 0.0
      %2457 = vmatpush.msra.mxu0 0.0
      %2458 = vmatpush.msra.mxu0 0.0
      %2459 = vmatpush.msra.mxu0 0.0
      %2460 = vmatpush.msra.mxu0 0.0
      %2461 = vmatpush.msra.mxu0 0.0
      %2462 = vmatpush.msra.mxu0 0.0
      %2463 = vmatpush.msra.mxu0 %v292
      %2464 = vmatpush.msra.mxu0 %v291
      %2465 = vmatpush.msra.mxu0 %v290
      %2466 = vmatpush.msra.mxu0 %v289
      %2467 = vmatmul.f32.gmra.mxu0 %v2445
      %v2468 = vpop.f32.mrf.mxu0
      %v2469 = vadd.f32 %v2437, %v2468
      %2470 = vmatmul.f32.gmra.mxu0 %v2447
      %v2471 = vpop.f32.mrf.mxu0
      %v2472 = vadd.f32 %v2440, %v2471
      %2473 = vmatmul.f32.gmra.mxu0 %v2449
      %v2474 = vpop.f32.mrf.mxu0
      %v2475 = vadd.f32 %v2443, %v2474
      %2476 = vdwg.mxu0
      %v2477 = vrot.slane %v2402, 2
      %v2478 = vrot.slane %v2403, 2
      %v2479 = vsel %vm459, %v2477, %v2478
      %v2480 = vrot.slane %v2404, 2
      %v2481 = vsel %vm459, %v2478, %v2480
      %v2482 = vsel %vm394, %v2479, 0
      %v2484 = vsel %vm394, %v2481, 0
      %v2486 = vsel %vm394, %v2480, 0
      %2488 = vmatpush.msra.mxu0 0.0
      %2489 = vmatpush.msra.mxu0 0.0
      %2490 = vmatpush.msra.mxu0 0.0
      %2491 = vmatpush.msra.mxu0 0.0
      %2492 = vmatpush.msra.mxu0 0.0
      %2493 = vmatpush.msra.mxu0 0.0
      %2494 = vmatpush.msra.mxu0 0.0
      %2495 = vmatpush.msra.mxu0 0.0
      %2496 = vmatpush.msra.mxu0 0.0
      %2497 = vmatpush.msra.mxu0 0.0
      %2498 = vmatpush.msra.mxu0 0.0
      %2499 = vmatpush.msra.mxu0 0.0
      %2500 = vmatpush.msra.mxu0 %v300
      %2501 = vmatpush.msra.mxu0 %v299
      %2502 = vmatpush.msra.mxu0 %v298
      %2503 = vmatpush.msra.mxu0 %v297
      %2504 = vmatmul.f32.gmra.mxu0 %v2482
      %v2505 = vpop.f32.mrf.mxu0
      %v2506 = vadd.f32 0.0, %v2505
      %2507 = vmatmul.f32.gmra.mxu0 %v2484
      %v2508 = vpop.f32.mrf.mxu0
      %v2509 = vadd.f32 0.0, %v2508
      %2510 = vmatmul.f32.gmra.mxu0 %v2486
      %v2511 = vpop.f32.mrf.mxu0
      %v2512 = vadd.f32 0.0, %v2511
      %2513 = vdwg.mxu0
      %v2514 = vadd.f32 %v2469, %v2506
      %v2515 = vadd.f32 %v2472, %v2509
      %v2516 = vadd.f32 %v2475, %v2512
      %v2517 = vrot.slane %v2402, 3
      %v2518 = vrot.slane %v2403, 3
      %v2519 = vsel %vm500, %v2517, %v2518
      %v2520 = vrot.slane %v2404, 3
      %v2521 = vsel %vm500, %v2518, %v2520
      %v2522 = vsel %vm394, %v2519, 0
      %v2524 = vsel %vm394, %v2521, 0
      %v2526 = vsel %vm394, %v2520, 0
      %2528 = vmatpush.msra.mxu0 0.0
      %2529 = vmatpush.msra.mxu0 0.0
      %2530 = vmatpush.msra.mxu0 0.0
      %2531 = vmatpush.msra.mxu0 0.0
      %2532 = vmatpush.msra.mxu0 0.0
      %2533 = vmatpush.msra.mxu0 0.0
      %2534 = vmatpush.msra.mxu0 0.0
      %2535 = vmatpush.msra.mxu0 0.0
      %2536 = vmatpush.msra.mxu0 0.0
      %2537 = vmatpush.msra.mxu0 0.0
      %2538 = vmatpush.msra.mxu0 0.0
      %2539 = vmatpush.msra.mxu0 0.0
      %2540 = vmatpush.msra.mxu0 %v304
      %2541 = vmatpush.msra.mxu0 %v303
      %2542 = vmatpush.msra.mxu0 %v302
      %2543 = vmatpush.msra.mxu0 %v301
      %2544 = vmatmul.f32.gmra.mxu0 %v2522
      %v2545 = vpop.f32.mrf.mxu0
      %v2546 = vadd.f32 0.0, %v2545
      %2547 = vmatmul.f32.gmra.mxu0 %v2524
      %v2548 = vpop.f32.mrf.mxu0
      %v2549 = vadd.f32 0.0, %v2548
      %2550 = vmatmul.f32.gmra.mxu0 %v2526
      %v2551 = vpop.f32.mrf.mxu0
      %v2552 = vadd.f32 0.0, %v2551
      %2553 = vdwg.mxu0
      %v2554 = vadd.f32 %v2514, %v2546
      %v2555 = vadd.f32 %v2515, %v2549
      %v2556 = vadd.f32 %v2516, %v2552
      %v2557 = vadd.f32 %v2554, %v541
      %v2558 = vadd.f32 %v2555, %v541
      %v2559 = vadd.f32 %v2556, %v541
      %vm2560 = vcmp.ge.f32.partialorder %v2557, 0.0
      %vm2561 = vcmp.ge.f32.partialorder %v2558, 0.0
      %vm2562 = vcmp.ge.f32.partialorder %v2559, 0.0
      %v2563 = vmul.f32 %v2557, 0.01
      %v2564 = vmul.f32 %v2558, 0.01
      %v2565 = vmul.f32 %v2559, 0.01
      %v2566 = vsel %vm2560, %v2557, %v2563
      %v2567 = vsel %vm2561, %v2558, %v2564
      %v2568 = vsel %vm2562, %v2559, %v2565
      %v2569 = vmul.f32 %v2566, %v554
      %v2570 = vmul.f32 %v2567, %v554
      %v2571 = vmul.f32 %v2568, %v554
      %v2572 = vadd.f32 %v2569, %v558
      %v2573 = vadd.f32 %v2570, %v558
      %v2574 = vadd.f32 %v2571, %v558
      %v2578 = vrot.slane %v2572, 1
      %v2579 = vrot.slane %v2573, 1
      %v2580 = vsel %vm388, %v2578, %v2579
      %v2581 = vrot.slane %v2574, 1
      %v2582 = vsel %vm388, %v2579, %v2581
      %v2583 = vsel %vm394, %v2580, 0
      %v2585 = vsel %vm394, %v2582, 0
      %v2587 = vsel %vm394, %v2581, 0
      %2589 = vmatpush.msra.mxu0 0.0
      %2590 = vmatpush.msra.mxu0 0.0
      %2591 = vmatpush.msra.mxu0 0.0
      %2592 = vmatpush.msra.mxu0 0.0
      %2593 = vmatpush.msra.mxu0 0.0
      %2594 = vmatpush.msra.mxu0 0.0
      %2595 = vmatpush.msra.mxu0 0.0
      %2596 = vmatpush.msra.mxu0 0.0
      %2597 = vmatpush.msra.mxu0 0.0
      %2598 = vmatpush.msra.mxu0 0.0
      %2599 = vmatpush.msra.mxu0 0.0
      %2600 = vmatpush.msra.mxu0 0.0
      %2601 = vmatpush.msra.mxu0 %v313
      %2602 = vmatpush.msra.mxu0 %v312
      %2603 = vmatpush.msra.mxu0 %v311
      %2604 = vmatpush.msra.mxu0 %v310
      %2605 = vmatmul.f32.gmra.mxu0 %v2583
      %v2606 = vpop.f32.mrf.mxu0
      %v2607 = vadd.f32 0.0, %v2606
      %2608 = vmatmul.f32.gmra.mxu0 %v2585
      %v2609 = vpop.f32.mrf.mxu0
      %v2610 = vadd.f32 0.0, %v2609
      %2611 = vmatmul.f32.gmra.mxu0 %v2587
      %v2612 = vpop.f32.mrf.mxu0
      %v2613 = vadd.f32 0.0, %v2612
      %2614 = vdwg.mxu0
      %v2615 = vsel %vm394, %v2572, 0
      %v2617 = vsel %vm394, %v2573, 0
      %v2619 = vsel %vm394, %v2574, 0
      %2621 = vmatpush.msra.mxu0 0.0
      %2622 = vmatpush.msra.mxu0 0.0
      %2623 = vmatpush.msra.mxu0 0.0
      %2624 = vmatpush.msra.mxu0 0.0
      %2625 = vmatpush.msra.mxu0 0.0
      %2626 = vmatpush.msra.mxu0 0.0
      %2627 = vmatpush.msra.mxu0 0.0
      %2628 = vmatpush.msra.mxu0 0.0
      %2629 = vmatpush.msra.mxu0 0.0
      %2630 = vmatpush.msra.mxu0 0.0
      %2631 = vmatpush.msra.mxu0 0.0
      %2632 = vmatpush.msra.mxu0 0.0
      %2633 = vmatpush.msra.mxu0 %v309
      %2634 = vmatpush.msra.mxu0 %v308
      %2635 = vmatpush.msra.mxu0 %v307
      %2636 = vmatpush.msra.mxu0 %v306
      %2637 = vmatmul.f32.gmra.mxu0 %v2615
      %v2638 = vpop.f32.mrf.mxu0
      %v2639 = vadd.f32 %v2607, %v2638
      %2640 = vmatmul.f32.gmra.mxu0 %v2617
      %v2641 = vpop.f32.mrf.mxu0
      %v2642 = vadd.f32 %v2610, %v2641
      %2643 = vmatmul.f32.gmra.mxu0 %v2619
      %v2644 = vpop.f32.mrf.mxu0
      %v2645 = vadd.f32 %v2613, %v2644
      %2646 = vdwg.mxu0
      %v2647 = vrot.slane %v2572, 2
      %v2648 = vrot.slane %v2573, 2
      %v2649 = vsel %vm459, %v2647, %v2648
      %v2650 = vrot.slane %v2574, 2
      %v2651 = vsel %vm459, %v2648, %v2650
      %v2652 = vsel %vm394, %v2649, 0
      %v2654 = vsel %vm394, %v2651, 0
      %v2656 = vsel %vm394, %v2650, 0
      %2658 = vmatpush.msra.mxu0 0.0
      %2659 = vmatpush.msra.mxu0 0.0
      %2660 = vmatpush.msra.mxu0 0.0
      %2661 = vmatpush.msra.mxu0 0.0
      %2662 = vmatpush.msra.mxu0 0.0
      %2663 = vmatpush.msra.mxu0 0.0
      %2664 = vmatpush.msra.mxu0 0.0
      %2665 = vmatpush.msra.mxu0 0.0
      %2666 = vmatpush.msra.mxu0 0.0
      %2667 = vmatpush.msra.mxu0 0.0
      %2668 = vmatpush.msra.mxu0 0.0
      %2669 = vmatpush.msra.mxu0 0.0
      %2670 = vmatpush.msra.mxu0 %v317
      %2671 = vmatpush.msra.mxu0 %v316
      %2672 = vmatpush.msra.mxu0 %v315
      %2673 = vmatpush.msra.mxu0 %v314
      %2674 = vmatmul.f32.gmra.mxu0 %v2652
      %v2675 = vpop.f32.mrf.mxu0
      %v2676 = vadd.f32 0.0, %v2675
      %2677 = vmatmul.f32.gmra.mxu0 %v2654
      %v2678 = vpop.f32.mrf.mxu0
      %v2679 = vadd.f32 0.0, %v2678
      %2680 = vmatmul.f32.gmra.mxu0 %v2656
      %v2681 = vpop.f32.mrf.mxu0
      %v2682 = vadd.f32 0.0, %v2681
      %2683 = vdwg.mxu0
      %v2684 = vadd.f32 %v2639, %v2676
      %v2685 = vadd.f32 %v2642, %v2679
      %v2686 = vadd.f32 %v2645, %v2682
      %v2687 = vrot.slane %v2572, 3
      %v2688 = vrot.slane %v2573, 3
      %v2689 = vsel %vm500, %v2687, %v2688
      %v2690 = vrot.slane %v2574, 3
      %v2691 = vsel %vm500, %v2688, %v2690
      %v2692 = vsel %vm394, %v2689, 0
      %v2694 = vsel %vm394, %v2691, 0
      %v2696 = vsel %vm394, %v2690, 0
      %2698 = vmatpush.msra.mxu0 0.0
      %2699 = vmatpush.msra.mxu0 0.0
      %2700 = vmatpush.msra.mxu0 0.0
      %2701 = vmatpush.msra.mxu0 0.0
      %2702 = vmatpush.msra.mxu0 0.0
      %2703 = vmatpush.msra.mxu0 0.0
      %2704 = vmatpush.msra.mxu0 0.0
      %2705 = vmatpush.msra.mxu0 0.0
      %2706 = vmatpush.msra.mxu0 0.0
      %2707 = vmatpush.msra.mxu0 0.0
      %2708 = vmatpush.msra.mxu0 0.0
      %2709 = vmatpush.msra.mxu0 0.0
      %2710 = vmatpush.msra.mxu0 %v321
      %2711 = vmatpush.msra.mxu0 %v320
      %2712 = vmatpush.msra.mxu0 %v319
      %2713 = vmatpush.msra.mxu0 %v318
      %2714 = vmatmul.f32.gmra.mxu0 %v2692
      %v2715 = vpop.f32.mrf.mxu0
      %v2716 = vadd.f32 0.0, %v2715
      %2717 = vmatmul.f32.gmra.mxu0 %v2694
      %v2718 = vpop.f32.mrf.mxu0
      %v2719 = vadd.f32 0.0, %v2718
      %2720 = vmatmul.f32.gmra.mxu0 %v2696
      %v2721 = vpop.f32.mrf.mxu0
      %v2722 = vadd.f32 0.0, %v2721
      %2723 = vdwg.mxu0
      %v2724 = vadd.f32 %v2684, %v2716
      %v2725 = vadd.f32 %v2685, %v2719
      %v2726 = vadd.f32 %v2686, %v2722
      %v2727 = vadd.f32 %v2724, %v714
      %v2728 = vadd.f32 %v2725, %v714
      %v2729 = vadd.f32 %v2726, %v714
      %vm2730 = vcmp.ge.f32.partialorder %v2727, 0.0
      %vm2731 = vcmp.ge.f32.partialorder %v2728, 0.0
      %vm2732 = vcmp.ge.f32.partialorder %v2729, 0.0
      %v2733 = vmul.f32 %v2727, 0.01
      %v2734 = vmul.f32 %v2728, 0.01
      %v2735 = vmul.f32 %v2729, 0.01
      %v2736 = vsel %vm2730, %v2727, %v2733
      %v2737 = vsel %vm2731, %v2728, %v2734
      %v2738 = vsel %vm2732, %v2729, %v2735
      %v2739 = vmul.f32 %v2736, %v727
      %v2740 = vmul.f32 %v2737, %v727
      %v2741 = vmul.f32 %v2738, %v727
      %v2742 = vadd.f32 %v2739, %v731
      %v2743 = vadd.f32 %v2740, %v731
      %v2744 = vadd.f32 %v2741, %v731
      %s2745 = scalar_lea.vmem %s285, 120
      %2746 = vst.msk [vmem:[%s2745] sm:$0xff] %vm394, %v2742
      %2747 = vst.msk [vmem:[%s2745 + $0x8] sm:$0xff] %vm394, %v2743
      %2748 = vst.msk [vmem:[%s2745 + $0x10] sm:$0x3] %vm737, %v2744
      %s2749 = scalar_lea.vmem %s278, 144
      %v2750 = vld [vmem:[%s2749] sm:$0xff]
      %v2751 = vld [vmem:[%s2749 + $0x8] sm:$0xff]
      %v2752 = vld [vmem:[%s2749 + $0x10] sm:$0xff]
      %2754 = vset.pattern.permute.xlu0 0
      %2755 = vperm.xlu0 %2754, %v2750
      %v2756 = vpop.permute.xlu0 %2755
      %2759 = vset.pattern.permute.xlu0 0
      %2760 = vperm.xlu0 %2759, %v2751
      %v2761 = vpop.permute.xlu0 %2760
      %2764 = vset.pattern.permute.xlu0 0
      %2765 = vperm.xlu0 %2764, %v2752
      %v2766 = vpop.permute.xlu0 %2765
      %v2768 = vmul.f32 %v2756, %v341
      %v2769 = vmul.f32 %v2761, %v341
      %v2770 = vmul.f32 %v2766, %v341
      %2771 = vset.pattern.permute.xlu0 1
      %2772 = vperm.xlu0 %2771, %v2750
      %v2773 = vpop.permute.xlu0 %2772
      %2775 = vset.pattern.permute.xlu0 1
      %2776 = vperm.xlu0 %2775, %v2751
      %v2777 = vpop.permute.xlu0 %2776
      %2779 = vset.pattern.permute.xlu0 1
      %2780 = vperm.xlu0 %2779, %v2752
      %v2781 = vpop.permute.xlu0 %2780
      %v2783 = vmul.f32 %v2773, %v357
      %v2784 = vmul.f32 %v2777, %v357
      %v2785 = vmul.f32 %v2781, %v357
      %v2786 = vadd.f32 %v2768, %v2783
      %v2787 = vadd.f32 %v2769, %v2784
      %v2788 = vadd.f32 %v2770, %v2785
      %v2789 = vadd.f32 %v2786, %v364
      %v2790 = vadd.f32 %v2787, %v364
      %v2791 = vadd.f32 %v2788, %v364
      %vm2792 = vcmp.ge.f32.partialorder %v2789, 0.0
      %vm2793 = vcmp.ge.f32.partialorder %v2790, 0.0
      %vm2794 = vcmp.ge.f32.partialorder %v2791, 0.0
      %v2795 = vmul.f32 %v2789, 0.01
      %v2796 = vmul.f32 %v2790, 0.01
      %v2797 = vmul.f32 %v2791, 0.01
      %v2798 = vsel %vm2792, %v2789, %v2795
      %v2799 = vsel %vm2793, %v2790, %v2796
      %v2800 = vsel %vm2794, %v2791, %v2797
      %v2801 = vmul.f32 %v2798, %v377
      %v2802 = vmul.f32 %v2799, %v377
      %v2803 = vmul.f32 %v2800, %v377
      %v2804 = vadd.f32 %v2801, %v381
      %v2805 = vadd.f32 %v2802, %v381
      %v2806 = vadd.f32 %v2803, %v381
      %v2810 = vrot.slane %v2804, 1
      %v2811 = vrot.slane %v2805, 1
      %v2812 = vsel %vm388, %v2810, %v2811
      %v2813 = vrot.slane %v2806, 1
      %v2814 = vsel %vm388, %v2811, %v2813
      %v2815 = vsel %vm394, %v2812, 0
      %v2817 = vsel %vm394, %v2814, 0
      %v2819 = vsel %vm394, %v2813, 0
      %2821 = vmatpush.msra.mxu0 0.0
      %2822 = vmatpush.msra.mxu0 0.0
      %2823 = vmatpush.msra.mxu0 0.0
      %2824 = vmatpush.msra.mxu0 0.0
      %2825 = vmatpush.msra.mxu0 0.0
      %2826 = vmatpush.msra.mxu0 0.0
      %2827 = vmatpush.msra.mxu0 0.0
      %2828 = vmatpush.msra.mxu0 0.0
      %2829 = vmatpush.msra.mxu0 0.0
      %2830 = vmatpush.msra.mxu0 0.0
      %2831 = vmatpush.msra.mxu0 0.0
      %2832 = vmatpush.msra.mxu0 0.0
      %2833 = vmatpush.msra.mxu0 %v296
      %2834 = vmatpush.msra.mxu0 %v295
      %2835 = vmatpush.msra.mxu0 %v294
      %2836 = vmatpush.msra.mxu0 %v293
      %2837 = vmatmul.f32.gmra.mxu0 %v2815
      %v2838 = vpop.f32.mrf.mxu0
      %v2839 = vadd.f32 0.0, %v2838
      %2840 = vmatmul.f32.gmra.mxu0 %v2817
      %v2841 = vpop.f32.mrf.mxu0
      %v2842 = vadd.f32 0.0, %v2841
      %2843 = vmatmul.f32.gmra.mxu0 %v2819
      %v2844 = vpop.f32.mrf.mxu0
      %v2845 = vadd.f32 0.0, %v2844
      %2846 = vdwg.mxu0
      %v2847 = vsel %vm394, %v2804, 0
      %v2849 = vsel %vm394, %v2805, 0
      %v2851 = vsel %vm394, %v2806, 0
      %2853 = vmatpush.msra.mxu0 0.0
      %2854 = vmatpush.msra.mxu0 0.0
      %2855 = vmatpush.msra.mxu0 0.0
      %2856 = vmatpush.msra.mxu0 0.0
      %2857 = vmatpush.msra.mxu0 0.0
      %2858 = vmatpush.msra.mxu0 0.0
      %2859 = vmatpush.msra.mxu0 0.0
      %2860 = vmatpush.msra.mxu0 0.0
      %2861 = vmatpush.msra.mxu0 0.0
      %2862 = vmatpush.msra.mxu0 0.0
      %2863 = vmatpush.msra.mxu0 0.0
      %2864 = vmatpush.msra.mxu0 0.0
      %2865 = vmatpush.msra.mxu0 %v292
      %2866 = vmatpush.msra.mxu0 %v291
      %2867 = vmatpush.msra.mxu0 %v290
      %2868 = vmatpush.msra.mxu0 %v289
      %2869 = vmatmul.f32.gmra.mxu0 %v2847
      %v2870 = vpop.f32.mrf.mxu0
      %v2871 = vadd.f32 %v2839, %v2870
      %2872 = vmatmul.f32.gmra.mxu0 %v2849
      %v2873 = vpop.f32.mrf.mxu0
      %v2874 = vadd.f32 %v2842, %v2873
      %2875 = vmatmul.f32.gmra.mxu0 %v2851
      %v2876 = vpop.f32.mrf.mxu0
      %v2877 = vadd.f32 %v2845, %v2876
      %2878 = vdwg.mxu0
      %v2879 = vrot.slane %v2804, 2
      %v2880 = vrot.slane %v2805, 2
      %v2881 = vsel %vm459, %v2879, %v2880
      %v2882 = vrot.slane %v2806, 2
      %v2883 = vsel %vm459, %v2880, %v2882
      %v2884 = vsel %vm394, %v2881, 0
      %v2886 = vsel %vm394, %v2883, 0
      %v2888 = vsel %vm394, %v2882, 0
      %2890 = vmatpush.msra.mxu0 0.0
      %2891 = vmatpush.msra.mxu0 0.0
      %2892 = vmatpush.msra.mxu0 0.0
      %2893 = vmatpush.msra.mxu0 0.0
      %2894 = vmatpush.msra.mxu0 0.0
      %2895 = vmatpush.msra.mxu0 0.0
      %2896 = vmatpush.msra.mxu0 0.0
      %2897 = vmatpush.msra.mxu0 0.0
      %2898 = vmatpush.msra.mxu0 0.0
      %2899 = vmatpush.msra.mxu0 0.0
      %2900 = vmatpush.msra.mxu0 0.0
      %2901 = vmatpush.msra.mxu0 0.0
      %2902 = vmatpush.msra.mxu0 %v300
      %2903 = vmatpush.msra.mxu0 %v299
      %2904 = vmatpush.msra.mxu0 %v298
      %2905 = vmatpush.msra.mxu0 %v297
      %2906 = vmatmul.f32.gmra.mxu0 %v2884
      %v2907 = vpop.f32.mrf.mxu0
      %v2908 = vadd.f32 0.0, %v2907
      %2909 = vmatmul.f32.gmra.mxu0 %v2886
      %v2910 = vpop.f32.mrf.mxu0
      %v2911 = vadd.f32 0.0, %v2910
      %2912 = vmatmul.f32.gmra.mxu0 %v2888
      %v2913 = vpop.f32.mrf.mxu0
      %v2914 = vadd.f32 0.0, %v2913
      %2915 = vdwg.mxu0
      %v2916 = vadd.f32 %v2871, %v2908
      %v2917 = vadd.f32 %v2874, %v2911
      %v2918 = vadd.f32 %v2877, %v2914
      %v2919 = vrot.slane %v2804, 3
      %v2920 = vrot.slane %v2805, 3
      %v2921 = vsel %vm500, %v2919, %v2920
      %v2922 = vrot.slane %v2806, 3
      %v2923 = vsel %vm500, %v2920, %v2922
      %v2924 = vsel %vm394, %v2921, 0
      %v2926 = vsel %vm394, %v2923, 0
      %v2928 = vsel %vm394, %v2922, 0
      %2930 = vmatpush.msra.mxu0 0.0
      %2931 = vmatpush.msra.mxu0 0.0
      %2932 = vmatpush.msra.mxu0 0.0
      %2933 = vmatpush.msra.mxu0 0.0
      %2934 = vmatpush.msra.mxu0 0.0
      %2935 = vmatpush.msra.mxu0 0.0
      %2936 = vmatpush.msra.mxu0 0.0
      %2937 = vmatpush.msra.mxu0 0.0
      %2938 = vmatpush.msra.mxu0 0.0
      %2939 = vmatpush.msra.mxu0 0.0
      %2940 = vmatpush.msra.mxu0 0.0
      %2941 = vmatpush.msra.mxu0 0.0
      %2942 = vmatpush.msra.mxu0 %v304
      %2943 = vmatpush.msra.mxu0 %v303
      %2944 = vmatpush.msra.mxu0 %v302
      %2945 = vmatpush.msra.mxu0 %v301
      %2946 = vmatmul.f32.gmra.mxu0 %v2924
      %v2947 = vpop.f32.mrf.mxu0
      %v2948 = vadd.f32 0.0, %v2947
      %2949 = vmatmul.f32.gmra.mxu0 %v2926
      %v2950 = vpop.f32.mrf.mxu0
      %v2951 = vadd.f32 0.0, %v2950
      %2952 = vmatmul.f32.gmra.mxu0 %v2928
      %v2953 = vpop.f32.mrf.mxu0
      %v2954 = vadd.f32 0.0, %v2953
      %2955 = vdwg.mxu0
      %v2956 = vadd.f32 %v2916, %v2948
      %v2957 = vadd.f32 %v2917, %v2951
      %v2958 = vadd.f32 %v2918, %v2954
      %v2959 = vadd.f32 %v2956, %v541
      %v2960 = vadd.f32 %v2957, %v541
      %v2961 = vadd.f32 %v2958, %v541
      %vm2962 = vcmp.ge.f32.partialorder %v2959, 0.0
      %vm2963 = vcmp.ge.f32.partialorder %v2960, 0.0
      %vm2964 = vcmp.ge.f32.partialorder %v2961, 0.0
      %v2965 = vmul.f32 %v2959, 0.01
      %v2966 = vmul.f32 %v2960, 0.01
      %v2967 = vmul.f32 %v2961, 0.01
      %v2968 = vsel %vm2962, %v2959, %v2965
      %v2969 = vsel %vm2963, %v2960, %v2966
      %v2970 = vsel %vm2964, %v2961, %v2967
      %v2971 = vmul.f32 %v2968, %v554
      %v2972 = vmul.f32 %v2969, %v554
      %v2973 = vmul.f32 %v2970, %v554
      %v2974 = vadd.f32 %v2971, %v558
      %v2975 = vadd.f32 %v2972, %v558
      %v2976 = vadd.f32 %v2973, %v558
      %v2980 = vrot.slane %v2974, 1
      %v2981 = vrot.slane %v2975, 1
      %v2982 = vsel %vm388, %v2980, %v2981
      %v2983 = vrot.slane %v2976, 1
      %v2984 = vsel %vm388, %v2981, %v2983
      %v2985 = vsel %vm394, %v2982, 0
      %v2987 = vsel %vm394, %v2984, 0
      %v2989 = vsel %vm394, %v2983, 0
      %2991 = vmatpush.msra.mxu0 0.0
      %2992 = vmatpush.msra.mxu0 0.0
      %2993 = vmatpush.msra.mxu0 0.0
      %2994 = vmatpush.msra.mxu0 0.0
      %2995 = vmatpush.msra.mxu0 0.0
      %2996 = vmatpush.msra.mxu0 0.0
      %2997 = vmatpush.msra.mxu0 0.0
      %2998 = vmatpush.msra.mxu0 0.0
      %2999 = vmatpush.msra.mxu0 0.0
      %3000 = vmatpush.msra.mxu0 0.0
      %3001 = vmatpush.msra.mxu0 0.0
      %3002 = vmatpush.msra.mxu0 0.0
      %3003 = vmatpush.msra.mxu0 %v313
      %3004 = vmatpush.msra.mxu0 %v312
      %3005 = vmatpush.msra.mxu0 %v311
      %3006 = vmatpush.msra.mxu0 %v310
      %3007 = vmatmul.f32.gmra.mxu0 %v2985
      %v3008 = vpop.f32.mrf.mxu0
      %v3009 = vadd.f32 0.0, %v3008
      %3010 = vmatmul.f32.gmra.mxu0 %v2987
      %v3011 = vpop.f32.mrf.mxu0
      %v3012 = vadd.f32 0.0, %v3011
      %3013 = vmatmul.f32.gmra.mxu0 %v2989
      %v3014 = vpop.f32.mrf.mxu0
      %v3015 = vadd.f32 0.0, %v3014
      %3016 = vdwg.mxu0
      %v3017 = vsel %vm394, %v2974, 0
      %v3019 = vsel %vm394, %v2975, 0
      %v3021 = vsel %vm394, %v2976, 0
      %3023 = vmatpush.msra.mxu0 0.0
      %3024 = vmatpush.msra.mxu0 0.0
      %3025 = vmatpush.msra.mxu0 0.0
      %3026 = vmatpush.msra.mxu0 0.0
      %3027 = vmatpush.msra.mxu0 0.0
      %3028 = vmatpush.msra.mxu0 0.0
      %3029 = vmatpush.msra.mxu0 0.0
      %3030 = vmatpush.msra.mxu0 0.0
      %3031 = vmatpush.msra.mxu0 0.0
      %3032 = vmatpush.msra.mxu0 0.0
      %3033 = vmatpush.msra.mxu0 0.0
      %3034 = vmatpush.msra.mxu0 0.0
      %3035 = vmatpush.msra.mxu0 %v309
      %3036 = vmatpush.msra.mxu0 %v308
      %3037 = vmatpush.msra.mxu0 %v307
      %3038 = vmatpush.msra.mxu0 %v306
      %3039 = vmatmul.f32.gmra.mxu0 %v3017
      %v3040 = vpop.f32.mrf.mxu0
      %v3041 = vadd.f32 %v3009, %v3040
      %3042 = vmatmul.f32.gmra.mxu0 %v3019
      %v3043 = vpop.f32.mrf.mxu0
      %v3044 = vadd.f32 %v3012, %v3043
      %3045 = vmatmul.f32.gmra.mxu0 %v3021
      %v3046 = vpop.f32.mrf.mxu0
      %v3047 = vadd.f32 %v3015, %v3046
      %3048 = vdwg.mxu0
      %v3049 = vrot.slane %v2974, 2
      %v3050 = vrot.slane %v2975, 2
      %v3051 = vsel %vm459, %v3049, %v3050
      %v3052 = vrot.slane %v2976, 2
      %v3053 = vsel %vm459, %v3050, %v3052
      %v3054 = vsel %vm394, %v3051, 0
      %v3056 = vsel %vm394, %v3053, 0
      %v3058 = vsel %vm394, %v3052, 0
      %3060 = vmatpush.msra.mxu0 0.0
      %3061 = vmatpush.msra.mxu0 0.0
      %3062 = vmatpush.msra.mxu0 0.0
      %3063 = vmatpush.msra.mxu0 0.0
      %3064 = vmatpush.msra.mxu0 0.0
      %3065 = vmatpush.msra.mxu0 0.0
      %3066 = vmatpush.msra.mxu0 0.0
      %3067 = vmatpush.msra.mxu0 0.0
      %3068 = vmatpush.msra.mxu0 0.0
      %3069 = vmatpush.msra.mxu0 0.0
      %3070 = vmatpush.msra.mxu0 0.0
      %3071 = vmatpush.msra.mxu0 0.0
      %3072 = vmatpush.msra.mxu0 %v317
      %3073 = vmatpush.msra.mxu0 %v316
      %3074 = vmatpush.msra.mxu0 %v315
      %3075 = vmatpush.msra.mxu0 %v314
      %3076 = vmatmul.f32.gmra.mxu0 %v3054
      %v3077 = vpop.f32.mrf.mxu0
      %v3078 = vadd.f32 0.0, %v3077
      %3079 = vmatmul.f32.gmra.mxu0 %v3056
      %v3080 = vpop.f32.mrf.mxu0
      %v3081 = vadd.f32 0.0, %v3080
      %3082 = vmatmul.f32.gmra.mxu0 %v3058
      %v3083 = vpop.f32.mrf.mxu0
      %v3084 = vadd.f32 0.0, %v3083
      %3085 = vdwg.mxu0
      %v3086 = vadd.f32 %v3041, %v3078
      %v3087 = vadd.f32 %v3044, %v3081
      %v3088 = vadd.f32 %v3047, %v3084
      %v3089 = vrot.slane %v2974, 3
      %v3090 = vrot.slane %v2975, 3
      %v3091 = vsel %vm500, %v3089, %v3090
      %v3092 = vrot.slane %v2976, 3
      %v3093 = vsel %vm500, %v3090, %v3092
      %v3094 = vsel %vm394, %v3091, 0
      %v3096 = vsel %vm394, %v3093, 0
      %v3098 = vsel %vm394, %v3092, 0
      %3100 = vmatpush.msra.mxu0 0.0
      %3101 = vmatpush.msra.mxu0 0.0
      %3102 = vmatpush.msra.mxu0 0.0
      %3103 = vmatpush.msra.mxu0 0.0
      %3104 = vmatpush.msra.mxu0 0.0
      %3105 = vmatpush.msra.mxu0 0.0
      %3106 = vmatpush.msra.mxu0 0.0
      %3107 = vmatpush.msra.mxu0 0.0
      %3108 = vmatpush.msra.mxu0 0.0
      %3109 = vmatpush.msra.mxu0 0.0
      %3110 = vmatpush.msra.mxu0 0.0
      %3111 = vmatpush.msra.mxu0 0.0
      %3112 = vmatpush.msra.mxu0 %v321
      %3113 = vmatpush.msra.mxu0 %v320
      %3114 = vmatpush.msra.mxu0 %v319
      %3115 = vmatpush.msra.mxu0 %v318
      %3116 = vmatmul.f32.gmra.mxu0 %v3094
      %v3117 = vpop.f32.mrf.mxu0
      %v3118 = vadd.f32 0.0, %v3117
      %3119 = vmatmul.f32.gmra.mxu0 %v3096
      %v3120 = vpop.f32.mrf.mxu0
      %v3121 = vadd.f32 0.0, %v3120
      %3122 = vmatmul.f32.gmra.mxu0 %v3098
      %v3123 = vpop.f32.mrf.mxu0
      %v3124 = vadd.f32 0.0, %v3123
      %3125 = vdwg.mxu0
      %v3126 = vadd.f32 %v3086, %v3118
      %v3127 = vadd.f32 %v3087, %v3121
      %v3128 = vadd.f32 %v3088, %v3124
      %v3129 = vadd.f32 %v3126, %v714
      %v3130 = vadd.f32 %v3127, %v714
      %v3131 = vadd.f32 %v3128, %v714
      %vm3132 = vcmp.ge.f32.partialorder %v3129, 0.0
      %vm3133 = vcmp.ge.f32.partialorder %v3130, 0.0
      %vm3134 = vcmp.ge.f32.partialorder %v3131, 0.0
      %v3135 = vmul.f32 %v3129, 0.01
      %v3136 = vmul.f32 %v3130, 0.01
      %v3137 = vmul.f32 %v3131, 0.01
      %v3138 = vsel %vm3132, %v3129, %v3135
      %v3139 = vsel %vm3133, %v3130, %v3136
      %v3140 = vsel %vm3134, %v3131, %v3137
      %v3141 = vmul.f32 %v3138, %v727
      %v3142 = vmul.f32 %v3139, %v727
      %v3143 = vmul.f32 %v3140, %v727
      %v3144 = vadd.f32 %v3141, %v731
      %v3145 = vadd.f32 %v3142, %v731
      %v3146 = vadd.f32 %v3143, %v731
      %s3147 = scalar_lea.vmem %s285, 144
      %3148 = vst.msk [vmem:[%s3147] sm:$0xff] %vm394, %v3144
      %3149 = vst.msk [vmem:[%s3147 + $0x8] sm:$0xff] %vm394, %v3145
      %3150 = vst.msk [vmem:[%s3147 + $0x10] sm:$0x3] %vm737, %v3146
      %s3151 = scalar_lea.vmem %s278, 168
      %v3152 = vld [vmem:[%s3151] sm:$0xff]
      %v3153 = vld [vmem:[%s3151 + $0x8] sm:$0xff]
      %v3154 = vld [vmem:[%s3151 + $0x10] sm:$0xff]
      %3156 = vset.pattern.permute.xlu0 0
      %3157 = vperm.xlu0 %3156, %v3152
      %v3158 = vpop.permute.xlu0 %3157
      %3161 = vset.pattern.permute.xlu0 0
      %3162 = vperm.xlu0 %3161, %v3153
      %v3163 = vpop.permute.xlu0 %3162
      %3166 = vset.pattern.permute.xlu0 0
      %3167 = vperm.xlu0 %3166, %v3154
      %v3168 = vpop.permute.xlu0 %3167
      %v3170 = vmul.f32 %v3158, %v341
      %v3171 = vmul.f32 %v3163, %v341
      %v3172 = vmul.f32 %v3168, %v341
      %3173 = vset.pattern.permute.xlu0 1
      %3174 = vperm.xlu0 %3173, %v3152
      %v3175 = vpop.permute.xlu0 %3174
      %3177 = vset.pattern.permute.xlu0 1
      %3178 = vperm.xlu0 %3177, %v3153
      %v3179 = vpop.permute.xlu0 %3178
      %3181 = vset.pattern.permute.xlu0 1
      %3182 = vperm.xlu0 %3181, %v3154
      %v3183 = vpop.permute.xlu0 %3182
      %v3185 = vmul.f32 %v3175, %v357
      %v3186 = vmul.f32 %v3179, %v357
      %v3187 = vmul.f32 %v3183, %v357
      %v3188 = vadd.f32 %v3170, %v3185
      %v3189 = vadd.f32 %v3171, %v3186
      %v3190 = vadd.f32 %v3172, %v3187
      %v3191 = vadd.f32 %v3188, %v364
      %v3192 = vadd.f32 %v3189, %v364
      %v3193 = vadd.f32 %v3190, %v364
      %vm3194 = vcmp.ge.f32.partialorder %v3191, 0.0
      %vm3195 = vcmp.ge.f32.partialorder %v3192, 0.0
      %vm3196 = vcmp.ge.f32.partialorder %v3193, 0.0
      %v3197 = vmul.f32 %v3191, 0.01
      %v3198 = vmul.f32 %v3192, 0.01
      %v3199 = vmul.f32 %v3193, 0.01
      %v3200 = vsel %vm3194, %v3191, %v3197
      %v3201 = vsel %vm3195, %v3192, %v3198
      %v3202 = vsel %vm3196, %v3193, %v3199
      %v3203 = vmul.f32 %v3200, %v377
      %v3204 = vmul.f32 %v3201, %v377
      %v3205 = vmul.f32 %v3202, %v377
      %v3206 = vadd.f32 %v3203, %v381
      %v3207 = vadd.f32 %v3204, %v381
      %v3208 = vadd.f32 %v3205, %v381
      %v3212 = vrot.slane %v3206, 1
      %v3213 = vrot.slane %v3207, 1
      %v3214 = vsel %vm388, %v3212, %v3213
      %v3215 = vrot.slane %v3208, 1
      %v3216 = vsel %vm388, %v3213, %v3215
      %v3217 = vsel %vm394, %v3214, 0
      %v3219 = vsel %vm394, %v3216, 0
      %v3221 = vsel %vm394, %v3215, 0
      %3223 = vmatpush.msra.mxu0 0.0
      %3224 = vmatpush.msra.mxu0 0.0
      %3225 = vmatpush.msra.mxu0 0.0
      %3226 = vmatpush.msra.mxu0 0.0
      %3227 = vmatpush.msra.mxu0 0.0
      %3228 = vmatpush.msra.mxu0 0.0
      %3229 = vmatpush.msra.mxu0 0.0
      %3230 = vmatpush.msra.mxu0 0.0
      %3231 = vmatpush.msra.mxu0 0.0
      %3232 = vmatpush.msra.mxu0 0.0
      %3233 = vmatpush.msra.mxu0 0.0
      %3234 = vmatpush.msra.mxu0 0.0
      %3235 = vmatpush.msra.mxu0 %v296
      %3236 = vmatpush.msra.mxu0 %v295
      %3237 = vmatpush.msra.mxu0 %v294
      %3238 = vmatpush.msra.mxu0 %v293
      %3239 = vmatmul.f32.gmra.mxu0 %v3217
      %v3240 = vpop.f32.mrf.mxu0
      %v3241 = vadd.f32 0.0, %v3240
      %3242 = vmatmul.f32.gmra.mxu0 %v3219
      %v3243 = vpop.f32.mrf.mxu0
      %v3244 = vadd.f32 0.0, %v3243
      %3245 = vmatmul.f32.gmra.mxu0 %v3221
      %v3246 = vpop.f32.mrf.mxu0
      %v3247 = vadd.f32 0.0, %v3246
      %3248 = vdwg.mxu0
      %v3249 = vsel %vm394, %v3206, 0
      %v3251 = vsel %vm394, %v3207, 0
      %v3253 = vsel %vm394, %v3208, 0
      %3255 = vmatpush.msra.mxu0 0.0
      %3256 = vmatpush.msra.mxu0 0.0
      %3257 = vmatpush.msra.mxu0 0.0
      %3258 = vmatpush.msra.mxu0 0.0
      %3259 = vmatpush.msra.mxu0 0.0
      %3260 = vmatpush.msra.mxu0 0.0
      %3261 = vmatpush.msra.mxu0 0.0
      %3262 = vmatpush.msra.mxu0 0.0
      %3263 = vmatpush.msra.mxu0 0.0
      %3264 = vmatpush.msra.mxu0 0.0
      %3265 = vmatpush.msra.mxu0 0.0
      %3266 = vmatpush.msra.mxu0 0.0
      %3267 = vmatpush.msra.mxu0 %v292
      %3268 = vmatpush.msra.mxu0 %v291
      %3269 = vmatpush.msra.mxu0 %v290
      %3270 = vmatpush.msra.mxu0 %v289
      %3271 = vmatmul.f32.gmra.mxu0 %v3249
      %v3272 = vpop.f32.mrf.mxu0
      %v3273 = vadd.f32 %v3241, %v3272
      %3274 = vmatmul.f32.gmra.mxu0 %v3251
      %v3275 = vpop.f32.mrf.mxu0
      %v3276 = vadd.f32 %v3244, %v3275
      %3277 = vmatmul.f32.gmra.mxu0 %v3253
      %v3278 = vpop.f32.mrf.mxu0
      %v3279 = vadd.f32 %v3247, %v3278
      %3280 = vdwg.mxu0
      %v3281 = vrot.slane %v3206, 2
      %v3282 = vrot.slane %v3207, 2
      %v3283 = vsel %vm459, %v3281, %v3282
      %v3284 = vrot.slane %v3208, 2
      %v3285 = vsel %vm459, %v3282, %v3284
      %v3286 = vsel %vm394, %v3283, 0
      %v3288 = vsel %vm394, %v3285, 0
      %v3290 = vsel %vm394, %v3284, 0
      %3292 = vmatpush.msra.mxu0 0.0
      %3293 = vmatpush.msra.mxu0 0.0
      %3294 = vmatpush.msra.mxu0 0.0
      %3295 = vmatpush.msra.mxu0 0.0
      %3296 = vmatpush.msra.mxu0 0.0
      %3297 = vmatpush.msra.mxu0 0.0
      %3298 = vmatpush.msra.mxu0 0.0
      %3299 = vmatpush.msra.mxu0 0.0
      %3300 = vmatpush.msra.mxu0 0.0
      %3301 = vmatpush.msra.mxu0 0.0
      %3302 = vmatpush.msra.mxu0 0.0
      %3303 = vmatpush.msra.mxu0 0.0
      %3304 = vmatpush.msra.mxu0 %v300
      %3305 = vmatpush.msra.mxu0 %v299
      %3306 = vmatpush.msra.mxu0 %v298
      %3307 = vmatpush.msra.mxu0 %v297
      %3308 = vmatmul.f32.gmra.mxu0 %v3286
      %v3309 = vpop.f32.mrf.mxu0
      %v3310 = vadd.f32 0.0, %v3309
      %3311 = vmatmul.f32.gmra.mxu0 %v3288
      %v3312 = vpop.f32.mrf.mxu0
      %v3313 = vadd.f32 0.0, %v3312
      %3314 = vmatmul.f32.gmra.mxu0 %v3290
      %v3315 = vpop.f32.mrf.mxu0
      %v3316 = vadd.f32 0.0, %v3315
      %3317 = vdwg.mxu0
      %v3318 = vadd.f32 %v3273, %v3310
      %v3319 = vadd.f32 %v3276, %v3313
      %v3320 = vadd.f32 %v3279, %v3316
      %v3321 = vrot.slane %v3206, 3
      %v3322 = vrot.slane %v3207, 3
      %v3323 = vsel %vm500, %v3321, %v3322
      %v3324 = vrot.slane %v3208, 3
      %v3325 = vsel %vm500, %v3322, %v3324
      %v3326 = vsel %vm394, %v3323, 0
      %v3328 = vsel %vm394, %v3325, 0
      %v3330 = vsel %vm394, %v3324, 0
      %3332 = vmatpush.msra.mxu0 0.0
      %3333 = vmatpush.msra.mxu0 0.0
      %3334 = vmatpush.msra.mxu0 0.0
      %3335 = vmatpush.msra.mxu0 0.0
      %3336 = vmatpush.msra.mxu0 0.0
      %3337 = vmatpush.msra.mxu0 0.0
      %3338 = vmatpush.msra.mxu0 0.0
      %3339 = vmatpush.msra.mxu0 0.0
      %3340 = vmatpush.msra.mxu0 0.0
      %3341 = vmatpush.msra.mxu0 0.0
      %3342 = vmatpush.msra.mxu0 0.0
      %3343 = vmatpush.msra.mxu0 0.0
      %3344 = vmatpush.msra.mxu0 %v304
      %3345 = vmatpush.msra.mxu0 %v303
      %3346 = vmatpush.msra.mxu0 %v302
      %3347 = vmatpush.msra.mxu0 %v301
      %3348 = vmatmul.f32.gmra.mxu0 %v3326
      %v3349 = vpop.f32.mrf.mxu0
      %v3350 = vadd.f32 0.0, %v3349
      %3351 = vmatmul.f32.gmra.mxu0 %v3328
      %v3352 = vpop.f32.mrf.mxu0
      %v3353 = vadd.f32 0.0, %v3352
      %3354 = vmatmul.f32.gmra.mxu0 %v3330
      %v3355 = vpop.f32.mrf.mxu0
      %v3356 = vadd.f32 0.0, %v3355
      %3357 = vdwg.mxu0
      %v3358 = vadd.f32 %v3318, %v3350
      %v3359 = vadd.f32 %v3319, %v3353
      %v3360 = vadd.f32 %v3320, %v3356
      %v3361 = vadd.f32 %v3358, %v541
      %v3362 = vadd.f32 %v3359, %v541
      %v3363 = vadd.f32 %v3360, %v541
      %vm3364 = vcmp.ge.f32.partialorder %v3361, 0.0
      %vm3365 = vcmp.ge.f32.partialorder %v3362, 0.0
      %vm3366 = vcmp.ge.f32.partialorder %v3363, 0.0
      %v3367 = vmul.f32 %v3361, 0.01
      %v3368 = vmul.f32 %v3362, 0.01
      %v3369 = vmul.f32 %v3363, 0.01
      %v3370 = vsel %vm3364, %v3361, %v3367
      %v3371 = vsel %vm3365, %v3362, %v3368
      %v3372 = vsel %vm3366, %v3363, %v3369
      %v3373 = vmul.f32 %v3370, %v554
      %v3374 = vmul.f32 %v3371, %v554
      %v3375 = vmul.f32 %v3372, %v554
      %v3376 = vadd.f32 %v3373, %v558
      %v3377 = vadd.f32 %v3374, %v558
      %v3378 = vadd.f32 %v3375, %v558
      %v3382 = vrot.slane %v3376, 1
      %v3383 = vrot.slane %v3377, 1
      %v3384 = vsel %vm388, %v3382, %v3383
      %v3385 = vrot.slane %v3378, 1
      %v3386 = vsel %vm388, %v3383, %v3385
      %v3387 = vsel %vm394, %v3384, 0
      %v3389 = vsel %vm394, %v3386, 0
      %v3391 = vsel %vm394, %v3385, 0
      %3393 = vmatpush.msra.mxu0 0.0
      %3394 = vmatpush.msra.mxu0 0.0
      %3395 = vmatpush.msra.mxu0 0.0
      %3396 = vmatpush.msra.mxu0 0.0
      %3397 = vmatpush.msra.mxu0 0.0
      %3398 = vmatpush.msra.mxu0 0.0
      %3399 = vmatpush.msra.mxu0 0.0
      %3400 = vmatpush.msra.mxu0 0.0
      %3401 = vmatpush.msra.mxu0 0.0
      %3402 = vmatpush.msra.mxu0 0.0
      %3403 = vmatpush.msra.mxu0 0.0
      %3404 = vmatpush.msra.mxu0 0.0
      %3405 = vmatpush.msra.mxu0 %v313
      %3406 = vmatpush.msra.mxu0 %v312
      %3407 = vmatpush.msra.mxu0 %v311
      %3408 = vmatpush.msra.mxu0 %v310
      %3409 = vmatmul.f32.gmra.mxu0 %v3387
      %v3410 = vpop.f32.mrf.mxu0
      %v3411 = vadd.f32 0.0, %v3410
      %3412 = vmatmul.f32.gmra.mxu0 %v3389
      %v3413 = vpop.f32.mrf.mxu0
      %v3414 = vadd.f32 0.0, %v3413
      %3415 = vmatmul.f32.gmra.mxu0 %v3391
      %v3416 = vpop.f32.mrf.mxu0
      %v3417 = vadd.f32 0.0, %v3416
      %3418 = vdwg.mxu0
      %v3419 = vsel %vm394, %v3376, 0
      %v3421 = vsel %vm394, %v3377, 0
      %v3423 = vsel %vm394, %v3378, 0
      %3425 = vmatpush.msra.mxu0 0.0
      %3426 = vmatpush.msra.mxu0 0.0
      %3427 = vmatpush.msra.mxu0 0.0
      %3428 = vmatpush.msra.mxu0 0.0
      %3429 = vmatpush.msra.mxu0 0.0
      %3430 = vmatpush.msra.mxu0 0.0
      %3431 = vmatpush.msra.mxu0 0.0
      %3432 = vmatpush.msra.mxu0 0.0
      %3433 = vmatpush.msra.mxu0 0.0
      %3434 = vmatpush.msra.mxu0 0.0
      %3435 = vmatpush.msra.mxu0 0.0
      %3436 = vmatpush.msra.mxu0 0.0
      %3437 = vmatpush.msra.mxu0 %v309
      %3438 = vmatpush.msra.mxu0 %v308
      %3439 = vmatpush.msra.mxu0 %v307
      %3440 = vmatpush.msra.mxu0 %v306
      %3441 = vmatmul.f32.gmra.mxu0 %v3419
      %v3442 = vpop.f32.mrf.mxu0
      %v3443 = vadd.f32 %v3411, %v3442
      %3444 = vmatmul.f32.gmra.mxu0 %v3421
      %v3445 = vpop.f32.mrf.mxu0
      %v3446 = vadd.f32 %v3414, %v3445
      %3447 = vmatmul.f32.gmra.mxu0 %v3423
      %v3448 = vpop.f32.mrf.mxu0
      %v3449 = vadd.f32 %v3417, %v3448
      %3450 = vdwg.mxu0
      %v3451 = vrot.slane %v3376, 2
      %v3452 = vrot.slane %v3377, 2
      %v3453 = vsel %vm459, %v3451, %v3452
      %v3454 = vrot.slane %v3378, 2
      %v3455 = vsel %vm459, %v3452, %v3454
      %v3456 = vsel %vm394, %v3453, 0
      %v3458 = vsel %vm394, %v3455, 0
      %v3460 = vsel %vm394, %v3454, 0
      %3462 = vmatpush.msra.mxu0 0.0
      %3463 = vmatpush.msra.mxu0 0.0
      %3464 = vmatpush.msra.mxu0 0.0
      %3465 = vmatpush.msra.mxu0 0.0
      %3466 = vmatpush.msra.mxu0 0.0
      %3467 = vmatpush.msra.mxu0 0.0
      %3468 = vmatpush.msra.mxu0 0.0
      %3469 = vmatpush.msra.mxu0 0.0
      %3470 = vmatpush.msra.mxu0 0.0
      %3471 = vmatpush.msra.mxu0 0.0
      %3472 = vmatpush.msra.mxu0 0.0
      %3473 = vmatpush.msra.mxu0 0.0
      %3474 = vmatpush.msra.mxu0 %v317
      %3475 = vmatpush.msra.mxu0 %v316
      %3476 = vmatpush.msra.mxu0 %v315
      %3477 = vmatpush.msra.mxu0 %v314
      %3478 = vmatmul.f32.gmra.mxu0 %v3456
      %v3479 = vpop.f32.mrf.mxu0
      %v3480 = vadd.f32 0.0, %v3479
      %3481 = vmatmul.f32.gmra.mxu0 %v3458
      %v3482 = vpop.f32.mrf.mxu0
      %v3483 = vadd.f32 0.0, %v3482
      %3484 = vmatmul.f32.gmra.mxu0 %v3460
      %v3485 = vpop.f32.mrf.mxu0
      %v3486 = vadd.f32 0.0, %v3485
      %3487 = vdwg.mxu0
      %v3488 = vadd.f32 %v3443, %v3480
      %v3489 = vadd.f32 %v3446, %v3483
      %v3490 = vadd.f32 %v3449, %v3486
      %v3491 = vrot.slane %v3376, 3
      %v3492 = vrot.slane %v3377, 3
      %v3493 = vsel %vm500, %v3491, %v3492
      %v3494 = vrot.slane %v3378, 3
      %v3495 = vsel %vm500, %v3492, %v3494
      %v3496 = vsel %vm394, %v3493, 0
      %v3498 = vsel %vm394, %v3495, 0
      %v3500 = vsel %vm394, %v3494, 0
      %3502 = vmatpush.msra.mxu0 0.0
      %3503 = vmatpush.msra.mxu0 0.0
      %3504 = vmatpush.msra.mxu0 0.0
      %3505 = vmatpush.msra.mxu0 0.0
      %3506 = vmatpush.msra.mxu0 0.0
      %3507 = vmatpush.msra.mxu0 0.0
      %3508 = vmatpush.msra.mxu0 0.0
      %3509 = vmatpush.msra.mxu0 0.0
      %3510 = vmatpush.msra.mxu0 0.0
      %3511 = vmatpush.msra.mxu0 0.0
      %3512 = vmatpush.msra.mxu0 0.0
      %3513 = vmatpush.msra.mxu0 0.0
      %3514 = vmatpush.msra.mxu0 %v321
      %3515 = vmatpush.msra.mxu0 %v320
      %3516 = vmatpush.msra.mxu0 %v319
      %3517 = vmatpush.msra.mxu0 %v318
      %3518 = vmatmul.f32.gmra.mxu0 %v3496
      %v3519 = vpop.f32.mrf.mxu0
      %v3520 = vadd.f32 0.0, %v3519
      %3521 = vmatmul.f32.gmra.mxu0 %v3498
      %v3522 = vpop.f32.mrf.mxu0
      %v3523 = vadd.f32 0.0, %v3522
      %3524 = vmatmul.f32.gmra.mxu0 %v3500
      %v3525 = vpop.f32.mrf.mxu0
      %v3526 = vadd.f32 0.0, %v3525
      %3527 = vdwg.mxu0
      %v3528 = vadd.f32 %v3488, %v3520
      %v3529 = vadd.f32 %v3489, %v3523
      %v3530 = vadd.f32 %v3490, %v3526
      %v3531 = vadd.f32 %v3528, %v714
      %v3532 = vadd.f32 %v3529, %v714
      %v3533 = vadd.f32 %v3530, %v714
      %vm3534 = vcmp.ge.f32.partialorder %v3531, 0.0
      %vm3535 = vcmp.ge.f32.partialorder %v3532, 0.0
      %vm3536 = vcmp.ge.f32.partialorder %v3533, 0.0
      %v3537 = vmul.f32 %v3531, 0.01
      %v3538 = vmul.f32 %v3532, 0.01
      %v3539 = vmul.f32 %v3533, 0.01
      %v3540 = vsel %vm3534, %v3531, %v3537
      %v3541 = vsel %vm3535, %v3532, %v3538
      %v3542 = vsel %vm3536, %v3533, %v3539
      %v3543 = vmul.f32 %v3540, %v727
      %v3544 = vmul.f32 %v3541, %v727
      %v3545 = vmul.f32 %v3542, %v727
      %v3546 = vadd.f32 %v3543, %v731
      %v3547 = vadd.f32 %v3544, %v731
      %v3548 = vadd.f32 %v3545, %v731
      %s3549 = scalar_lea.vmem %s285, 168
      %3550 = vst.msk [vmem:[%s3549] sm:$0xff] %vm394, %v3546
      %3551 = vst.msk [vmem:[%s3549 + $0x8] sm:$0xff] %vm394, %v3547
      %3552 = vst.msk [vmem:[%s3549 + $0x10] sm:$0x3] %vm737, %v3548
      %s3553 = smul.u32 8, %s18
      %p3554 = scmp.lt.s32.totalorder %s3553, 23
      %s3555 = scalar_select %p3554, %s3553, 23
      %s3556 = smul.addr %s3555, 3
      %s3557 = smul.addr %s3556, 8
      %s3558 = scalar_lea.vmem %s7, %s3557
      // Predicated region
      $region49: #{deeplob_depth_forward.4} parent=47 // pred_check
        %p3559 = pneg %p188
      $region50: #{deeplob_depth_forward.4} parent=47 // pred_check_branch
        %3561 = sbr.rel (%p3559) target = $region52
      $region51: #{deeplob_depth_forward.4} parent=47 // pred_region
        %s3562 = smul.u32 8, %s18
      $region52: #{deeplob_depth_forward.4} parent=47 // pred_fallthru
        _
    $region48: #{deeplob_depth_forward.4} parent=5 // pred_fallthru
      _
    %p3563 = scmp.le.s32.totalorder 2, %s13
    // Predicated region
    $region53: #{deeplob_depth_forward.4} parent=5 // pred_check
      %p3564 = pneg %p3563
    $region54: #{deeplob_depth_forward.4} parent=5 // pred_check_branch
      %3566 = sbr.rel (%p3564) target = $region56
    $region55: #{deeplob_depth_forward.4} parent=5 // pred_region
      %s3567 = ssub.s32 %s13, 2
      // Predicated region
      $region57: #{deeplob_depth_forward.4} parent=55 // pred_check
        %p3568 = pneg %p194
      $region58: #{deeplob_depth_forward.4} parent=55 // pred_check_branch
        %3570 = sbr.rel (%p3568) target = $region60
      $region59: #{deeplob_depth_forward.4} parent=55 // pred_region
        %s3571 = smul.u32 8, %s19
        %p3572 = scmp.lt.s32.totalorder %s3571, 23
        %s3573 = scalar_select %p3572, %s3571, 23
        %s3574 = smul.addr %s3573, 3
        %s3575 = smul.addr %s3574, 8
        %s3576 = scalar_lea.vmem %s7, %s3575
      $region60: #{deeplob_depth_forward.4} parent=55 // pred_fallthru
        _
    $region56: #{deeplob_depth_forward.4} parent=5 // pred_fallthru
      _
  $region6: #{deeplob_depth_forward.4} parent=0 // loop_footer
    %s17 = sadd.s32 1, %s13
  $region7: #{deeplob_depth_forward.4} parent=0 // loop_footer_branch
    %12 = sbr.rel target = $region3
  $region8: #{deeplob_depth_forward.4} parent=0 // loop_exit
    _

// kernel: deeplob_depth_forward.7
$region0: #{deeplob_depth_forward.7}
  #allocation0 [shape = 'u32[]', space=smem, size = 0x4, offset = 0x4, fixed_abs, tag = 'smem constant byte address 0x4 - core index']
  #allocation1 [shape = 'u32[72,128]{1,0:T(1,128)}', space=vmem, size = 0x9000, scoped, tag = 'internal scratch']
  %s0 = inlined_call_operand.vmem [shape: f32[12,2,256], index: 0, kind: input, shape index: {}]
  %s1 = inlined_call_operand.vmem [shape: f32[64,256], index: 1, kind: input, shape index: {}]
  %s2 = inlined_call_operand.vmem [shape: f32[64,3], index: 2, kind: input, shape index: {}]
  %s3 = inlined_call_operand.vmem [shape: f32[1,3], index: 3, kind: input, shape index: {}]
  %s4 = inlined_call_operand.hbm [shape: f32[2,3], index: 4, kind: output, shape index: {}]
  %s5 = sld [smem:[#allocation0]]
  $region26: #{deeplob_depth_forward.7} parent=0
    _
  %s7 = ssub.s32 1, %s5
  %s8 = scalar_select 0, %s7, %s5
  $region1: #{deeplob_depth_forward.7} parent=0
    #allocation2 [shape = 'u8[1024]{0}', space=vmem, size = 0x400, scoped, tag = 'output window, operand 0, single buffered']
    #allocation3 [shape = 's32[1]{0}', space=sflag, size = 0x4, scoped, tag = 'scoped memory for deeplob_depth_forward.7']
    %9 = vsyncpa [#allocation3], 0
    // Predicated region
    $region2: #{deeplob_depth_forward.7} parent=1 // pred_check
      _
    $region3: #{deeplob_depth_forward.7} parent=1 // pred_check_branch
      %11 = sbr.rel (0) target = $region5
    $region4: #{deeplob_depth_forward.7} parent=1 // pred_region
      _
    $region5: #{deeplob_depth_forward.7} parent=1 // pred_fallthru
      _
    // Predicated region
    $region6: #{deeplob_depth_forward.7} parent=1 // pred_check
      _
    $region7: #{deeplob_depth_forward.7} parent=1 // pred_check_branch
      %13 = sbr.rel (0) target = $region9
    $region8: #{deeplob_depth_forward.7} parent=1 // pred_region
      _
    $region9: #{deeplob_depth_forward.7} parent=1 // pred_fallthru
      _
    // Predicated region
    $region10: #{deeplob_depth_forward.7} parent=1 // pred_check
      _
    $region11: #{deeplob_depth_forward.7} parent=1 // pred_check_branch
      %15 = sbr.rel (0) target = $region13
    $region12: #{deeplob_depth_forward.7} parent=1 // pred_region
      _
    $region13: #{deeplob_depth_forward.7} parent=1 // pred_fallthru
      _
    // Predicated region
    $region14: #{deeplob_depth_forward.7} parent=1 // pred_check
      _
    $region15: #{deeplob_depth_forward.7} parent=1 // pred_check_branch
      %17 = sbr.rel (0) target = $region17
    $region16: #{deeplob_depth_forward.7} parent=1 // pred_region
      _
    $region17: #{deeplob_depth_forward.7} parent=1 // pred_fallthru
      _
    %v18 = vld [vmem:[%s1] sm:$0xff]
    %v19 = vld [vmem:[%s1 + $0x8] sm:$0xff]
    %v20 = vld [vmem:[%s1 + $0x10] sm:$0xff]
    %v21 = vld [vmem:[%s1 + $0x18] sm:$0xff]
    %v22 = vld [vmem:[%s1 + $0x20] sm:$0xff]
    %v23 = vld [vmem:[%s1 + $0x28] sm:$0xff]
    %v24 = vld [vmem:[%s1 + $0x30] sm:$0xff]
    %v25 = vld [vmem:[%s1 + $0x38] sm:$0xff]
    %v26 = vld [vmem:[%s1 + $0x40] sm:$0xff]
    %v27 = vld [vmem:[%s1 + $0x48] sm:$0xff]
    %v28 = vld [vmem:[%s1 + $0x50] sm:$0xff]
    %v29 = vld [vmem:[%s1 + $0x58] sm:$0xff]
    %v30 = vld [vmem:[%s1 + $0x60] sm:$0xff]
    %v31 = vld [vmem:[%s1 + $0x68] sm:$0xff]
    %v32 = vld [vmem:[%s1 + $0x70] sm:$0xff]
    %v33 = vld [vmem:[%s1 + $0x78] sm:$0xff]
    %v34 = vld [vmem:[%s0] sm:$0xf]
    %vm35 = vcmask 523264
    %v37 = vsel %vm35, 0.0, 0
    %39 = vmatpush.msra.mxu0 0.0
    %40 = vmatpush.msra.mxu0 0.0
    %41 = vmatpush.msra.mxu0 0.0
    %42 = vmatpush.msra.mxu0 0.0
    %43 = vmatpush.msra.mxu0 0.0
    %44 = vmatpush.msra.mxu0 0.0
    %45 = vmatpush.msra.mxu0 0.0
    %46 = vmatpush.msra.mxu0 0.0
    %47 = vmatpush.msra.mxu0 %v32
    %48 = vmatpush.msra.mxu0 %v30
    %49 = vmatpush.msra.mxu0 %v28
    %50 = vmatpush.msra.mxu0 %v26
    %51 = vmatpush.msra.mxu0 %v24
    %52 = vmatpush.msra.mxu0 %v22
    %53 = vmatpush.msra.mxu0 %v20
    %54 = vmatpush.msra.mxu0 %v18
    %55 = vmatmul.f32.gmra.mxu0 %v37
    %v56 = vpop.f32.mrf.mxu0
    %v57 = vadd.f32 0.0, %v56
    %58 = vdwg.mxu0
    %59 = vmatpush.msra.mxu0 0.0
    %60 = vmatpush.msra.mxu0 0.0
    %61 = vmatpush.msra.mxu0 0.0
    %62 = vmatpush.msra.mxu0 0.0
    %63 = vmatpush.msra.mxu0 0.0
    %64 = vmatpush.msra.mxu0 0.0
    %65 = vmatpush.msra.mxu0 0.0
    %66 = vmatpush.msra.mxu0 0.0
    %67 = vmatpush.msra.mxu0 %v33
    %68 = vmatpush.msra.mxu0 %v31
    %69 = vmatpush.msra.mxu0 %v29
    %70 = vmatpush.msra.mxu0 %v27
    %71 = vmatpush.msra.mxu0 %v25
    %72 = vmatpush.msra.mxu0 %v23
    %73 = vmatpush.msra.mxu0 %v21
    %74 = vmatpush.msra.mxu0 %v19
    %75 = vmatmul.f32.gmra.mxu0 %v37
    %v76 = vpop.f32.mrf.mxu0
    %v77 = vadd.f32 0.0, %v76
    %78 = vdwg.mxu0
    %v81 = vrot.slane %v77, 6
    %vm82 = vcmask 1041408
    %v83 = vsel %vm82, %v57, %v81
    %v85 = vadd.f32 %v34, %v83
    %v86 = vxor.u32 %v85, 2147483648
    %v87 = vmul.f32 %v86, 1.442695
    %v88 = vpow.pop %v87
    %v89 = vadd.f32 %v88, 1.0
    %v90 = vrcp.pop %v89
    %v91 = vmul.f32 %v89, %v90
    %v92 = vsub.f32 1.0, %v91
    %v93 = vmul.f32 %v90, %v92
    %v94 = vadd.f32 %v90, %v93
    %vm95 = vweird.f32 %v89
    %vm96 = vweird.f32 %v90
    %vm97 = vmor %vm95, %vm96
    %v98 = vsel %vm97, %v90, %v94
    %v99 = vand.u32 2147483647, %v89
    %vm100 = vcmp.eq.f32.partialorder %v99, 8.507059e+37
    %v101 = vand.u32 %v89, 2147483648
    %v102 = vor.u32 1.1754944e-38, %v101
    %v103 = vsel %vm100, %v102, %v98
    %v104 = vmul.f32 1.0, %v103
    %106 = vrot.lane.b32.xlu0 %v85, 64
    %v107 = vpop.permute.xlu0 %106
    %v108 = vrot.slane %v107, 2
    %v110 = vtanh.pop %v108
    %v111 = vmul.f32 %v104, 0.0
    %v112 = vmul.f32 %v104, %v110
    %114 = vrot.lane.b32.xlu0 %v112, 64
    %v115 = vpop.permute.xlu0 %114
    %v117 = vadd.f32 %v111, %v115
    %v118 = vtanh.pop %v117
    %v120 = vrot.slane %v104, 2
    %123 = vrot.lane.b32.xlu0 %v118, 64
    %v124 = vpop.permute.xlu0 %123
    %v126 = vmul.f32 %v120, %v124
    %s127 = scalar_lea.vmem %s0, 4
    %v128 = vld [vmem:[%s127] sm:$0xf]
    %v130 = vsel %vm35, %v126, 0
    %132 = vmatpush.msra.mxu0 0.0
    %133 = vmatpush.msra.mxu0 0.0
    %134 = vmatpush.msra.mxu0 0.0
    %135 = vmatpush.msra.mxu0 0.0
    %136 = vmatpush.msra.mxu0 0.0
    %137 = vmatpush.msra.mxu0 0.0
    %138 = vmatpush.msra.mxu0 0.0
    %139 = vmatpush.msra.mxu0 0.0
    %140 = vmatpush.msra.mxu0 %v32
    %141 = vmatpush.msra.mxu0 %v30
    %142 = vmatpush.msra.mxu0 %v28
    %143 = vmatpush.msra.mxu0 %v26
    %144 = vmatpush.msra.mxu0 %v24
    %145 = vmatpush.msra.mxu0 %v22
    %146 = vmatpush.msra.mxu0 %v20
    %147 = vmatpush.msra.mxu0 %v18
    %148 = vmatmul.f32.gmra.mxu0 %v130
    %v149 = vpop.f32.mrf.mxu0
    %v150 = vadd.f32 0.0, %v149
    %151 = vdwg.mxu0
    %152 = vmatpush.msra.mxu0 0.0
    %153 = vmatpush.msra.mxu0 0.0
    %154 = vmatpush.msra.mxu0 0.0
    %155 = vmatpush.msra.mxu0 0.0
    %156 = vmatpush.msra.mxu0 0.0
    %157 = vmatpush.msra.mxu0 0.0
    %158 = vmatpush.msra.mxu0 0.0
    %159 = vmatpush.msra.mxu0 0.0
    %160 = vmatpush.msra.mxu0 %v33
    %161 = vmatpush.msra.mxu0 %v31
    %162 = vmatpush.msra.mxu0 %v29
    %163 = vmatpush.msra.mxu0 %v27
    %164 = vmatpush.msra.mxu0 %v25
    %165 = vmatpush.msra.mxu0 %v23
    %166 = vmatpush.msra.mxu0 %v21
    %167 = vmatpush.msra.mxu0 %v19
    %168 = vmatmul.f32.gmra.mxu0 %v130
    %v169 = vpop.f32.mrf.mxu0
    %v170 = vadd.f32 0.0, %v169
    %171 = vdwg.mxu0
    %v174 = vrot.slane %v170, 6
    %v175 = vsel %vm82, %v150, %v174
    %v177 = vadd.f32 %v128, %v175
    %v178 = vxor.u32 %v177, 2147483648
    %v179 = vmul.f32 %v178, 1.442695
    %v180 = vpow.pop %v179
    %v181 = vadd.f32 %v180, 1.0
    %v182 = vrcp.pop %v181
    %v183 = vmul.f32 %v181, %v182
    %v184 = vsub.f32 1.0, %v183
    %v185 = vmul.f32 %v182, %v184
    %v186 = vadd.f32 %v182, %v185
    %vm187 = vweird.f32 %v181
    %vm188 = vweird.f32 %v182
    %vm189 = vmor %vm187, %vm188
    %v190 = vsel %vm189, %v182, %v186
    %v191 = vand.u32 2147483647, %v181
    %vm192 = vcmp.eq.f32.partialorder %v191, 8.507059e+37
    %v193 = vand.u32 %v181, 2147483648
    %v194 = vor.u32 1.1754944e-38, %v193
    %v195 = vsel %vm192, %v194, %v190
    %v196 = vmul.f32 1.0, %v195
    %198 = vrot.lane.b32.xlu0 %v177, 64
    %v199 = vpop.permute.xlu0 %198
    %v200 = vrot.slane %v199, 2
    %v202 = vtanh.pop %v200
    %v203 = vmul.f32 %v196, %v117
    %v204 = vmul.f32 %v196, %v202
    %206 = vrot.lane.b32.xlu0 %v204, 64
    %v207 = vpop.permute.xlu0 %206
    %v209 = vadd.f32 %v203, %v207
    %v210 = vtanh.pop %v209
    %v212 = vrot.slane %v196, 2
    %215 = vrot.lane.b32.xlu0 %v210, 64
    %v216 = vpop.permute.xlu0 %215
    %v218 = vmul.f32 %v212, %v216
    %s219 = scalar_lea.vmem %s0, 8
    %v220 = vld [vmem:[%s219] sm:$0xf]
    %v222 = vsel %vm35, %v218, 0
    %224 = vmatpush.msra.mxu0 0.0
    %225 = vmatpush.msra.mxu0 0.0
    %226 = vmatpush.msra.mxu0 0.0
    %227 = vmatpush.msra.mxu0 0.0
    %228 = vmatpush.msra.mxu0 0.0
    %229 = vmatpush.msra.mxu0 0.0
    %230 = vmatpush.msra.mxu0 0.0
    %231 = vmatpush.msra.mxu0 0.0
    %232 = vmatpush.msra.mxu0 %v32
    %233 = vmatpush.msra.mxu0 %v30
    %234 = vmatpush.msra.mxu0 %v28
    %235 = vmatpush.msra.mxu0 %v26
    %236 = vmatpush.msra.mxu0 %v24
    %237 = vmatpush.msra.mxu0 %v22
    %238 = vmatpush.msra.mxu0 %v20
    %239 = vmatpush.msra.mxu0 %v18
    %240 = vmatmul.f32.gmra.mxu0 %v222
    %v241 = vpop.f32.mrf.mxu0
    %v242 = vadd.f32 0.0, %v241
    %243 = vdwg.mxu0
    %244 = vmatpush.msra.mxu0 0.0
    %245 = vmatpush.msra.mxu0 0.0
    %246 = vmatpush.msra.mxu0 0.0
    %247 = vmatpush.msra.mxu0 0.0
    %248 = vmatpush.msra.mxu0 0.0
    %249 = vmatpush.msra.mxu0 0.0
    %250 = vmatpush.msra.mxu0 0.0
    %251 = vmatpush.msra.mxu0 0.0
    %252 = vmatpush.msra.mxu0 %v33
    %253 = vmatpush.msra.mxu0 %v31
    %254 = vmatpush.msra.mxu0 %v29
    %255 = vmatpush.msra.mxu0 %v27
    %256 = vmatpush.msra.mxu0 %v25
    %257 = vmatpush.msra.mxu0 %v23
    %258 = vmatpush.msra.mxu0 %v21
    %259 = vmatpush.msra.mxu0 %v19
    %260 = vmatmul.f32.gmra.mxu0 %v222
    %v261 = vpop.f32.mrf.mxu0
    %v262 = vadd.f32 0.0, %v261
    %263 = vdwg.mxu0
    %v266 = vrot.slane %v262, 6
    %v267 = vsel %vm82, %v242, %v266
    %v269 = vadd.f32 %v220, %v267
    %v270 = vxor.u32 %v269, 2147483648
    %v271 = vmul.f32 %v270, 1.442695
    %v272 = vpow.pop %v271
    %v273 = vadd.f32 %v272, 1.0
    %v274 = vrcp.pop %v273
    %v275 = vmul.f32 %v273, %v274
    %v276 = vsub.f32 1.0, %v275
    %v277 = vmul.f32 %v274, %v276
    %v278 = vadd.f32 %v274, %v277
    %vm279 = vweird.f32 %v273
    %vm280 = vweird.f32 %v274
    %vm281 = vmor %vm279, %vm280
    %v282 = vsel %vm281, %v274, %v278
    %v283 = vand.u32 2147483647, %v273
    %vm284 = vcmp.eq.f32.partialorder %v283, 8.507059e+37
    %v285 = vand.u32 %v273, 2147483648
    %v286 = vor.u32 1.1754944e-38, %v285
    %v287 = vsel %vm284, %v286, %v282
    %v288 = vmul.f32 1.0, %v287
    %290 = vrot.lane.b32.xlu0 %v269, 64
    %v291 = vpop.permute.xlu0 %290
    %v292 = vrot.slane %v291, 2
    %v294 = vtanh.pop %v292
    %v295 = vmul.f32 %v288, %v209
    %v296 = vmul.f32 %v288, %v294
    %298 = vrot.lane.b32.xlu0 %v296, 64
    %v299 = vpop.permute.xlu0 %298
    %v301 = vadd.f32 %v295, %v299
    %v302 = vtanh.pop %v301
    %v304 = vrot.slane %v288, 2
    %307 = vrot.lane.b32.xlu0 %v302, 64
    %v308 = vpop.permute.xlu0 %307
    %v310 = vmul.f32 %v304, %v308
    %s311 = scalar_lea.vmem %s0, 12
    %v312 = vld [vmem:[%s311] sm:$0xf]
    %v314 = vsel %vm35, %v310, 0
    %316 = vmatpush.msra.mxu0 0.0
    %317 = vmatpush.msra.mxu0 0.0
    %318 = vmatpush.msra.mxu0 0.0
    %319 = vmatpush.msra.mxu0 0.0
    %320 = vmatpush.msra.mxu0 0.0
    %321 = vmatpush.msra.mxu0 0.0
    %322 = vmatpush.msra.mxu0 0.0
    %323 = vmatpush.msra.mxu0 0.0
    %324 = vmatpush.msra.mxu0 %v32
    %325 = vmatpush.msra.mxu0 %v30
    %326 = vmatpush.msra.mxu0 %v28
    %327 = vmatpush.msra.mxu0 %v26
    %328 = vmatpush.msra.mxu0 %v24
    %329 = vmatpush.msra.mxu0 %v22
    %330 = vmatpush.msra.mxu0 %v20
    %331 = vmatpush.msra.mxu0 %v18
    %332 = vmatmul.f32.gmra.mxu0 %v314
    %v333 = vpop.f32.mrf.mxu0
    %v334 = vadd.f32 0.0, %v333
    %335 = vdwg.mxu0
    %336 = vmatpush.msra.mxu0 0.0
    %337 = vmatpush.msra.mxu0 0.0
    %338 = vmatpush.msra.mxu0 0.0
    %339 = vmatpush.msra.mxu0 0.0
    %340 = vmatpush.msra.mxu0 0.0
    %341 = vmatpush.msra.mxu0 0.0
    %342 = vmatpush.msra.mxu0 0.0
    %343 = vmatpush.msra.mxu0 0.0
    %344 = vmatpush.msra.mxu0 %v33
    %345 = vmatpush.msra.mxu0 %v31
    %346 = vmatpush.msra.mxu0 %v29
    %347 = vmatpush.msra.mxu0 %v27
    %348 = vmatpush.msra.mxu0 %v25
    %349 = vmatpush.msra.mxu0 %v23
    %350 = vmatpush.msra.mxu0 %v21
    %351 = vmatpush.msra.mxu0 %v19
    %352 = vmatmul.f32.gmra.mxu0 %v314
    %v353 = vpop.f32.mrf.mxu0
    %v354 = vadd.f32 0.0, %v353
    %355 = vdwg.mxu0
    %v358 = vrot.slane %v354, 6
    %v359 = vsel %vm82, %v334, %v358
    %v361 = vadd.f32 %v312, %v359
    %v362 = vxor.u32 %v361, 2147483648
    %v363 = vmul.f32 %v362, 1.442695
    %v364 = vpow.pop %v363
    %v365 = vadd.f32 %v364, 1.0
    %v366 = vrcp.pop %v365
    %v367 = vmul.f32 %v365, %v366
    %v368 = vsub.f32 1.0, %v367
    %v369 = vmul.f32 %v366, %v368
    %v370 = vadd.f32 %v366, %v369
    %vm371 = vweird.f32 %v365
    %vm372 = vweird.f32 %v366
    %vm373 = vmor %vm371, %vm372
    %v374 = vsel %vm373, %v366, %v370
    %v375 = vand.u32 2147483647, %v365
    %vm376 = vcmp.eq.f32.partialorder %v375, 8.507059e+37
    %v377 = vand.u32 %v365, 2147483648
    %v378 = vor.u32 1.1754944e-38, %v377
    %v379 = vsel %vm376, %v378, %v374
    %v380 = vmul.f32 1.0, %v379
    %382 = vrot.lane.b32.xlu0 %v361, 64
    %v383 = vpop.permute.xlu0 %382
    %v384 = vrot.slane %v383, 2
    %v386 = vtanh.pop %v384
    %v387 = vmul.f32 %v380, %v301
    %v388 = vmul.f32 %v380, %v386
    %390 = vrot.lane.b32.xlu0 %v388, 64
    %v391 = vpop.permute.xlu0 %390
    %v393 = vadd.f32 %v387, %v391
    %v394 = vtanh.pop %v393
    %v396 = vrot.slane %v380, 2
    %399 = vrot.lane.b32.xlu0 %v394, 64
    %v400 = vpop.permute.xlu0 %399
    %v402 = vmul.f32 %v396, %v400
    %s403 = scalar_lea.vmem %s0, 16
    %v404 = vld [vmem:[%s403] sm:$0xf]
    %v406 = vsel %vm35, %v402, 0
    %408 = vmatpush.msra.mxu0 0.0
    %409 = vmatpush.msra.mxu0 0.0
    %410 = vmatpush.msra.mxu0 0.0
    %411 = vmatpush.msra.mxu0 0.0
    %412 = vmatpush.msra.mxu0 0.0
    %413 = vmatpush.msra.mxu0 0.0
    %414 = vmatpush.msra.mxu0 0.0
    %415 = vmatpush.msra.mxu0 0.0
    %416 = vmatpush.msra.mxu0 %v32
    %417 = vmatpush.msra.mxu0 %v30
    %418 = vmatpush.msra.mxu0 %v28
    %419 = vmatpush.msra.mxu0 %v26
    %420 = vmatpush.msra.mxu0 %v24
    %421 = vmatpush.msra.mxu0 %v22
    %422 = vmatpush.msra.mxu0 %v20
    %423 = vmatpush.msra.mxu0 %v18
    %424 = vmatmul.f32.gmra.mxu0 %v406
    %v425 = vpop.f32.mrf.mxu0
    %v426 = vadd.f32 0.0, %v425
    %427 = vdwg.mxu0
    %428 = vmatpush.msra.mxu0 0.0
    %429 = vmatpush.msra.mxu0 0.0
    %430 = vmatpush.msra.mxu0 0.0
    %431 = vmatpush.msra.mxu0 0.0
    %432 = vmatpush.msra.mxu0 0.0
    %433 = vmatpush.msra.mxu0 0.0
    %434 = vmatpush.msra.mxu0 0.0
    %435 = vmatpush.msra.mxu0 0.0
    %436 = vmatpush.msra.mxu0 %v33
    %437 = vmatpush.msra.mxu0 %v31
    %438 = vmatpush.msra.mxu0 %v29
    %439 = vmatpush.msra.mxu0 %v27
    %440 = vmatpush.msra.mxu0 %v25
    %441 = vmatpush.msra.mxu0 %v23
    %442 = vmatpush.msra.mxu0 %v21
    %443 = vmatpush.msra.mxu0 %v19
    %444 = vmatmul.f32.gmra.mxu0 %v406
    %v445 = vpop.f32.mrf.mxu0
    %v446 = vadd.f32 0.0, %v445
    %447 = vdwg.mxu0
    %v450 = vrot.slane %v446, 6
    %v451 = vsel %vm82, %v426, %v450
    %v453 = vadd.f32 %v404, %v451
    %v454 = vxor.u32 %v453, 2147483648
    %v455 = vmul.f32 %v454, 1.442695
    %v456 = vpow.pop %v455
    %v457 = vadd.f32 %v456, 1.0
    %v458 = vrcp.pop %v457
    %v459 = vmul.f32 %v457, %v458
    %v460 = vsub.f32 1.0, %v459
    %v461 = vmul.f32 %v458, %v460
    %v462 = vadd.f32 %v458, %v461
    %vm463 = vweird.f32 %v457
    %vm464 = vweird.f32 %v458
    %vm465 = vmor %vm463, %vm464
    %v466 = vsel %vm465, %v458, %v462
    %v467 = vand.u32 2147483647, %v457
    %vm468 = vcmp.eq.f32.partialorder %v467, 8.507059e+37
    %v469 = vand.u32 %v457, 2147483648
    %v470 = vor.u32 1.1754944e-38, %v469
    %v471 = vsel %vm468, %v470, %v466
    %v472 = vmul.f32 1.0, %v471
    %474 = vrot.lane.b32.xlu0 %v453, 64
    %v475 = vpop.permute.xlu0 %474
    %v476 = vrot.slane %v475, 2
    %v478 = vtanh.pop %v476
    %v479 = vmul.f32 %v472, %v393
    %v480 = vmul.f32 %v472, %v478
    %482 = vrot.lane.b32.xlu0 %v480, 64
    %v483 = vpop.permute.xlu0 %482
    %v485 = vadd.f32 %v479, %v483
    %v486 = vtanh.pop %v485
    %v488 = vrot.slane %v472, 2
    %491 = vrot.lane.b32.xlu0 %v486, 64
    %v492 = vpop.permute.xlu0 %491
    %v494 = vmul.f32 %v488, %v492
    %s495 = scalar_lea.vmem %s0, 20
    %v496 = vld [vmem:[%s495] sm:$0xf]
    %v498 = vsel %vm35, %v494, 0
    %500 = vmatpush.msra.mxu0 0.0
    %501 = vmatpush.msra.mxu0 0.0
    %502 = vmatpush.msra.mxu0 0.0
    %503 = vmatpush.msra.mxu0 0.0
    %504 = vmatpush.msra.mxu0 0.0
    %505 = vmatpush.msra.mxu0 0.0
    %506 = vmatpush.msra.mxu0 0.0
    %507 = vmatpush.msra.mxu0 0.0
    %508 = vmatpush.msra.mxu0 %v32
    %509 = vmatpush.msra.mxu0 %v30
    %510 = vmatpush.msra.mxu0 %v28
    %511 = vmatpush.msra.mxu0 %v26
    %512 = vmatpush.msra.mxu0 %v24
    %513 = vmatpush.msra.mxu0 %v22
    %514 = vmatpush.msra.mxu0 %v20
    %515 = vmatpush.msra.mxu0 %v18
    %516 = vmatmul.f32.gmra.mxu0 %v498
    %v517 = vpop.f32.mrf.mxu0
    %v518 = vadd.f32 0.0, %v517
    %519 = vdwg.mxu0
    %520 = vmatpush.msra.mxu0 0.0
    %521 = vmatpush.msra.mxu0 0.0
    %522 = vmatpush.msra.mxu0 0.0
    %523 = vmatpush.msra.mxu0 0.0
    %524 = vmatpush.msra.mxu0 0.0
    %525 = vmatpush.msra.mxu0 0.0
    %526 = vmatpush.msra.mxu0 0.0
    %527 = vmatpush.msra.mxu0 0.0
    %528 = vmatpush.msra.mxu0 %v33
    %529 = vmatpush.msra.mxu0 %v31
    %530 = vmatpush.msra.mxu0 %v29
    %531 = vmatpush.msra.mxu0 %v27
    %532 = vmatpush.msra.mxu0 %v25
    %533 = vmatpush.msra.mxu0 %v23
    %534 = vmatpush.msra.mxu0 %v21
    %535 = vmatpush.msra.mxu0 %v19
    %536 = vmatmul.f32.gmra.mxu0 %v498
    %v537 = vpop.f32.mrf.mxu0
    %v538 = vadd.f32 0.0, %v537
    %539 = vdwg.mxu0
    %v542 = vrot.slane %v538, 6
    %v543 = vsel %vm82, %v518, %v542
    %v545 = vadd.f32 %v496, %v543
    %v546 = vxor.u32 %v545, 2147483648
    %v547 = vmul.f32 %v546, 1.442695
    %v548 = vpow.pop %v547
    %v549 = vadd.f32 %v548, 1.0
    %v550 = vrcp.pop %v549
    %v551 = vmul.f32 %v549, %v550
    %v552 = vsub.f32 1.0, %v551
    %v553 = vmul.f32 %v550, %v552
    %v554 = vadd.f32 %v550, %v553
    %vm555 = vweird.f32 %v549
    %vm556 = vweird.f32 %v550
    %vm557 = vmor %vm555, %vm556
    %v558 = vsel %vm557, %v550, %v554
    %v559 = vand.u32 2147483647, %v549
    %vm560 = vcmp.eq.f32.partialorder %v559, 8.507059e+37
    %v561 = vand.u32 %v549, 2147483648
    %v562 = vor.u32 1.1754944e-38, %v561
    %v563 = vsel %vm560, %v562, %v558
    %v564 = vmul.f32 1.0, %v563
    %566 = vrot.lane.b32.xlu0 %v545, 64
    %v567 = vpop.permute.xlu0 %566
    %v568 = vrot.slane %v567, 2
    %v570 = vtanh.pop %v568
    %v571 = vmul.f32 %v564, %v485
    %v572 = vmul.f32 %v564, %v570
    %574 = vrot.lane.b32.xlu0 %v572, 64
    %v575 = vpop.permute.xlu0 %574
    %v577 = vadd.f32 %v571, %v575
    %v578 = vtanh.pop %v577
    %v580 = vrot.slane %v564, 2
    %583 = vrot.lane.b32.xlu0 %v578, 64
    %v584 = vpop.permute.xlu0 %583
    %v586 = vmul.f32 %v580, %v584
    %s587 = scalar_lea.vmem %s0, 24
    %v588 = vld [vmem:[%s587] sm:$0xf]
    %v590 = vsel %vm35, %v586, 0
    %592 = vmatpush.msra.mxu0 0.0
    %593 = vmatpush.msra.mxu0 0.0
    %594 = vmatpush.msra.mxu0 0.0
    %595 = vmatpush.msra.mxu0 0.0
    %596 = vmatpush.msra.mxu0 0.0
    %597 = vmatpush.msra.mxu0 0.0
    %598 = vmatpush.msra.mxu0 0.0
    %599 = vmatpush.msra.mxu0 0.0
    %600 = vmatpush.msra.mxu0 %v32
    %601 = vmatpush.msra.mxu0 %v30
    %602 = vmatpush.msra.mxu0 %v28
    %603 = vmatpush.msra.mxu0 %v26
    %604 = vmatpush.msra.mxu0 %v24
    %605 = vmatpush.msra.mxu0 %v22
    %606 = vmatpush.msra.mxu0 %v20
    %607 = vmatpush.msra.mxu0 %v18
    %608 = vmatmul.f32.gmra.mxu0 %v590
    %v609 = vpop.f32.mrf.mxu0
    %v610 = vadd.f32 0.0, %v609
    %611 = vdwg.mxu0
    %612 = vmatpush.msra.mxu0 0.0
    %613 = vmatpush.msra.mxu0 0.0
    %614 = vmatpush.msra.mxu0 0.0
    %615 = vmatpush.msra.mxu0 0.0
    %616 = vmatpush.msra.mxu0 0.0
    %617 = vmatpush.msra.mxu0 0.0
    %618 = vmatpush.msra.mxu0 0.0
    %619 = vmatpush.msra.mxu0 0.0
    %620 = vmatpush.msra.mxu0 %v33
    %621 = vmatpush.msra.mxu0 %v31
    %622 = vmatpush.msra.mxu0 %v29
    %623 = vmatpush.msra.mxu0 %v27
    %624 = vmatpush.msra.mxu0 %v25
    %625 = vmatpush.msra.mxu0 %v23
    %626 = vmatpush.msra.mxu0 %v21
    %627 = vmatpush.msra.mxu0 %v19
    %628 = vmatmul.f32.gmra.mxu0 %v590
    %v629 = vpop.f32.mrf.mxu0
    %v630 = vadd.f32 0.0, %v629
    %631 = vdwg.mxu0
    %v634 = vrot.slane %v630, 6
    %v635 = vsel %vm82, %v610, %v634
    %v637 = vadd.f32 %v588, %v635
    %v638 = vxor.u32 %v637, 2147483648
    %v639 = vmul.f32 %v638, 1.442695
    %v640 = vpow.pop %v639
    %v641 = vadd.f32 %v640, 1.0
    %v642 = vrcp.pop %v641
    %v643 = vmul.f32 %v641, %v642
    %v644 = vsub.f32 1.0, %v643
    %v645 = vmul.f32 %v642, %v644
    %v646 = vadd.f32 %v642, %v645
    %vm647 = vweird.f32 %v641
    %vm648 = vweird.f32 %v642
    %vm649 = vmor %vm647, %vm648
    %v650 = vsel %vm649, %v642, %v646
    %v651 = vand.u32 2147483647, %v641
    %vm652 = vcmp.eq.f32.partialorder %v651, 8.507059e+37
    %v653 = vand.u32 %v641, 2147483648
    %v654 = vor.u32 1.1754944e-38, %v653
    %v655 = vsel %vm652, %v654, %v650
    %v656 = vmul.f32 1.0, %v655
    %658 = vrot.lane.b32.xlu0 %v637, 64
    %v659 = vpop.permute.xlu0 %658
    %v660 = vrot.slane %v659, 2
    %v662 = vtanh.pop %v660
    %v663 = vmul.f32 %v656, %v577
    %v664 = vmul.f32 %v656, %v662
    %666 = vrot.lane.b32.xlu0 %v664, 64
    %v667 = vpop.permute.xlu0 %666
    %v669 = vadd.f32 %v663, %v667
    %v670 = vtanh.pop %v669
    %v672 = vrot.slane %v656, 2
    %675 = vrot.lane.b32.xlu0 %v670, 64
    %v676 = vpop.permute.xlu0 %675
    %v678 = vmul.f32 %v672, %v676
    %s679 = scalar_lea.vmem %s0, 28
    %v680 = vld [vmem:[%s679] sm:$0xf]
    %v682 = vsel %vm35, %v678, 0
    %684 = vmatpush.msra.mxu0 0.0
    %685 = vmatpush.msra.mxu0 0.0
    %686 = vmatpush.msra.mxu0 0.0
    %687 = vmatpush.msra.mxu0 0.0
    %688 = vmatpush.msra.mxu0 0.0
    %689 = vmatpush.msra.mxu0 0.0
    %690 = vmatpush.msra.mxu0 0.0
    %691 = vmatpush.msra.mxu0 0.0
    %692 = vmatpush.msra.mxu0 %v32
    %693 = vmatpush.msra.mxu0 %v30
    %694 = vmatpush.msra.mxu0 %v28
    %695 = vmatpush.msra.mxu0 %v26
    %696 = vmatpush.msra.mxu0 %v24
    %697 = vmatpush.msra.mxu0 %v22
    %698 = vmatpush.msra.mxu0 %v20
    %699 = vmatpush.msra.mxu0 %v18
    %700 = vmatmul.f32.gmra.mxu0 %v682
    %v701 = vpop.f32.mrf.mxu0
    %v702 = vadd.f32 0.0, %v701
    %703 = vdwg.mxu0
    %704 = vmatpush.msra.mxu0 0.0
    %705 = vmatpush.msra.mxu0 0.0
    %706 = vmatpush.msra.mxu0 0.0
    %707 = vmatpush.msra.mxu0 0.0
    %708 = vmatpush.msra.mxu0 0.0
    %709 = vmatpush.msra.mxu0 0.0
    %710 = vmatpush.msra.mxu0 0.0
    %711 = vmatpush.msra.mxu0 0.0
    %712 = vmatpush.msra.mxu0 %v33
    %713 = vmatpush.msra.mxu0 %v31
    %714 = vmatpush.msra.mxu0 %v29
    %715 = vmatpush.msra.mxu0 %v27
    %716 = vmatpush.msra.mxu0 %v25
    %717 = vmatpush.msra.mxu0 %v23
    %718 = vmatpush.msra.mxu0 %v21
    %719 = vmatpush.msra.mxu0 %v19
    %720 = vmatmul.f32.gmra.mxu0 %v682
    %v721 = vpop.f32.mrf.mxu0
    %v722 = vadd.f32 0.0, %v721
    %723 = vdwg.mxu0
    %v726 = vrot.slane %v722, 6
    %v727 = vsel %vm82, %v702, %v726
    %v729 = vadd.f32 %v680, %v727
    %v730 = vxor.u32 %v729, 2147483648
    %v731 = vmul.f32 %v730, 1.442695
    %v732 = vpow.pop %v731
    %v733 = vadd.f32 %v732, 1.0
    %v734 = vrcp.pop %v733
    %v735 = vmul.f32 %v733, %v734
    %v736 = vsub.f32 1.0, %v735
    %v737 = vmul.f32 %v734, %v736
    %v738 = vadd.f32 %v734, %v737
    %vm739 = vweird.f32 %v733
    %vm740 = vweird.f32 %v734
    %vm741 = vmor %vm739, %vm740
    %v742 = vsel %vm741, %v734, %v738
    %v743 = vand.u32 2147483647, %v733
    %vm744 = vcmp.eq.f32.partialorder %v743, 8.507059e+37
    %v745 = vand.u32 %v733, 2147483648
    %v746 = vor.u32 1.1754944e-38, %v745
    %v747 = vsel %vm744, %v746, %v742
    %v748 = vmul.f32 1.0, %v747
    %750 = vrot.lane.b32.xlu0 %v729, 64
    %v751 = vpop.permute.xlu0 %750
    %v752 = vrot.slane %v751, 2
    %v754 = vtanh.pop %v752
    %v755 = vmul.f32 %v748, %v669
    %v756 = vmul.f32 %v748, %v754
    %758 = vrot.lane.b32.xlu0 %v756, 64
    %v759 = vpop.permute.xlu0 %758
    %v761 = vadd.f32 %v755, %v759
    %v762 = vtanh.pop %v761
    %v764 = vrot.slane %v748, 2
    %767 = vrot.lane.b32.xlu0 %v762, 64
    %v768 = vpop.permute.xlu0 %767
    %v770 = vmul.f32 %v764, %v768
    %s771 = scalar_lea.vmem %s0, 32
    %v772 = vld [vmem:[%s771] sm:$0xf]
    %v774 = vsel %vm35, %v770, 0
    %776 = vmatpush.msra.mxu0 0.0
    %777 = vmatpush.msra.mxu0 0.0
    %778 = vmatpush.msra.mxu0 0.0
    %779 = vmatpush.msra.mxu0 0.0
    %780 = vmatpush.msra.mxu0 0.0
    %781 = vmatpush.msra.mxu0 0.0
    %782 = vmatpush.msra.mxu0 0.0
    %783 = vmatpush.msra.mxu0 0.0
    %784 = vmatpush.msra.mxu0 %v32
    %785 = vmatpush.msra.mxu0 %v30
    %786 = vmatpush.msra.mxu0 %v28
    %787 = vmatpush.msra.mxu0 %v26
    %788 = vmatpush.msra.mxu0 %v24
    %789 = vmatpush.msra.mxu0 %v22
    %790 = vmatpush.msra.mxu0 %v20
    %791 = vmatpush.msra.mxu0 %v18
    %792 = vmatmul.f32.gmra.mxu0 %v774
    %v793 = vpop.f32.mrf.mxu0
    %v794 = vadd.f32 0.0, %v793
    %795 = vdwg.mxu0
    %796 = vmatpush.msra.mxu0 0.0
    %797 = vmatpush.msra.mxu0 0.0
    %798 = vmatpush.msra.mxu0 0.0
    %799 = vmatpush.msra.mxu0 0.0
    %800 = vmatpush.msra.mxu0 0.0
    %801 = vmatpush.msra.mxu0 0.0
    %802 = vmatpush.msra.mxu0 0.0
    %803 = vmatpush.msra.mxu0 0.0
    %804 = vmatpush.msra.mxu0 %v33
    %805 = vmatpush.msra.mxu0 %v31
    %806 = vmatpush.msra.mxu0 %v29
    %807 = vmatpush.msra.mxu0 %v27
    %808 = vmatpush.msra.mxu0 %v25
    %809 = vmatpush.msra.mxu0 %v23
    %810 = vmatpush.msra.mxu0 %v21
    %811 = vmatpush.msra.mxu0 %v19
    %812 = vmatmul.f32.gmra.mxu0 %v774
    %v813 = vpop.f32.mrf.mxu0
    %v814 = vadd.f32 0.0, %v813
    %815 = vdwg.mxu0
    %v818 = vrot.slane %v814, 6
    %v819 = vsel %vm82, %v794, %v818
    %v821 = vadd.f32 %v772, %v819
    %v822 = vxor.u32 %v821, 2147483648
    %v823 = vmul.f32 %v822, 1.442695
    %v824 = vpow.pop %v823
    %v825 = vadd.f32 %v824, 1.0
    %v826 = vrcp.pop %v825
    %v827 = vmul.f32 %v825, %v826
    %v828 = vsub.f32 1.0, %v827
    %v829 = vmul.f32 %v826, %v828
    %v830 = vadd.f32 %v826, %v829
    %vm831 = vweird.f32 %v825
    %vm832 = vweird.f32 %v826
    %vm833 = vmor %vm831, %vm832
    %v834 = vsel %vm833, %v826, %v830
    %v835 = vand.u32 2147483647, %v825
    %vm836 = vcmp.eq.f32.partialorder %v835, 8.507059e+37
    %v837 = vand.u32 %v825, 2147483648
    %v838 = vor.u32 1.1754944e-38, %v837
    %v839 = vsel %vm836, %v838, %v834
    %v840 = vmul.f32 1.0, %v839
    %842 = vrot.lane.b32.xlu0 %v821, 64
    %v843 = vpop.permute.xlu0 %842
    %v844 = vrot.slane %v843, 2
    %v846 = vtanh.pop %v844
    %v847 = vmul.f32 %v840, %v761
    %v848 = vmul.f32 %v840, %v846
    %850 = vrot.lane.b32.xlu0 %v848, 64
    %v851 = vpop.permute.xlu0 %850
    %v853 = vadd.f32 %v847, %v851
    %v854 = vtanh.pop %v853
    %v856 = vrot.slane %v840, 2
    %859 = vrot.lane.b32.xlu0 %v854, 64
    %v860 = vpop.permute.xlu0 %859
    %v862 = vmul.f32 %v856, %v860
    %s863 = scalar_lea.vmem %s0, 36
    %v864 = vld [vmem:[%s863] sm:$0xf]
    %v866 = vsel %vm35, %v862, 0
    %868 = vmatpush.msra.mxu0 0.0
    %869 = vmatpush.msra.mxu0 0.0
    %870 = vmatpush.msra.mxu0 0.0
    %871 = vmatpush.msra.mxu0 0.0
    %872 = vmatpush.msra.mxu0 0.0
    %873 = vmatpush.msra.mxu0 0.0
    %874 = vmatpush.msra.mxu0 0.0
    %875 = vmatpush.msra.mxu0 0.0
    %876 = vmatpush.msra.mxu0 %v32
    %877 = vmatpush.msra.mxu0 %v30
    %878 = vmatpush.msra.mxu0 %v28
    %879 = vmatpush.msra.mxu0 %v26
    %880 = vmatpush.msra.mxu0 %v24
    %881 = vmatpush.msra.mxu0 %v22
    %882 = vmatpush.msra.mxu0 %v20
    %883 = vmatpush.msra.mxu0 %v18
    %884 = vmatmul.f32.gmra.mxu0 %v866
    %v885 = vpop.f32.mrf.mxu0
    %v886 = vadd.f32 0.0, %v885
    %887 = vdwg.mxu0
    %888 = vmatpush.msra.mxu0 0.0
    %889 = vmatpush.msra.mxu0 0.0
    %890 = vmatpush.msra.mxu0 0.0
    %891 = vmatpush.msra.mxu0 0.0
    %892 = vmatpush.msra.mxu0 0.0
    %893 = vmatpush.msra.mxu0 0.0
    %894 = vmatpush.msra.mxu0 0.0
    %895 = vmatpush.msra.mxu0 0.0
    %896 = vmatpush.msra.mxu0 %v33
    %897 = vmatpush.msra.mxu0 %v31
    %898 = vmatpush.msra.mxu0 %v29
    %899 = vmatpush.msra.mxu0 %v27
    %900 = vmatpush.msra.mxu0 %v25
    %901 = vmatpush.msra.mxu0 %v23
    %902 = vmatpush.msra.mxu0 %v21
    %903 = vmatpush.msra.mxu0 %v19
    %904 = vmatmul.f32.gmra.mxu0 %v866
    %v905 = vpop.f32.mrf.mxu0
    %v906 = vadd.f32 0.0, %v905
    %907 = vdwg.mxu0
    %v910 = vrot.slane %v906, 6
    %v911 = vsel %vm82, %v886, %v910
    %v913 = vadd.f32 %v864, %v911
    %v914 = vxor.u32 %v913, 2147483648
    %v915 = vmul.f32 %v914, 1.442695
    %v916 = vpow.pop %v915
    %v917 = vadd.f32 %v916, 1.0
    %v918 = vrcp.pop %v917
    %v919 = vmul.f32 %v917, %v918
    %v920 = vsub.f32 1.0, %v919
    %v921 = vmul.f32 %v918, %v920
    %v922 = vadd.f32 %v918, %v921
    %vm923 = vweird.f32 %v917
    %vm924 = vweird.f32 %v918
    %vm925 = vmor %vm923, %vm924
    %v926 = vsel %vm925, %v918, %v922
    %v927 = vand.u32 2147483647, %v917
    %vm928 = vcmp.eq.f32.partialorder %v927, 8.507059e+37
    %v929 = vand.u32 %v917, 2147483648
    %v930 = vor.u32 1.1754944e-38, %v929
    %v931 = vsel %vm928, %v930, %v926
    %v932 = vmul.f32 1.0, %v931
    %934 = vrot.lane.b32.xlu0 %v913, 64
    %v935 = vpop.permute.xlu0 %934
    %v936 = vrot.slane %v935, 2
    %v938 = vtanh.pop %v936
    %v939 = vmul.f32 %v932, %v853
    %v940 = vmul.f32 %v932, %v938
    %942 = vrot.lane.b32.xlu0 %v940, 64
    %v943 = vpop.permute.xlu0 %942
    %v945 = vadd.f32 %v939, %v943
    %v946 = vtanh.pop %v945
    %v948 = vrot.slane %v932, 2
    %951 = vrot.lane.b32.xlu0 %v946, 64
    %v952 = vpop.permute.xlu0 %951
    %v954 = vmul.f32 %v948, %v952
    %s955 = scalar_lea.vmem %s0, 40
    %v956 = vld [vmem:[%s955] sm:$0xf]
    %v958 = vsel %vm35, %v954, 0
    %960 = vmatpush.msra.mxu0 0.0
    %961 = vmatpush.msra.mxu0 0.0
    %962 = vmatpush.msra.mxu0 0.0
    %963 = vmatpush.msra.mxu0 0.0
    %964 = vmatpush.msra.mxu0 0.0
    %965 = vmatpush.msra.mxu0 0.0
    %966 = vmatpush.msra.mxu0 0.0
    %967 = vmatpush.msra.mxu0 0.0
    %968 = vmatpush.msra.mxu0 %v32
    %969 = vmatpush.msra.mxu0 %v30
    %970 = vmatpush.msra.mxu0 %v28
    %971 = vmatpush.msra.mxu0 %v26
    %972 = vmatpush.msra.mxu0 %v24
    %973 = vmatpush.msra.mxu0 %v22
    %974 = vmatpush.msra.mxu0 %v20
    %975 = vmatpush.msra.mxu0 %v18
    %976 = vmatmul.f32.gmra.mxu0 %v958
    %v977 = vpop.f32.mrf.mxu0
    %v978 = vadd.f32 0.0, %v977
    %979 = vdwg.mxu0
    %980 = vmatpush.msra.mxu0 0.0
    %981 = vmatpush.msra.mxu0 0.0
    %982 = vmatpush.msra.mxu0 0.0
    %983 = vmatpush.msra.mxu0 0.0
    %984 = vmatpush.msra.mxu0 0.0
    %985 = vmatpush.msra.mxu0 0.0
    %986 = vmatpush.msra.mxu0 0.0
    %987 = vmatpush.msra.mxu0 0.0
    %988 = vmatpush.msra.mxu0 %v33
    %989 = vmatpush.msra.mxu0 %v31
    %990 = vmatpush.msra.mxu0 %v29
    %991 = vmatpush.msra.mxu0 %v27
    %992 = vmatpush.msra.mxu0 %v25
    %993 = vmatpush.msra.mxu0 %v23
    %994 = vmatpush.msra.mxu0 %v21
    %995 = vmatpush.msra.mxu0 %v19
    %996 = vmatmul.f32.gmra.mxu0 %v958
    %v997 = vpop.f32.mrf.mxu0
    %v998 = vadd.f32 0.0, %v997
    %999 = vdwg.mxu0
    %v1002 = vrot.slane %v998, 6
    %v1003 = vsel %vm82, %v978, %v1002
    %v1005 = vadd.f32 %v956, %v1003
    %v1006 = vxor.u32 %v1005, 2147483648
    %v1007 = vmul.f32 %v1006, 1.442695
    %v1008 = vpow.pop %v1007
    %v1009 = vadd.f32 %v1008, 1.0
    %v1010 = vrcp.pop %v1009
    %v1011 = vmul.f32 %v1009, %v1010
    %v1012 = vsub.f32 1.0, %v1011
    %v1013 = vmul.f32 %v1010, %v1012
    %v1014 = vadd.f32 %v1010, %v1013
    %vm1015 = vweird.f32 %v1009
    %vm1016 = vweird.f32 %v1010
    %vm1017 = vmor %vm1015, %vm1016
    %v1018 = vsel %vm1017, %v1010, %v1014
    %v1019 = vand.u32 2147483647, %v1009
    %vm1020 = vcmp.eq.f32.partialorder %v1019, 8.507059e+37
    %v1021 = vand.u32 %v1009, 2147483648
    %v1022 = vor.u32 1.1754944e-38, %v1021
    %v1023 = vsel %vm1020, %v1022, %v1018
    %v1024 = vmul.f32 1.0, %v1023
    %1026 = vrot.lane.b32.xlu0 %v1005, 64
    %v1027 = vpop.permute.xlu0 %1026
    %v1028 = vrot.slane %v1027, 2
    %v1030 = vtanh.pop %v1028
    %v1031 = vmul.f32 %v1024, %v945
    %v1032 = vmul.f32 %v1024, %v1030
    %1034 = vrot.lane.b32.xlu0 %v1032, 64
    %v1035 = vpop.permute.xlu0 %1034
    %v1037 = vadd.f32 %v1031, %v1035
    %v1038 = vtanh.pop %v1037
    %v1040 = vrot.slane %v1024, 2
    %1043 = vrot.lane.b32.xlu0 %v1038, 64
    %v1044 = vpop.permute.xlu0 %1043
    %v1046 = vmul.f32 %v1040, %v1044
    %s1047 = scalar_lea.vmem %s0, 44
    %v1048 = vld [vmem:[%s1047] sm:$0xf]
    %v1050 = vsel %vm35, %v1046, 0
    %1052 = vmatpush.msra.mxu0 0.0
    %1053 = vmatpush.msra.mxu0 0.0
    %1054 = vmatpush.msra.mxu0 0.0
    %1055 = vmatpush.msra.mxu0 0.0
    %1056 = vmatpush.msra.mxu0 0.0
    %1057 = vmatpush.msra.mxu0 0.0
    %1058 = vmatpush.msra.mxu0 0.0
    %1059 = vmatpush.msra.mxu0 0.0
    %1060 = vmatpush.msra.mxu0 %v32
    %1061 = vmatpush.msra.mxu0 %v30
    %1062 = vmatpush.msra.mxu0 %v28
    %1063 = vmatpush.msra.mxu0 %v26
    %1064 = vmatpush.msra.mxu0 %v24
    %1065 = vmatpush.msra.mxu0 %v22
    %1066 = vmatpush.msra.mxu0 %v20
    %1067 = vmatpush.msra.mxu0 %v18
    %1068 = vmatmul.f32.gmra.mxu0 %v1050
    %v1069 = vpop.f32.mrf.mxu0
    %v1070 = vadd.f32 0.0, %v1069
    %1071 = vdwg.mxu0
    %1072 = vmatpush.msra.mxu0 0.0
    %1073 = vmatpush.msra.mxu0 0.0
    %1074 = vmatpush.msra.mxu0 0.0
    %1075 = vmatpush.msra.mxu0 0.0
    %1076 = vmatpush.msra.mxu0 0.0
    %1077 = vmatpush.msra.mxu0 0.0
    %1078 = vmatpush.msra.mxu0 0.0
    %1079 = vmatpush.msra.mxu0 0.0
    %1080 = vmatpush.msra.mxu0 %v33
    %1081 = vmatpush.msra.mxu0 %v31
    %1082 = vmatpush.msra.mxu0 %v29
    %1083 = vmatpush.msra.mxu0 %v27
    %1084 = vmatpush.msra.mxu0 %v25
    %1085 = vmatpush.msra.mxu0 %v23
    %1086 = vmatpush.msra.mxu0 %v21
    %1087 = vmatpush.msra.mxu0 %v19
    %1088 = vmatmul.f32.gmra.mxu0 %v1050
    %v1089 = vpop.f32.mrf.mxu0
    %v1090 = vadd.f32 0.0, %v1089
    %1091 = vdwg.mxu0
    %v1094 = vrot.slane %v1090, 6
    %v1095 = vsel %vm82, %v1070, %v1094
    %v1097 = vadd.f32 %v1048, %v1095
    %v1098 = vxor.u32 %v1097, 2147483648
    %v1099 = vmul.f32 %v1098, 1.442695
    %v1100 = vpow.pop %v1099
    %v1101 = vadd.f32 %v1100, 1.0
    %v1102 = vrcp.pop %v1101
    %v1103 = vmul.f32 %v1101, %v1102
    %v1104 = vsub.f32 1.0, %v1103
    %v1105 = vmul.f32 %v1102, %v1104
    %v1106 = vadd.f32 %v1102, %v1105
    %vm1107 = vweird.f32 %v1101
    %vm1108 = vweird.f32 %v1102
    %vm1109 = vmor %vm1107, %vm1108
    %v1110 = vsel %vm1109, %v1102, %v1106
    %v1111 = vand.u32 2147483647, %v1101
    %vm1112 = vcmp.eq.f32.partialorder %v1111, 8.507059e+37
    %v1113 = vand.u32 %v1101, 2147483648
    %v1114 = vor.u32 1.1754944e-38, %v1113
    %v1115 = vsel %vm1112, %v1114, %v1110
    %v1116 = vmul.f32 1.0, %v1115
    %1118 = vrot.lane.b32.xlu0 %v1097, 64
    %v1119 = vpop.permute.xlu0 %1118
    %v1120 = vrot.slane %v1119, 2
    %v1122 = vtanh.pop %v1120
    %v1123 = vmul.f32 %v1116, %v1037
    %v1124 = vmul.f32 %v1116, %v1122
    %1126 = vrot.lane.b32.xlu0 %v1124, 64
    %v1127 = vpop.permute.xlu0 %1126
    %v1129 = vadd.f32 %v1123, %v1127
    %v1130 = vtanh.pop %v1129
    %v1132 = vrot.slane %v1116, 2
    %1135 = vrot.lane.b32.xlu0 %v1130, 64
    %v1136 = vpop.permute.xlu0 %1135
    %v1138 = vmul.f32 %v1132, %v1136
    %v1139 = vld [vmem:[%s2] sm:$0xff]
    %v1140 = vld [vmem:[%s2 + $0x8] sm:$0xff]
    %v1141 = vld [vmem:[%s2 + $0x10] sm:$0xff]
    %v1142 = vld [vmem:[%s2 + $0x18] sm:$0xff]
    %v1143 = vld [vmem:[%s2 + $0x20] sm:$0xff]
    %v1144 = vld [vmem:[%s2 + $0x28] sm:$0xff]
    %v1145 = vld [vmem:[%s2 + $0x30] sm:$0xff]
    %v1146 = vld [vmem:[%s2 + $0x38] sm:$0xff]
    %v1147 = vld [vmem:[%s3] sm:$0x1]
    %v1149 = vperm.slane %v1147, 0
    %v1152 = vsel %vm35, %v1138, 0
    %1154 = vmatpush.msra.mxu0 0.0
    %1155 = vmatpush.msra.mxu0 0.0
    %1156 = vmatpush.msra.mxu0 0.0
    %1157 = vmatpush.msra.mxu0 0.0
    %1158 = vmatpush.msra.mxu0 0.0
    %1159 = vmatpush.msra.mxu0 0.0
    %1160 = vmatpush.msra.mxu0 0.0
    %1161 = vmatpush.msra.mxu0 0.0
    %1162 = vmatpush.msra.mxu0 %v1146
    %1163 = vmatpush.msra.mxu0 %v1145
    %1164 = vmatpush.msra.mxu0 %v1144
    %1165 = vmatpush.msra.mxu0 %v1143
    %1166 = vmatpush.msra.mxu0 %v1142
    %1167 = vmatpush.msra.mxu0 %v1141
    %1168 = vmatpush.msra.mxu0 %v1140
    %1169 = vmatpush.msra.mxu0 %v1139
    %1170 = vmatmul.f32.gmra.mxu0 %v1152
    %v1171 = vpop.f32.mrf.mxu0
    %v1172 = vadd.f32 %v1149, %v1171
    %1173 = vdwg.mxu0
    %vm1174 = vcmask 17408
    %1175 = vst.msk [vmem:[#allocation2] sm:$0x3] %vm1174, %v1172
    // Predicated region
    $region18: #{deeplob_depth_forward.7} parent=1 // pred_check
      _
    $region19: #{deeplob_depth_forward.7} parent=1 // pred_check_branch
      %1177 = sbr.rel (0) target = $region21
    $region20: #{deeplob_depth_forward.7} parent=1 // pred_region
      %1179 = vsyncadd [#allocation3], 0
      %s1181 = sshll.u32 [#allocation2], 4
      %s1182 = int_to_ptr.vmem [resolvable:$true] %s1181
      %s1183 = sshll.u32 %s4, 4
      %s1184 = int_to_ptr.hbm [resolvable:$true] %s1183
      %1186 = dma.vmem_to_hbm [thread:$0]  %s1182, 32, %s1184, [#allocation3]
    $region21: #{deeplob_depth_forward.7} parent=1 // pred_fallthru
      _
    // Predicated region
    $region22: #{deeplob_depth_forward.7} parent=1 // pred_check
      _
    $region23: #{deeplob_depth_forward.7} parent=1 // pred_check_branch
      %1188 = sbr.rel (0) target = $region25
    $region24: #{deeplob_depth_forward.7} parent=1 // pred_region
      %1190 = dma.done [#allocation3], 32
    $region25: #{deeplob_depth_forward.7} parent=1 // pred_fallthru
      _
    %1191 = vsyncpa [#allocation3], 1

</llo_original>
